<compile_context>
chip_gen: v7x
topology: tpu7x:2x2x1
jax: 0.10.0
libtpu: 0.0.40
codegen_flags: <defaults>
</compile_context>

<pallas_src>
import math
import functools

import jax
import jax.numpy as jnp
from jax.experimental import pallas as pl
from jax.experimental.pallas import tpu as pltpu

NEG_INF = -1e9  # finite stand-in for float('-inf') additive masks (exp underflows to 0)


# ----------------------------- in-kernel helpers -----------------------------

def _bf16(x):
    return x.astype(jnp.bfloat16)


def _ln(x, g, b, eps=1e-5):
    mean = jnp.mean(x, axis=-1, keepdims=True)
    var = jnp.mean((x - mean) ** 2, axis=-1, keepdims=True)
    return (x - mean) * jax.lax.rsqrt(var + eps) * g + b


def _softmax_rows(s):
    # NOTE: a fully-masked row (all keys padded) gives a ~0 denominator -> Inf,
    # matching the reference's NaN behaviour; guarded batches are the caller's job.
    s = s - jnp.max(s, axis=-1, keepdims=True)
    p = jnp.exp(s)
    return p * pl.reciprocal(jnp.sum(p, axis=-1, keepdims=True), approx=True)


def _mha(q, k, v, wo, bias, nhead):
    """Whole-batch multi-head attention on 2-D row-flattened activations.

    q: (Mq, E), k/v: (Mk, E), wo: (E, E), bias: (Mq, Mk) additive
    (bias already contains the block-diagonal batch mask, key-padding and causal
    terms, so a single score matmul per head covers the whole batch).
    Per-head contexts are accumulated at their final lane offsets (V lane-masked
    per head), so ONE K=E out-projection matmul serves all heads.
    Returns (Mq, E) f32 (before the output-projection bias).
    """
    mq, e = q.shape
    hd = e // nhead
    lane = jax.lax.broadcasted_iota(jnp.int32, (1, e), 1)
    ctx = jnp.zeros((mq, e), jnp.float32)
    for h in range(nhead):
        sl = slice(h * hd, (h + 1) * hd)
        # f32 score matmul: K = head_dim (tiny); proven transposed-contraction form.
        s = jnp.einsum('qd,kd->qk', q[:, sl], k[:, sl],
                       preferred_element_type=jnp.float32) + bias
        p = _softmax_rows(s)
        # V masked to head h's lanes -> this head's context lands at its final
        # lane offsets; summing over heads IS the concatenated context.
        v_h = jnp.where((lane >= h * hd) & (lane < (h + 1) * hd), v, 0.0)
        ctx = ctx + jnp.dot(_bf16(p), _bf16(v_h), preferred_element_type=jnp.float32)
    return jnp.dot(_bf16(ctx), _bf16(wo), preferred_element_type=jnp.float32)


# ----------------------------- Pallas kernels -----------------------------

def _encoder_stack_kernel(src_ref, pe_ref, bias_ref,
                          wqkv_ref, bqkv_ref, wo_ref, bo_ref,
                          g1_ref, b1_ref, w1_ref, bf1_ref, w2_ref, bf2_ref,
                          g2_ref, b2_ref,
                          gf_ref, bfin_ref,
                          o_ref, x_scr, *, nhead, scale):
    l = pl.program_id(0)
    nl = pl.num_programs(0)

    @pl.when(l == 0)
    def _():
        # fused positional encoding: x = src * sqrt(d_model) + pe
        x_scr[...] = src_ref[...] * scale + pe_ref[...]

    x = x_scr[...]                                     # (N*S, E) f32 carry
    e = x.shape[-1]

    # fused QKV projection (Q weights pre-scaled by 1/sqrt(head_dim))
    qkv = jnp.dot(_bf16(x), _bf16(wqkv_ref[0]),
                  preferred_element_type=jnp.float32) + bqkv_ref[0]      # (N*S, 3E)
    attn = _mha(qkv[:, :e], qkv[:, e:2 * e], qkv[:, 2 * e:],
                wo_ref[0], bias_ref[...], nhead) + bo_ref[0]
    x1 = _ln(attn + x, g1_ref[0], b1_ref[0])

    ff = jnp.maximum(jnp.dot(_bf16(x1), _bf16(w1_ref[0]),
                             preferred_element_type=jnp.float32) + bf1_ref[0], 0.0)
    ff = jnp.dot(_bf16(ff), _bf16(w2_ref[0]),
                 preferred_element_type=jnp.float32) + bf2_ref[0]
    x_new = _ln(ff + x1, g2_ref[0], b2_ref[0])

    x_scr[...] = x_new

    @pl.when(l == nl - 1)
    def _():
        # fused encoder-stack final LayerNorm
        o_ref[...] = _ln(x_new, gf_ref[...], bfin_ref[...])


def _decoder_stack_kernel(tgt_ref, pe_ref, mem_ref, sbias_ref, cbias_ref,
                          swqkv_ref, sbqkv_ref, swo_ref, sbo_ref, g1_ref, b1_ref,
                          cwq_ref, cbq_ref, cwkv_ref, cbkv_ref, cwo_ref, cbo_ref,
                          g2_ref, b2_ref,
                          w1_ref, bf1_ref, w2_ref, bf2_ref, g3_ref, b3_ref,
                          gf_ref, bfin_ref, fcw_ref, fcb_ref,
                          o_ref, x_scr, *, nhead, scale):
    l = pl.program_id(0)
    nl = pl.num_programs(0)

    @pl.when(l == 0)
    def _():
        # fused positional encoding on the target embeddings
        x_scr[...] = tgt_ref[...] * scale + pe_ref[...]

    x = x_scr[...]                                     # (N*T, E) f32 carry
    e = x.shape[-1]

    # masked self-attention (causal + tgt padding + batch-block bias precomputed)
    qkv = jnp.dot(_bf16(x), _bf16(swqkv_ref[0]),
                  preferred_element_type=jnp.float32) + sbqkv_ref[0]     # (N*T, 3E)
    attn = _mha(qkv[:, :e], qkv[:, e:2 * e], qkv[:, 2 * e:],
                swo_ref[0], sbias_ref[...], nhead) + sbo_ref[0]
    x1 = _ln(attn + x, g1_ref[0], b1_ref[0])

    # cross-attention against encoder memory (fused KV projection)
    qc = jnp.dot(_bf16(x1), _bf16(cwq_ref[0]),
                 preferred_element_type=jnp.float32) + cbq_ref[0]        # (N*T, E)
    kv = jnp.dot(_bf16(mem_ref[...]), _bf16(cwkv_ref[0]),
                 preferred_element_type=jnp.float32) + cbkv_ref[0]       # (N*S, 2E)
    attn2 = _mha(qc, kv[:, :e], kv[:, e:],
                 cwo_ref[0], cbias_ref[...], nhead) + cbo_ref[0]
    x2 = _ln(attn2 + x1, g2_ref[0], b2_ref[0])

    # feed-forward
    ff = jnp.maximum(jnp.dot(_bf16(x2), _bf16(w1_ref[0]),
                             preferred_element_type=jnp.float32) + bf1_ref[0], 0.0)
    ff = jnp.dot(_bf16(ff), _bf16(w2_ref[0]),
                 preferred_element_type=jnp.float32) + bf2_ref[0]
    x_new = _ln(ff + x2, g3_ref[0], b3_ref[0])

    x_scr[...] = x_new

    @pl.when(l == nl - 1)
    def _():
        # fused decoder-stack final LayerNorm + fc head
        y = _ln(x_new, gf_ref[...], bfin_ref[...])
        # TODO(synk): vocab=64 (<128 lanes) means masked stores on the logits; a
        # lane-dense (N, T*vocab) repack would need an in-kernel cross-lane reshape
        # that is not worth the lowering risk for a 4 KiB, launch-bound output.
        o_ref[...] = jnp.dot(_bf16(y), _bf16(fcw_ref[...]),
                             preferred_element_type=jnp.float32) + fcb_ref[...]


# ----------------------------- pallas_call wrappers -----------------------------

def _full_spec(shape):
    nd = len(shape)
    return pl.BlockSpec(tuple(shape), lambda l, _nd=nd: (0,) * _nd)


def _layer_spec(shape):
    nd = len(shape)
    return pl.BlockSpec((1,) + tuple(shape[1:]),
                        lambda l, _nd=nd: (l,) + (0,) * (_nd - 1))


_CPARAMS = pltpu.CompilerParams(dimension_semantics=("arbitrary",))

_ENC_STACKED = ('wqkv', 'bqkv', 'wo', 'bo', 'g1', 'b1',
                'w1', 'bf1', 'w2', 'bf2', 'g2', 'b2')

_DEC_STACKED = ('swqkv', 'sbqkv', 'swo', 'sbo', 'g1', 'b1',
                'cwq', 'cbq', 'cwkv', 'cbkv', 'cwo', 'cbo', 'g2', 'b2',
                'w1', 'bf1', 'w2', 'bf2', 'g3', 'b3')


def encoder_stack(p, src2d, pe2d, bias, *, nhead, d_model):
    m, e = src2d.shape
    n_layers = p['wqkv'].shape[0]
    full_in = (src2d, pe2d, bias)
    stacked_in = tuple(p[k] for k in _ENC_STACKED)
    tail_in = (p['norm_g'], p['norm_b'])
    in_specs = ([_full_spec(a.shape) for a in full_in] +
                [_layer_spec(a.shape) for a in stacked_in] +
                [_full_spec(a.shape) for a in tail_in])
    return pl.pallas_call(
        functools.partial(_encoder_stack_kernel, nhead=nhead,
                          scale=math.sqrt(d_model)),
        grid=(n_layers,),
        in_specs=in_specs,
        out_specs=_full_spec((m, e)),
        out_shape=jax.ShapeDtypeStruct((m, e), jnp.float32),
        scratch_shapes=[pltpu.VMEM((m, e), jnp.float32)],
        compiler_params=_CPARAMS,
    )(*(full_in + stacked_in + tail_in))


def decoder_stack(p, tgt2d, pe2d, memory2d, self_bias, cross_bias, fc_w, fc_b,
                  *, nhead, d_model):
    mt, e = tgt2d.shape
    v = fc_w.shape[1]
    n_layers = p['swqkv'].shape[0]
    full_in = (tgt2d, pe2d, memory2d, self_bias, cross_bias)
    stacked_in = tuple(p[k] for k in _DEC_STACKED)
    tail_in = (p['norm_g'], p['norm_b'], fc_w, fc_b)
    in_specs = ([_full_spec(a.shape) for a in full_in] +
                [_layer_spec(a.shape) for a in stacked_in] +
                [_full_spec(a.shape) for a in tail_in])
    return pl.pallas_call(
        functools.partial(_decoder_stack_kernel, nhead=nhead,
                          scale=math.sqrt(d_model)),
        grid=(n_layers,),
        in_specs=in_specs,
        out_specs=_full_spec((mt, v)),
        out_shape=jax.ShapeDtypeStruct((mt, v), jnp.float32),
        scratch_shapes=[pltpu.VMEM((mt, e), jnp.float32)],
        compiler_params=_CPARAMS,
    )(*(full_in + stacked_in + tail_in))


# ----------------------------- model pieces -----------------------------

def make_pe(max_len, d_model):
    position = jnp.arange(max_len, dtype=jnp.float32)[:, None]
    div_term = jnp.exp(jnp.arange(0, d_model, 2, dtype=jnp.float32)
                       * (-math.log(10000.0) / d_model))
    pe = jnp.zeros((max_len, d_model), jnp.float32)
    pe = pe.at[:, 0::2].set(jnp.sin(position * div_term))
    pe = pe.at[:, 1::2].set(jnp.cos(position * div_term))
    return pe                                            # (max_len, d_model)


def language_transformer_forward(params, src, tgt, src_key_padding_mask=None,
                                 tgt_key_padding_mask=None,
                                 memory_key_padding_mask=None, *, d_model, nhead):
    """src: (S, N, E) float; tgt: (T, N) int -> logits (N, T, vocab)."""
    S, N, E = src.shape
    T = tgt.shape[0]
    if src_key_padding_mask is None:
        src_key_padding_mask = jnp.zeros((N, S), dtype=bool)
    if tgt_key_padding_mask is None:
        tgt_key_padding_mask = jnp.zeros((N, T), dtype=bool)
    if memory_key_padding_mask is None:
        memory_key_padding_mask = jnp.zeros((N, S), dtype=bool)

    pe = params['pe']

    # Batch-first, row-flattened activations (XLA glue only -> kernels stay
    # 2-D and reshape-free; the module's final transpose(0,1) is therefore free).
    src2d = jnp.transpose(src, (1, 0, 2)).reshape(N * S, E)
    # TODO(synk): embedding gather stays as XLA glue (data-dependent gather).
    tgt2d = jnp.take(params['embed'], tgt.T, axis=0).reshape(N * T, E)
    pe_s = jnp.tile(pe[:S], (N, 1))                      # (N*S, E)
    pe_t = jnp.tile(pe[:T], (N, 1))                      # (N*T, E)

    # Tiny additive attention biases built once in XLA: block-diagonal over the
    # batch (so whole-batch single-matmul attention never mixes batch elements),
    # plus key-padding and causal (no-peek) terms.
    qb_s = jnp.repeat(jnp.arange(N), S)
    qb_t = jnp.repeat(jnp.arange(N), T)

    def _block_bias(qb, kb):
        return jnp.where(qb[:, None] == kb[None, :], 0.0, NEG_INF)

    src_kp = jnp.where(src_key_padding_mask.reshape(N * S), NEG_INF, 0.0)
    mem_kp = jnp.where(memory_key_padding_mask.reshape(N * S), NEG_INF, 0.0)
    pos_t = jnp.tile(jnp.arange(T), N)
    causal = jnp.where(pos_t[None, :] <= pos_t[:, None], 0.0, NEG_INF)
    # TODO(synk): reproduces the reference quirk `tgt_key_padding_mask.float()`
    # (additive +1.0 for padded target positions, not -inf).
    tgt_kp = tgt_key_padding_mask.reshape(N * T).astype(jnp.float32)

    enc_bias = (_block_bias(qb_s, qb_s) + src_kp[None, :]).astype(jnp.float32)
    dec_self_bias = (_block_bias(qb_t, qb_t) + causal + tgt_kp[None, :]).astype(jnp.float32)
    dec_cross_bias = (_block_bias(qb_t, qb_s) + mem_kp[None, :]).astype(jnp.float32)

    # One pallas_call for the whole encoder stack (+ pos-enc + final norm) ...
    memory2d = encoder_stack(params['enc'], src2d, pe_s, enc_bias,
                             nhead=nhead, d_model=d_model)
    # ... and one for the whole decoder stack (+ pos-enc + final norm + fc head).
    logits2d = decoder_stack(params['dec'], tgt2d, pe_t, memory2d,
                             dec_self_bias, dec_cross_bias,
                             params['fc_w'], params['fc_b'],
                             nhead=nhead, d_model=d_model)
    return logits2d.reshape(N, T, -1)                    # (N, T, vocab)


# ----------------------------- parameter init -----------------------------

def init_params(key, vocab_size, d_model, nhead, n_enc, n_dec, d_ff, max_len):
    keys = iter(jax.random.split(key, 512))
    qscale = 1.0 / math.sqrt(d_model // nhead)

    def w(shape, scale=0.02):
        return jax.random.normal(next(keys), shape, jnp.float32) * scale

    def z(shape):
        return jnp.zeros(shape, jnp.float32)

    def ones(shape):
        return jnp.ones(shape, jnp.float32)

    def stack(fn, n):
        return jnp.stack([fn() for _ in range(n)], axis=0)

    def wqkv():
        # 1/sqrt(head_dim) folded into the Q weight slice (in_proj bias is zero
        # here; a real checkpoint's Q-bias slice must be scaled identically).
        wq, wk, wv = w((d_model, d_model)), w((d_model, d_model)), w((d_model, d_model))
        return jnp.concatenate([wq * qscale, wk, wv], axis=1)             # (E, 3E)

    def wkv():
        return jnp.concatenate([w((d_model, d_model)), w((d_model, d_model))], axis=1)

    enc = dict(
        wqkv=stack(wqkv, n_enc), bqkv=z((n_enc, 1, 3 * d_model)),
        wo=stack(lambda: w((d_model, d_model)), n_enc), bo=z((n_enc, 1, d_model)),
        g1=ones((n_enc, 1, d_model)), b1=z((n_enc, 1, d_model)),
        w1=stack(lambda: w((d_model, d_ff)), n_enc), bf1=z((n_enc, 1, d_ff)),
        w2=stack(lambda: w((d_ff, d_model)), n_enc), bf2=z((n_enc, 1, d_model)),
        g2=ones((n_enc, 1, d_model)), b2=z((n_enc, 1, d_model)),
        norm_g=ones((1, d_model)), norm_b=z((1, d_model)))

    dec = dict(
        swqkv=stack(wqkv, n_dec), sbqkv=z((n_dec, 1, 3 * d_model)),
        swo=stack(lambda: w((d_model, d_model)), n_dec), sbo=z((n_dec, 1, d_model)),
        g1=ones((n_dec, 1, d_model)), b1=z((n_dec, 1, d_model)),
        cwq=stack(lambda: w((d_model, d_model)) * qscale, n_dec), cbq=z((n_dec, 1, d_model)),
        cwkv=stack(wkv, n_dec), cbkv=z((n_dec, 1, 2 * d_model)),
        cwo=stack(lambda: w((d_model, d_model)), n_dec), cbo=z((n_dec, 1, d_model)),
        g2=ones((n_dec, 1, d_model)), b2=z((n_dec, 1, d_model)),
        w1=stack(lambda: w((d_model, d_ff)), n_dec), bf1=z((n_dec, 1, d_ff)),
        w2=stack(lambda: w((d_ff, d_model)), n_dec), bf2=z((n_dec, 1, d_model)),
        g3=ones((n_dec, 1, d_model)), b3=z((n_dec, 1, d_model)),
        norm_g=ones((1, d_model)), norm_b=z((1, d_model)))

    return dict(embed=w((vocab_size, d_model), 1.0),
                pe=make_pe(max_len, d_model),
                enc=enc, dec=dec,
                fc_w=w((d_model, vocab_size)),
                fc_b=z((1, vocab_size)))


# ----------------------------- main -----------------------------

if __name__ == "__main__":
    vocab_size, d_model, nhead = 64, 32, 4
    num_encoder_layers, num_decoder_layers = 2, 2
    dim_feedforward, max_seq_length = 64, 100
    S, T, N = 10, 8, 2  # src len, tgt len, batch

    key = jax.random.PRNGKey(0)
    kp, ks, kt = jax.random.split(key, 3)
    params = init_params(kp, vocab_size, d_model, nhead,
                         num_encoder_layers, num_decoder_layers,
                         dim_feedforward, max_seq_length)

    src = jax.random.normal(ks, (S, N, d_model), jnp.float32)        # (W, N, C)
    tgt = jax.random.randint(kt, (T, N), 0, vocab_size)              # (T, N)
    src_key_padding_mask = jnp.zeros((N, S), dtype=bool)             # no padding
    tgt_key_padding_mask = jnp.zeros((N, T), dtype=bool)
    memory_key_padding_mask = jnp.zeros((N, S), dtype=bool)

    fwd = jax.jit(functools.partial(language_transformer_forward,
                                    d_model=d_model, nhead=nhead))
    out = fwd(params, src, tgt, src_key_padding_mask,
              tgt_key_padding_mask, memory_key_padding_mask)
    jax.block_until_ready(out)
    assert out.shape == (N, T, vocab_size), out.shape
    assert bool(jnp.all(jnp.isfinite(out)))
    print("KERNEL_OK")
</pallas_src>

<mosaic_0001>
module attributes {stable_mosaic.version = 11 : i64} {
  func.func @_encoder_stack_kernel(%arg0: i32, %arg1: memref<20x32xf32, #tpu.memory_space<vmem>>, %arg2: memref<20x32xf32, #tpu.memory_space<vmem>>, %arg3: memref<20x20xf32, #tpu.memory_space<vmem>>, %arg4: memref<1x32x96xf32, #tpu.memory_space<vmem>>, %arg5: memref<1x1x96xf32, #tpu.memory_space<vmem>>, %arg6: memref<1x32x32xf32, #tpu.memory_space<vmem>>, %arg7: memref<1x1x32xf32, #tpu.memory_space<vmem>>, %arg8: memref<1x1x32xf32, #tpu.memory_space<vmem>>, %arg9: memref<1x1x32xf32, #tpu.memory_space<vmem>>, %arg10: memref<1x32x64xf32, #tpu.memory_space<vmem>>, %arg11: memref<1x1x64xf32, #tpu.memory_space<vmem>>, %arg12: memref<1x64x32xf32, #tpu.memory_space<vmem>>, %arg13: memref<1x1x32xf32, #tpu.memory_space<vmem>>, %arg14: memref<1x1x32xf32, #tpu.memory_space<vmem>>, %arg15: memref<1x1x32xf32, #tpu.memory_space<vmem>>, %arg16: memref<1x32xf32, #tpu.memory_space<vmem>>, %arg17: memref<1x32xf32, #tpu.memory_space<vmem>>, %arg18: memref<20x32xf32, #tpu.memory_space<vmem>>, %arg19: memref<20x32xf32, #tpu.memory_space<vmem>>) attributes {dimension_semantics = [#tpu.dimension_semantics<arbitrary>], iteration_bounds = array<i64: 2>, scalar_prefetch = 0 : i64, scratch_operands = 1 : i64, tpu.core_type = #tpu.core_type<tc>, window_params = [{pipeline_mode = #tpu.pipeline_mode<synchronous>, transform_indices = @transform_0, window_bounds = array<i64: 20, 32>}, {pipeline_mode = #tpu.pipeline_mode<synchronous>, transform_indices = @transform_1, window_bounds = array<i64: 20, 32>}, {pipeline_mode = #tpu.pipeline_mode<synchronous>, transform_indices = @transform_2, window_bounds = array<i64: 20, 20>}, {transform_indices = @transform_3, window_bounds = array<i64: 1, 32, 96>}, {transform_indices = @transform_4, window_bounds = array<i64: 1, 1, 96>}, {transform_indices = @transform_5, window_bounds = array<i64: 1, 32, 32>}, {transform_indices = @transform_6, window_bounds = array<i64: 1, 1, 32>}, {transform_indices = @transform_7, window_bounds = array<i64: 1, 1, 32>}, {transform_indices = @transform_8, window_bounds = array<i64: 1, 1, 32>}, {transform_indices = @transform_9, window_bounds = array<i64: 1, 32, 64>}, {transform_indices = @transform_10, window_bounds = array<i64: 1, 1, 64>}, {transform_indices = @transform_11, window_bounds = array<i64: 1, 64, 32>}, {transform_indices = @transform_12, window_bounds = array<i64: 1, 1, 32>}, {transform_indices = @transform_13, window_bounds = array<i64: 1, 1, 32>}, {transform_indices = @transform_14, window_bounds = array<i64: 1, 1, 32>}, {pipeline_mode = #tpu.pipeline_mode<synchronous>, transform_indices = @transform_15, window_bounds = array<i64: 1, 32>}, {pipeline_mode = #tpu.pipeline_mode<synchronous>, transform_indices = @transform_16, window_bounds = array<i64: 1, 32>}, {pipeline_mode = #tpu.pipeline_mode<synchronous>, transform_indices = @transform_17, window_bounds = array<i64: 20, 32>}]} {
    %c0_i32 = arith.constant 0 : i32
    %0 = arith.cmpi eq, %arg0, %c0_i32 : i32
    %1 = arith.extui %0 : i1 to i32
    %c0_i32_0 = arith.constant 0 : i32
    %2 = arith.cmpi ne, %1, %c0_i32_0 : i32
    scf.if %2 {
      %c0_82 = arith.constant 0 : index
      %c0_83 = arith.constant 0 : index
      %214 = vector.load %arg1[%c0_82, %c0_83] : memref<20x32xf32, #tpu.memory_space<vmem>>, vector<20x32xf32>
      %cst_84 = arith.constant 5.65685415 : f32
      %215 = vector.broadcast %cst_84 : f32 to vector<20x32xf32>
      %216 = arith.mulf %214, %215 : vector<20x32xf32>
      %c0_85 = arith.constant 0 : index
      %c0_86 = arith.constant 0 : index
      %217 = vector.load %arg2[%c0_85, %c0_86] : memref<20x32xf32, #tpu.memory_space<vmem>>, vector<20x32xf32>
      %218 = arith.addf %216, %217 : vector<20x32xf32>
      %c0_87 = arith.constant 0 : index
      %c0_88 = arith.constant 0 : index
      %219 = vector.load %arg19[%c0_87, %c0_88] : memref<20x32xf32, #tpu.memory_space<vmem>>, vector<20x32xf32>
      tpu.vector_store %arg19[%c0_87, %c0_88], %218 {strides = array<i32>} : memref<20x32xf32, #tpu.memory_space<vmem>>, vector<20x32xf32>,
    } else {
    }
    %c0 = arith.constant 0 : index
    %c0_1 = arith.constant 0 : index
    %3 = vector.load %arg19[%c0, %c0_1] : memref<20x32xf32, #tpu.memory_space<vmem>>, vector<20x32xf32>
    %4 = arith.truncf %3 : vector<20x32xf32> to vector<20x32xbf16>
    %c0_2 = arith.constant 0 : index
    %c0_3 = arith.constant 0 : index
    %c0_4 = arith.constant 0 : index
    %5 = vector.load %arg4[%c0_2, %c0_3, %c0_4] : memref<1x32x96xf32, #tpu.memory_space<vmem>>, vector<1x32x96xf32>
    %6 = vector.shape_cast %5 : vector<1x32x96xf32> to vector<32x96xf32>
    %7 = arith.truncf %6 : vector<32x96xf32> to vector<32x96xbf16>
    %cst = arith.constant dense<0.000000e+00> : vector<20x96xf32>
    %8 = tpu.matmul %4, %7, %cst {dimension_numbers = #tpu.dot_dimension_numbers<[1], [0], [0], [1], [0, 0, 1, 1], [], []>} : vector<20x32xbf16>, vector<32x96xbf16>, vector<20x96xf32> -> vector<20x96xf32>
    %c0_5 = arith.constant 0 : index
    %c0_6 = arith.constant 0 : index
    %c0_7 = arith.constant 0 : index
    %9 = vector.load %arg5[%c0_5, %c0_6, %c0_7] : memref<1x1x96xf32, #tpu.memory_space<vmem>>, vector<1x1x96xf32>
    %10 = vector.shape_cast %9 : vector<1x1x96xf32> to vector<1x96xf32>
    %11 = vector.broadcast %10 : vector<1x96xf32> to vector<20x96xf32>
    %12 = arith.addf %8, %11 : vector<20x96xf32>
    %13 = vector.extract_strided_slice %12 {offsets = [0, 0], sizes = [20, 32], strides = [1, 1]} : vector<20x96xf32> to vector<20x32xf32>
    %14 = vector.extract_strided_slice %12 {offsets = [0, 32], sizes = [20, 32], strides = [1, 1]} : vector<20x96xf32> to vector<20x32xf32>
    %15 = vector.extract_strided_slice %12 {offsets = [0, 64], sizes = [20, 32], strides = [1, 1]} : vector<20x96xf32> to vector<20x32xf32>
    %c0_8 = arith.constant 0 : index
    %c0_9 = arith.constant 0 : index
    %c0_10 = arith.constant 0 : index
    %16 = vector.load %arg6[%c0_8, %c0_9, %c0_10] : memref<1x32x32xf32, #tpu.memory_space<vmem>>, vector<1x32x32xf32>
    %17 = vector.shape_cast %16 : vector<1x32x32xf32> to vector<32x32xf32>
    %c0_11 = arith.constant 0 : index
    %c0_12 = arith.constant 0 : index
    %18 = vector.load %arg3[%c0_11, %c0_12] : memref<20x20xf32, #tpu.memory_space<vmem>>, vector<20x20xf32>
    %19 = tpu.iota {dimensions = array<i32: 1>} : vector<1x32xi32>
    %cst_13 = arith.constant 0.000000e+00 : f32
    %20 = vector.broadcast %cst_13 : f32 to vector<20x32xf32>
    %21 = vector.extract_strided_slice %13 {offsets = [0, 0], sizes = [20, 8], strides = [1, 1]} : vector<20x32xf32> to vector<20x8xf32>
    %22 = vector.extract_strided_slice %14 {offsets = [0, 0], sizes = [20, 8], strides = [1, 1]} : vector<20x32xf32> to vector<20x8xf32>
    "tpu.trace_start"() <{level = 10 : i32, message = "qd,kd->qk"}> : () -> ()
    %cst_14 = arith.constant dense<0.000000e+00> : vector<20x20xf32>
    %23 = tpu.matmul %21, %22, %cst_14 {dimension_numbers = #tpu.dot_dimension_numbers<[1], [1], [0], [0], [0, 0, 1, 0], [], []>} : vector<20x8xf32>, vector<20x8xf32>, vector<20x20xf32> -> vector<20x20xf32>
    "tpu.trace_stop"() : () -> ()
    %24 = arith.addf %23, %18 : vector<20x20xf32>
    %cst_15 = arith.constant dense<0xFF800000> : vector<20xf32>
    %25 = vector.multi_reduction <maximumf>, %24, %cst_15 [1] : vector<20x20xf32> to vector<20xf32>
    %26 = vector.shape_cast %25 : vector<20xf32> to vector<20x1xf32>
    %27 = vector.broadcast %26 : vector<20x1xf32> to vector<20x20xf32>
    %28 = arith.subf %24, %27 : vector<20x20xf32>
    %29 = math.exp %28 : vector<20x20xf32>
    %cst_16 = arith.constant dense<0.000000e+00> : vector<20xf32>
    %30 = vector.multi_reduction <add>, %29, %cst_16 [1] : vector<20x20xf32> to vector<20xf32>
    %31 = vector.shape_cast %30 : vector<20xf32> to vector<20x1xf32>
    %32 = tpu.reciprocal %31 {approx = true} : vector<20x1xf32> -> vector<20x1xf32>
    %33 = vector.broadcast %32 : vector<20x1xf32> to vector<20x20xf32>
    %34 = arith.mulf %29, %33 : vector<20x20xf32>
    %c0_i32_17 = arith.constant 0 : i32
    %35 = vector.broadcast %c0_i32_17 : i32 to vector<1x32xi32>
    %36 = arith.cmpi sge, %19, %35 : vector<1x32xi32>
    %c8_i32 = arith.constant 8 : i32
    %37 = vector.broadcast %c8_i32 : i32 to vector<1x32xi32>
    %38 = arith.cmpi slt, %19, %37 : vector<1x32xi32>
    %39 = arith.andi %36, %38 : vector<1x32xi1>
    %cst_18 = arith.constant 0.000000e+00 : f32
    %40 = vector.shape_cast %39 : vector<1x32xi1> to vector<1x32xi1>
    %41 = vector.broadcast %40 : vector<1x32xi1> to vector<20x32xi1>
    %42 = vector.broadcast %cst_18 : f32 to vector<20x32xf32>
    %43 = arith.select %41, %15, %42 : vector<20x32xi1>, vector<20x32xf32>
    %44 = arith.truncf %34 : vector<20x20xf32> to vector<20x20xbf16>
    %45 = arith.truncf %43 : vector<20x32xf32> to vector<20x32xbf16>
    %cst_19 = arith.constant dense<0.000000e+00> : vector<20x32xf32>
    %46 = tpu.matmul %44, %45, %cst_19 {dimension_numbers = #tpu.dot_dimension_numbers<[1], [0], [0], [1], [0, 0, 1, 1], [], []>} : vector<20x20xbf16>, vector<20x32xbf16>, vector<20x32xf32> -> vector<20x32xf32>
    %47 = arith.addf %20, %46 : vector<20x32xf32>
    %48 = vector.extract_strided_slice %13 {offsets = [0, 8], sizes = [20, 8], strides = [1, 1]} : vector<20x32xf32> to vector<20x8xf32>
    %49 = vector.extract_strided_slice %14 {offsets = [0, 8], sizes = [20, 8], strides = [1, 1]} : vector<20x32xf32> to vector<20x8xf32>
    "tpu.trace_start"() <{level = 10 : i32, message = "qd,kd->qk"}> : () -> ()
    %cst_20 = arith.constant dense<0.000000e+00> : vector<20x20xf32>
    %50 = tpu.matmul %48, %49, %cst_20 {dimension_numbers = #tpu.dot_dimension_numbers<[1], [1], [0], [0], [0, 0, 1, 0], [], []>} : vector<20x8xf32>, vector<20x8xf32>, vector<20x20xf32> -> vector<20x20xf32>
    "tpu.trace_stop"() : () -> ()
    %51 = arith.addf %50, %18 : vector<20x20xf32>
    %cst_21 = arith.constant dense<0xFF800000> : vector<20xf32>
    %52 = vector.multi_reduction <maximumf>, %51, %cst_21 [1] : vector<20x20xf32> to vector<20xf32>
    %53 = vector.shape_cast %52 : vector<20xf32> to vector<20x1xf32>
    %54 = vector.broadcast %53 : vector<20x1xf32> to vector<20x20xf32>
    %55 = arith.subf %51, %54 : vector<20x20xf32>
    %56 = math.exp %55 : vector<20x20xf32>
    %cst_22 = arith.constant dense<0.000000e+00> : vector<20xf32>
    %57 = vector.multi_reduction <add>, %56, %cst_22 [1] : vector<20x20xf32> to vector<20xf32>
    %58 = vector.shape_cast %57 : vector<20xf32> to vector<20x1xf32>
    %59 = tpu.reciprocal %58 {approx = true} : vector<20x1xf32> -> vector<20x1xf32>
    %60 = vector.broadcast %59 : vector<20x1xf32> to vector<20x20xf32>
    %61 = arith.mulf %56, %60 : vector<20x20xf32>
    %c8_i32_23 = arith.constant 8 : i32
    %62 = vector.broadcast %c8_i32_23 : i32 to vector<1x32xi32>
    %63 = arith.cmpi sge, %19, %62 : vector<1x32xi32>
    %c16_i32 = arith.constant 16 : i32
    %64 = vector.broadcast %c16_i32 : i32 to vector<1x32xi32>
    %65 = arith.cmpi slt, %19, %64 : vector<1x32xi32>
    %66 = arith.andi %63, %65 : vector<1x32xi1>
    %cst_24 = arith.constant 0.000000e+00 : f32
    %67 = vector.shape_cast %66 : vector<1x32xi1> to vector<1x32xi1>
    %68 = vector.broadcast %67 : vector<1x32xi1> to vector<20x32xi1>
    %69 = vector.broadcast %cst_24 : f32 to vector<20x32xf32>
    %70 = arith.select %68, %15, %69 : vector<20x32xi1>, vector<20x32xf32>
    %71 = arith.truncf %61 : vector<20x20xf32> to vector<20x20xbf16>
    %72 = arith.truncf %70 : vector<20x32xf32> to vector<20x32xbf16>
    %cst_25 = arith.constant dense<0.000000e+00> : vector<20x32xf32>
    %73 = tpu.matmul %71, %72, %cst_25 {dimension_numbers = #tpu.dot_dimension_numbers<[1], [0], [0], [1], [0, 0, 1, 1], [], []>} : vector<20x20xbf16>, vector<20x32xbf16>, vector<20x32xf32> -> vector<20x32xf32>
    %74 = arith.addf %47, %73 : vector<20x32xf32>
    %75 = vector.extract_strided_slice %13 {offsets = [0, 16], sizes = [20, 8], strides = [1, 1]} : vector<20x32xf32> to vector<20x8xf32>
    %76 = vector.extract_strided_slice %14 {offsets = [0, 16], sizes = [20, 8], strides = [1, 1]} : vector<20x32xf32> to vector<20x8xf32>
    "tpu.trace_start"() <{level = 10 : i32, message = "qd,kd->qk"}> : () -> ()
    %cst_26 = arith.constant dense<0.000000e+00> : vector<20x20xf32>
    %77 = tpu.matmul %75, %76, %cst_26 {dimension_numbers = #tpu.dot_dimension_numbers<[1], [1], [0], [0], [0, 0, 1, 0], [], []>} : vector<20x8xf32>, vector<20x8xf32>, vector<20x20xf32> -> vector<20x20xf32>
    "tpu.trace_stop"() : () -> ()
    %78 = arith.addf %77, %18 : vector<20x20xf32>
    %cst_27 = arith.constant dense<0xFF800000> : vector<20xf32>
    %79 = vector.multi_reduction <maximumf>, %78, %cst_27 [1] : vector<20x20xf32> to vector<20xf32>
    %80 = vector.shape_cast %79 : vector<20xf32> to vector<20x1xf32>
    %81 = vector.broadcast %80 : vector<20x1xf32> to vector<20x20xf32>
    %82 = arith.subf %78, %81 : vector<20x20xf32>
    %83 = math.exp %82 : vector<20x20xf32>
    %cst_28 = arith.constant dense<0.000000e+00> : vector<20xf32>
    %84 = vector.multi_reduction <add>, %83, %cst_28 [1] : vector<20x20xf32> to vector<20xf32>
    %85 = vector.shape_cast %84 : vector<20xf32> to vector<20x1xf32>
    %86 = tpu.reciprocal %85 {approx = true} : vector<20x1xf32> -> vector<20x1xf32>
    %87 = vector.broadcast %86 : vector<20x1xf32> to vector<20x20xf32>
    %88 = arith.mulf %83, %87 : vector<20x20xf32>
    %c16_i32_29 = arith.constant 16 : i32
    %89 = vector.broadcast %c16_i32_29 : i32 to vector<1x32xi32>
    %90 = arith.cmpi sge, %19, %89 : vector<1x32xi32>
    %c24_i32 = arith.constant 24 : i32
    %91 = vector.broadcast %c24_i32 : i32 to vector<1x32xi32>
    %92 = arith.cmpi slt, %19, %91 : vector<1x32xi32>
    %93 = arith.andi %90, %92 : vector<1x32xi1>
    %cst_30 = arith.constant 0.000000e+00 : f32
    %94 = vector.shape_cast %93 : vector<1x32xi1> to vector<1x32xi1>
    %95 = vector.broadcast %94 : vector<1x32xi1> to vector<20x32xi1>
    %96 = vector.broadcast %cst_30 : f32 to vector<20x32xf32>
    %97 = arith.select %95, %15, %96 : vector<20x32xi1>, vector<20x32xf32>
    %98 = arith.truncf %88 : vector<20x20xf32> to vector<20x20xbf16>
    %99 = arith.truncf %97 : vector<20x32xf32> to vector<20x32xbf16>
    %cst_31 = arith.constant dense<0.000000e+00> : vector<20x32xf32>
    %100 = tpu.matmul %98, %99, %cst_31 {dimension_numbers = #tpu.dot_dimension_numbers<[1], [0], [0], [1], [0, 0, 1, 1], [], []>} : vector<20x20xbf16>, vector<20x32xbf16>, vector<20x32xf32> -> vector<20x32xf32>
    %101 = arith.addf %74, %100 : vector<20x32xf32>
    %102 = vector.extract_strided_slice %13 {offsets = [0, 24], sizes = [20, 8], strides = [1, 1]} : vector<20x32xf32> to vector<20x8xf32>
    %103 = vector.extract_strided_slice %14 {offsets = [0, 24], sizes = [20, 8], strides = [1, 1]} : vector<20x32xf32> to vector<20x8xf32>
    "tpu.trace_start"() <{level = 10 : i32, message = "qd,kd->qk"}> : () -> ()
    %cst_32 = arith.constant dense<0.000000e+00> : vector<20x20xf32>
    %104 = tpu.matmul %102, %103, %cst_32 {dimension_numbers = #tpu.dot_dimension_numbers<[1], [1], [0], [0], [0, 0, 1, 0], [], []>} : vector<20x8xf32>, vector<20x8xf32>, vector<20x20xf32> -> vector<20x20xf32>
    "tpu.trace_stop"() : () -> ()
    %105 = arith.addf %104, %18 : vector<20x20xf32>
    %cst_33 = arith.constant dense<0xFF800000> : vector<20xf32>
    %106 = vector.multi_reduction <maximumf>, %105, %cst_33 [1] : vector<20x20xf32> to vector<20xf32>
    %107 = vector.shape_cast %106 : vector<20xf32> to vector<20x1xf32>
    %108 = vector.broadcast %107 : vector<20x1xf32> to vector<20x20xf32>
    %109 = arith.subf %105, %108 : vector<20x20xf32>
    %110 = math.exp %109 : vector<20x20xf32>
    %cst_34 = arith.constant dense<0.000000e+00> : vector<20xf32>
    %111 = vector.multi_reduction <add>, %110, %cst_34 [1] : vector<20x20xf32> to vector<20xf32>
    %112 = vector.shape_cast %111 : vector<20xf32> to vector<20x1xf32>
    %113 = tpu.reciprocal %112 {approx = true} : vector<20x1xf32> -> vector<20x1xf32>
    %114 = vector.broadcast %113 : vector<20x1xf32> to vector<20x20xf32>
    %115 = arith.mulf %110, %114 : vector<20x20xf32>
    %c24_i32_35 = arith.constant 24 : i32
    %116 = vector.broadcast %c24_i32_35 : i32 to vector<1x32xi32>
    %117 = arith.cmpi sge, %19, %116 : vector<1x32xi32>
    %c32_i32 = arith.constant 32 : i32
    %118 = vector.broadcast %c32_i32 : i32 to vector<1x32xi32>
    %119 = arith.cmpi slt, %19, %118 : vector<1x32xi32>
    %120 = arith.andi %117, %119 : vector<1x32xi1>
    %cst_36 = arith.constant 0.000000e+00 : f32
    %121 = vector.shape_cast %120 : vector<1x32xi1> to vector<1x32xi1>
    %122 = vector.broadcast %121 : vector<1x32xi1> to vector<20x32xi1>
    %123 = vector.broadcast %cst_36 : f32 to vector<20x32xf32>
    %124 = arith.select %122, %15, %123 : vector<20x32xi1>, vector<20x32xf32>
    %125 = arith.truncf %115 : vector<20x20xf32> to vector<20x20xbf16>
    %126 = arith.truncf %124 : vector<20x32xf32> to vector<20x32xbf16>
    %cst_37 = arith.constant dense<0.000000e+00> : vector<20x32xf32>
    %127 = tpu.matmul %125, %126, %cst_37 {dimension_numbers = #tpu.dot_dimension_numbers<[1], [0], [0], [1], [0, 0, 1, 1], [], []>} : vector<20x20xbf16>, vector<20x32xbf16>, vector<20x32xf32> -> vector<20x32xf32>
    %128 = arith.addf %101, %127 : vector<20x32xf32>
    %129 = arith.truncf %128 : vector<20x32xf32> to vector<20x32xbf16>
    %130 = arith.truncf %17 : vector<32x32xf32> to vector<32x32xbf16>
    %cst_38 = arith.constant dense<0.000000e+00> : vector<20x32xf32>
    %131 = tpu.matmul %129, %130, %cst_38 {dimension_numbers = #tpu.dot_dimension_numbers<[1], [0], [0], [1], [0, 0, 1, 1], [], []>} : vector<20x32xbf16>, vector<32x32xbf16>, vector<20x32xf32> -> vector<20x32xf32>
    %c0_39 = arith.constant 0 : index
    %c0_40 = arith.constant 0 : index
    %c0_41 = arith.constant 0 : index
    %132 = vector.load %arg7[%c0_39, %c0_40, %c0_41] : memref<1x1x32xf32, #tpu.memory_space<vmem>>, vector<1x1x32xf32>
    %133 = vector.shape_cast %132 : vector<1x1x32xf32> to vector<1x32xf32>
    %134 = vector.broadcast %133 : vector<1x32xf32> to vector<20x32xf32>
    %135 = arith.addf %131, %134 : vector<20x32xf32>
    %136 = arith.addf %135, %3 : vector<20x32xf32>
    %c0_42 = arith.constant 0 : index
    %c0_43 = arith.constant 0 : index
    %c0_44 = arith.constant 0 : index
    %137 = vector.load %arg8[%c0_42, %c0_43, %c0_44] : memref<1x1x32xf32, #tpu.memory_space<vmem>>, vector<1x1x32xf32>
    %138 = vector.shape_cast %137 : vector<1x1x32xf32> to vector<1x32xf32>
    %c0_45 = arith.constant 0 : index
    %c0_46 = arith.constant 0 : index
    %c0_47 = arith.constant 0 : index
    %139 = vector.load %arg9[%c0_45, %c0_46, %c0_47] : memref<1x1x32xf32, #tpu.memory_space<vmem>>, vector<1x1x32xf32>
    %140 = vector.shape_cast %139 : vector<1x1x32xf32> to vector<1x32xf32>
    %cst_48 = arith.constant dense<0.000000e+00> : vector<20xf32>
    %141 = vector.multi_reduction <add>, %136, %cst_48 [1] : vector<20x32xf32> to vector<20xf32>
    %142 = vector.shape_cast %141 : vector<20xf32> to vector<20x1xf32>
    %cst_49 = arith.constant 3.200000e+01 : f32
    %143 = vector.broadcast %cst_49 : f32 to vector<20x1xf32>
    %144 = arith.divf %142, %143 : vector<20x1xf32>
    %145 = vector.broadcast %144 : vector<20x1xf32> to vector<20x32xf32>
    %146 = arith.subf %136, %145 : vector<20x32xf32>
    %147 = arith.mulf %146, %146 : vector<20x32xf32>
    %cst_50 = arith.constant dense<0.000000e+00> : vector<20xf32>
    %148 = vector.multi_reduction <add>, %147, %cst_50 [1] : vector<20x32xf32> to vector<20xf32>
    %149 = vector.shape_cast %148 : vector<20xf32> to vector<20x1xf32>
    %cst_51 = arith.constant 3.200000e+01 : f32
    %150 = vector.broadcast %cst_51 : f32 to vector<20x1xf32>
    %151 = arith.divf %149, %150 : vector<20x1xf32>
    %152 = vector.broadcast %144 : vector<20x1xf32> to vector<20x32xf32>
    %153 = arith.subf %136, %152 : vector<20x32xf32>
    %cst_52 = arith.constant 9.99999974E-6 : f32
    %154 = vector.broadcast %cst_52 : f32 to vector<20x1xf32>
    %155 = arith.addf %151, %154 : vector<20x1xf32>
    %156 = math.rsqrt %155 : vector<20x1xf32>
    %157 = vector.broadcast %156 : vector<20x1xf32> to vector<20x32xf32>
    %158 = arith.mulf %153, %157 : vector<20x32xf32>
    %159 = vector.broadcast %138 : vector<1x32xf32> to vector<20x32xf32>
    %160 = arith.mulf %158, %159 : vector<20x32xf32>
    %161 = vector.broadcast %140 : vector<1x32xf32> to vector<20x32xf32>
    %162 = arith.addf %160, %161 : vector<20x32xf32>
    %163 = arith.truncf %162 : vector<20x32xf32> to vector<20x32xbf16>
    %c0_53 = arith.constant 0 : index
    %c0_54 = arith.constant 0 : index
    %c0_55 = arith.constant 0 : index
    %164 = vector.load %arg10[%c0_53, %c0_54, %c0_55] : memref<1x32x64xf32, #tpu.memory_space<vmem>>, vector<1x32x64xf32>
    %165 = vector.shape_cast %164 : vector<1x32x64xf32> to vector<32x64xf32>
    %166 = arith.truncf %165 : vector<32x64xf32> to vector<32x64xbf16>
    %cst_56 = arith.constant dense<0.000000e+00> : vector<20x64xf32>
    %167 = tpu.matmul %163, %166, %cst_56 {dimension_numbers = #tpu.dot_dimension_numbers<[1], [0], [0], [1], [0, 0, 1, 1], [], []>} : vector<20x32xbf16>, vector<32x64xbf16>, vector<20x64xf32> -> vector<20x64xf32>
    %c0_57 = arith.constant 0 : index
    %c0_58 = arith.constant 0 : index
    %c0_59 = arith.constant 0 : index
    %168 = vector.load %arg11[%c0_57, %c0_58, %c0_59] : memref<1x1x64xf32, #tpu.memory_space<vmem>>, vector<1x1x64xf32>
    %169 = vector.shape_cast %168 : vector<1x1x64xf32> to vector<1x64xf32>
    %170 = vector.broadcast %169 : vector<1x64xf32> to vector<20x64xf32>
    %171 = arith.addf %167, %170 : vector<20x64xf32>
    %cst_60 = arith.constant 0.000000e+00 : f32
    %172 = vector.broadcast %cst_60 : f32 to vector<20x64xf32>
    %173 = arith.maximumf %171, %172 : vector<20x64xf32>
    %174 = arith.truncf %173 : vector<20x64xf32> to vector<20x64xbf16>
    %c0_61 = arith.constant 0 : index
    %c0_62 = arith.constant 0 : index
    %c0_63 = arith.constant 0 : index
    %175 = vector.load %arg12[%c0_61, %c0_62, %c0_63] : memref<1x64x32xf32, #tpu.memory_space<vmem>>, vector<1x64x32xf32>
    %176 = vector.shape_cast %175 : vector<1x64x32xf32> to vector<64x32xf32>
    %177 = arith.truncf %176 : vector<64x32xf32> to vector<64x32xbf16>
    %cst_64 = arith.constant dense<0.000000e+00> : vector<20x32xf32>
    %178 = tpu.matmul %174, %177, %cst_64 {dimension_numbers = #tpu.dot_dimension_numbers<[1], [0], [0], [1], [0, 0, 1, 1], [], []>} : vector<20x64xbf16>, vector<64x32xbf16>, vector<20x32xf32> -> vector<20x32xf32>
    %c0_65 = arith.constant 0 : index
    %c0_66 = arith.constant 0 : index
    %c0_67 = arith.constant 0 : index
    %179 = vector.load %arg13[%c0_65, %c0_66, %c0_67] : memref<1x1x32xf32, #tpu.memory_space<vmem>>, vector<1x1x32xf32>
    %180 = vector.shape_cast %179 : vector<1x1x32xf32> to vector<1x32xf32>
    %181 = vector.broadcast %180 : vector<1x32xf32> to vector<20x32xf32>
    %182 = arith.addf %178, %181 : vector<20x32xf32>
    %183 = arith.addf %182, %162 : vector<20x32xf32>
    %c0_68 = arith.constant 0 : index
    %c0_69 = arith.constant 0 : index
    %c0_70 = arith.constant 0 : index
    %184 = vector.load %arg14[%c0_68, %c0_69, %c0_70] : memref<1x1x32xf32, #tpu.memory_space<vmem>>, vector<1x1x32xf32>
    %185 = vector.shape_cast %184 : vector<1x1x32xf32> to vector<1x32xf32>
    %c0_71 = arith.constant 0 : index
    %c0_72 = arith.constant 0 : index
    %c0_73 = arith.constant 0 : index
    %186 = vector.load %arg15[%c0_71, %c0_72, %c0_73] : memref<1x1x32xf32, #tpu.memory_space<vmem>>, vector<1x1x32xf32>
    %187 = vector.shape_cast %186 : vector<1x1x32xf32> to vector<1x32xf32>
    %cst_74 = arith.constant dense<0.000000e+00> : vector<20xf32>
    %188 = vector.multi_reduction <add>, %183, %cst_74 [1] : vector<20x32xf32> to vector<20xf32>
    %189 = vector.shape_cast %188 : vector<20xf32> to vector<20x1xf32>
    %cst_75 = arith.constant 3.200000e+01 : f32
    %190 = vector.broadcast %cst_75 : f32 to vector<20x1xf32>
    %191 = arith.divf %189, %190 : vector<20x1xf32>
    %192 = vector.broadcast %191 : vector<20x1xf32> to vector<20x32xf32>
    %193 = arith.subf %183, %192 : vector<20x32xf32>
    %194 = arith.mulf %193, %193 : vector<20x32xf32>
    %cst_76 = arith.constant dense<0.000000e+00> : vector<20xf32>
    %195 = vector.multi_reduction <add>, %194, %cst_76 [1] : vector<20x32xf32> to vector<20xf32>
    %196 = vector.shape_cast %195 : vector<20xf32> to vector<20x1xf32>
    %cst_77 = arith.constant 3.200000e+01 : f32
    %197 = vector.broadcast %cst_77 : f32 to vector<20x1xf32>
    %198 = arith.divf %196, %197 : vector<20x1xf32>
    %199 = vector.broadcast %191 : vector<20x1xf32> to vector<20x32xf32>
    %200 = arith.subf %183, %199 : vector<20x32xf32>
    %cst_78 = arith.constant 9.99999974E-6 : f32
    %201 = vector.broadcast %cst_78 : f32 to vector<20x1xf32>
    %202 = arith.addf %198, %201 : vector<20x1xf32>
    %203 = math.rsqrt %202 : vector<20x1xf32>
    %204 = vector.broadcast %203 : vector<20x1xf32> to vector<20x32xf32>
    %205 = arith.mulf %200, %204 : vector<20x32xf32>
    %206 = vector.broadcast %185 : vector<1x32xf32> to vector<20x32xf32>
    %207 = arith.mulf %205, %206 : vector<20x32xf32>
    %208 = vector.broadcast %187 : vector<1x32xf32> to vector<20x32xf32>
    %209 = arith.addf %207, %208 : vector<20x32xf32>
    %c0_79 = arith.constant 0 : index
    %c0_80 = arith.constant 0 : index
    %210 = vector.load %arg19[%c0_79, %c0_80] : memref<20x32xf32, #tpu.memory_space<vmem>>, vector<20x32xf32>
    tpu.vector_store %arg19[%c0_79, %c0_80], %209 {strides = array<i32>} : memref<20x32xf32, #tpu.memory_space<vmem>>, vector<20x32xf32>,
    %c1_i32 = arith.constant 1 : i32
    %211 = arith.cmpi eq, %arg0, %c1_i32 : i32
    %212 = arith.extui %211 : i1 to i32
    %c0_i32_81 = arith.constant 0 : i32
    %213 = arith.cmpi ne, %212, %c0_i32_81 : i32
    scf.if %213 {
      %c0_82 = arith.constant 0 : index
      %c0_83 = arith.constant 0 : index
      %214 = vector.load %arg16[%c0_82, %c0_83] : memref<1x32xf32, #tpu.memory_space<vmem>>, vector<1x32xf32>
      %c0_84 = arith.constant 0 : index
      %c0_85 = arith.constant 0 : index
      %215 = vector.load %arg17[%c0_84, %c0_85] : memref<1x32xf32, #tpu.memory_space<vmem>>, vector<1x32xf32>
      %cst_86 = arith.constant dense<0.000000e+00> : vector<20xf32>
      %216 = vector.multi_reduction <add>, %209, %cst_86 [1] : vector<20x32xf32> to vector<20xf32>
      %217 = vector.shape_cast %216 : vector<20xf32> to vector<20x1xf32>
      %cst_87 = arith.constant 3.200000e+01 : f32
      %218 = vector.broadcast %cst_87 : f32 to vector<20x1xf32>
      %219 = arith.divf %217, %218 : vector<20x1xf32>
      %220 = vector.broadcast %219 : vector<20x1xf32> to vector<20x32xf32>
      %221 = arith.subf %209, %220 : vector<20x32xf32>
      %222 = arith.mulf %221, %221 : vector<20x32xf32>
      %cst_88 = arith.constant dense<0.000000e+00> : vector<20xf32>
      %223 = vector.multi_reduction <add>, %222, %cst_88 [1] : vector<20x32xf32> to vector<20xf32>
      %224 = vector.shape_cast %223 : vector<20xf32> to vector<20x1xf32>
      %cst_89 = arith.constant 3.200000e+01 : f32
      %225 = vector.broadcast %cst_89 : f32 to vector<20x1xf32>
      %226 = arith.divf %224, %225 : vector<20x1xf32>
      %227 = vector.broadcast %219 : vector<20x1xf32> to vector<20x32xf32>
      %228 = arith.subf %209, %227 : vector<20x32xf32>
      %cst_90 = arith.constant 9.99999974E-6 : f32
      %229 = vector.broadcast %cst_90 : f32 to vector<20x1xf32>
      %230 = arith.addf %226, %229 : vector<20x1xf32>
      %231 = math.rsqrt %230 : vector<20x1xf32>
      %232 = vector.broadcast %231 : vector<20x1xf32> to vector<20x32xf32>
      %233 = arith.mulf %228, %232 : vector<20x32xf32>
      %234 = vector.broadcast %214 : vector<1x32xf32> to vector<20x32xf32>
      %235 = arith.mulf %233, %234 : vector<20x32xf32>
      %236 = vector.broadcast %215 : vector<1x32xf32> to vector<20x32xf32>
      %237 = arith.addf %235, %236 : vector<20x32xf32>
      %c0_91 = arith.constant 0 : index
      %c0_92 = arith.constant 0 : index
      %238 = vector.load %arg18[%c0_91, %c0_92] : memref<20x32xf32, #tpu.memory_space<vmem>>, vector<20x32xf32>
      tpu.vector_store %arg18[%c0_91, %c0_92], %237 {strides = array<i32>} : memref<20x32xf32, #tpu.memory_space<vmem>>, vector<20x32xf32>,
    } else {
    }
    return
  }
  func.func @transform_0(%arg0: i32) -> (i32, i32) {
    %c0_i32 = arith.constant 0 : i32
    %c0_i32_0 = arith.constant 0 : i32
    %c0_i32_1 = arith.constant 0 : i32
    return %c0_i32, %c0_i32_0 : i32, i32
  }
  func.func @transform_1(%arg0: i32) -> (i32, i32) {
    %c0_i32 = arith.constant 0 : i32
    %c0_i32_0 = arith.constant 0 : i32
    %c0_i32_1 = arith.constant 0 : i32
    return %c0_i32, %c0_i32_0 : i32, i32
  }
  func.func @transform_2(%arg0: i32) -> (i32, i32) {
    %c0_i32 = arith.constant 0 : i32
    %c0_i32_0 = arith.constant 0 : i32
    %c0_i32_1 = arith.constant 0 : i32
    return %c0_i32, %c0_i32_0 : i32, i32
  }
  func.func @transform_3(%arg0: i32) -> (i32, i32, i32) {
    %c0_i32 = arith.constant 0 : i32
    %c0_i32_0 = arith.constant 0 : i32
    %c0_i32_1 = arith.constant 0 : i32
    return %arg0, %c0_i32, %c0_i32_0 : i32, i32, i32
  }
  func.func @transform_4(%arg0: i32) -> (i32, i32, i32) {
    %c0_i32 = arith.constant 0 : i32
    %c0_i32_0 = arith.constant 0 : i32
    %c0_i32_1 = arith.constant 0 : i32
    return %arg0, %c0_i32, %c0_i32_0 : i32, i32, i32
  }
  func.func @transform_5(%arg0: i32) -> (i32, i32, i32) {
    %c0_i32 = arith.constant 0 : i32
    %c0_i32_0 = arith.constant 0 : i32
    %c0_i32_1 = arith.constant 0 : i32
    return %arg0, %c0_i32, %c0_i32_0 : i32, i32, i32
  }
  func.func @transform_6(%arg0: i32) -> (i32, i32, i32) {
    %c0_i32 = arith.constant 0 : i32
    %c0_i32_0 = arith.constant 0 : i32
    %c0_i32_1 = arith.constant 0 : i32
    return %arg0, %c0_i32, %c0_i32_0 : i32, i32, i32
  }
  func.func @transform_7(%arg0: i32) -> (i32, i32, i32) {
    %c0_i32 = arith.constant 0 : i32
    %c0_i32_0 = arith.constant 0 : i32
    %c0_i32_1 = arith.constant 0 : i32
    return %arg0, %c0_i32, %c0_i32_0 : i32, i32, i32
  }
  func.func @transform_8(%arg0: i32) -> (i32, i32, i32) {
    %c0_i32 = arith.constant 0 : i32
    %c0_i32_0 = arith.constant 0 : i32
    %c0_i32_1 = arith.constant 0 : i32
    return %arg0, %c0_i32, %c0_i32_0 : i32, i32, i32
  }
  func.func @transform_9(%arg0: i32) -> (i32, i32, i32) {
    %c0_i32 = arith.constant 0 : i32
    %c0_i32_0 = arith.constant 0 : i32
    %c0_i32_1 = arith.constant 0 : i32
    return %arg0, %c0_i32, %c0_i32_0 : i32, i32, i32
  }
  func.func @transform_10(%arg0: i32) -> (i32, i32, i32) {
    %c0_i32 = arith.constant 0 : i32
    %c0_i32_0 = arith.constant 0 : i32
    %c0_i32_1 = arith.constant 0 : i32
    return %arg0, %c0_i32, %c0_i32_0 : i32, i32, i32
  }
  func.func @transform_11(%arg0: i32) -> (i32, i32, i32) {
    %c0_i32 = arith.constant 0 : i32
    %c0_i32_0 = arith.constant 0 : i32
    %c0_i32_1 = arith.constant 0 : i32
    return %arg0, %c0_i32, %c0_i32_0 : i32, i32, i32
  }
  func.func @transform_12(%arg0: i32) -> (i32, i32, i32) {
    %c0_i32 = arith.constant 0 : i32
    %c0_i32_0 = arith.constant 0 : i32
    %c0_i32_1 = arith.constant 0 : i32
    return %arg0, %c0_i32, %c0_i32_0 : i32, i32, i32
  }
  func.func @transform_13(%arg0: i32) -> (i32, i32, i32) {
    %c0_i32 = arith.constant 0 : i32
    %c0_i32_0 = arith.constant 0 : i32
    %c0_i32_1 = arith.constant 0 : i32
    return %arg0, %c0_i32, %c0_i32_0 : i32, i32, i32
  }
  func.func @transform_14(%arg0: i32) -> (i32, i32, i32) {
    %c0_i32 = arith.constant 0 : i32
    %c0_i32_0 = arith.constant 0 : i32
    %c0_i32_1 = arith.constant 0 : i32
    return %arg0, %c0_i32, %c0_i32_0 : i32, i32, i32
  }
  func.func @transform_15(%arg0: i32) -> (i32, i32) {
    %c0_i32 = arith.constant 0 : i32
    %c0_i32_0 = arith.constant 0 : i32
    %c0_i32_1 = arith.constant 0 : i32
    return %c0_i32, %c0_i32_0 : i32, i32
  }
  func.func @transform_16(%arg0: i32) -> (i32, i32) {
    %c0_i32 = arith.constant 0 : i32
    %c0_i32_0 = arith.constant 0 : i32
    %c0_i32_1 = arith.constant 0 : i32
    return %c0_i32, %c0_i32_0 : i32, i32
  }
  func.func @transform_17(%arg0: i32) -> (i32, i32) {
    %c0_i32 = arith.constant 0 : i32
    %c0_i32_0 = arith.constant 0 : i32
    %c0_i32_1 = arith.constant 0 : i32
    return %c0_i32, %c0_i32_0 : i32, i32
  }
}

module attributes {stable_mosaic.version = 11 : i64} {
  func.func @_decoder_stack_kernel(%arg0: i32, %arg1: memref<16x32xf32, #tpu.memory_space<vmem>>, %arg2: memref<16x32xf32, #tpu.memory_space<vmem>>, %arg3: memref<20x32xf32, #tpu.memory_space<vmem>>, %arg4: memref<16x16xf32, #tpu.memory_space<vmem>>, %arg5: memref<16x20xf32, #tpu.memory_space<vmem>>, %arg6: memref<1x32x96xf32, #tpu.memory_space<vmem>>, %arg7: memref<1x1x96xf32, #tpu.memory_space<vmem>>, %arg8: memref<1x32x32xf32, #tpu.memory_space<vmem>>, %arg9: memref<1x1x32xf32, #tpu.memory_space<vmem>>, %arg10: memref<1x1x32xf32, #tpu.memory_space<vmem>>, %arg11: memref<1x1x32xf32, #tpu.memory_space<vmem>>, %arg12: memref<1x32x32xf32, #tpu.memory_space<vmem>>, %arg13: memref<1x1x32xf32, #tpu.memory_space<vmem>>, %arg14: memref<1x32x64xf32, #tpu.memory_space<vmem>>, %arg15: memref<1x1x64xf32, #tpu.memory_space<vmem>>, %arg16: memref<1x32x32xf32, #tpu.memory_space<vmem>>, %arg17: memref<1x1x32xf32, #tpu.memory_space<vmem>>, %arg18: memref<1x1x32xf32, #tpu.memory_space<vmem>>, %arg19: memref<1x1x32xf32, #tpu.memory_space<vmem>>, %arg20: memref<1x32x64xf32, #tpu.memory_space<vmem>>, %arg21: memref<1x1x64xf32, #tpu.memory_space<vmem>>, %arg22: memref<1x64x32xf32, #tpu.memory_space<vmem>>, %arg23: memref<1x1x32xf32, #tpu.memory_space<vmem>>, %arg24: memref<1x1x32xf32, #tpu.memory_space<vmem>>, %arg25: memref<1x1x32xf32, #tpu.memory_space<vmem>>, %arg26: memref<1x32xf32, #tpu.memory_space<vmem>>, %arg27: memref<1x32xf32, #tpu.memory_space<vmem>>, %arg28: memref<32x64xf32, #tpu.memory_space<vmem>>, %arg29: memref<1x64xf32, #tpu.memory_space<vmem>>, %arg30: memref<16x64xf32, #tpu.memory_space<vmem>>, %arg31: memref<16x32xf32, #tpu.memory_space<vmem>>) attributes {dimension_semantics = [#tpu.dimension_semantics<arbitrary>], iteration_bounds = array<i64: 2>, scalar_prefetch = 0 : i64, scratch_operands = 1 : i64, tpu.core_type = #tpu.core_type<tc>, window_params = [{pipeline_mode = #tpu.pipeline_mode<synchronous>, transform_indices = @transform_0, window_bounds = array<i64: 16, 32>}, {pipeline_mode = #tpu.pipeline_mode<synchronous>, transform_indices = @transform_1, window_bounds = array<i64: 16, 32>}, {pipeline_mode = #tpu.pipeline_mode<synchronous>, transform_indices = @transform_2, window_bounds = array<i64: 20, 32>}, {pipeline_mode = #tpu.pipeline_mode<synchronous>, transform_indices = @transform_3, window_bounds = array<i64: 16, 16>}, {pipeline_mode = #tpu.pipeline_mode<synchronous>, transform_indices = @transform_4, window_bounds = array<i64: 16, 20>}, {transform_indices = @transform_5, window_bounds = array<i64: 1, 32, 96>}, {transform_indices = @transform_6, window_bounds = array<i64: 1, 1, 96>}, {transform_indices = @transform_7, window_bounds = array<i64: 1, 32, 32>}, {transform_indices = @transform_8, window_bounds = array<i64: 1, 1, 32>}, {transform_indices = @transform_9, window_bounds = array<i64: 1, 1, 32>}, {transform_indices = @transform_10, window_bounds = array<i64: 1, 1, 32>}, {transform_indices = @transform_11, window_bounds = array<i64: 1, 32, 32>}, {transform_indices = @transform_12, window_bounds = array<i64: 1, 1, 32>}, {transform_indices = @transform_13, window_bounds = array<i64: 1, 32, 64>}, {transform_indices = @transform_14, window_bounds = array<i64: 1, 1, 64>}, {transform_indices = @transform_15, window_bounds = array<i64: 1, 32, 32>}, {transform_indices = @transform_16, window_bounds = array<i64: 1, 1, 32>}, {transform_indices = @transform_17, window_bounds = array<i64: 1, 1, 32>}, {transform_indices = @transform_18, window_bounds = array<i64: 1, 1, 32>}, {transform_indices = @transform_19, window_bounds = array<i64: 1, 32, 64>}, {transform_indices = @transform_20, window_bounds = array<i64: 1, 1, 64>}, {transform_indices = @transform_21, window_bounds = array<i64: 1, 64, 32>}, {transform_indices = @transform_22, window_bounds = array<i64: 1, 1, 32>}, {transform_indices = @transform_23, window_bounds = array<i64: 1, 1, 32>}, {transform_indices = @transform_24, window_bounds = array<i64: 1, 1, 32>}, {pipeline_mode = #tpu.pipeline_mode<synchronous>, transform_indices = @transform_25, window_bounds = array<i64: 1, 32>}, {pipeline_mode = #tpu.pipeline_mode<synchronous>, transform_indices = @transform_26, window_bounds = array<i64: 1, 32>}, {pipeline_mode = #tpu.pipeline_mode<synchronous>, transform_indices = @transform_27, window_bounds = array<i64: 32, 64>}, {pipeline_mode = #tpu.pipeline_mode<synchronous>, transform_indices = @transform_28, window_bounds = array<i64: 1, 64>}, {pipeline_mode = #tpu.pipeline_mode<synchronous>, transform_indices = @transform_29, window_bounds = array<i64: 16, 64>}]} {
    %c0_i32 = arith.constant 0 : i32
    %0 = arith.cmpi eq, %arg0, %c0_i32 : i32
    %1 = arith.extui %0 : i1 to i32
    %c0_i32_0 = arith.constant 0 : i32
    %2 = arith.cmpi ne, %1, %c0_i32_0 : i32
    scf.if %2 {
      %c0_147 = arith.constant 0 : index
      %c0_148 = arith.constant 0 : index
      %382 = vector.load %arg1[%c0_147, %c0_148] : memref<16x32xf32, #tpu.memory_space<vmem>>, vector<16x32xf32>
      %cst_149 = arith.constant 5.65685415 : f32
      %383 = vector.broadcast %cst_149 : f32 to vector<16x32xf32>
      %384 = arith.mulf %382, %383 : vector<16x32xf32>
      %c0_150 = arith.constant 0 : index
      %c0_151 = arith.constant 0 : index
      %385 = vector.load %arg2[%c0_150, %c0_151] : memref<16x32xf32, #tpu.memory_space<vmem>>, vector<16x32xf32>
      %386 = arith.addf %384, %385 : vector<16x32xf32>
      %c0_152 = arith.constant 0 : index
      %c0_153 = arith.constant 0 : index
      %387 = vector.load %arg31[%c0_152, %c0_153] : memref<16x32xf32, #tpu.memory_space<vmem>>, vector<16x32xf32>
      tpu.vector_store %arg31[%c0_152, %c0_153], %386 {strides = array<i32>} : memref<16x32xf32, #tpu.memory_space<vmem>>, vector<16x32xf32>,
    } else {
    }
    %c0 = arith.constant 0 : index
    %c0_1 = arith.constant 0 : index
    %3 = vector.load %arg31[%c0, %c0_1] : memref<16x32xf32, #tpu.memory_space<vmem>>, vector<16x32xf32>
    %4 = arith.truncf %3 : vector<16x32xf32> to vector<16x32xbf16>
    %c0_2 = arith.constant 0 : index
    %c0_3 = arith.constant 0 : index
    %c0_4 = arith.constant 0 : index
    %5 = vector.load %arg6[%c0_2, %c0_3, %c0_4] : memref<1x32x96xf32, #tpu.memory_space<vmem>>, vector<1x32x96xf32>
    %6 = vector.shape_cast %5 : vector<1x32x96xf32> to vector<32x96xf32>
    %7 = arith.truncf %6 : vector<32x96xf32> to vector<32x96xbf16>
    %cst = arith.constant dense<0.000000e+00> : vector<16x96xf32>
    %8 = tpu.matmul %4, %7, %cst {dimension_numbers = #tpu.dot_dimension_numbers<[1], [0], [0], [1], [0, 0, 1, 1], [], []>} : vector<16x32xbf16>, vector<32x96xbf16>, vector<16x96xf32> -> vector<16x96xf32>
    %c0_5 = arith.constant 0 : index
    %c0_6 = arith.constant 0 : index
    %c0_7 = arith.constant 0 : index
    %9 = vector.load %arg7[%c0_5, %c0_6, %c0_7] : memref<1x1x96xf32, #tpu.memory_space<vmem>>, vector<1x1x96xf32>
    %10 = vector.shape_cast %9 : vector<1x1x96xf32> to vector<1x96xf32>
    %11 = vector.broadcast %10 : vector<1x96xf32> to vector<16x96xf32>
    %12 = arith.addf %8, %11 : vector<16x96xf32>
    %13 = vector.extract_strided_slice %12 {offsets = [0, 0], sizes = [16, 32], strides = [1, 1]} : vector<16x96xf32> to vector<16x32xf32>
    %14 = vector.extract_strided_slice %12 {offsets = [0, 32], sizes = [16, 32], strides = [1, 1]} : vector<16x96xf32> to vector<16x32xf32>
    %15 = vector.extract_strided_slice %12 {offsets = [0, 64], sizes = [16, 32], strides = [1, 1]} : vector<16x96xf32> to vector<16x32xf32>
    %c0_8 = arith.constant 0 : index
    %c0_9 = arith.constant 0 : index
    %c0_10 = arith.constant 0 : index
    %16 = vector.load %arg8[%c0_8, %c0_9, %c0_10] : memref<1x32x32xf32, #tpu.memory_space<vmem>>, vector<1x32x32xf32>
    %17 = vector.shape_cast %16 : vector<1x32x32xf32> to vector<32x32xf32>
    %c0_11 = arith.constant 0 : index
    %c0_12 = arith.constant 0 : index
    %18 = vector.load %arg4[%c0_11, %c0_12] : memref<16x16xf32, #tpu.memory_space<vmem>>, vector<16x16xf32>
    %19 = tpu.iota {dimensions = array<i32: 1>} : vector<1x32xi32>
    %cst_13 = arith.constant 0.000000e+00 : f32
    %20 = vector.broadcast %cst_13 : f32 to vector<16x32xf32>
    %21 = vector.extract_strided_slice %13 {offsets = [0, 0], sizes = [16, 8], strides = [1, 1]} : vector<16x32xf32> to vector<16x8xf32>
    %22 = vector.extract_strided_slice %14 {offsets = [0, 0], sizes = [16, 8], strides = [1, 1]} : vector<16x32xf32> to vector<16x8xf32>
    "tpu.trace_start"() <{level = 10 : i32, message = "qd,kd->qk"}> : () -> ()
    %cst_14 = arith.constant dense<0.000000e+00> : vector<16x16xf32>
    %23 = tpu.matmul %21, %22, %cst_14 {dimension_numbers = #tpu.dot_dimension_numbers<[1], [1], [0], [0], [0, 0, 1, 0], [], []>} : vector<16x8xf32>, vector<16x8xf32>, vector<16x16xf32> -> vector<16x16xf32>
    "tpu.trace_stop"() : () -> ()
    %24 = arith.addf %23, %18 : vector<16x16xf32>
    %cst_15 = arith.constant dense<0xFF800000> : vector<16xf32>
    %25 = vector.multi_reduction <maximumf>, %24, %cst_15 [1] : vector<16x16xf32> to vector<16xf32>
    %26 = vector.shape_cast %25 : vector<16xf32> to vector<16x1xf32>
    %27 = vector.broadcast %26 : vector<16x1xf32> to vector<16x16xf32>
    %28 = arith.subf %24, %27 : vector<16x16xf32>
    %29 = math.exp %28 : vector<16x16xf32>
    %cst_16 = arith.constant dense<0.000000e+00> : vector<16xf32>
    %30 = vector.multi_reduction <add>, %29, %cst_16 [1] : vector<16x16xf32> to vector<16xf32>
    %31 = vector.shape_cast %30 : vector<16xf32> to vector<16x1xf32>
    %32 = tpu.reciprocal %31 {approx = true} : vector<16x1xf32> -> vector<16x1xf32>
    %33 = vector.broadcast %32 : vector<16x1xf32> to vector<16x16xf32>
    %34 = arith.mulf %29, %33 : vector<16x16xf32>
    %c0_i32_17 = arith.constant 0 : i32
    %35 = vector.broadcast %c0_i32_17 : i32 to vector<1x32xi32>
    %36 = arith.cmpi sge, %19, %35 : vector<1x32xi32>
    %c8_i32 = arith.constant 8 : i32
    %37 = vector.broadcast %c8_i32 : i32 to vector<1x32xi32>
    %38 = arith.cmpi slt, %19, %37 : vector<1x32xi32>
    %39 = arith.andi %36, %38 : vector<1x32xi1>
    %cst_18 = arith.constant 0.000000e+00 : f32
    %40 = vector.shape_cast %39 : vector<1x32xi1> to vector<1x32xi1>
    %41 = vector.broadcast %40 : vector<1x32xi1> to vector<16x32xi1>
    %42 = vector.broadcast %cst_18 : f32 to vector<16x32xf32>
    %43 = arith.select %41, %15, %42 : vector<16x32xi1>, vector<16x32xf32>
    %44 = arith.truncf %34 : vector<16x16xf32> to vector<16x16xbf16>
    %45 = arith.truncf %43 : vector<16x32xf32> to vector<16x32xbf16>
    %cst_19 = arith.constant dense<0.000000e+00> : vector<16x32xf32>
    %46 = tpu.matmul %44, %45, %cst_19 {dimension_numbers = #tpu.dot_dimension_numbers<[1], [0], [0], [1], [0, 0, 1, 1], [], []>} : vector<16x16xbf16>, vector<16x32xbf16>, vector<16x32xf32> -> vector<16x32xf32>
    %47 = arith.addf %20, %46 : vector<16x32xf32>
    %48 = vector.extract_strided_slice %13 {offsets = [0, 8], sizes = [16, 8], strides = [1, 1]} : vector<16x32xf32> to vector<16x8xf32>
    %49 = vector.extract_strided_slice %14 {offsets = [0, 8], sizes = [16, 8], strides = [1, 1]} : vector<16x32xf32> to vector<16x8xf32>
    "tpu.trace_start"() <{level = 10 : i32, message = "qd,kd->qk"}> : () -> ()
    %cst_20 = arith.constant dense<0.000000e+00> : vector<16x16xf32>
    %50 = tpu.matmul %48, %49, %cst_20 {dimension_numbers = #tpu.dot_dimension_numbers<[1], [1], [0], [0], [0, 0, 1, 0], [], []>} : vector<16x8xf32>, vector<16x8xf32>, vector<16x16xf32> -> vector<16x16xf32>
    "tpu.trace_stop"() : () -> ()
    %51 = arith.addf %50, %18 : vector<16x16xf32>
    %cst_21 = arith.constant dense<0xFF800000> : vector<16xf32>
    %52 = vector.multi_reduction <maximumf>, %51, %cst_21 [1] : vector<16x16xf32> to vector<16xf32>
    %53 = vector.shape_cast %52 : vector<16xf32> to vector<16x1xf32>
    %54 = vector.broadcast %53 : vector<16x1xf32> to vector<16x16xf32>
    %55 = arith.subf %51, %54 : vector<16x16xf32>
    %56 = math.exp %55 : vector<16x16xf32>
    %cst_22 = arith.constant dense<0.000000e+00> : vector<16xf32>
    %57 = vector.multi_reduction <add>, %56, %cst_22 [1] : vector<16x16xf32> to vector<16xf32>
    %58 = vector.shape_cast %57 : vector<16xf32> to vector<16x1xf32>
    %59 = tpu.reciprocal %58 {approx = true} : vector<16x1xf32> -> vector<16x1xf32>
    %60 = vector.broadcast %59 : vector<16x1xf32> to vector<16x16xf32>
    %61 = arith.mulf %56, %60 : vector<16x16xf32>
    %c8_i32_23 = arith.constant 8 : i32
    %62 = vector.broadcast %c8_i32_23 : i32 to vector<1x32xi32>
    %63 = arith.cmpi sge, %19, %62 : vector<1x32xi32>
    %c16_i32 = arith.constant 16 : i32
    %64 = vector.broadcast %c16_i32 : i32 to vector<1x32xi32>
    %65 = arith.cmpi slt, %19, %64 : vector<1x32xi32>
    %66 = arith.andi %63, %65 : vector<1x32xi1>
    %cst_24 = arith.constant 0.000000e+00 : f32
    %67 = vector.shape_cast %66 : vector<1x32xi1> to vector<1x32xi1>
    %68 = vector.broadcast %67 : vector<1x32xi1> to vector<16x32xi1>
    %69 = vector.broadcast %cst_24 : f32 to vector<16x32xf32>
    %70 = arith.select %68, %15, %69 : vector<16x32xi1>, vector<16x32xf32>
    %71 = arith.truncf %61 : vector<16x16xf32> to vector<16x16xbf16>
    %72 = arith.truncf %70 : vector<16x32xf32> to vector<16x32xbf16>
    %cst_25 = arith.constant dense<0.000000e+00> : vector<16x32xf32>
    %73 = tpu.matmul %71, %72, %cst_25 {dimension_numbers = #tpu.dot_dimension_numbers<[1], [0], [0], [1], [0, 0, 1, 1], [], []>} : vector<16x16xbf16>, vector<16x32xbf16>, vector<16x32xf32> -> vector<16x32xf32>
    %74 = arith.addf %47, %73 : vector<16x32xf32>
    %75 = vector.extract_strided_slice %13 {offsets = [0, 16], sizes = [16, 8], strides = [1, 1]} : vector<16x32xf32> to vector<16x8xf32>
    %76 = vector.extract_strided_slice %14 {offsets = [0, 16], sizes = [16, 8], strides = [1, 1]} : vector<16x32xf32> to vector<16x8xf32>
    "tpu.trace_start"() <{level = 10 : i32, message = "qd,kd->qk"}> : () -> ()
    %cst_26 = arith.constant dense<0.000000e+00> : vector<16x16xf32>
    %77 = tpu.matmul %75, %76, %cst_26 {dimension_numbers = #tpu.dot_dimension_numbers<[1], [1], [0], [0], [0, 0, 1, 0], [], []>} : vector<16x8xf32>, vector<16x8xf32>, vector<16x16xf32> -> vector<16x16xf32>
    "tpu.trace_stop"() : () -> ()
    %78 = arith.addf %77, %18 : vector<16x16xf32>
    %cst_27 = arith.constant dense<0xFF800000> : vector<16xf32>
    %79 = vector.multi_reduction <maximumf>, %78, %cst_27 [1] : vector<16x16xf32> to vector<16xf32>
    %80 = vector.shape_cast %79 : vector<16xf32> to vector<16x1xf32>
    %81 = vector.broadcast %80 : vector<16x1xf32> to vector<16x16xf32>
    %82 = arith.subf %78, %81 : vector<16x16xf32>
    %83 = math.exp %82 : vector<16x16xf32>
    %cst_28 = arith.constant dense<0.000000e+00> : vector<16xf32>
    %84 = vector.multi_reduction <add>, %83, %cst_28 [1] : vector<16x16xf32> to vector<16xf32>
    %85 = vector.shape_cast %84 : vector<16xf32> to vector<16x1xf32>
    %86 = tpu.reciprocal %85 {approx = true} : vector<16x1xf32> -> vector<16x1xf32>
    %87 = vector.broadcast %86 : vector<16x1xf32> to vector<16x16xf32>
    %88 = arith.mulf %83, %87 : vector<16x16xf32>
    %c16_i32_29 = arith.constant 16 : i32
    %89 = vector.broadcast %c16_i32_29 : i32 to vector<1x32xi32>
    %90 = arith.cmpi sge, %19, %89 : vector<1x32xi32>
    %c24_i32 = arith.constant 24 : i32
    %91 = vector.broadcast %c24_i32 : i32 to vector<1x32xi32>
    %92 = arith.cmpi slt, %19, %91 : vector<1x32xi32>
    %93 = arith.andi %90, %92 : vector<1x32xi1>
    %cst_30 = arith.constant 0.000000e+00 : f32
    %94 = vector.shape_cast %93 : vector<1x32xi1> to vector<1x32xi1>
    %95 = vector.broadcast %94 : vector<1x32xi1> to vector<16x32xi1>
    %96 = vector.broadcast %cst_30 : f32 to vector<16x32xf32>
    %97 = arith.select %95, %15, %96 : vector<16x32xi1>, vector<16x32xf32>
    %98 = arith.truncf %88 : vector<16x16xf32> to vector<16x16xbf16>
    %99 = arith.truncf %97 : vector<16x32xf32> to vector<16x32xbf16>
    %cst_31 = arith.constant dense<0.000000e+00> : vector<16x32xf32>
    %100 = tpu.matmul %98, %99, %cst_31 {dimension_numbers = #tpu.dot_dimension_numbers<[1], [0], [0], [1], [0, 0, 1, 1], [], []>} : vector<16x16xbf16>, vector<16x32xbf16>, vector<16x32xf32> -> vector<16x32xf32>
    %101 = arith.addf %74, %100 : vector<16x32xf32>
    %102 = vector.extract_strided_slice %13 {offsets = [0, 24], sizes = [16, 8], strides = [1, 1]} : vector<16x32xf32> to vector<16x8xf32>
    %103 = vector.extract_strided_slice %14 {offsets = [0, 24], sizes = [16, 8], strides = [1, 1]} : vector<16x32xf32> to vector<16x8xf32>
    "tpu.trace_start"() <{level = 10 : i32, message = "qd,kd->qk"}> : () -> ()
    %cst_32 = arith.constant dense<0.000000e+00> : vector<16x16xf32>
    %104 = tpu.matmul %102, %103, %cst_32 {dimension_numbers = #tpu.dot_dimension_numbers<[1], [1], [0], [0], [0, 0, 1, 0], [], []>} : vector<16x8xf32>, vector<16x8xf32>, vector<16x16xf32> -> vector<16x16xf32>
    "tpu.trace_stop"() : () -> ()
    %105 = arith.addf %104, %18 : vector<16x16xf32>
    %cst_33 = arith.constant dense<0xFF800000> : vector<16xf32>
    %106 = vector.multi_reduction <maximumf>, %105, %cst_33 [1] : vector<16x16xf32> to vector<16xf32>
    %107 = vector.shape_cast %106 : vector<16xf32> to vector<16x1xf32>
    %108 = vector.broadcast %107 : vector<16x1xf32> to vector<16x16xf32>
    %109 = arith.subf %105, %108 : vector<16x16xf32>
    %110 = math.exp %109 : vector<16x16xf32>
    %cst_34 = arith.constant dense<0.000000e+00> : vector<16xf32>
    %111 = vector.multi_reduction <add>, %110, %cst_34 [1] : vector<16x16xf32> to vector<16xf32>
    %112 = vector.shape_cast %111 : vector<16xf32> to vector<16x1xf32>
    %113 = tpu.reciprocal %112 {approx = true} : vector<16x1xf32> -> vector<16x1xf32>
    %114 = vector.broadcast %113 : vector<16x1xf32> to vector<16x16xf32>
    %115 = arith.mulf %110, %114 : vector<16x16xf32>
    %c24_i32_35 = arith.constant 24 : i32
    %116 = vector.broadcast %c24_i32_35 : i32 to vector<1x32xi32>
    %117 = arith.cmpi sge, %19, %116 : vector<1x32xi32>
    %c32_i32 = arith.constant 32 : i32
    %118 = vector.broadcast %c32_i32 : i32 to vector<1x32xi32>
    %119 = arith.cmpi slt, %19, %118 : vector<1x32xi32>
    %120 = arith.andi %117, %119 : vector<1x32xi1>
    %cst_36 = arith.constant 0.000000e+00 : f32
    %121 = vector.shape_cast %120 : vector<1x32xi1> to vector<1x32xi1>
    %122 = vector.broadcast %121 : vector<1x32xi1> to vector<16x32xi1>
    %123 = vector.broadcast %cst_36 : f32 to vector<16x32xf32>
    %124 = arith.select %122, %15, %123 : vector<16x32xi1>, vector<16x32xf32>
    %125 = arith.truncf %115 : vector<16x16xf32> to vector<16x16xbf16>
    %126 = arith.truncf %124 : vector<16x32xf32> to vector<16x32xbf16>
    %cst_37 = arith.constant dense<0.000000e+00> : vector<16x32xf32>
    %127 = tpu.matmul %125, %126, %cst_37 {dimension_numbers = #tpu.dot_dimension_numbers<[1], [0], [0], [1], [0, 0, 1, 1], [], []>} : vector<16x16xbf16>, vector<16x32xbf16>, vector<16x32xf32> -> vector<16x32xf32>
    %128 = arith.addf %101, %127 : vector<16x32xf32>
    %129 = arith.truncf %128 : vector<16x32xf32> to vector<16x32xbf16>
    %130 = arith.truncf %17 : vector<32x32xf32> to vector<32x32xbf16>
    %cst_38 = arith.constant dense<0.000000e+00> : vector<16x32xf32>
    %131 = tpu.matmul %129, %130, %cst_38 {dimension_numbers = #tpu.dot_dimension_numbers<[1], [0], [0], [1], [0, 0, 1, 1], [], []>} : vector<16x32xbf16>, vector<32x32xbf16>, vector<16x32xf32> -> vector<16x32xf32>
    %c0_39 = arith.constant 0 : index
    %c0_40 = arith.constant 0 : index
    %c0_41 = arith.constant 0 : index
    %132 = vector.load %arg9[%c0_39, %c0_40, %c0_41] : memref<1x1x32xf32, #tpu.memory_space<vmem>>, vector<1x1x32xf32>
    %133 = vector.shape_cast %132 : vector<1x1x32xf32> to vector<1x32xf32>
    %134 = vector.broadcast %133 : vector<1x32xf32> to vector<16x32xf32>
    %135 = arith.addf %131, %134 : vector<16x32xf32>
    %136 = arith.addf %135, %3 : vector<16x32xf32>
    %c0_42 = arith.constant 0 : index
    %c0_43 = arith.constant 0 : index
    %c0_44 = arith.constant 0 : index
    %137 = vector.load %arg10[%c0_42, %c0_43, %c0_44] : memref<1x1x32xf32, #tpu.memory_space<vmem>>, vector<1x1x32xf32>
    %138 = vector.shape_cast %137 : vector<1x1x32xf32> to vector<1x32xf32>
    %c0_45 = arith.constant 0 : index
    %c0_46 = arith.constant 0 : index
    %c0_47 = arith.constant 0 : index
    %139 = vector.load %arg11[%c0_45, %c0_46, %c0_47] : memref<1x1x32xf32, #tpu.memory_space<vmem>>, vector<1x1x32xf32>
    %140 = vector.shape_cast %139 : vector<1x1x32xf32> to vector<1x32xf32>
    %cst_48 = arith.constant dense<0.000000e+00> : vector<16xf32>
    %141 = vector.multi_reduction <add>, %136, %cst_48 [1] : vector<16x32xf32> to vector<16xf32>
    %142 = vector.shape_cast %141 : vector<16xf32> to vector<16x1xf32>
    %cst_49 = arith.constant 3.200000e+01 : f32
    %143 = vector.broadcast %cst_49 : f32 to vector<16x1xf32>
    %144 = arith.divf %142, %143 : vector<16x1xf32>
    %145 = vector.broadcast %144 : vector<16x1xf32> to vector<16x32xf32>
    %146 = arith.subf %136, %145 : vector<16x32xf32>
    %147 = arith.mulf %146, %146 : vector<16x32xf32>
    %cst_50 = arith.constant dense<0.000000e+00> : vector<16xf32>
    %148 = vector.multi_reduction <add>, %147, %cst_50 [1] : vector<16x32xf32> to vector<16xf32>
    %149 = vector.shape_cast %148 : vector<16xf32> to vector<16x1xf32>
    %cst_51 = arith.constant 3.200000e+01 : f32
    %150 = vector.broadcast %cst_51 : f32 to vector<16x1xf32>
    %151 = arith.divf %149, %150 : vector<16x1xf32>
    %152 = vector.broadcast %144 : vector<16x1xf32> to vector<16x32xf32>
    %153 = arith.subf %136, %152 : vector<16x32xf32>
    %cst_52 = arith.constant 9.99999974E-6 : f32
    %154 = vector.broadcast %cst_52 : f32 to vector<16x1xf32>
    %155 = arith.addf %151, %154 : vector<16x1xf32>
    %156 = math.rsqrt %155 : vector<16x1xf32>
    %157 = vector.broadcast %156 : vector<16x1xf32> to vector<16x32xf32>
    %158 = arith.mulf %153, %157 : vector<16x32xf32>
    %159 = vector.broadcast %138 : vector<1x32xf32> to vector<16x32xf32>
    %160 = arith.mulf %158, %159 : vector<16x32xf32>
    %161 = vector.broadcast %140 : vector<1x32xf32> to vector<16x32xf32>
    %162 = arith.addf %160, %161 : vector<16x32xf32>
    %163 = arith.truncf %162 : vector<16x32xf32> to vector<16x32xbf16>
    %c0_53 = arith.constant 0 : index
    %c0_54 = arith.constant 0 : index
    %c0_55 = arith.constant 0 : index
    %164 = vector.load %arg12[%c0_53, %c0_54, %c0_55] : memref<1x32x32xf32, #tpu.memory_space<vmem>>, vector<1x32x32xf32>
    %165 = vector.shape_cast %164 : vector<1x32x32xf32> to vector<32x32xf32>
    %166 = arith.truncf %165 : vector<32x32xf32> to vector<32x32xbf16>
    %cst_56 = arith.constant dense<0.000000e+00> : vector<16x32xf32>
    %167 = tpu.matmul %163, %166, %cst_56 {dimension_numbers = #tpu.dot_dimension_numbers<[1], [0], [0], [1], [0, 0, 1, 1], [], []>} : vector<16x32xbf16>, vector<32x32xbf16>, vector<16x32xf32> -> vector<16x32xf32>
    %c0_57 = arith.constant 0 : index
    %c0_58 = arith.constant 0 : index
    %c0_59 = arith.constant 0 : index
    %168 = vector.load %arg13[%c0_57, %c0_58, %c0_59] : memref<1x1x32xf32, #tpu.memory_space<vmem>>, vector<1x1x32xf32>
    %169 = vector.shape_cast %168 : vector<1x1x32xf32> to vector<1x32xf32>
    %170 = vector.broadcast %169 : vector<1x32xf32> to vector<16x32xf32>
    %171 = arith.addf %167, %170 : vector<16x32xf32>
    %c0_60 = arith.constant 0 : index
    %c0_61 = arith.constant 0 : index
    %172 = vector.load %arg3[%c0_60, %c0_61] : memref<20x32xf32, #tpu.memory_space<vmem>>, vector<20x32xf32>
    %173 = arith.truncf %172 : vector<20x32xf32> to vector<20x32xbf16>
    %c0_62 = arith.constant 0 : index
    %c0_63 = arith.constant 0 : index
    %c0_64 = arith.constant 0 : index
    %174 = vector.load %arg14[%c0_62, %c0_63, %c0_64] : memref<1x32x64xf32, #tpu.memory_space<vmem>>, vector<1x32x64xf32>
    %175 = vector.shape_cast %174 : vector<1x32x64xf32> to vector<32x64xf32>
    %176 = arith.truncf %175 : vector<32x64xf32> to vector<32x64xbf16>
    %cst_65 = arith.constant dense<0.000000e+00> : vector<20x64xf32>
    %177 = tpu.matmul %173, %176, %cst_65 {dimension_numbers = #tpu.dot_dimension_numbers<[1], [0], [0], [1], [0, 0, 1, 1], [], []>} : vector<20x32xbf16>, vector<32x64xbf16>, vector<20x64xf32> -> vector<20x64xf32>
    %c0_66 = arith.constant 0 : index
    %c0_67 = arith.constant 0 : index
    %c0_68 = arith.constant 0 : index
    %178 = vector.load %arg15[%c0_66, %c0_67, %c0_68] : memref<1x1x64xf32, #tpu.memory_space<vmem>>, vector<1x1x64xf32>
    %179 = vector.shape_cast %178 : vector<1x1x64xf32> to vector<1x64xf32>
    %180 = vector.broadcast %179 : vector<1x64xf32> to vector<20x64xf32>
    %181 = arith.addf %177, %180 : vector<20x64xf32>
    %182 = vector.extract_strided_slice %181 {offsets = [0, 0], sizes = [20, 32], strides = [1, 1]} : vector<20x64xf32> to vector<20x32xf32>
    %183 = vector.extract_strided_slice %181 {offsets = [0, 32], sizes = [20, 32], strides = [1, 1]} : vector<20x64xf32> to vector<20x32xf32>
    %c0_69 = arith.constant 0 : index
    %c0_70 = arith.constant 0 : index
    %c0_71 = arith.constant 0 : index
    %184 = vector.load %arg16[%c0_69, %c0_70, %c0_71] : memref<1x32x32xf32, #tpu.memory_space<vmem>>, vector<1x32x32xf32>
    %185 = vector.shape_cast %184 : vector<1x32x32xf32> to vector<32x32xf32>
    %c0_72 = arith.constant 0 : index
    %c0_73 = arith.constant 0 : index
    %186 = vector.load %arg5[%c0_72, %c0_73] : memref<16x20xf32, #tpu.memory_space<vmem>>, vector<16x20xf32>
    %187 = tpu.iota {dimensions = array<i32: 1>} : vector<1x32xi32>
    %cst_74 = arith.constant 0.000000e+00 : f32
    %188 = vector.broadcast %cst_74 : f32 to vector<16x32xf32>
    %189 = vector.extract_strided_slice %171 {offsets = [0, 0], sizes = [16, 8], strides = [1, 1]} : vector<16x32xf32> to vector<16x8xf32>
    %190 = vector.extract_strided_slice %182 {offsets = [0, 0], sizes = [20, 8], strides = [1, 1]} : vector<20x32xf32> to vector<20x8xf32>
    "tpu.trace_start"() <{level = 10 : i32, message = "qd,kd->qk"}> : () -> ()
    %cst_75 = arith.constant dense<0.000000e+00> : vector<16x20xf32>
    %191 = tpu.matmul %189, %190, %cst_75 {dimension_numbers = #tpu.dot_dimension_numbers<[1], [1], [0], [0], [0, 0, 1, 0], [], []>} : vector<16x8xf32>, vector<20x8xf32>, vector<16x20xf32> -> vector<16x20xf32>
    "tpu.trace_stop"() : () -> ()
    %192 = arith.addf %191, %186 : vector<16x20xf32>
    %cst_76 = arith.constant dense<0xFF800000> : vector<16xf32>
    %193 = vector.multi_reduction <maximumf>, %192, %cst_76 [1] : vector<16x20xf32> to vector<16xf32>
    %194 = vector.shape_cast %193 : vector<16xf32> to vector<16x1xf32>
    %195 = vector.broadcast %194 : vector<16x1xf32> to vector<16x20xf32>
    %196 = arith.subf %192, %195 : vector<16x20xf32>
    %197 = math.exp %196 : vector<16x20xf32>
    %cst_77 = arith.constant dense<0.000000e+00> : vector<16xf32>
    %198 = vector.multi_reduction <add>, %197, %cst_77 [1] : vector<16x20xf32> to vector<16xf32>
    %199 = vector.shape_cast %198 : vector<16xf32> to vector<16x1xf32>
    %200 = tpu.reciprocal %199 {approx = true} : vector<16x1xf32> -> vector<16x1xf32>
    %201 = vector.broadcast %200 : vector<16x1xf32> to vector<16x20xf32>
    %202 = arith.mulf %197, %201 : vector<16x20xf32>
    %c0_i32_78 = arith.constant 0 : i32
    %203 = vector.broadcast %c0_i32_78 : i32 to vector<1x32xi32>
    %204 = arith.cmpi sge, %187, %203 : vector<1x32xi32>
    %c8_i32_79 = arith.constant 8 : i32
    %205 = vector.broadcast %c8_i32_79 : i32 to vector<1x32xi32>
    %206 = arith.cmpi slt, %187, %205 : vector<1x32xi32>
    %207 = arith.andi %204, %206 : vector<1x32xi1>
    %cst_80 = arith.constant 0.000000e+00 : f32
    %208 = vector.shape_cast %207 : vector<1x32xi1> to vector<1x32xi1>
    %209 = vector.broadcast %208 : vector<1x32xi1> to vector<20x32xi1>
    %210 = vector.broadcast %cst_80 : f32 to vector<20x32xf32>
    %211 = arith.select %209, %183, %210 : vector<20x32xi1>, vector<20x32xf32>
    %212 = arith.truncf %202 : vector<16x20xf32> to vector<16x20xbf16>
    %213 = arith.truncf %211 : vector<20x32xf32> to vector<20x32xbf16>
    %cst_81 = arith.constant dense<0.000000e+00> : vector<16x32xf32>
    %214 = tpu.matmul %212, %213, %cst_81 {dimension_numbers = #tpu.dot_dimension_numbers<[1], [0], [0], [1], [0, 0, 1, 1], [], []>} : vector<16x20xbf16>, vector<20x32xbf16>, vector<16x32xf32> -> vector<16x32xf32>
    %215 = arith.addf %188, %214 : vector<16x32xf32>
    %216 = vector.extract_strided_slice %171 {offsets = [0, 8], sizes = [16, 8], strides = [1, 1]} : vector<16x32xf32> to vector<16x8xf32>
    %217 = vector.extract_strided_slice %182 {offsets = [0, 8], sizes = [20, 8], strides = [1, 1]} : vector<20x32xf32> to vector<20x8xf32>
    "tpu.trace_start"() <{level = 10 : i32, message = "qd,kd->qk"}> : () -> ()
    %cst_82 = arith.constant dense<0.000000e+00> : vector<16x20xf32>
    %218 = tpu.matmul %216, %217, %cst_82 {dimension_numbers = #tpu.dot_dimension_numbers<[1], [1], [0], [0], [0, 0, 1, 0], [], []>} : vector<16x8xf32>, vector<20x8xf32>, vector<16x20xf32> -> vector<16x20xf32>
    "tpu.trace_stop"() : () -> ()
    %219 = arith.addf %218, %186 : vector<16x20xf32>
    %cst_83 = arith.constant dense<0xFF800000> : vector<16xf32>
    %220 = vector.multi_reduction <maximumf>, %219, %cst_83 [1] : vector<16x20xf32> to vector<16xf32>
    %221 = vector.shape_cast %220 : vector<16xf32> to vector<16x1xf32>
    %222 = vector.broadcast %221 : vector<16x1xf32> to vector<16x20xf32>
    %223 = arith.subf %219, %222 : vector<16x20xf32>
    %224 = math.exp %223 : vector<16x20xf32>
    %cst_84 = arith.constant dense<0.000000e+00> : vector<16xf32>
    %225 = vector.multi_reduction <add>, %224, %cst_84 [1] : vector<16x20xf32> to vector<16xf32>
    %226 = vector.shape_cast %225 : vector<16xf32> to vector<16x1xf32>
    %227 = tpu.reciprocal %226 {approx = true} : vector<16x1xf32> -> vector<16x1xf32>
    %228 = vector.broadcast %227 : vector<16x1xf32> to vector<16x20xf32>
    %229 = arith.mulf %224, %228 : vector<16x20xf32>
    %c8_i32_85 = arith.constant 8 : i32
    %230 = vector.broadcast %c8_i32_85 : i32 to vector<1x32xi32>
    %231 = arith.cmpi sge, %187, %230 : vector<1x32xi32>
    %c16_i32_86 = arith.constant 16 : i32
    %232 = vector.broadcast %c16_i32_86 : i32 to vector<1x32xi32>
    %233 = arith.cmpi slt, %187, %232 : vector<1x32xi32>
    %234 = arith.andi %231, %233 : vector<1x32xi1>
    %cst_87 = arith.constant 0.000000e+00 : f32
    %235 = vector.shape_cast %234 : vector<1x32xi1> to vector<1x32xi1>
    %236 = vector.broadcast %235 : vector<1x32xi1> to vector<20x32xi1>
    %237 = vector.broadcast %cst_87 : f32 to vector<20x32xf32>
    %238 = arith.select %236, %183, %237 : vector<20x32xi1>, vector<20x32xf32>
    %239 = arith.truncf %229 : vector<16x20xf32> to vector<16x20xbf16>
    %240 = arith.truncf %238 : vector<20x32xf32> to vector<20x32xbf16>
    %cst_88 = arith.constant dense<0.000000e+00> : vector<16x32xf32>
    %241 = tpu.matmul %239, %240, %cst_88 {dimension_numbers = #tpu.dot_dimension_numbers<[1], [0], [0], [1], [0, 0, 1, 1], [], []>} : vector<16x20xbf16>, vector<20x32xbf16>, vector<16x32xf32> -> vector<16x32xf32>
    %242 = arith.addf %215, %241 : vector<16x32xf32>
    %243 = vector.extract_strided_slice %171 {offsets = [0, 16], sizes = [16, 8], strides = [1, 1]} : vector<16x32xf32> to vector<16x8xf32>
    %244 = vector.extract_strided_slice %182 {offsets = [0, 16], sizes = [20, 8], strides = [1, 1]} : vector<20x32xf32> to vector<20x8xf32>
    "tpu.trace_start"() <{level = 10 : i32, message = "qd,kd->qk"}> : () -> ()
    %cst_89 = arith.constant dense<0.000000e+00> : vector<16x20xf32>
    %245 = tpu.matmul %243, %244, %cst_89 {dimension_numbers = #tpu.dot_dimension_numbers<[1], [1], [0], [0], [0, 0, 1, 0], [], []>} : vector<16x8xf32>, vector<20x8xf32>, vector<16x20xf32> -> vector<16x20xf32>
    "tpu.trace_stop"() : () -> ()
    %246 = arith.addf %245, %186 : vector<16x20xf32>
    %cst_90 = arith.constant dense<0xFF800000> : vector<16xf32>
    %247 = vector.multi_reduction <maximumf>, %246, %cst_90 [1] : vector<16x20xf32> to vector<16xf32>
    %248 = vector.shape_cast %247 : vector<16xf32> to vector<16x1xf32>
    %249 = vector.broadcast %248 : vector<16x1xf32> to vector<16x20xf32>
    %250 = arith.subf %246, %249 : vector<16x20xf32>
    %251 = math.exp %250 : vector<16x20xf32>
    %cst_91 = arith.constant dense<0.000000e+00> : vector<16xf32>
    %252 = vector.multi_reduction <add>, %251, %cst_91 [1] : vector<16x20xf32> to vector<16xf32>
    %253 = vector.shape_cast %252 : vector<16xf32> to vector<16x1xf32>
    %254 = tpu.reciprocal %253 {approx = true} : vector<16x1xf32> -> vector<16x1xf32>
    %255 = vector.broadcast %254 : vector<16x1xf32> to vector<16x20xf32>
    %256 = arith.mulf %251, %255 : vector<16x20xf32>
    %c16_i32_92 = arith.constant 16 : i32
    %257 = vector.broadcast %c16_i32_92 : i32 to vector<1x32xi32>
    %258 = arith.cmpi sge, %187, %257 : vector<1x32xi32>
    %c24_i32_93 = arith.constant 24 : i32
    %259 = vector.broadcast %c24_i32_93 : i32 to vector<1x32xi32>
    %260 = arith.cmpi slt, %187, %259 : vector<1x32xi32>
    %261 = arith.andi %258, %260 : vector<1x32xi1>
    %cst_94 = arith.constant 0.000000e+00 : f32
    %262 = vector.shape_cast %261 : vector<1x32xi1> to vector<1x32xi1>
    %263 = vector.broadcast %262 : vector<1x32xi1> to vector<20x32xi1>
    %264 = vector.broadcast %cst_94 : f32 to vector<20x32xf32>
    %265 = arith.select %263, %183, %264 : vector<20x32xi1>, vector<20x32xf32>
    %266 = arith.truncf %256 : vector<16x20xf32> to vector<16x20xbf16>
    %267 = arith.truncf %265 : vector<20x32xf32> to vector<20x32xbf16>
    %cst_95 = arith.constant dense<0.000000e+00> : vector<16x32xf32>
    %268 = tpu.matmul %266, %267, %cst_95 {dimension_numbers = #tpu.dot_dimension_numbers<[1], [0], [0], [1], [0, 0, 1, 1], [], []>} : vector<16x20xbf16>, vector<20x32xbf16>, vector<16x32xf32> -> vector<16x32xf32>
    %269 = arith.addf %242, %268 : vector<16x32xf32>
    %270 = vector.extract_strided_slice %171 {offsets = [0, 24], sizes = [16, 8], strides = [1, 1]} : vector<16x32xf32> to vector<16x8xf32>
    %271 = vector.extract_strided_slice %182 {offsets = [0, 24], sizes = [20, 8], strides = [1, 1]} : vector<20x32xf32> to vector<20x8xf32>
    "tpu.trace_start"() <{level = 10 : i32, message = "qd,kd->qk"}> : () -> ()
    %cst_96 = arith.constant dense<0.000000e+00> : vector<16x20xf32>
    %272 = tpu.matmul %270, %271, %cst_96 {dimension_numbers = #tpu.dot_dimension_numbers<[1], [1], [0], [0], [0, 0, 1, 0], [], []>} : vector<16x8xf32>, vector<20x8xf32>, vector<16x20xf32> -> vector<16x20xf32>
    "tpu.trace_stop"() : () -> ()
    %273 = arith.addf %272, %186 : vector<16x20xf32>
    %cst_97 = arith.constant dense<0xFF800000> : vector<16xf32>
    %274 = vector.multi_reduction <maximumf>, %273, %cst_97 [1] : vector<16x20xf32> to vector<16xf32>
    %275 = vector.shape_cast %274 : vector<16xf32> to vector<16x1xf32>
    %276 = vector.broadcast %275 : vector<16x1xf32> to vector<16x20xf32>
    %277 = arith.subf %273, %276 : vector<16x20xf32>
    %278 = math.exp %277 : vector<16x20xf32>
    %cst_98 = arith.constant dense<0.000000e+00> : vector<16xf32>
    %279 = vector.multi_reduction <add>, %278, %cst_98 [1] : vector<16x20xf32> to vector<16xf32>
    %280 = vector.shape_cast %279 : vector<16xf32> to vector<16x1xf32>
    %281 = tpu.reciprocal %280 {approx = true} : vector<16x1xf32> -> vector<16x1xf32>
    %282 = vector.broadcast %281 : vector<16x1xf32> to vector<16x20xf32>
    %283 = arith.mulf %278, %282 : vector<16x20xf32>
    %c24_i32_99 = arith.constant 24 : i32
    %284 = vector.broadcast %c24_i32_99 : i32 to vector<1x32xi32>
    %285 = arith.cmpi sge, %187, %284 : vector<1x32xi32>
    %c32_i32_100 = arith.constant 32 : i32
    %286 = vector.broadcast %c32_i32_100 : i32 to vector<1x32xi32>
    %287 = arith.cmpi slt, %187, %286 : vector<1x32xi32>
    %288 = arith.andi %285, %287 : vector<1x32xi1>
    %cst_101 = arith.constant 0.000000e+00 : f32
    %289 = vector.shape_cast %288 : vector<1x32xi1> to vector<1x32xi1>
    %290 = vector.broadcast %289 : vector<1x32xi1> to vector<20x32xi1>
    %291 = vector.broadcast %cst_101 : f32 to vector<20x32xf32>
    %292 = arith.select %290, %183, %291 : vector<20x32xi1>, vector<20x32xf32>
    %293 = arith.truncf %283 : vector<16x20xf32> to vector<16x20xbf16>
    %294 = arith.truncf %292 : vector<20x32xf32> to vector<20x32xbf16>
    %cst_102 = arith.constant dense<0.000000e+00> : vector<16x32xf32>
    %295 = tpu.matmul %293, %294, %cst_102 {dimension_numbers = #tpu.dot_dimension_numbers<[1], [0], [0], [1], [0, 0, 1, 1], [], []>} : vector<16x20xbf16>, vector<20x32xbf16>, vector<16x32xf32> -> vector<16x32xf32>
    %296 = arith.addf %269, %295 : vector<16x32xf32>
    %297 = arith.truncf %296 : vector<16x32xf32> to vector<16x32xbf16>
    %298 = arith.truncf %185 : vector<32x32xf32> to vector<32x32xbf16>
    %cst_103 = arith.constant dense<0.000000e+00> : vector<16x32xf32>
    %299 = tpu.matmul %297, %298, %cst_103 {dimension_numbers = #tpu.dot_dimension_numbers<[1], [0], [0], [1], [0, 0, 1, 1], [], []>} : vector<16x32xbf16>, vector<32x32xbf16>, vector<16x32xf32> -> vector<16x32xf32>
    %c0_104 = arith.constant 0 : index
    %c0_105 = arith.constant 0 : index
    %c0_106 = arith.constant 0 : index
    %300 = vector.load %arg17[%c0_104, %c0_105, %c0_106] : memref<1x1x32xf32, #tpu.memory_space<vmem>>, vector<1x1x32xf32>
    %301 = vector.shape_cast %300 : vector<1x1x32xf32> to vector<1x32xf32>
    %302 = vector.broadcast %301 : vector<1x32xf32> to vector<16x32xf32>
    %303 = arith.addf %299, %302 : vector<16x32xf32>
    %304 = arith.addf %303, %162 : vector<16x32xf32>
    %c0_107 = arith.constant 0 : index
    %c0_108 = arith.constant 0 : index
    %c0_109 = arith.constant 0 : index
    %305 = vector.load %arg18[%c0_107, %c0_108, %c0_109] : memref<1x1x32xf32, #tpu.memory_space<vmem>>, vector<1x1x32xf32>
    %306 = vector.shape_cast %305 : vector<1x1x32xf32> to vector<1x32xf32>
    %c0_110 = arith.constant 0 : index
    %c0_111 = arith.constant 0 : index
    %c0_112 = arith.constant 0 : index
    %307 = vector.load %arg19[%c0_110, %c0_111, %c0_112] : memref<1x1x32xf32, #tpu.memory_space<vmem>>, vector<1x1x32xf32>
    %308 = vector.shape_cast %307 : vector<1x1x32xf32> to vector<1x32xf32>
    %cst_113 = arith.constant dense<0.000000e+00> : vector<16xf32>
    %309 = vector.multi_reduction <add>, %304, %cst_113 [1] : vector<16x32xf32> to vector<16xf32>
    %310 = vector.shape_cast %309 : vector<16xf32> to vector<16x1xf32>
    %cst_114 = arith.constant 3.200000e+01 : f32
    %311 = vector.broadcast %cst_114 : f32 to vector<16x1xf32>
    %312 = arith.divf %310, %311 : vector<16x1xf32>
    %313 = vector.broadcast %312 : vector<16x1xf32> to vector<16x32xf32>
    %314 = arith.subf %304, %313 : vector<16x32xf32>
    %315 = arith.mulf %314, %314 : vector<16x32xf32>
    %cst_115 = arith.constant dense<0.000000e+00> : vector<16xf32>
    %316 = vector.multi_reduction <add>, %315, %cst_115 [1] : vector<16x32xf32> to vector<16xf32>
    %317 = vector.shape_cast %316 : vector<16xf32> to vector<16x1xf32>
    %cst_116 = arith.constant 3.200000e+01 : f32
    %318 = vector.broadcast %cst_116 : f32 to vector<16x1xf32>
    %319 = arith.divf %317, %318 : vector<16x1xf32>
    %320 = vector.broadcast %312 : vector<16x1xf32> to vector<16x32xf32>
    %321 = arith.subf %304, %320 : vector<16x32xf32>
    %cst_117 = arith.constant 9.99999974E-6 : f32
    %322 = vector.broadcast %cst_117 : f32 to vector<16x1xf32>
    %323 = arith.addf %319, %322 : vector<16x1xf32>
    %324 = math.rsqrt %323 : vector<16x1xf32>
    %325 = vector.broadcast %324 : vector<16x1xf32> to vector<16x32xf32>
    %326 = arith.mulf %321, %325 : vector<16x32xf32>
    %327 = vector.broadcast %306 : vector<1x32xf32> to vector<16x32xf32>
    %328 = arith.mulf %326, %327 : vector<16x32xf32>
    %329 = vector.broadcast %308 : vector<1x32xf32> to vector<16x32xf32>
    %330 = arith.addf %328, %329 : vector<16x32xf32>
    %331 = arith.truncf %330 : vector<16x32xf32> to vector<16x32xbf16>
    %c0_118 = arith.constant 0 : index
    %c0_119 = arith.constant 0 : index
    %c0_120 = arith.constant 0 : index
    %332 = vector.load %arg20[%c0_118, %c0_119, %c0_120] : memref<1x32x64xf32, #tpu.memory_space<vmem>>, vector<1x32x64xf32>
    %333 = vector.shape_cast %332 : vector<1x32x64xf32> to vector<32x64xf32>
    %334 = arith.truncf %333 : vector<32x64xf32> to vector<32x64xbf16>
    %cst_121 = arith.constant dense<0.000000e+00> : vector<16x64xf32>
    %335 = tpu.matmul %331, %334, %cst_121 {dimension_numbers = #tpu.dot_dimension_numbers<[1], [0], [0], [1], [0, 0, 1, 1], [], []>} : vector<16x32xbf16>, vector<32x64xbf16>, vector<16x64xf32> -> vector<16x64xf32>
    %c0_122 = arith.constant 0 : index
    %c0_123 = arith.constant 0 : index
    %c0_124 = arith.constant 0 : index
    %336 = vector.load %arg21[%c0_122, %c0_123, %c0_124] : memref<1x1x64xf32, #tpu.memory_space<vmem>>, vector<1x1x64xf32>
    %337 = vector.shape_cast %336 : vector<1x1x64xf32> to vector<1x64xf32>
    %338 = vector.broadcast %337 : vector<1x64xf32> to vector<16x64xf32>
    %339 = arith.addf %335, %338 : vector<16x64xf32>
    %cst_125 = arith.constant 0.000000e+00 : f32
    %340 = vector.broadcast %cst_125 : f32 to vector<16x64xf32>
    %341 = arith.maximumf %339, %340 : vector<16x64xf32>
    %342 = arith.truncf %341 : vector<16x64xf32> to vector<16x64xbf16>
    %c0_126 = arith.constant 0 : index
    %c0_127 = arith.constant 0 : index
    %c0_128 = arith.constant 0 : index
    %343 = vector.load %arg22[%c0_126, %c0_127, %c0_128] : memref<1x64x32xf32, #tpu.memory_space<vmem>>, vector<1x64x32xf32>
    %344 = vector.shape_cast %343 : vector<1x64x32xf32> to vector<64x32xf32>
    %345 = arith.truncf %344 : vector<64x32xf32> to vector<64x32xbf16>
    %cst_129 = arith.constant dense<0.000000e+00> : vector<16x32xf32>
    %346 = tpu.matmul %342, %345, %cst_129 {dimension_numbers = #tpu.dot_dimension_numbers<[1], [0], [0], [1], [0, 0, 1, 1], [], []>} : vector<16x64xbf16>, vector<64x32xbf16>, vector<16x32xf32> -> vector<16x32xf32>
    %c0_130 = arith.constant 0 : index
    %c0_131 = arith.constant 0 : index
    %c0_132 = arith.constant 0 : index
    %347 = vector.load %arg23[%c0_130, %c0_131, %c0_132] : memref<1x1x32xf32, #tpu.memory_space<vmem>>, vector<1x1x32xf32>
    %348 = vector.shape_cast %347 : vector<1x1x32xf32> to vector<1x32xf32>
    %349 = vector.broadcast %348 : vector<1x32xf32> to vector<16x32xf32>
    %350 = arith.addf %346, %349 : vector<16x32xf32>
    %351 = arith.addf %350, %330 : vector<16x32xf32>
    %c0_133 = arith.constant 0 : index
    %c0_134 = arith.constant 0 : index
    %c0_135 = arith.constant 0 : index
    %352 = vector.load %arg24[%c0_133, %c0_134, %c0_135] : memref<1x1x32xf32, #tpu.memory_space<vmem>>, vector<1x1x32xf32>
    %353 = vector.shape_cast %352 : vector<1x1x32xf32> to vector<1x32xf32>
    %c0_136 = arith.constant 0 : index
    %c0_137 = arith.constant 0 : index
    %c0_138 = arith.constant 0 : index
    %354 = vector.load %arg25[%c0_136, %c0_137, %c0_138] : memref<1x1x32xf32, #tpu.memory_space<vmem>>, vector<1x1x32xf32>
    %355 = vector.shape_cast %354 : vector<1x1x32xf32> to vector<1x32xf32>
    %cst_139 = arith.constant dense<0.000000e+00> : vector<16xf32>
    %356 = vector.multi_reduction <add>, %351, %cst_139 [1] : vector<16x32xf32> to vector<16xf32>
    %357 = vector.shape_cast %356 : vector<16xf32> to vector<16x1xf32>
    %cst_140 = arith.constant 3.200000e+01 : f32
    %358 = vector.broadcast %cst_140 : f32 to vector<16x1xf32>
    %359 = arith.divf %357, %358 : vector<16x1xf32>
    %360 = vector.broadcast %359 : vector<16x1xf32> to vector<16x32xf32>
    %361 = arith.subf %351, %360 : vector<16x32xf32>
    %362 = arith.mulf %361, %361 : vector<16x32xf32>
    %cst_141 = arith.constant dense<0.000000e+00> : vector<16xf32>
    %363 = vector.multi_reduction <add>, %362, %cst_141 [1] : vector<16x32xf32> to vector<16xf32>
    %364 = vector.shape_cast %363 : vector<16xf32> to vector<16x1xf32>
    %cst_142 = arith.constant 3.200000e+01 : f32
    %365 = vector.broadcast %cst_142 : f32 to vector<16x1xf32>
    %366 = arith.divf %364, %365 : vector<16x1xf32>
    %367 = vector.broadcast %359 : vector<16x1xf32> to vector<16x32xf32>
    %368 = arith.subf %351, %367 : vector<16x32xf32>
    %cst_143 = arith.constant 9.99999974E-6 : f32
    %369 = vector.broadcast %cst_143 : f32 to vector<16x1xf32>
    %370 = arith.addf %366, %369 : vector<16x1xf32>
    %371 = math.rsqrt %370 : vector<16x1xf32>
    %372 = vector.broadcast %371 : vector<16x1xf32> to vector<16x32xf32>
    %373 = arith.mulf %368, %372 : vector<16x32xf32>
    %374 = vector.broadcast %353 : vector<1x32xf32> to vector<16x32xf32>
    %375 = arith.mulf %373, %374 : vector<16x32xf32>
    %376 = vector.broadcast %355 : vector<1x32xf32> to vector<16x32xf32>
    %377 = arith.addf %375, %376 : vector<16x32xf32>
    %c0_144 = arith.constant 0 : index
    %c0_145 = arith.constant 0 : index
    %378 = vector.load %arg31[%c0_144, %c0_145] : memref<16x32xf32, #tpu.memory_space<vmem>>, vector<16x32xf32>
    tpu.vector_store %arg31[%c0_144, %c0_145], %377 {strides = array<i32>} : memref<16x32xf32, #tpu.memory_space<vmem>>, vector<16x32xf32>,
    %c1_i32 = arith.constant 1 : i32
    %379 = arith.cmpi eq, %arg0, %c1_i32 : i32
    %380 = arith.extui %379 : i1 to i32
    %c0_i32_146 = arith.constant 0 : i32
    %381 = arith.cmpi ne, %380, %c0_i32_146 : i32
    scf.if %381 {
      %c0_147 = arith.constant 0 : index
      %c0_148 = arith.constant 0 : index
      %382 = vector.load %arg26[%c0_147, %c0_148] : memref<1x32xf32, #tpu.memory_space<vmem>>, vector<1x32xf32>
      %c0_149 = arith.constant 0 : index
      %c0_150 = arith.constant 0 : index
      %383 = vector.load %arg27[%c0_149, %c0_150] : memref<1x32xf32, #tpu.memory_space<vmem>>, vector<1x32xf32>
      %cst_151 = arith.constant dense<0.000000e+00> : vector<16xf32>
      %384 = vector.multi_reduction <add>, %377, %cst_151 [1] : vector<16x32xf32> to vector<16xf32>
      %385 = vector.shape_cast %384 : vector<16xf32> to vector<16x1xf32>
      %cst_152 = arith.constant 3.200000e+01 : f32
      %386 = vector.broadcast %cst_152 : f32 to vector<16x1xf32>
      %387 = arith.divf %385, %386 : vector<16x1xf32>
      %388 = vector.broadcast %387 : vector<16x1xf32> to vector<16x32xf32>
      %389 = arith.subf %377, %388 : vector<16x32xf32>
      %390 = arith.mulf %389, %389 : vector<16x32xf32>
      %cst_153 = arith.constant dense<0.000000e+00> : vector<16xf32>
      %391 = vector.multi_reduction <add>, %390, %cst_153 [1] : vector<16x32xf32> to vector<16xf32>
      %392 = vector.shape_cast %391 : vector<16xf32> to vector<16x1xf32>
      %cst_154 = arith.constant 3.200000e+01 : f32
      %393 = vector.broadcast %cst_154 : f32 to vector<16x1xf32>
      %394 = arith.divf %392, %393 : vector<16x1xf32>
      %395 = vector.broadcast %387 : vector<16x1xf32> to vector<16x32xf32>
      %396 = arith.subf %377, %395 : vector<16x32xf32>
      %cst_155 = arith.constant 9.99999974E-6 : f32
      %397 = vector.broadcast %cst_155 : f32 to vector<16x1xf32>
      %398 = arith.addf %394, %397 : vector<16x1xf32>
      %399 = math.rsqrt %398 : vector<16x1xf32>
      %400 = vector.broadcast %399 : vector<16x1xf32> to vector<16x32xf32>
      %401 = arith.mulf %396, %400 : vector<16x32xf32>
      %402 = vector.broadcast %382 : vector<1x32xf32> to vector<16x32xf32>
      %403 = arith.mulf %401, %402 : vector<16x32xf32>
      %404 = vector.broadcast %383 : vector<1x32xf32> to vector<16x32xf32>
      %405 = arith.addf %403, %404 : vector<16x32xf32>
      %406 = arith.truncf %405 : vector<16x32xf32> to vector<16x32xbf16>
      %c0_156 = arith.constant 0 : index
      %c0_157 = arith.constant 0 : index
      %407 = vector.load %arg28[%c0_156, %c0_157] : memref<32x64xf32, #tpu.memory_space<vmem>>, vector<32x64xf32>
      %408 = arith.truncf %407 : vector<32x64xf32> to vector<32x64xbf16>
      %cst_158 = arith.constant dense<0.000000e+00> : vector<16x64xf32>
      %409 = tpu.matmul %406, %408, %cst_158 {dimension_numbers = #tpu.dot_dimension_numbers<[1], [0], [0], [1], [0, 0, 1, 1], [], []>} : vector<16x32xbf16>, vector<32x64xbf16>, vector<16x64xf32> -> vector<16x64xf32>
      %c0_159 = arith.constant 0 : index
      %c0_160 = arith.constant 0 : index
      %410 = vector.load %arg29[%c0_159, %c0_160] : memref<1x64xf32, #tpu.memory_space<vmem>>, vector<1x64xf32>
      %411 = vector.broadcast %410 : vector<1x64xf32> to vector<16x64xf32>
      %412 = arith.addf %409, %411 : vector<16x64xf32>
      %c0_161 = arith.constant 0 : index
      %c0_162 = arith.constant 0 : index
      %413 = vector.load %arg30[%c0_161, %c0_162] : memref<16x64xf32, #tpu.memory_space<vmem>>, vector<16x64xf32>
      tpu.vector_store %arg30[%c0_161, %c0_162], %412 {strides = array<i32>} : memref<16x64xf32, #tpu.memory_space<vmem>>, vector<16x64xf32>,
    } else {
    }
    return
  }
  func.func @transform_0(%arg0: i32) -> (i32, i32) {
    %c0_i32 = arith.constant 0 : i32
    %c0_i32_0 = arith.constant 0 : i32
    %c0_i32_1 = arith.constant 0 : i32
    return %c0_i32, %c0_i32_0 : i32, i32
  }
  func.func @transform_1(%arg0: i32) -> (i32, i32) {
    %c0_i32 = arith.constant 0 : i32
    %c0_i32_0 = arith.constant 0 : i32
    %c0_i32_1 = arith.constant 0 : i32
    return %c0_i32, %c0_i32_0 : i32, i32
  }
  func.func @transform_2(%arg0: i32) -> (i32, i32) {
    %c0_i32 = arith.constant 0 : i32
    %c0_i32_0 = arith.constant 0 : i32
    %c0_i32_1 = arith.constant 0 : i32
    return %c0_i32, %c0_i32_0 : i32, i32
  }
  func.func @transform_3(%arg0: i32) -> (i32, i32) {
    %c0_i32 = arith.constant 0 : i32
    %c0_i32_0 = arith.constant 0 : i32
    %c0_i32_1 = arith.constant 0 : i32
    return %c0_i32, %c0_i32_0 : i32, i32
  }
  func.func @transform_4(%arg0: i32) -> (i32, i32) {
    %c0_i32 = arith.constant 0 : i32
    %c0_i32_0 = arith.constant 0 : i32
    %c0_i32_1 = arith.constant 0 : i32
    return %c0_i32, %c0_i32_0 : i32, i32
  }
  func.func @transform_5(%arg0: i32) -> (i32, i32, i32) {
    %c0_i32 = arith.constant 0 : i32
    %c0_i32_0 = arith.constant 0 : i32
    %c0_i32_1 = arith.constant 0 : i32
    return %arg0, %c0_i32, %c0_i32_0 : i32, i32, i32
  }
  func.func @transform_6(%arg0: i32) -> (i32, i32, i32) {
    %c0_i32 = arith.constant 0 : i32
    %c0_i32_0 = arith.constant 0 : i32
    %c0_i32_1 = arith.constant 0 : i32
    return %arg0, %c0_i32, %c0_i32_0 : i32, i32, i32
  }
  func.func @transform_7(%arg0: i32) -> (i32, i32, i32) {
    %c0_i32 = arith.constant 0 : i32
    %c0_i32_0 = arith.constant 0 : i32
    %c0_i32_1 = arith.constant 0 : i32
    return %arg0, %c0_i32, %c0_i32_0 : i32, i32, i32
  }
  func.func @transform_8(%arg0: i32) -> (i32, i32, i32) {
    %c0_i32 = arith.constant 0 : i32
    %c0_i32_0 = arith.constant 0 : i32
    %c0_i32_1 = arith.constant 0 : i32
    return %arg0, %c0_i32, %c0_i32_0 : i32, i32, i32
  }
  func.func @transform_9(%arg0: i32) -> (i32, i32, i32) {
    %c0_i32 = arith.constant 0 : i32
    %c0_i32_0 = arith.constant 0 : i32
    %c0_i32_1 = arith.constant 0 : i32
    return %arg0, %c0_i32, %c0_i32_0 : i32, i32, i32
  }
  func.func @transform_10(%arg0: i32) -> (i32, i32, i32) {
    %c0_i32 = arith.constant 0 : i32
    %c0_i32_0 = arith.constant 0 : i32
    %c0_i32_1 = arith.constant 0 : i32
    return %arg0, %c0_i32, %c0_i32_0 : i32, i32, i32
  }
  func.func @transform_11(%arg0: i32) -> (i32, i32, i32) {
    %c0_i32 = arith.constant 0 : i32
    %c0_i32_0 = arith.constant 0 : i32
    %c0_i32_1 = arith.constant 0 : i32
    return %arg0, %c0_i32, %c0_i32_0 : i32, i32, i32
  }
  func.func @transform_12(%arg0: i32) -> (i32, i32, i32) {
    %c0_i32 = arith.constant 0 : i32
    %c0_i32_0 = arith.constant 0 : i32
    %c0_i32_1 = arith.constant 0 : i32
    return %arg0, %c0_i32, %c0_i32_0 : i32, i32, i32
  }
  func.func @transform_13(%arg0: i32) -> (i32, i32, i32) {
    %c0_i32 = arith.constant 0 : i32
    %c0_i32_0 = arith.constant 0 : i32
    %c0_i32_1 = arith.constant 0 : i32
    return %arg0, %c0_i32, %c0_i32_0 : i32, i32, i32
  }
  func.func @transform_14(%arg0: i32) -> (i32, i32, i32) {
    %c0_i32 = arith.constant 0 : i32
    %c0_i32_0 = arith.constant 0 : i32
    %c0_i32_1 = arith.constant 0 : i32
    return %arg0, %c0_i32, %c0_i32_0 : i32, i32, i32
  }
  func.func @transform_15(%arg0: i32) -> (i32, i32, i32) {
    %c0_i32 = arith.constant 0 : i32
    %c0_i32_0 = arith.constant 0 : i32
    %c0_i32_1 = arith.constant 0 : i32
    return %arg0, %c0_i32, %c0_i32_0 : i32, i32, i32
  }
  func.func @transform_16(%arg0: i32) -> (i32, i32, i32) {
    %c0_i32 = arith.constant 0 : i32
    %c0_i32_0 = arith.constant 0 : i32
    %c0_i32_1 = arith.constant 0 : i32
    return %arg0, %c0_i32, %c0_i32_0 : i32, i32, i32
  }
  func.func @transform_17(%arg0: i32) -> (i32, i32, i32) {
    %c0_i32 = arith.constant 0 : i32
    %c0_i32_0 = arith.constant 0 : i32
    %c0_i32_1 = arith.constant 0 : i32
    return %arg0, %c0_i32, %c0_i32_0 : i32, i32, i32
  }
  func.func @transform_18(%arg0: i32) -> (i32, i32, i32) {
    %c0_i32 = arith.constant 0 : i32
    %c0_i32_0 = arith.constant 0 : i32
    %c0_i32_1 = arith.constant 0 : i32
    return %arg0, %c0_i32, %c0_i32_0 : i32, i32, i32
  }
  func.func @transform_19(%arg0: i32) -> (i32, i32, i32) {
    %c0_i32 = arith.constant 0 : i32
    %c0_i32_0 = arith.constant 0 : i32
    %c0_i32_1 = arith.constant 0 : i32
    return %arg0, %c0_i32, %c0_i32_0 : i32, i32, i32
  }
  func.func @transform_20(%arg0: i32) -> (i32, i32, i32) {
    %c0_i32 = arith.constant 0 : i32
    %c0_i32_0 = arith.constant 0 : i32
    %c0_i32_1 = arith.constant 0 : i32
    return %arg0, %c0_i32, %c0_i32_0 : i32, i32, i32
  }
  func.func @transform_21(%arg0: i32) -> (i32, i32, i32) {
    %c0_i32 = arith.constant 0 : i32
    %c0_i32_0 = arith.constant 0 : i32
    %c0_i32_1 = arith.constant 0 : i32
    return %arg0, %c0_i32, %c0_i32_0 : i32, i32, i32
  }
  func.func @transform_22(%arg0: i32) -> (i32, i32, i32) {
    %c0_i32 = arith.constant 0 : i32
    %c0_i32_0 = arith.constant 0 : i32
    %c0_i32_1 = arith.constant 0 : i32
    return %arg0, %c0_i32, %c0_i32_0 : i32, i32, i32
  }
  func.func @transform_23(%arg0: i32) -> (i32, i32, i32) {
    %c0_i32 = arith.constant 0 : i32
    %c0_i32_0 = arith.constant 0 : i32
    %c0_i32_1 = arith.constant 0 : i32
    return %arg0, %c0_i32, %c0_i32_0 : i32, i32, i32
  }
  func.func @transform_24(%arg0: i32) -> (i32, i32, i32) {
    %c0_i32 = arith.constant 0 : i32
    %c0_i32_0 = arith.constant 0 : i32
    %c0_i32_1 = arith.constant 0 : i32
    return %arg0, %c0_i32, %c0_i32_0 : i32, i32, i32
  }
  func.func @transform_25(%arg0: i32) -> (i32, i32) {
    %c0_i32 = arith.constant 0 : i32
    %c0_i32_0 = arith.constant 0 : i32
    %c0_i32_1 = arith.constant 0 : i32
    return %c0_i32, %c0_i32_0 : i32, i32
  }
  func.func @transform_26(%arg0: i32) -> (i32, i32) {
    %c0_i32 = arith.constant 0 : i32
    %c0_i32_0 = arith.constant 0 : i32
    %c0_i32_1 = arith.constant 0 : i32
    return %c0_i32, %c0_i32_0 : i32, i32
  }
  func.func @transform_27(%arg0: i32) -> (i32, i32) {
    %c0_i32 = arith.constant 0 : i32
    %c0_i32_0 = arith.constant 0 : i32
    %c0_i32_1 = arith.constant 0 : i32
    return %c0_i32, %c0_i32_0 : i32, i32
  }
  func.func @transform_28(%arg0: i32) -> (i32, i32) {
    %c0_i32 = arith.constant 0 : i32
    %c0_i32_0 = arith.constant 0 : i32
    %c0_i32_1 = arith.constant 0 : i32
    return %c0_i32, %c0_i32_0 : i32, i32
  }
  func.func @transform_29(%arg0: i32) -> (i32, i32) {
    %c0_i32 = arith.constant 0 : i32
    %c0_i32_0 = arith.constant 0 : i32
    %c0_i32_1 = arith.constant 0 : i32
    return %c0_i32, %c0_i32_0 : i32, i32
  }
}

</mosaic_0001>

<llo_original>
// kernel: eq.22
$region0: #{eq.22}
  %s0 = inlined_call_operand.vmem [shape: s32[2,10], index: 0, kind: input, shape index: {}]
  %s1 = inlined_call_operand.vmem [shape: s32[20], index: 1, kind: output, shape index: {}]
  $region1: #{eq.22} parent=0
    #allocation0 [shape = 'u8[4096]{0}', space=vmem, size = 0x1000, scoped, tag = 'scoped mem for output reshape']
    #allocation1 [shape = 'u8[4096]{0}', space=vmem, size = 0x1000, scoped, tag = 'scoped mem for input reshape']
    %s3 = sshllo.u32 0, 2
    %v4 = vld [vmem:[%s0] sm:%s3]
    %5 = vst [vmem:[#allocation1] sm:%s3] %v4
    %v6 = vld [vmem:[#allocation1] sm:$0x1]
    %vm7 = vcmask 80896
    %8 = vst.msk [vmem:[#allocation0] sm:$0x1] %vm7, %v6
    %s9 = scalar_lea.vmem [#allocation1], 1
    %v10 = vld [vmem:[%s9] sm:$0x1]
    %11 = vrot.lane.b32.xlu0 %v10, 10
    %v12 = vpop.permute.xlu0 %11
    %vm13 = vcmask 162896
    %14 = vst.msk [vmem:[#allocation0] sm:$0x1] %vm13, %v12
    %s16 = sshllo.u32 0, 1
    %v18 = vld [vmem:[#allocation0] sm:%s16]
    %s19 = sshllo.u32 0, 1
    %20 = vst [vmem:[%s1] sm:%s19] %v18

// kernel: language_transformer_forward.2
$region0: #{language_transformer_forward.2}
  #allocation0 [shape = 'u32[]', space=smem, size = 0x4, offset = 0x4, fixed_abs, tag = 'smem constant byte address 0x4 - core index']
  #allocation1 [shape = 'u32[144,128]{1,0:T(1,128)}', space=vmem, size = 0x12000, scoped, tag = 'internal scratch']
  #allocation2 [shape = 'f32[20,32]{1,0:T(8,128)}', space=vmem, size = 0x3000, scoped, tag = 'scratch operand']
  %s0 = inlined_call_operand.vmem [shape: f32[20,32], index: 0, kind: input, shape index: {}]
  %s1 = inlined_call_operand.vmem [shape: f32[20,32], index: 1, kind: input, shape index: {}]
  %s2 = inlined_call_operand.vmem [shape: f32[20,20], index: 2, kind: input, shape index: {}]
  %s3 = inlined_call_operand.vmem [shape: f32[2,32,96], index: 3, kind: input, shape index: {}]
  %s4 = inlined_call_operand.vmem [shape: f32[2,1,96], index: 4, kind: input, shape index: {}]
  %s5 = inlined_call_operand.vmem [shape: f32[2,32,32], index: 5, kind: input, shape index: {}]
  %s6 = inlined_call_operand.vmem [shape: f32[2,1,32], index: 6, kind: input, shape index: {}]
  %s7 = inlined_call_operand.vmem [shape: f32[2,1,32], index: 7, kind: input, shape index: {}]
  %s8 = inlined_call_operand.vmem [shape: f32[2,1,32], index: 8, kind: input, shape index: {}]
  %s9 = inlined_call_operand.vmem [shape: f32[2,32,64], index: 9, kind: input, shape index: {}]
  %s10 = inlined_call_operand.vmem [shape: f32[2,1,64], index: 10, kind: input, shape index: {}]
  %s11 = inlined_call_operand.vmem [shape: f32[2,64,32], index: 11, kind: input, shape index: {}]
  %s12 = inlined_call_operand.vmem [shape: f32[2,1,32], index: 12, kind: input, shape index: {}]
  %s13 = inlined_call_operand.vmem [shape: f32[2,1,32], index: 13, kind: input, shape index: {}]
  %s14 = inlined_call_operand.vmem [shape: f32[2,1,32], index: 14, kind: input, shape index: {}]
  %s15 = inlined_call_operand.vmem [shape: f32[1,32], index: 15, kind: input, shape index: {}]
  %s16 = inlined_call_operand.vmem [shape: f32[1,32], index: 16, kind: input, shape index: {}]
  %s17 = inlined_call_operand.vmem [shape: f32[20,32], index: 17, kind: output, shape index: {}]
  %s18 = sld [smem:[#allocation0]]
  $region109: #{language_transformer_forward.2} parent=0
    _
  %s20 = ssub.s32 1, %s18
  %s21 = scalar_select 0, %s20, %s18
  loop: start=0, step=1, limit=4
  $region2: #{language_transformer_forward.2} parent=0 // loop_pre_header
    _
  $region3: #{language_transformer_forward.2} parent=0 // loop_header
    %s23 = sphi 0, %s27
    %p24 = scmp.ge.s32.totalorder %s23, 4
    %s31 = sphi 0, %s31
    %s33 = sphi 0, %s31
    %s34 = sphi 0, %s33
    %s48 = sphi 0, %s34
    %s52 = sphi 0, %s52
    %s54 = sphi 0, %s52
    %s55 = sphi 0, %s54
    %s69 = sphi 0, %s55
    %s73 = sphi 0, %s73
    %s75 = sphi 0, %s73
    %s76 = sphi 0, %s75
    %s90 = sphi 0, %s76
    %s96 = sphi 0, %s98
    %s99 = sphi 0, %s96
    %s100 = sphi 0, %s99
    %s116 = sphi 0, %s100
    %s122 = sphi 0, %s124
    %s125 = sphi 0, %s122
    %s126 = sphi 0, %s125
    %s142 = sphi 0, %s126
    %s148 = sphi 0, %s150
    %s151 = sphi 0, %s148
    %s152 = sphi 0, %s151
    %s168 = sphi 0, %s152
    %s174 = sphi 0, %s176
    %s177 = sphi 0, %s174
    %s178 = sphi 0, %s177
    %s194 = sphi 0, %s178
    %s200 = sphi 0, %s202
    %s203 = sphi 0, %s200
    %s204 = sphi 0, %s203
    %s220 = sphi 0, %s204
    %s226 = sphi 0, %s228
    %s229 = sphi 0, %s226
    %s230 = sphi 0, %s229
    %s246 = sphi 0, %s230
    %s252 = sphi 0, %s254
    %s255 = sphi 0, %s252
    %s256 = sphi 0, %s255
    %s272 = sphi 0, %s256
    %s278 = sphi 0, %s280
    %s281 = sphi 0, %s278
    %s282 = sphi 0, %s281
    %s298 = sphi 0, %s282
    %s304 = sphi 0, %s306
    %s307 = sphi 0, %s304
    %s308 = sphi 0, %s307
    %s324 = sphi 0, %s308
    %s330 = sphi 0, %s332
    %s333 = sphi 0, %s330
    %s334 = sphi 0, %s333
    %s350 = sphi 0, %s334
    %s356 = sphi 0, %s358
    %s359 = sphi 0, %s356
    %s360 = sphi 0, %s359
    %s376 = sphi 0, %s360
    %s382 = sphi 0, %s384
    %s385 = sphi 0, %s382
    %s386 = sphi 0, %s385
    %s402 = sphi 0, %s386
    %s406 = sphi 0, %s406
    %s408 = sphi 0, %s406
    %s409 = sphi 0, %s408
    %s423 = sphi 0, %s409
    %s427 = sphi 0, %s427
    %s429 = sphi 0, %s427
    %s430 = sphi 0, %s429
    %s444 = sphi 0, %s430
    %s448 = sphi 0, %s448
    %s450 = sphi 0, %s448
    %s451 = sphi 0, %s450
    %s465 = sphi 0, %s451
  $region4: #{language_transformer_forward.2} parent=0 // loop_header_branch
    %26 = sbr.rel (%p24) target = $region8
  $region5: #{language_transformer_forward.2} parent=0 // loop_body
    %s28 = ssub.s32 %s23, 1
    %s29 = ssub.s32 %s23, 2
    %s30 = sadd.s32 %s23, 1
    %s32 = sadd.s32 %s31, 1
    %p35 = scmp.eq.s32.totalorder %s23, 1
    %p36 = scmp.ne.s32.totalorder %s31, %s33
    %p37 = scmp.eq.s32.totalorder %s23, 0
    %p38 = por %p36, %p37
    %p39 = scmp.ne.s32.totalorder %s31, %s33
    %p40 = scmp.eq.s32.totalorder %s28, 1
    %p41 = por %p39, %p40
    %p42 = scmp.ne.s32.totalorder %s33, %s34
    %p43 = scmp.eq.s32.totalorder %s28, 0
    %p44 = por %p42, %p43
    %p45 = scmp.ne.s32.totalorder %s33, %s34
    %p46 = scmp.eq.s32.totalorder %s29, 1
    %p47 = por %p45, %p46
    %p49 = scmp.ne.s32.totalorder %s34, %s48
    %p50 = scmp.eq.s32.totalorder %s29, 0
    %p51 = por %p49, %p50
    %s53 = sadd.s32 %s52, 1
    %p56 = scmp.eq.s32.totalorder %s23, 1
    %p57 = scmp.ne.s32.totalorder %s52, %s54
    %p58 = scmp.eq.s32.totalorder %s23, 0
    %p59 = por %p57, %p58
    %p60 = scmp.ne.s32.totalorder %s52, %s54
    %p61 = scmp.eq.s32.totalorder %s28, 1
    %p62 = por %p60, %p61
    %p63 = scmp.ne.s32.totalorder %s54, %s55
    %p64 = scmp.eq.s32.totalorder %s28, 0
    %p65 = por %p63, %p64
    %p66 = scmp.ne.s32.totalorder %s54, %s55
    %p67 = scmp.eq.s32.totalorder %s29, 1
    %p68 = por %p66, %p67
    %p70 = scmp.ne.s32.totalorder %s55, %s69
    %p71 = scmp.eq.s32.totalorder %s29, 0
    %p72 = por %p70, %p71
    %s74 = sadd.s32 %s73, 1
    %p77 = scmp.eq.s32.totalorder %s23, 1
    %p78 = scmp.ne.s32.totalorder %s73, %s75
    %p79 = scmp.eq.s32.totalorder %s23, 0
    %p80 = por %p78, %p79
    %p81 = scmp.ne.s32.totalorder %s73, %s75
    %p82 = scmp.eq.s32.totalorder %s28, 1
    %p83 = por %p81, %p82
    %p84 = scmp.ne.s32.totalorder %s75, %s76
    %p85 = scmp.eq.s32.totalorder %s28, 0
    %p86 = por %p84, %p85
    %p87 = scmp.ne.s32.totalorder %s75, %s76
    %p88 = scmp.eq.s32.totalorder %s29, 1
    %p89 = por %p87, %p88
    %p91 = scmp.ne.s32.totalorder %s76, %s90
    %p92 = scmp.eq.s32.totalorder %s29, 0
    %p93 = por %p91, %p92
    %s94 = ssub.s32 %s23, %s30
    %p95 = scmp.eq.s32.totalorder %s94, 0
    %s97 = sadd.s32 %s96, 1
    %s98 = scalar_select %p95, %s96, %s97
    %p101 = pneg %p95
    %p102 = scmp.eq.s32.totalorder %s23, 1
    %p103 = por %p101, %p102
    %p104 = scmp.ne.s32.totalorder %s96, %s99
    %p105 = scmp.eq.s32.totalorder %s23, 0
    %p106 = por %p104, %p105
    %p107 = scmp.ne.s32.totalorder %s96, %s99
    %p108 = scmp.eq.s32.totalorder %s28, 1
    %p109 = por %p107, %p108
    %p110 = scmp.ne.s32.totalorder %s99, %s100
    %p111 = scmp.eq.s32.totalorder %s28, 0
    %p112 = por %p110, %p111
    %p113 = scmp.ne.s32.totalorder %s99, %s100
    %p114 = scmp.eq.s32.totalorder %s29, 1
    %p115 = por %p113, %p114
    %p117 = scmp.ne.s32.totalorder %s100, %s116
    %p118 = scmp.eq.s32.totalorder %s29, 0
    %p119 = por %p117, %p118
    %s120 = ssub.s32 %s23, %s30
    %p121 = scmp.eq.s32.totalorder %s120, 0
    %s123 = sadd.s32 %s122, 1
    %s124 = scalar_select %p121, %s122, %s123
    %p127 = pneg %p121
    %p128 = scmp.eq.s32.totalorder %s23, 1
    %p129 = por %p127, %p128
    %p130 = scmp.ne.s32.totalorder %s122, %s125
    %p131 = scmp.eq.s32.totalorder %s23, 0
    %p132 = por %p130, %p131
    %p133 = scmp.ne.s32.totalorder %s122, %s125
    %p134 = scmp.eq.s32.totalorder %s28, 1
    %p135 = por %p133, %p134
    %p136 = scmp.ne.s32.totalorder %s125, %s126
    %p137 = scmp.eq.s32.totalorder %s28, 0
    %p138 = por %p136, %p137
    %p139 = scmp.ne.s32.totalorder %s125, %s126
    %p140 = scmp.eq.s32.totalorder %s29, 1
    %p141 = por %p139, %p140
    %p143 = scmp.ne.s32.totalorder %s126, %s142
    %p144 = scmp.eq.s32.totalorder %s29, 0
    %p145 = por %p143, %p144
    %s146 = ssub.s32 %s23, %s30
    %p147 = scmp.eq.s32.totalorder %s146, 0
    %s149 = sadd.s32 %s148, 1
    %s150 = scalar_select %p147, %s148, %s149
    %p153 = pneg %p147
    %p154 = scmp.eq.s32.totalorder %s23, 1
    %p155 = por %p153, %p154
    %p156 = scmp.ne.s32.totalorder %s148, %s151
    %p157 = scmp.eq.s32.totalorder %s23, 0
    %p158 = por %p156, %p157
    %p159 = scmp.ne.s32.totalorder %s148, %s151
    %p160 = scmp.eq.s32.totalorder %s28, 1
    %p161 = por %p159, %p160
    %p162 = scmp.ne.s32.totalorder %s151, %s152
    %p163 = scmp.eq.s32.totalorder %s28, 0
    %p164 = por %p162, %p163
    %p165 = scmp.ne.s32.totalorder %s151, %s152
    %p166 = scmp.eq.s32.totalorder %s29, 1
    %p167 = por %p165, %p166
    %p169 = scmp.ne.s32.totalorder %s152, %s168
    %p170 = scmp.eq.s32.totalorder %s29, 0
    %p171 = por %p169, %p170
    %s172 = ssub.s32 %s23, %s30
    %p173 = scmp.eq.s32.totalorder %s172, 0
    %s175 = sadd.s32 %s174, 1
    %s176 = scalar_select %p173, %s174, %s175
    %p179 = pneg %p173
    %p180 = scmp.eq.s32.totalorder %s23, 1
    %p181 = por %p179, %p180
    %p182 = scmp.ne.s32.totalorder %s174, %s177
    %p183 = scmp.eq.s32.totalorder %s23, 0
    %p184 = por %p182, %p183
    %p185 = scmp.ne.s32.totalorder %s174, %s177
    %p186 = scmp.eq.s32.totalorder %s28, 1
    %p187 = por %p185, %p186
    %p188 = scmp.ne.s32.totalorder %s177, %s178
    %p189 = scmp.eq.s32.totalorder %s28, 0
    %p190 = por %p188, %p189
    %p191 = scmp.ne.s32.totalorder %s177, %s178
    %p192 = scmp.eq.s32.totalorder %s29, 1
    %p193 = por %p191, %p192
    %p195 = scmp.ne.s32.totalorder %s178, %s194
    %p196 = scmp.eq.s32.totalorder %s29, 0
    %p197 = por %p195, %p196
    %s198 = ssub.s32 %s23, %s30
    %p199 = scmp.eq.s32.totalorder %s198, 0
    %s201 = sadd.s32 %s200, 1
    %s202 = scalar_select %p199, %s200, %s201
    %p205 = pneg %p199
    %p206 = scmp.eq.s32.totalorder %s23, 1
    %p207 = por %p205, %p206
    %p208 = scmp.ne.s32.totalorder %s200, %s203
    %p209 = scmp.eq.s32.totalorder %s23, 0
    %p210 = por %p208, %p209
    %p211 = scmp.ne.s32.totalorder %s200, %s203
    %p212 = scmp.eq.s32.totalorder %s28, 1
    %p213 = por %p211, %p212
    %p214 = scmp.ne.s32.totalorder %s203, %s204
    %p215 = scmp.eq.s32.totalorder %s28, 0
    %p216 = por %p214, %p215
    %p217 = scmp.ne.s32.totalorder %s203, %s204
    %p218 = scmp.eq.s32.totalorder %s29, 1
    %p219 = por %p217, %p218
    %p221 = scmp.ne.s32.totalorder %s204, %s220
    %p222 = scmp.eq.s32.totalorder %s29, 0
    %p223 = por %p221, %p222
    %s224 = ssub.s32 %s23, %s30
    %p225 = scmp.eq.s32.totalorder %s224, 0
    %s227 = sadd.s32 %s226, 1
    %s228 = scalar_select %p225, %s226, %s227
    %p231 = pneg %p225
    %p232 = scmp.eq.s32.totalorder %s23, 1
    %p233 = por %p231, %p232
    %p234 = scmp.ne.s32.totalorder %s226, %s229
    %p235 = scmp.eq.s32.totalorder %s23, 0
    %p236 = por %p234, %p235
    %p237 = scmp.ne.s32.totalorder %s226, %s229
    %p238 = scmp.eq.s32.totalorder %s28, 1
    %p239 = por %p237, %p238
    %p240 = scmp.ne.s32.totalorder %s229, %s230
    %p241 = scmp.eq.s32.totalorder %s28, 0
    %p242 = por %p240, %p241
    %p243 = scmp.ne.s32.totalorder %s229, %s230
    %p244 = scmp.eq.s32.totalorder %s29, 1
    %p245 = por %p243, %p244
    %p247 = scmp.ne.s32.totalorder %s230, %s246
    %p248 = scmp.eq.s32.totalorder %s29, 0
    %p249 = por %p247, %p248
    %s250 = ssub.s32 %s23, %s30
    %p251 = scmp.eq.s32.totalorder %s250, 0
    %s253 = sadd.s32 %s252, 1
    %s254 = scalar_select %p251, %s252, %s253
    %p257 = pneg %p251
    %p258 = scmp.eq.s32.totalorder %s23, 1
    %p259 = por %p257, %p258
    %p260 = scmp.ne.s32.totalorder %s252, %s255
    %p261 = scmp.eq.s32.totalorder %s23, 0
    %p262 = por %p260, %p261
    %p263 = scmp.ne.s32.totalorder %s252, %s255
    %p264 = scmp.eq.s32.totalorder %s28, 1
    %p265 = por %p263, %p264
    %p266 = scmp.ne.s32.totalorder %s255, %s256
    %p267 = scmp.eq.s32.totalorder %s28, 0
    %p268 = por %p266, %p267
    %p269 = scmp.ne.s32.totalorder %s255, %s256
    %p270 = scmp.eq.s32.totalorder %s29, 1
    %p271 = por %p269, %p270
    %p273 = scmp.ne.s32.totalorder %s256, %s272
    %p274 = scmp.eq.s32.totalorder %s29, 0
    %p275 = por %p273, %p274
    %s276 = ssub.s32 %s23, %s30
    %p277 = scmp.eq.s32.totalorder %s276, 0
    %s279 = sadd.s32 %s278, 1
    %s280 = scalar_select %p277, %s278, %s279
    %p283 = pneg %p277
    %p284 = scmp.eq.s32.totalorder %s23, 1
    %p285 = por %p283, %p284
    %p286 = scmp.ne.s32.totalorder %s278, %s281
    %p287 = scmp.eq.s32.totalorder %s23, 0
    %p288 = por %p286, %p287
    %p289 = scmp.ne.s32.totalorder %s278, %s281
    %p290 = scmp.eq.s32.totalorder %s28, 1
    %p291 = por %p289, %p290
    %p292 = scmp.ne.s32.totalorder %s281, %s282
    %p293 = scmp.eq.s32.totalorder %s28, 0
    %p294 = por %p292, %p293
    %p295 = scmp.ne.s32.totalorder %s281, %s282
    %p296 = scmp.eq.s32.totalorder %s29, 1
    %p297 = por %p295, %p296
    %p299 = scmp.ne.s32.totalorder %s282, %s298
    %p300 = scmp.eq.s32.totalorder %s29, 0
    %p301 = por %p299, %p300
    %s302 = ssub.s32 %s23, %s30
    %p303 = scmp.eq.s32.totalorder %s302, 0
    %s305 = sadd.s32 %s304, 1
    %s306 = scalar_select %p303, %s304, %s305
    %p309 = pneg %p303
    %p310 = scmp.eq.s32.totalorder %s23, 1
    %p311 = por %p309, %p310
    %p312 = scmp.ne.s32.totalorder %s304, %s307
    %p313 = scmp.eq.s32.totalorder %s23, 0
    %p314 = por %p312, %p313
    %p315 = scmp.ne.s32.totalorder %s304, %s307
    %p316 = scmp.eq.s32.totalorder %s28, 1
    %p317 = por %p315, %p316
    %p318 = scmp.ne.s32.totalorder %s307, %s308
    %p319 = scmp.eq.s32.totalorder %s28, 0
    %p320 = por %p318, %p319
    %p321 = scmp.ne.s32.totalorder %s307, %s308
    %p322 = scmp.eq.s32.totalorder %s29, 1
    %p323 = por %p321, %p322
    %p325 = scmp.ne.s32.totalorder %s308, %s324
    %p326 = scmp.eq.s32.totalorder %s29, 0
    %p327 = por %p325, %p326
    %s328 = ssub.s32 %s23, %s30
    %p329 = scmp.eq.s32.totalorder %s328, 0
    %s331 = sadd.s32 %s330, 1
    %s332 = scalar_select %p329, %s330, %s331
    %p335 = pneg %p329
    %p336 = scmp.eq.s32.totalorder %s23, 1
    %p337 = por %p335, %p336
    %p338 = scmp.ne.s32.totalorder %s330, %s333
    %p339 = scmp.eq.s32.totalorder %s23, 0
    %p340 = por %p338, %p339
    %p341 = scmp.ne.s32.totalorder %s330, %s333
    %p342 = scmp.eq.s32.totalorder %s28, 1
    %p343 = por %p341, %p342
    %p344 = scmp.ne.s32.totalorder %s333, %s334
    %p345 = scmp.eq.s32.totalorder %s28, 0
    %p346 = por %p344, %p345
    %p347 = scmp.ne.s32.totalorder %s333, %s334
    %p348 = scmp.eq.s32.totalorder %s29, 1
    %p349 = por %p347, %p348
    %p351 = scmp.ne.s32.totalorder %s334, %s350
    %p352 = scmp.eq.s32.totalorder %s29, 0
    %p353 = por %p351, %p352
    %s354 = ssub.s32 %s23, %s30
    %p355 = scmp.eq.s32.totalorder %s354, 0
    %s357 = sadd.s32 %s356, 1
    %s358 = scalar_select %p355, %s356, %s357
    %p361 = pneg %p355
    %p362 = scmp.eq.s32.totalorder %s23, 1
    %p363 = por %p361, %p362
    %p364 = scmp.ne.s32.totalorder %s356, %s359
    %p365 = scmp.eq.s32.totalorder %s23, 0
    %p366 = por %p364, %p365
    %p367 = scmp.ne.s32.totalorder %s356, %s359
    %p368 = scmp.eq.s32.totalorder %s28, 1
    %p369 = por %p367, %p368
    %p370 = scmp.ne.s32.totalorder %s359, %s360
    %p371 = scmp.eq.s32.totalorder %s28, 0
    %p372 = por %p370, %p371
    %p373 = scmp.ne.s32.totalorder %s359, %s360
    %p374 = scmp.eq.s32.totalorder %s29, 1
    %p375 = por %p373, %p374
    %p377 = scmp.ne.s32.totalorder %s360, %s376
    %p378 = scmp.eq.s32.totalorder %s29, 0
    %p379 = por %p377, %p378
    %s380 = ssub.s32 %s23, %s30
    %p381 = scmp.eq.s32.totalorder %s380, 0
    %s383 = sadd.s32 %s382, 1
    %s384 = scalar_select %p381, %s382, %s383
    %p387 = pneg %p381
    %p388 = scmp.eq.s32.totalorder %s23, 1
    %p389 = por %p387, %p388
    %p390 = scmp.ne.s32.totalorder %s382, %s385
    %p391 = scmp.eq.s32.totalorder %s23, 0
    %p392 = por %p390, %p391
    %p393 = scmp.ne.s32.totalorder %s382, %s385
    %p394 = scmp.eq.s32.totalorder %s28, 1
    %p395 = por %p393, %p394
    %p396 = scmp.ne.s32.totalorder %s385, %s386
    %p397 = scmp.eq.s32.totalorder %s28, 0
    %p398 = por %p396, %p397
    %p399 = scmp.ne.s32.totalorder %s385, %s386
    %p400 = scmp.eq.s32.totalorder %s29, 1
    %p401 = por %p399, %p400
    %p403 = scmp.ne.s32.totalorder %s386, %s402
    %p404 = scmp.eq.s32.totalorder %s29, 0
    %p405 = por %p403, %p404
    %s407 = sadd.s32 %s406, 1
    %p410 = scmp.eq.s32.totalorder %s23, 1
    %p411 = scmp.ne.s32.totalorder %s406, %s408
    %p412 = scmp.eq.s32.totalorder %s23, 0
    %p413 = por %p411, %p412
    %p414 = scmp.ne.s32.totalorder %s406, %s408
    %p415 = scmp.eq.s32.totalorder %s28, 1
    %p416 = por %p414, %p415
    %p417 = scmp.ne.s32.totalorder %s408, %s409
    %p418 = scmp.eq.s32.totalorder %s28, 0
    %p419 = por %p417, %p418
    %p420 = scmp.ne.s32.totalorder %s408, %s409
    %p421 = scmp.eq.s32.totalorder %s29, 1
    %p422 = por %p420, %p421
    %p424 = scmp.ne.s32.totalorder %s409, %s423
    %p425 = scmp.eq.s32.totalorder %s29, 0
    %p426 = por %p424, %p425
    %s428 = sadd.s32 %s427, 1
    %p431 = scmp.eq.s32.totalorder %s23, 1
    %p432 = scmp.ne.s32.totalorder %s427, %s429
    %p433 = scmp.eq.s32.totalorder %s23, 0
    %p434 = por %p432, %p433
    %p435 = scmp.ne.s32.totalorder %s427, %s429
    %p436 = scmp.eq.s32.totalorder %s28, 1
    %p437 = por %p435, %p436
    %p438 = scmp.ne.s32.totalorder %s429, %s430
    %p439 = scmp.eq.s32.totalorder %s28, 0
    %p440 = por %p438, %p439
    %p441 = scmp.ne.s32.totalorder %s429, %s430
    %p442 = scmp.eq.s32.totalorder %s29, 1
    %p443 = por %p441, %p442
    %p445 = scmp.ne.s32.totalorder %s430, %s444
    %p446 = scmp.eq.s32.totalorder %s29, 0
    %p447 = por %p445, %p446
    %s449 = sadd.s32 %s448, 1
    %p452 = scmp.eq.s32.totalorder %s23, 1
    %p453 = scmp.ne.s32.totalorder %s448, %s450
    %p454 = scmp.eq.s32.totalorder %s23, 0
    %p455 = por %p453, %p454
    %p456 = scmp.ne.s32.totalorder %s448, %s450
    %p457 = scmp.eq.s32.totalorder %s28, 1
    %p458 = por %p456, %p457
    %p459 = scmp.ne.s32.totalorder %s450, %s451
    %p460 = scmp.eq.s32.totalorder %s28, 0
    %p461 = por %p459, %p460
    %p462 = scmp.ne.s32.totalorder %s450, %s451
    %p463 = scmp.eq.s32.totalorder %s29, 1
    %p464 = por %p462, %p463
    %p466 = scmp.ne.s32.totalorder %s451, %s465
    %p467 = scmp.eq.s32.totalorder %s29, 0
    %p468 = por %p466, %p467
    %p469 = scmp.le.s32.totalorder 1, %s23
    %p470 = scmp.lt.s32.totalorder %s23, 3
    %p471 = pnand %p469, %p470
    %p472 = pneg %p471
    // Predicated region
    $region9: #{language_transformer_forward.2} parent=5 // pred_check
      _
    $region10: #{language_transformer_forward.2} parent=5 // pred_check_branch
      %474 = sbr.rel (%p471) target = $region12
    $region11: #{language_transformer_forward.2} parent=5 // pred_region
      %s475 = ssub.s32 %s23, 1
      // Predicated region
      $region13: #{language_transformer_forward.2} parent=11 // pred_check
        %p476 = pneg %p44
      $region14: #{language_transformer_forward.2} parent=11 // pred_check_branch
        %478 = sbr.rel (%p476) target = $region16
      $region15: #{language_transformer_forward.2} parent=11 // pred_region
        _
      $region16: #{language_transformer_forward.2} parent=11 // pred_fallthru
        _
      // Predicated region
      $region17: #{language_transformer_forward.2} parent=11 // pred_check
        %p479 = pneg %p65
      $region18: #{language_transformer_forward.2} parent=11 // pred_check_branch
        %481 = sbr.rel (%p479) target = $region20
      $region19: #{language_transformer_forward.2} parent=11 // pred_region
        _
      $region20: #{language_transformer_forward.2} parent=11 // pred_fallthru
        _
      // Predicated region
      $region21: #{language_transformer_forward.2} parent=11 // pred_check
        %p482 = pneg %p86
      $region22: #{language_transformer_forward.2} parent=11 // pred_check_branch
        %484 = sbr.rel (%p482) target = $region24
      $region23: #{language_transformer_forward.2} parent=11 // pred_region
        _
      $region24: #{language_transformer_forward.2} parent=11 // pred_fallthru
        _
      // Predicated region
      $region25: #{language_transformer_forward.2} parent=11 // pred_check
        %p485 = pneg %p419
      $region26: #{language_transformer_forward.2} parent=11 // pred_check_branch
        %487 = sbr.rel (%p485) target = $region28
      $region27: #{language_transformer_forward.2} parent=11 // pred_region
        _
      $region28: #{language_transformer_forward.2} parent=11 // pred_fallthru
        _
      // Predicated region
      $region29: #{language_transformer_forward.2} parent=11 // pred_check
        %p488 = pneg %p440
      $region30: #{language_transformer_forward.2} parent=11 // pred_check_branch
        %490 = sbr.rel (%p488) target = $region32
      $region31: #{language_transformer_forward.2} parent=11 // pred_region
        _
      $region32: #{language_transformer_forward.2} parent=11 // pred_fallthru
        _
    $region12: #{language_transformer_forward.2} parent=5 // pred_fallthru
      _
    %p491 = scmp.lt.s32.totalorder %s23, 2
    // Predicated region
    $region33: #{language_transformer_forward.2} parent=5 // pred_check
      %p492 = pneg %p491
    $region34: #{language_transformer_forward.2} parent=5 // pred_check_branch
      %494 = sbr.rel (%p492) target = $region36
    $region35: #{language_transformer_forward.2} parent=5 // pred_region
      // Predicated region
      $region37: #{language_transformer_forward.2} parent=35 // pred_check
        %p495 = pneg %p106
      $region38: #{language_transformer_forward.2} parent=35 // pred_check_branch
        %497 = sbr.rel (%p495) target = $region40
      $region39: #{language_transformer_forward.2} parent=35 // pred_region
        %p498 = scmp.lt.s32.totalorder %s23, 1
        %s499 = scalar_select %p498, %s23, 1
        %s500 = smul.addr %s499, 4
        %s501 = smul.addr %s500, 8
        %s502 = scalar_lea.vmem %s3, %s501
      $region40: #{language_transformer_forward.2} parent=35 // pred_fallthru
        _
      // Predicated region
      $region41: #{language_transformer_forward.2} parent=35 // pred_check
        %p503 = pneg %p132
      $region42: #{language_transformer_forward.2} parent=35 // pred_check_branch
        %505 = sbr.rel (%p503) target = $region44
      $region43: #{language_transformer_forward.2} parent=35 // pred_region
        %p506 = scmp.lt.s32.totalorder %s23, 1
        %s507 = scalar_select %p506, %s23, 1
        %s508 = scalar_lea.vmem %s4, %s507
      $region44: #{language_transformer_forward.2} parent=35 // pred_fallthru
        _
      // Predicated region
      $region45: #{language_transformer_forward.2} parent=35 // pred_check
        %p509 = pneg %p158
      $region46: #{language_transformer_forward.2} parent=35 // pred_check_branch
        %511 = sbr.rel (%p509) target = $region48
      $region47: #{language_transformer_forward.2} parent=35 // pred_region
        %p512 = scmp.lt.s32.totalorder %s23, 1
        %s513 = scalar_select %p512, %s23, 1
        %s514 = smul.addr %s513, 4
        %s515 = smul.addr %s514, 8
        %s516 = scalar_lea.vmem %s5, %s515
      $region48: #{language_transformer_forward.2} parent=35 // pred_fallthru
        _
      // Predicated region
      $region49: #{language_transformer_forward.2} parent=35 // pred_check
        %p517 = pneg %p184
      $region50: #{language_transformer_forward.2} parent=35 // pred_check_branch
        %519 = sbr.rel (%p517) target = $region52
      $region51: #{language_transformer_forward.2} parent=35 // pred_region
        %p520 = scmp.lt.s32.totalorder %s23, 1
        %s521 = scalar_select %p520, %s23, 1
        %s522 = scalar_lea.vmem %s6, %s521
      $region52: #{language_transformer_forward.2} parent=35 // pred_fallthru
        _
      // Predicated region
      $region53: #{language_transformer_forward.2} parent=35 // pred_check
        %p523 = pneg %p210
      $region54: #{language_transformer_forward.2} parent=35 // pred_check_branch
        %525 = sbr.rel (%p523) target = $region56
      $region55: #{language_transformer_forward.2} parent=35 // pred_region
        %p526 = scmp.lt.s32.totalorder %s23, 1
        %s527 = scalar_select %p526, %s23, 1
        %s528 = scalar_lea.vmem %s7, %s527
      $region56: #{language_transformer_forward.2} parent=35 // pred_fallthru
        _
      // Predicated region
      $region57: #{language_transformer_forward.2} parent=35 // pred_check
        %p529 = pneg %p236
      $region58: #{language_transformer_forward.2} parent=35 // pred_check_branch
        %531 = sbr.rel (%p529) target = $region60
      $region59: #{language_transformer_forward.2} parent=35 // pred_region
        %p532 = scmp.lt.s32.totalorder %s23, 1
        %s533 = scalar_select %p532, %s23, 1
        %s534 = scalar_lea.vmem %s8, %s533
      $region60: #{language_transformer_forward.2} parent=35 // pred_fallthru
        _
      // Predicated region
      $region61: #{language_transformer_forward.2} parent=35 // pred_check
        %p535 = pneg %p262
      $region62: #{language_transformer_forward.2} parent=35 // pred_check_branch
        %537 = sbr.rel (%p535) target = $region64
      $region63: #{language_transformer_forward.2} parent=35 // pred_region
        %p538 = scmp.lt.s32.totalorder %s23, 1
        %s539 = scalar_select %p538, %s23, 1
        %s540 = smul.addr %s539, 4
        %s541 = smul.addr %s540, 8
        %s542 = scalar_lea.vmem %s9, %s541
      $region64: #{language_transformer_forward.2} parent=35 // pred_fallthru
        _
      // Predicated region
      $region65: #{language_transformer_forward.2} parent=35 // pred_check
        %p543 = pneg %p288
      $region66: #{language_transformer_forward.2} parent=35 // pred_check_branch
        %545 = sbr.rel (%p543) target = $region68
      $region67: #{language_transformer_forward.2} parent=35 // pred_region
        %p546 = scmp.lt.s32.totalorder %s23, 1
        %s547 = scalar_select %p546, %s23, 1
        %s548 = scalar_lea.vmem %s10, %s547
      $region68: #{language_transformer_forward.2} parent=35 // pred_fallthru
        _
      // Predicated region
      $region69: #{language_transformer_forward.2} parent=35 // pred_check
        %p549 = pneg %p314
      $region70: #{language_transformer_forward.2} parent=35 // pred_check_branch
        %551 = sbr.rel (%p549) target = $region72
      $region71: #{language_transformer_forward.2} parent=35 // pred_region
        %p552 = scmp.lt.s32.totalorder %s23, 1
        %s553 = scalar_select %p552, %s23, 1
        %s554 = smul.addr %s553, 8
        %s555 = smul.addr %s554, 8
        %s556 = scalar_lea.vmem %s11, %s555
      $region72: #{language_transformer_forward.2} parent=35 // pred_fallthru
        _
      // Predicated region
      $region73: #{language_transformer_forward.2} parent=35 // pred_check
        %p557 = pneg %p340
      $region74: #{language_transformer_forward.2} parent=35 // pred_check_branch
        %559 = sbr.rel (%p557) target = $region76
      $region75: #{language_transformer_forward.2} parent=35 // pred_region
        %p560 = scmp.lt.s32.totalorder %s23, 1
        %s561 = scalar_select %p560, %s23, 1
        %s562 = scalar_lea.vmem %s12, %s561
      $region76: #{language_transformer_forward.2} parent=35 // pred_fallthru
        _
      // Predicated region
      $region77: #{language_transformer_forward.2} parent=35 // pred_check
        %p563 = pneg %p366
      $region78: #{language_transformer_forward.2} parent=35 // pred_check_branch
        %565 = sbr.rel (%p563) target = $region80
      $region79: #{language_transformer_forward.2} parent=35 // pred_region
        %p566 = scmp.lt.s32.totalorder %s23, 1
        %s567 = scalar_select %p566, %s23, 1
        %s568 = scalar_lea.vmem %s13, %s567
      $region80: #{language_transformer_forward.2} parent=35 // pred_fallthru
        _
      // Predicated region
      $region81: #{language_transformer_forward.2} parent=35 // pred_check
        %p569 = pneg %p392
      $region82: #{language_transformer_forward.2} parent=35 // pred_check_branch
        %571 = sbr.rel (%p569) target = $region84
      $region83: #{language_transformer_forward.2} parent=35 // pred_region
        %p572 = scmp.lt.s32.totalorder %s23, 1
        %s573 = scalar_select %p572, %s23, 1
        %s574 = scalar_lea.vmem %s14, %s573
      $region84: #{language_transformer_forward.2} parent=35 // pred_fallthru
        _
    $region36: #{language_transformer_forward.2} parent=5 // pred_fallthru
      _
    %p575 = scmp.le.s32.totalorder 1, %s23
    %p576 = scmp.lt.s32.totalorder %s23, 3
    %p577 = pnand %p575, %p576
    %p578 = pneg %p577
    // Predicated region
    $region85: #{language_transformer_forward.2} parent=5 // pred_check
      _
    $region86: #{language_transformer_forward.2} parent=5 // pred_check_branch
      %580 = sbr.rel (%p577) target = $region88
    $region87: #{language_transformer_forward.2} parent=5 // pred_region
      %s581 = ssub.s32 %s23, 1
      %p582 = pneg %p44
      %p583 = pneg %p41
      %p584 = pneg %p65
      %p585 = pneg %p62
      %p586 = pneg %p86
      %p587 = pneg %p83
      %p588 = scmp.lt.s32.totalorder %s28, 1
      %s589 = scalar_select %p588, %s28, 1
      %s590 = smul.addr %s589, 4
      %s591 = smul.addr %s590, 8
      %s592 = scalar_lea.vmem %s3, %s591
      %p593 = pneg %p112
      %p594 = pneg %p109
      %p595 = scmp.lt.s32.totalorder %s28, 1
      %s596 = scalar_select %p595, %s28, 1
      %s597 = scalar_lea.vmem %s4, %s596
      %p598 = pneg %p138
      %p599 = pneg %p135
      %p600 = scmp.lt.s32.totalorder %s28, 1
      %s601 = scalar_select %p600, %s28, 1
      %s602 = smul.addr %s601, 4
      %s603 = smul.addr %s602, 8
      %s604 = scalar_lea.vmem %s5, %s603
      %p605 = pneg %p164
      %p606 = pneg %p161
      %p607 = scmp.lt.s32.totalorder %s28, 1
      %s608 = scalar_select %p607, %s28, 1
      %s609 = scalar_lea.vmem %s6, %s608
      %p610 = pneg %p190
      %p611 = pneg %p187
      %p612 = scmp.lt.s32.totalorder %s28, 1
      %s613 = scalar_select %p612, %s28, 1
      %s614 = scalar_lea.vmem %s7, %s613
      %p615 = pneg %p216
      %p616 = pneg %p213
      %p617 = scmp.lt.s32.totalorder %s28, 1
      %s618 = scalar_select %p617, %s28, 1
      %s619 = scalar_lea.vmem %s8, %s618
      %p620 = pneg %p242
      %p621 = pneg %p239
      %p622 = scmp.lt.s32.totalorder %s28, 1
      %s623 = scalar_select %p622, %s28, 1
      %s624 = smul.addr %s623, 4
      %s625 = smul.addr %s624, 8
      %s626 = scalar_lea.vmem %s9, %s625
      %p627 = pneg %p268
      %p628 = pneg %p265
      %p629 = scmp.lt.s32.totalorder %s28, 1
      %s630 = scalar_select %p629, %s28, 1
      %s631 = scalar_lea.vmem %s10, %s630
      %p632 = pneg %p294
      %p633 = pneg %p291
      %p634 = scmp.lt.s32.totalorder %s28, 1
      %s635 = scalar_select %p634, %s28, 1
      %s636 = smul.addr %s635, 8
      %s637 = smul.addr %s636, 8
      %s638 = scalar_lea.vmem %s11, %s637
      %p639 = pneg %p320
      %p640 = pneg %p317
      %p641 = scmp.lt.s32.totalorder %s28, 1
      %s642 = scalar_select %p641, %s28, 1
      %s643 = scalar_lea.vmem %s12, %s642
      %p644 = pneg %p346
      %p645 = pneg %p343
      %p646 = scmp.lt.s32.totalorder %s28, 1
      %s647 = scalar_select %p646, %s28, 1
      %s648 = scalar_lea.vmem %s13, %s647
      %p649 = pneg %p372
      %p650 = pneg %p369
      %p651 = scmp.lt.s32.totalorder %s28, 1
      %s652 = scalar_select %p651, %s28, 1
      %s653 = scalar_lea.vmem %s14, %s652
      %p654 = pneg %p398
      %p655 = pneg %p395
      %p656 = pneg %p419
      %p657 = pneg %p416
      %p658 = pneg %p440
      %p659 = pneg %p437
      %p660 = pneg %p461
      %p661 = pneg %p458
      %p662 = scmp.lt.s32.totalorder %s28, 1
      %s663 = scalar_select %p662, %s28, 1
      %s664 = smul.addr %s663, 4
      %s665 = smul.addr %s664, 8
      %s666 = scalar_lea.vmem %s3, %s665
      %p667 = scmp.lt.s32.totalorder %s28, 1
      %s668 = scalar_select %p667, %s28, 1
      %s669 = scalar_lea.vmem %s4, %s668
      %p670 = scmp.lt.s32.totalorder %s28, 1
      %s671 = scalar_select %p670, %s28, 1
      %s672 = smul.addr %s671, 4
      %s673 = smul.addr %s672, 8
      %s674 = scalar_lea.vmem %s5, %s673
      %p675 = scmp.lt.s32.totalorder %s28, 1
      %s676 = scalar_select %p675, %s28, 1
      %s677 = scalar_lea.vmem %s6, %s676
      %p678 = scmp.lt.s32.totalorder %s28, 1
      %s679 = scalar_select %p678, %s28, 1
      %s680 = scalar_lea.vmem %s7, %s679
      %p681 = scmp.lt.s32.totalorder %s28, 1
      %s682 = scalar_select %p681, %s28, 1
      %s683 = scalar_lea.vmem %s8, %s682
      %p684 = scmp.lt.s32.totalorder %s28, 1
      %s685 = scalar_select %p684, %s28, 1
      %s686 = smul.addr %s685, 4
      %s687 = smul.addr %s686, 8
      %s688 = scalar_lea.vmem %s9, %s687
      %p689 = scmp.lt.s32.totalorder %s28, 1
      %s690 = scalar_select %p689, %s28, 1
      %s691 = scalar_lea.vmem %s10, %s690
      %p692 = scmp.lt.s32.totalorder %s28, 1
      %s693 = scalar_select %p692, %s28, 1
      %s694 = smul.addr %s693, 8
      %s695 = smul.addr %s694, 8
      %s696 = scalar_lea.vmem %s11, %s695
      %p697 = scmp.lt.s32.totalorder %s28, 1
      %s698 = scalar_select %p697, %s28, 1
      %s699 = scalar_lea.vmem %s12, %s698
      %p700 = scmp.lt.s32.totalorder %s28, 1
      %s701 = scalar_select %p700, %s28, 1
      %s702 = scalar_lea.vmem %s13, %s701
      %p703 = scmp.lt.s32.totalorder %s28, 1
      %s704 = scalar_select %p703, %s28, 1
      %s705 = scalar_lea.vmem %s14, %s704
      %p707 = scmp.eq.s32.totalorder %s28, 0
      // Predicated region
      $region89: #{language_transformer_forward.2} parent=87 // pred_check
        %p708 = pneg %p707
      $region90: #{language_transformer_forward.2} parent=87 // pred_check_branch
        %710 = sbr.rel (%p708) target = $region92
      $region91: #{language_transformer_forward.2} parent=87 // pred_region
        %v711 = vld [vmem:[%s0] sm:$0xff]
        %v712 = vld [vmem:[%s0 + $0x8] sm:$0xff]
        %v713 = vld [vmem:[%s0 + $0x10] sm:$0xf]
        %v714 = vmul.f32 %v711, 5.656854
        %v715 = vmul.f32 %v712, 5.656854
        %v716 = vmul.f32 %v713, 5.656854
        %v717 = vld [vmem:[%s1] sm:$0xff]
        %v718 = vld [vmem:[%s1 + $0x8] sm:$0xff]
        %v719 = vld [vmem:[%s1 + $0x10] sm:$0xf]
        %v720 = vadd.f32 %v714, %v717
        %v721 = vadd.f32 %v715, %v718
        %v722 = vadd.f32 %v716, %v719
        %vm723 = vcmask 261120
        %724 = vst.msk [vmem:[#allocation2] sm:$0xff] %vm723, %v720
        %725 = vst.msk [vmem:[#allocation2 + $0x8] sm:$0xff] %vm723, %v721
        %vm726 = vcmask 257024
        %727 = vst.msk [vmem:[#allocation2 + $0x10] sm:$0xf] %vm726, %v722
      $region92: #{language_transformer_forward.2} parent=87 // pred_fallthru
        _
      %v728 = vld [vmem:[#allocation2] sm:$0xff]
      %v729 = vld [vmem:[#allocation2 + $0x8] sm:$0xff]
      %v730 = vld [vmem:[#allocation2 + $0x10] sm:$0xf]
      %v731 = vpack.c.bf16 %v729, %v728
      %v732 = vpack.c.bf16 %v730, %v730
      %v733 = vld [vmem:[%s666] sm:$0xff]
      %v734 = vld [vmem:[%s666 + $0x8] sm:$0xff]
      %v735 = vld [vmem:[%s666 + $0x10] sm:$0xff]
      %v736 = vld [vmem:[%s666 + $0x18] sm:$0xff]
      %v737 = vpack.c.bf16 %v734, %v733
      %v738 = vpack.c.bf16 %v736, %v735
      %v739 = vld [vmem:[%s669] sm:$0x1]
      %v741 = vlaneseq
      %v742 = vshrl.u32 %v741, 7
      %v743 = vsub.s32 0, %v742
      %v744 = vrot.slane %v739, %v743
      %vm746 = vcmask 261120
      %v748 = vsel %vm746, %v731, 0
      %v751 = vsel %vm746, %v732, 0
      %753 = vmatprep.subr.bf16.mxu0 0
      %754 = vmatpush1.bf16.msra.mxu0 %v737
      %755 = vmatprep.subr.bf16.mxu0 0
      %756 = vmatpush1.bf16.msra.mxu0 %v738
      %757 = vmatprep.subr.bf16.mxu0 0
      %758 = vmatpush1.bf16.msra.mxu0 0
      %759 = vmatprep.subr.bf16.mxu0 0
      %760 = vmatpush1.bf16.msra.mxu0 0
      %761 = vmatprep.subr.bf16.mxu0 0
      %762 = vmatpush1.bf16.msra.mxu0 0
      %763 = vmatprep.subr.bf16.mxu0 0
      %764 = vmatpush1.bf16.msra.mxu0 0
      %765 = vmatprep.subr.bf16.mxu0 0
      %766 = vmatpush1.bf16.msra.mxu0 0
      %767 = vmatprep.subr.bf16.mxu0 0
      %768 = vmatpush1.bf16.msra.mxu0 0
      %769 = vmatprep.subr.bf16.mxu0 0
      %770 = vmatpush1.bf16.msra.mxu0 0
      %771 = vmatprep.subr.bf16.mxu0 0
      %772 = vmatpush1.bf16.msra.mxu0 0
      %773 = vmatprep.subr.bf16.mxu0 0
      %774 = vmatpush1.bf16.msra.mxu0 0
      %775 = vmatprep.subr.bf16.mxu0 0
      %776 = vmatpush1.bf16.msra.mxu0 0
      %777 = vmatprep.subr.bf16.mxu0 0
      %778 = vmatpush1.bf16.msra.mxu0 0
      %779 = vmatprep.subr.bf16.mxu0 0
      %780 = vmatpush1.bf16.msra.mxu0 0
      %781 = vmatprep.subr.bf16.mxu0 0
      %782 = vmatpush1.bf16.msra.mxu0 0
      %783 = vmatprep.subr.bf16.mxu0 0
      %784 = vmatpush1.bf16.msra.mxu0 0
      %785 = vmatprep.mubr.bf16.mxu0 0
      %786 = vmatmul.mubr.bf16.gmra.mrb[0].mxu0 %v748
      %v787 = vpop.f32.mrb[0].mxu0
      %v788 = vadd.f32 %v744, %v787
      %v789 = vpop.f32.mrb[0].mxu0
      %v790 = vpop.f32.mrb[0].mxu0
      %v791 = vadd.f32 %v744, %v790
      %v792 = vpop.f32.mrb[0].mxu0
      %793 = vmatprep.mubr.bf16.mxu0 0
      %794 = vmatmul.mubr.bf16.gmra.mrb[0].mxu0 %v751
      %v795 = vpop.f32.mrb[0].mxu0
      %v796 = vadd.f32 %v744, %v795
      %v797 = vpop.f32.mrb[0].mxu0
      %v798 = vpop.f32.mrb[0].mxu0
      %v799 = vpop.f32.mrb[0].mxu0
      %800 = vdwg.mxu0
      %v801 = vld [vmem:[%s674] sm:$0xff]
      %v802 = vld [vmem:[%s674 + $0x8] sm:$0xff]
      %v803 = vld [vmem:[%s674 + $0x10] sm:$0xff]
      %v804 = vld [vmem:[%s674 + $0x18] sm:$0xff]
      %v805 = vld [vmem:[%s2] sm:$0xff]
      %v806 = vld [vmem:[%s2 + $0x8] sm:$0xff]
      %v807 = vld [vmem:[%s2 + $0x10] sm:$0xf]
      %v808 = vlaneseq
      %v809 = vand.u32 %v808, 127
      %813 = vrot.lane.b32.xlu0 %v788, 96
      %v814 = vpop.permute.xlu0 %813
      %815 = vrot.lane.b32.xlu0 %v791, 96
      %v816 = vpop.permute.xlu0 %815
      %817 = vrot.lane.b32.xlu0 %v796, 96
      %v818 = vpop.permute.xlu0 %817
      %vm819 = vcmask 64512
      %v820 = vsel %vm819, %v788, 0
      %v822 = vsel %vm819, %v791, 0
      %v824 = vsel %vm819, %v796, 0
      %v826 = vsel %vm819, %v814, 0
      %v828 = vsel %vm819, %v816, 0
      %v830 = vsel %vm819, %v818, 0
      %832 = vmatprep.subr.mxu0 0.0
      %833 = vmatpush1.xpose.msra.mxu0 %v826
      %834 = vmatprep.subr.mxu0 0.0
      %835 = vmatpush1.xpose.msra.mxu0 %v828
      %836 = vmatprep.subr.mxu0 0.0
      %837 = vmatpush1.xpose.msra.mxu0 %v830
      %838 = vmatprep.subr.mxu0 0.0
      %839 = vmatpush1.xpose.msra.mxu0 0.0
      %840 = vmatprep.subr.mxu0 0.0
      %841 = vmatpush1.xpose.msra.mxu0 0.0
      %842 = vmatprep.subr.mxu0 0.0
      %843 = vmatpush1.xpose.msra.mxu0 0.0
      %844 = vmatprep.subr.mxu0 0.0
      %845 = vmatpush1.xpose.msra.mxu0 0.0
      %846 = vmatprep.subr.mxu0 0.0
      %847 = vmatpush1.xpose.msra.mxu0 0.0
      %848 = vmatprep.subr.mxu0 0.0
      %849 = vmatpush1.xpose.msra.mxu0 0.0
      %850 = vmatprep.subr.mxu0 0.0
      %851 = vmatpush1.xpose.msra.mxu0 0.0
      %852 = vmatprep.subr.mxu0 0.0
      %853 = vmatpush1.xpose.msra.mxu0 0.0
      %854 = vmatprep.subr.mxu0 0.0
      %855 = vmatpush1.xpose.msra.mxu0 0.0
      %856 = vmatprep.subr.mxu0 0.0
      %857 = vmatpush1.xpose.msra.mxu0 0.0
      %858 = vmatprep.subr.mxu0 0.0
      %859 = vmatpush1.xpose.msra.mxu0 0.0
      %860 = vmatprep.subr.mxu0 0.0
      %861 = vmatpush1.xpose.msra.mxu0 0.0
      %862 = vmatprep.subr.mxu0 0.0
      %863 = vmatpush1.xpose.msra.mxu0 0.0
      %864 = vmatprep.subr.mxu0 0.0
      %865 = vmatpush1.xpose.msra.mxu0 0.0
      %866 = vmatprep.subr.mxu0 0.0
      %867 = vmatpush1.xpose.msra.mxu0 0.0
      %868 = vmatprep.subr.mxu0 0.0
      %869 = vmatpush1.xpose.msra.mxu0 0.0
      %870 = vmatprep.subr.mxu0 0.0
      %871 = vmatpush1.xpose.msra.mxu0 0.0
      %872 = vmatprep.subr.mxu0 0.0
      %873 = vmatpush1.xpose.msra.mxu0 0.0
      %874 = vmatprep.subr.mxu0 0.0
      %875 = vmatpush1.xpose.msra.mxu0 0.0
      %876 = vmatprep.subr.mxu0 0.0
      %877 = vmatpush1.xpose.msra.mxu0 0.0
      %878 = vmatprep.subr.mxu0 0.0
      %879 = vmatpush1.xpose.msra.mxu0 0.0
      %880 = vmatprep.subr.mxu0 0.0
      %881 = vmatpush1.xpose.msra.mxu0 0.0
      %882 = vmatprep.subr.mxu0 0.0
      %883 = vmatpush1.xpose.msra.mxu0 0.0
      %884 = vmatprep.subr.mxu0 0.0
      %885 = vmatpush1.xpose.msra.mxu0 0.0
      %886 = vmatprep.subr.mxu0 0.0
      %887 = vmatpush1.xpose.msra.mxu0 0.0
      %888 = vmatprep.subr.mxu0 0.0
      %889 = vmatpush1.xpose.msra.mxu0 0.0
      %890 = vmatprep.subr.mxu0 0.0
      %891 = vmatpush1.xpose.msra.mxu0 0.0
      %892 = vmatprep.subr.mxu0 0.0
      %893 = vmatpush1.xpose.msra.mxu0 0.0
      %894 = vmatprep.subr.mxu0 0.0
      %895 = vmatpush1.xpose.msra.mxu0 0.0
      %896 = vmatprep.mubr.f32.mxu0 0.0
      %897 = vmatmul.mubr.f32.gmra.mrb[0].mxu0 %v820
      %v898 = vpop.f32.mrb[0].mxu0
      %v899 = vadd.f32 %v805, %v898
      %v900 = vpop.f32.mrb[0].mxu0
      %901 = vmatprep.mubr.f32.mxu0 0.0
      %902 = vmatmul.mubr.f32.gmra.mrb[0].mxu0 %v822
      %v903 = vpop.f32.mrb[0].mxu0
      %v904 = vadd.f32 %v806, %v903
      %v905 = vpop.f32.mrb[0].mxu0
      %906 = vmatprep.mubr.f32.mxu0 0.0
      %907 = vmatmul.mubr.f32.gmra.mrb[0].mxu0 %v824
      %v908 = vpop.f32.mrb[0].mxu0
      %v909 = vadd.f32 %v807, %v908
      %v910 = vpop.f32.mrb[0].mxu0
      %911 = vdwg.mxu0
      %vm912 = vcmask 162816
      %v913 = vsel %vm912, %v899, -inf
      %914 = vmax.xlane.f32.xlu0 %v913
      %v915 = vpop.xlane.xlu0 %914
      %v916 = vsel %vm912, %v904, -inf
      %917 = vmax.xlane.f32.xlu0 %v916
      %v918 = vpop.xlane.xlu0 %917
      %vm919 = vcmask 158720
      %v920 = vsel %vm919, %v909, -inf
      %921 = vmax.xlane.f32.xlu0 %v920
      %v922 = vpop.xlane.xlu0 %921
      %v923 = vsub.f32 %v899, %v915
      %v924 = vsub.f32 %v904, %v918
      %v925 = vsub.f32 %v909, %v922
      %v926 = vmul.f32 %v923, 1.442695
      %v927 = vpow.pop %v926
      %v928 = vmul.f32 %v924, 1.442695
      %v929 = vpow.pop %v928
      %v930 = vmul.f32 %v925, 1.442695
      %v931 = vpow.pop %v930
      %v932 = vsel %vm912, %v927, 0.0
      %933 = vadd.xlane.f32.xlu0 %v932
      %v934 = vpop.xlane.xlu0 %933
      %v935 = vsel %vm912, %v929, 0.0
      %936 = vadd.xlane.f32.xlu0 %v935
      %v937 = vpop.xlane.xlu0 %936
      %v938 = vsel %vm919, %v931, 0.0
      %939 = vadd.xlane.f32.xlu0 %v938
      %v940 = vpop.xlane.xlu0 %939
      %v941 = vrcp.pop %v934
      %v942 = vrcp.pop %v937
      %v943 = vrcp.pop %v940
      %v944 = vmul.f32 %v927, %v941
      %v945 = vmul.f32 %v929, %v942
      %v946 = vmul.f32 %v931, %v943
      %vm947 = vcmp.ge.s32.totalorder %v809, 0
      %vm948 = vcmp.lt.s32.totalorder %v809, 8
      %vm949 = vmand %vm947, %vm948
      %v950 = vsel %vm949, 1, 0
      %vm951 = vcmp.eq.s32.totalorder %v950, 1
      %952 = vrot.lane.b32.xlu0 %v788, 64
      %v953 = vpop.permute.xlu0 %952
      %954 = vrot.lane.b32.xlu0 %v791, 64
      %v955 = vpop.permute.xlu0 %954
      %956 = vrot.lane.b32.xlu0 %v796, 64
      %v957 = vpop.permute.xlu0 %956
      %v961 = vsel %vm951, %v953, 0.0
      %v962 = vsel %vm951, %v955, 0.0
      %v963 = vsel %vm951, %v957, 0.0
      %v964 = vpack.c.bf16 %v945, %v944
      %v965 = vpack.c.bf16 %v946, %v946
      %v966 = vpack.c.bf16 %v962, %v961
      %v967 = vpack.c.bf16 %v963, %v963
      %968 = vrot.lane.b32.xlu0 %v788, 120
      %v969 = vpop.permute.xlu0 %968
      %970 = vrot.lane.b32.xlu0 %v791, 120
      %v971 = vpop.permute.xlu0 %970
      %972 = vrot.lane.b32.xlu0 %v796, 120
      %v973 = vpop.permute.xlu0 %972
      %974 = vrot.lane.b32.xlu0 %v788, 88
      %v975 = vpop.permute.xlu0 %974
      %976 = vrot.lane.b32.xlu0 %v791, 88
      %v977 = vpop.permute.xlu0 %976
      %978 = vrot.lane.b32.xlu0 %v796, 88
      %v979 = vpop.permute.xlu0 %978
      %v980 = vsel %vm819, %v969, 0
      %v982 = vsel %vm819, %v971, 0
      %v984 = vsel %vm819, %v973, 0
      %v986 = vsel %vm819, %v975, 0
      %v988 = vsel %vm819, %v977, 0
      %v990 = vsel %vm819, %v979, 0
      %992 = vmatprep.subr.mxu0 0.0
      %993 = vmatpush1.xpose.msra.mxu0 %v986
      %994 = vmatprep.subr.mxu0 0.0
      %995 = vmatpush1.xpose.msra.mxu0 %v988
      %996 = vmatprep.subr.mxu0 0.0
      %997 = vmatpush1.xpose.msra.mxu0 %v990
      %998 = vmatprep.subr.mxu0 0.0
      %999 = vmatpush1.xpose.msra.mxu0 0.0
      %1000 = vmatprep.subr.mxu0 0.0
      %1001 = vmatpush1.xpose.msra.mxu0 0.0
      %1002 = vmatprep.subr.mxu0 0.0
      %1003 = vmatpush1.xpose.msra.mxu0 0.0
      %1004 = vmatprep.subr.mxu0 0.0
      %1005 = vmatpush1.xpose.msra.mxu0 0.0
      %1006 = vmatprep.subr.mxu0 0.0
      %1007 = vmatpush1.xpose.msra.mxu0 0.0
      %1008 = vmatprep.subr.mxu0 0.0
      %1009 = vmatpush1.xpose.msra.mxu0 0.0
      %1010 = vmatprep.subr.mxu0 0.0
      %1011 = vmatpush1.xpose.msra.mxu0 0.0
      %1012 = vmatprep.subr.mxu0 0.0
      %1013 = vmatpush1.xpose.msra.mxu0 0.0
      %1014 = vmatprep.subr.mxu0 0.0
      %1015 = vmatpush1.xpose.msra.mxu0 0.0
      %1016 = vmatprep.subr.mxu0 0.0
      %1017 = vmatpush1.xpose.msra.mxu0 0.0
      %1018 = vmatprep.subr.mxu0 0.0
      %1019 = vmatpush1.xpose.msra.mxu0 0.0
      %1020 = vmatprep.subr.mxu0 0.0
      %1021 = vmatpush1.xpose.msra.mxu0 0.0
      %1022 = vmatprep.subr.mxu0 0.0
      %1023 = vmatpush1.xpose.msra.mxu0 0.0
      %1024 = vmatprep.subr.mxu0 0.0
      %1025 = vmatpush1.xpose.msra.mxu0 0.0
      %1026 = vmatprep.subr.mxu0 0.0
      %1027 = vmatpush1.xpose.msra.mxu0 0.0
      %1028 = vmatprep.subr.mxu0 0.0
      %1029 = vmatpush1.xpose.msra.mxu0 0.0
      %1030 = vmatprep.subr.mxu0 0.0
      %1031 = vmatpush1.xpose.msra.mxu0 0.0
      %1032 = vmatprep.subr.mxu0 0.0
      %1033 = vmatpush1.xpose.msra.mxu0 0.0
      %1034 = vmatprep.subr.mxu0 0.0
      %1035 = vmatpush1.xpose.msra.mxu0 0.0
      %1036 = vmatprep.subr.mxu0 0.0
      %1037 = vmatpush1.xpose.msra.mxu0 0.0
      %1038 = vmatprep.subr.mxu0 0.0
      %1039 = vmatpush1.xpose.msra.mxu0 0.0
      %1040 = vmatprep.subr.mxu0 0.0
      %1041 = vmatpush1.xpose.msra.mxu0 0.0
      %1042 = vmatprep.subr.mxu0 0.0
      %1043 = vmatpush1.xpose.msra.mxu0 0.0
      %1044 = vmatprep.subr.mxu0 0.0
      %1045 = vmatpush1.xpose.msra.mxu0 0.0
      %1046 = vmatprep.subr.mxu0 0.0
      %1047 = vmatpush1.xpose.msra.mxu0 0.0
      %1048 = vmatprep.subr.mxu0 0.0
      %1049 = vmatpush1.xpose.msra.mxu0 0.0
      %1050 = vmatprep.subr.mxu0 0.0
      %1051 = vmatpush1.xpose.msra.mxu0 0.0
      %1052 = vmatprep.subr.mxu0 0.0
      %1053 = vmatpush1.xpose.msra.mxu0 0.0
      %1054 = vmatprep.subr.mxu0 0.0
      %1055 = vmatpush1.xpose.msra.mxu0 0.0
      %1056 = vmatprep.mubr.f32.mxu0 0.0
      %1057 = vmatmul.mubr.f32.gmra.mrb[0].mxu0 %v980
      %v1058 = vpop.f32.mrb[0].mxu0
      %v1059 = vadd.f32 %v805, %v1058
      %v1060 = vpop.f32.mrb[0].mxu0
      %1061 = vmatprep.mubr.f32.mxu0 0.0
      %1062 = vmatmul.mubr.f32.gmra.mrb[0].mxu0 %v982
      %v1063 = vpop.f32.mrb[0].mxu0
      %v1064 = vadd.f32 %v806, %v1063
      %v1065 = vpop.f32.mrb[0].mxu0
      %1066 = vmatprep.mubr.f32.mxu0 0.0
      %1067 = vmatmul.mubr.f32.gmra.mrb[0].mxu0 %v984
      %v1068 = vpop.f32.mrb[0].mxu0
      %v1069 = vadd.f32 %v807, %v1068
      %v1070 = vpop.f32.mrb[0].mxu0
      %1071 = vdwg.mxu0
      %v1072 = vsel %vm912, %v1059, -inf
      %1073 = vmax.xlane.f32.xlu0 %v1072
      %v1074 = vpop.xlane.xlu0 %1073
      %v1075 = vsel %vm912, %v1064, -inf
      %1076 = vmax.xlane.f32.xlu0 %v1075
      %v1077 = vpop.xlane.xlu0 %1076
      %v1078 = vsel %vm919, %v1069, -inf
      %1079 = vmax.xlane.f32.xlu0 %v1078
      %v1080 = vpop.xlane.xlu0 %1079
      %v1081 = vsub.f32 %v1059, %v1074
      %v1082 = vsub.f32 %v1064, %v1077
      %v1083 = vsub.f32 %v1069, %v1080
      %v1084 = vmul.f32 %v1081, 1.442695
      %v1085 = vpow.pop %v1084
      %v1086 = vmul.f32 %v1082, 1.442695
      %v1087 = vpow.pop %v1086
      %v1088 = vmul.f32 %v1083, 1.442695
      %v1089 = vpow.pop %v1088
      %v1090 = vsel %vm912, %v1085, 0.0
      %1091 = vadd.xlane.f32.xlu0 %v1090
      %v1092 = vpop.xlane.xlu0 %1091
      %v1093 = vsel %vm912, %v1087, 0.0
      %1094 = vadd.xlane.f32.xlu0 %v1093
      %v1095 = vpop.xlane.xlu0 %1094
      %v1096 = vsel %vm919, %v1089, 0.0
      %1097 = vadd.xlane.f32.xlu0 %v1096
      %v1098 = vpop.xlane.xlu0 %1097
      %v1099 = vrcp.pop %v1092
      %v1100 = vrcp.pop %v1095
      %v1101 = vrcp.pop %v1098
      %v1102 = vmul.f32 %v1085, %v1099
      %v1103 = vmul.f32 %v1087, %v1100
      %v1104 = vmul.f32 %v1089, %v1101
      %vm1105 = vcmp.ge.s32.totalorder %v809, 8
      %vm1106 = vcmp.lt.s32.totalorder %v809, 16
      %vm1107 = vmand %vm1105, %vm1106
      %v1108 = vsel %vm1107, 1, 0
      %vm1109 = vcmp.eq.s32.totalorder %v1108, 1
      %v1110 = vsel %vm1109, %v953, 0.0
      %v1111 = vsel %vm1109, %v955, 0.0
      %v1112 = vsel %vm1109, %v957, 0.0
      %v1113 = vpack.c.bf16 %v1103, %v1102
      %v1114 = vpack.c.bf16 %v1104, %v1104
      %v1115 = vpack.c.bf16 %v1111, %v1110
      %v1116 = vpack.c.bf16 %v1112, %v1112
      %v1118 = vsel %vm912, %v1113, 0
      %v1121 = vsel %vm912, %v1114, 0
      %vm1123 = vcmask 1041408
      %v1125 = vsel %vm1123, %v1116, 0
      %1127 = vmatprep.subr.bf16.mxu0 0
      %1128 = vmatpush1.bf16.msra.mxu0 %v1115
      %1129 = vmatprep.subr.bf16.mxu0 0
      %1130 = vmatpush1.bf16.msra.mxu0 %v1125
      %1131 = vmatprep.subr.bf16.mxu0 0
      %1132 = vmatpush1.bf16.msra.mxu0 0
      %1133 = vmatprep.subr.bf16.mxu0 0
      %1134 = vmatpush1.bf16.msra.mxu0 0
      %1135 = vmatprep.subr.bf16.mxu0 0
      %1136 = vmatpush1.bf16.msra.mxu0 0
      %1137 = vmatprep.subr.bf16.mxu0 0
      %1138 = vmatpush1.bf16.msra.mxu0 0
      %1139 = vmatprep.subr.bf16.mxu0 0
      %1140 = vmatpush1.bf16.msra.mxu0 0
      %1141 = vmatprep.subr.bf16.mxu0 0
      %1142 = vmatpush1.bf16.msra.mxu0 0
      %1143 = vmatprep.subr.bf16.mxu0 0
      %1144 = vmatpush1.bf16.msra.mxu0 0
      %1145 = vmatprep.subr.bf16.mxu0 0
      %1146 = vmatpush1.bf16.msra.mxu0 0
      %1147 = vmatprep.subr.bf16.mxu0 0
      %1148 = vmatpush1.bf16.msra.mxu0 0
      %1149 = vmatprep.subr.bf16.mxu0 0
      %1150 = vmatpush1.bf16.msra.mxu0 0
      %1151 = vmatprep.subr.bf16.mxu0 0
      %1152 = vmatpush1.bf16.msra.mxu0 0
      %1153 = vmatprep.subr.bf16.mxu0 0
      %1154 = vmatpush1.bf16.msra.mxu0 0
      %1155 = vmatprep.subr.bf16.mxu0 0
      %1156 = vmatpush1.bf16.msra.mxu0 0
      %1157 = vmatprep.subr.bf16.mxu0 0
      %1158 = vmatpush1.bf16.msra.mxu0 0
      %1159 = vmatprep.mubr.bf16.mxu0 0
      %1160 = vmatmul.mubr.bf16.gmra.mrb[0].mxu0 %v1118
      %v1161 = vpop.f32.mrb[0].mxu0
      %v1162 = vadd.f32 0.0, %v1161
      %v1163 = vpop.f32.mrb[0].mxu0
      %v1164 = vpop.f32.mrb[0].mxu0
      %v1165 = vadd.f32 0.0, %v1164
      %v1166 = vpop.f32.mrb[0].mxu0
      %1167 = vmatprep.mubr.bf16.mxu0 0
      %1168 = vmatmul.mubr.bf16.gmra.mrb[0].mxu0 %v1121
      %v1169 = vpop.f32.mrb[0].mxu0
      %v1170 = vadd.f32 0.0, %v1169
      %v1171 = vpop.f32.mrb[0].mxu0
      %v1172 = vpop.f32.mrb[0].mxu0
      %v1173 = vpop.f32.mrb[0].mxu0
      %1174 = vdwg.mxu0
      %v1176 = vsel %vm912, %v964, 0
      %v1179 = vsel %vm912, %v965, 0
      %v1182 = vsel %vm1123, %v967, 0
      %1184 = vmatprep.subr.bf16.mxu0 0
      %1185 = vmatpush1.bf16.msra.mxu0 %v966
      %1186 = vmatprep.subr.bf16.mxu0 0
      %1187 = vmatpush1.bf16.msra.mxu0 %v1182
      %1188 = vmatprep.subr.bf16.mxu0 0
      %1189 = vmatpush1.bf16.msra.mxu0 0
      %1190 = vmatprep.subr.bf16.mxu0 0
      %1191 = vmatpush1.bf16.msra.mxu0 0
      %1192 = vmatprep.subr.bf16.mxu0 0
      %1193 = vmatpush1.bf16.msra.mxu0 0
      %1194 = vmatprep.subr.bf16.mxu0 0
      %1195 = vmatpush1.bf16.msra.mxu0 0
      %1196 = vmatprep.subr.bf16.mxu0 0
      %1197 = vmatpush1.bf16.msra.mxu0 0
      %1198 = vmatprep.subr.bf16.mxu0 0
      %1199 = vmatpush1.bf16.msra.mxu0 0
      %1200 = vmatprep.subr.bf16.mxu0 0
      %1201 = vmatpush1.bf16.msra.mxu0 0
      %1202 = vmatprep.subr.bf16.mxu0 0
      %1203 = vmatpush1.bf16.msra.mxu0 0
      %1204 = vmatprep.subr.bf16.mxu0 0
      %1205 = vmatpush1.bf16.msra.mxu0 0
      %1206 = vmatprep.subr.bf16.mxu0 0
      %1207 = vmatpush1.bf16.msra.mxu0 0
      %1208 = vmatprep.subr.bf16.mxu0 0
      %1209 = vmatpush1.bf16.msra.mxu0 0
      %1210 = vmatprep.subr.bf16.mxu0 0
      %1211 = vmatpush1.bf16.msra.mxu0 0
      %1212 = vmatprep.subr.bf16.mxu0 0
      %1213 = vmatpush1.bf16.msra.mxu0 0
      %1214 = vmatprep.subr.bf16.mxu0 0
      %1215 = vmatpush1.bf16.msra.mxu0 0
      %1216 = vmatprep.mubr.bf16.mxu0 0
      %1217 = vmatmul.mubr.bf16.gmra.mrb[0].mxu0 %v1176
      %v1218 = vpop.f32.mrb[0].mxu0
      %v1219 = vadd.f32 %v1162, %v1218
      %v1220 = vpop.f32.mrb[0].mxu0
      %v1221 = vpop.f32.mrb[0].mxu0
      %v1222 = vadd.f32 %v1165, %v1221
      %v1223 = vpop.f32.mrb[0].mxu0
      %1224 = vmatprep.mubr.bf16.mxu0 0
      %1225 = vmatmul.mubr.bf16.gmra.mrb[0].mxu0 %v1179
      %v1226 = vpop.f32.mrb[0].mxu0
      %v1227 = vadd.f32 %v1170, %v1226
      %v1228 = vpop.f32.mrb[0].mxu0
      %v1229 = vpop.f32.mrb[0].mxu0
      %v1230 = vpop.f32.mrb[0].mxu0
      %1231 = vdwg.mxu0
      %1232 = vrot.lane.b32.xlu0 %v788, 112
      %v1233 = vpop.permute.xlu0 %1232
      %1234 = vrot.lane.b32.xlu0 %v791, 112
      %v1235 = vpop.permute.xlu0 %1234
      %1236 = vrot.lane.b32.xlu0 %v796, 112
      %v1237 = vpop.permute.xlu0 %1236
      %1238 = vrot.lane.b32.xlu0 %v788, 80
      %v1239 = vpop.permute.xlu0 %1238
      %1240 = vrot.lane.b32.xlu0 %v791, 80
      %v1241 = vpop.permute.xlu0 %1240
      %1242 = vrot.lane.b32.xlu0 %v796, 80
      %v1243 = vpop.permute.xlu0 %1242
      %v1244 = vsel %vm819, %v1233, 0
      %v1246 = vsel %vm819, %v1235, 0
      %v1248 = vsel %vm819, %v1237, 0
      %v1250 = vsel %vm819, %v1239, 0
      %v1252 = vsel %vm819, %v1241, 0
      %v1254 = vsel %vm819, %v1243, 0
      %1256 = vmatprep.subr.mxu0 0.0
      %1257 = vmatpush1.xpose.msra.mxu0 %v1250
      %1258 = vmatprep.subr.mxu0 0.0
      %1259 = vmatpush1.xpose.msra.mxu0 %v1252
      %1260 = vmatprep.subr.mxu0 0.0
      %1261 = vmatpush1.xpose.msra.mxu0 %v1254
      %1262 = vmatprep.subr.mxu0 0.0
      %1263 = vmatpush1.xpose.msra.mxu0 0.0
      %1264 = vmatprep.subr.mxu0 0.0
      %1265 = vmatpush1.xpose.msra.mxu0 0.0
      %1266 = vmatprep.subr.mxu0 0.0
      %1267 = vmatpush1.xpose.msra.mxu0 0.0
      %1268 = vmatprep.subr.mxu0 0.0
      %1269 = vmatpush1.xpose.msra.mxu0 0.0
      %1270 = vmatprep.subr.mxu0 0.0
      %1271 = vmatpush1.xpose.msra.mxu0 0.0
      %1272 = vmatprep.subr.mxu0 0.0
      %1273 = vmatpush1.xpose.msra.mxu0 0.0
      %1274 = vmatprep.subr.mxu0 0.0
      %1275 = vmatpush1.xpose.msra.mxu0 0.0
      %1276 = vmatprep.subr.mxu0 0.0
      %1277 = vmatpush1.xpose.msra.mxu0 0.0
      %1278 = vmatprep.subr.mxu0 0.0
      %1279 = vmatpush1.xpose.msra.mxu0 0.0
      %1280 = vmatprep.subr.mxu0 0.0
      %1281 = vmatpush1.xpose.msra.mxu0 0.0
      %1282 = vmatprep.subr.mxu0 0.0
      %1283 = vmatpush1.xpose.msra.mxu0 0.0
      %1284 = vmatprep.subr.mxu0 0.0
      %1285 = vmatpush1.xpose.msra.mxu0 0.0
      %1286 = vmatprep.subr.mxu0 0.0
      %1287 = vmatpush1.xpose.msra.mxu0 0.0
      %1288 = vmatprep.subr.mxu0 0.0
      %1289 = vmatpush1.xpose.msra.mxu0 0.0
      %1290 = vmatprep.subr.mxu0 0.0
      %1291 = vmatpush1.xpose.msra.mxu0 0.0
      %1292 = vmatprep.subr.mxu0 0.0
      %1293 = vmatpush1.xpose.msra.mxu0 0.0
      %1294 = vmatprep.subr.mxu0 0.0
      %1295 = vmatpush1.xpose.msra.mxu0 0.0
      %1296 = vmatprep.subr.mxu0 0.0
      %1297 = vmatpush1.xpose.msra.mxu0 0.0
      %1298 = vmatprep.subr.mxu0 0.0
      %1299 = vmatpush1.xpose.msra.mxu0 0.0
      %1300 = vmatprep.subr.mxu0 0.0
      %1301 = vmatpush1.xpose.msra.mxu0 0.0
      %1302 = vmatprep.subr.mxu0 0.0
      %1303 = vmatpush1.xpose.msra.mxu0 0.0
      %1304 = vmatprep.subr.mxu0 0.0
      %1305 = vmatpush1.xpose.msra.mxu0 0.0
      %1306 = vmatprep.subr.mxu0 0.0
      %1307 = vmatpush1.xpose.msra.mxu0 0.0
      %1308 = vmatprep.subr.mxu0 0.0
      %1309 = vmatpush1.xpose.msra.mxu0 0.0
      %1310 = vmatprep.subr.mxu0 0.0
      %1311 = vmatpush1.xpose.msra.mxu0 0.0
      %1312 = vmatprep.subr.mxu0 0.0
      %1313 = vmatpush1.xpose.msra.mxu0 0.0
      %1314 = vmatprep.subr.mxu0 0.0
      %1315 = vmatpush1.xpose.msra.mxu0 0.0
      %1316 = vmatprep.subr.mxu0 0.0
      %1317 = vmatpush1.xpose.msra.mxu0 0.0
      %1318 = vmatprep.subr.mxu0 0.0
      %1319 = vmatpush1.xpose.msra.mxu0 0.0
      %1320 = vmatprep.mubr.f32.mxu0 0.0
      %1321 = vmatmul.mubr.f32.gmra.mrb[0].mxu0 %v1244
      %v1322 = vpop.f32.mrb[0].mxu0
      %v1323 = vadd.f32 %v805, %v1322
      %v1324 = vpop.f32.mrb[0].mxu0
      %1325 = vmatprep.mubr.f32.mxu0 0.0
      %1326 = vmatmul.mubr.f32.gmra.mrb[0].mxu0 %v1246
      %v1327 = vpop.f32.mrb[0].mxu0
      %v1328 = vadd.f32 %v806, %v1327
      %v1329 = vpop.f32.mrb[0].mxu0
      %1330 = vmatprep.mubr.f32.mxu0 0.0
      %1331 = vmatmul.mubr.f32.gmra.mrb[0].mxu0 %v1248
      %v1332 = vpop.f32.mrb[0].mxu0
      %v1333 = vadd.f32 %v807, %v1332
      %v1334 = vpop.f32.mrb[0].mxu0
      %1335 = vdwg.mxu0
      %v1336 = vsel %vm912, %v1323, -inf
      %1337 = vmax.xlane.f32.xlu0 %v1336
      %v1338 = vpop.xlane.xlu0 %1337
      %v1339 = vsel %vm912, %v1328, -inf
      %1340 = vmax.xlane.f32.xlu0 %v1339
      %v1341 = vpop.xlane.xlu0 %1340
      %v1342 = vsel %vm919, %v1333, -inf
      %1343 = vmax.xlane.f32.xlu0 %v1342
      %v1344 = vpop.xlane.xlu0 %1343
      %v1345 = vsub.f32 %v1323, %v1338
      %v1346 = vsub.f32 %v1328, %v1341
      %v1347 = vsub.f32 %v1333, %v1344
      %v1348 = vmul.f32 %v1345, 1.442695
      %v1349 = vpow.pop %v1348
      %v1350 = vmul.f32 %v1346, 1.442695
      %v1351 = vpow.pop %v1350
      %v1352 = vmul.f32 %v1347, 1.442695
      %v1353 = vpow.pop %v1352
      %v1354 = vsel %vm912, %v1349, 0.0
      %1355 = vadd.xlane.f32.xlu0 %v1354
      %v1356 = vpop.xlane.xlu0 %1355
      %v1357 = vsel %vm912, %v1351, 0.0
      %1358 = vadd.xlane.f32.xlu0 %v1357
      %v1359 = vpop.xlane.xlu0 %1358
      %v1360 = vsel %vm919, %v1353, 0.0
      %1361 = vadd.xlane.f32.xlu0 %v1360
      %v1362 = vpop.xlane.xlu0 %1361
      %v1363 = vrcp.pop %v1356
      %v1364 = vrcp.pop %v1359
      %v1365 = vrcp.pop %v1362
      %v1366 = vmul.f32 %v1349, %v1363
      %v1367 = vmul.f32 %v1351, %v1364
      %v1368 = vmul.f32 %v1353, %v1365
      %vm1369 = vcmp.ge.s32.totalorder %v809, 16
      %vm1370 = vcmp.lt.s32.totalorder %v809, 24
      %vm1371 = vmand %vm1369, %vm1370
      %v1372 = vsel %vm1371, 1, 0
      %vm1373 = vcmp.eq.s32.totalorder %v1372, 1
      %v1374 = vsel %vm1373, %v953, 0.0
      %v1375 = vsel %vm1373, %v955, 0.0
      %v1376 = vsel %vm1373, %v957, 0.0
      %v1377 = vpack.c.bf16 %v1367, %v1366
      %v1378 = vpack.c.bf16 %v1368, %v1368
      %v1379 = vpack.c.bf16 %v1375, %v1374
      %v1380 = vpack.c.bf16 %v1376, %v1376
      %v1382 = vsel %vm912, %v1377, 0
      %v1385 = vsel %vm912, %v1378, 0
      %v1388 = vsel %vm1123, %v1380, 0
      %1390 = vmatprep.subr.bf16.mxu0 0
      %1391 = vmatpush1.bf16.msra.mxu0 %v1379
      %1392 = vmatprep.subr.bf16.mxu0 0
      %1393 = vmatpush1.bf16.msra.mxu0 %v1388
      %1394 = vmatprep.subr.bf16.mxu0 0
      %1395 = vmatpush1.bf16.msra.mxu0 0
      %1396 = vmatprep.subr.bf16.mxu0 0
      %1397 = vmatpush1.bf16.msra.mxu0 0
      %1398 = vmatprep.subr.bf16.mxu0 0
      %1399 = vmatpush1.bf16.msra.mxu0 0
      %1400 = vmatprep.subr.bf16.mxu0 0
      %1401 = vmatpush1.bf16.msra.mxu0 0
      %1402 = vmatprep.subr.bf16.mxu0 0
      %1403 = vmatpush1.bf16.msra.mxu0 0
      %1404 = vmatprep.subr.bf16.mxu0 0
      %1405 = vmatpush1.bf16.msra.mxu0 0
      %1406 = vmatprep.subr.bf16.mxu0 0
      %1407 = vmatpush1.bf16.msra.mxu0 0
      %1408 = vmatprep.subr.bf16.mxu0 0
      %1409 = vmatpush1.bf16.msra.mxu0 0
      %1410 = vmatprep.subr.bf16.mxu0 0
      %1411 = vmatpush1.bf16.msra.mxu0 0
      %1412 = vmatprep.subr.bf16.mxu0 0
      %1413 = vmatpush1.bf16.msra.mxu0 0
      %1414 = vmatprep.subr.bf16.mxu0 0
      %1415 = vmatpush1.bf16.msra.mxu0 0
      %1416 = vmatprep.subr.bf16.mxu0 0
      %1417 = vmatpush1.bf16.msra.mxu0 0
      %1418 = vmatprep.subr.bf16.mxu0 0
      %1419 = vmatpush1.bf16.msra.mxu0 0
      %1420 = vmatprep.subr.bf16.mxu0 0
      %1421 = vmatpush1.bf16.msra.mxu0 0
      %1422 = vmatprep.mubr.bf16.mxu0 0
      %1423 = vmatmul.mubr.bf16.gmra.mrb[0].mxu0 %v1382
      %v1424 = vpop.f32.mrb[0].mxu0
      %v1425 = vadd.f32 0.0, %v1424
      %v1426 = vpop.f32.mrb[0].mxu0
      %v1427 = vpop.f32.mrb[0].mxu0
      %v1428 = vadd.f32 0.0, %v1427
      %v1429 = vpop.f32.mrb[0].mxu0
      %1430 = vmatprep.mubr.bf16.mxu0 0
      %1431 = vmatmul.mubr.bf16.gmra.mrb[0].mxu0 %v1385
      %v1432 = vpop.f32.mrb[0].mxu0
      %v1433 = vadd.f32 0.0, %v1432
      %v1434 = vpop.f32.mrb[0].mxu0
      %v1435 = vpop.f32.mrb[0].mxu0
      %v1436 = vpop.f32.mrb[0].mxu0
      %1437 = vdwg.mxu0
      %v1438 = vadd.f32 %v1219, %v1425
      %v1439 = vadd.f32 %v1222, %v1428
      %v1440 = vadd.f32 %v1227, %v1433
      %1441 = vrot.lane.b32.xlu0 %v788, 104
      %v1442 = vpop.permute.xlu0 %1441
      %1443 = vrot.lane.b32.xlu0 %v791, 104
      %v1444 = vpop.permute.xlu0 %1443
      %1445 = vrot.lane.b32.xlu0 %v796, 104
      %v1446 = vpop.permute.xlu0 %1445
      %1447 = vrot.lane.b32.xlu0 %v788, 72
      %v1448 = vpop.permute.xlu0 %1447
      %1449 = vrot.lane.b32.xlu0 %v791, 72
      %v1450 = vpop.permute.xlu0 %1449
      %1451 = vrot.lane.b32.xlu0 %v796, 72
      %v1452 = vpop.permute.xlu0 %1451
      %v1453 = vsel %vm819, %v1442, 0
      %v1455 = vsel %vm819, %v1444, 0
      %v1457 = vsel %vm819, %v1446, 0
      %v1459 = vsel %vm819, %v1448, 0
      %v1461 = vsel %vm819, %v1450, 0
      %v1463 = vsel %vm819, %v1452, 0
      %1465 = vmatprep.subr.mxu0 0.0
      %1466 = vmatpush1.xpose.msra.mxu0 %v1459
      %1467 = vmatprep.subr.mxu0 0.0
      %1468 = vmatpush1.xpose.msra.mxu0 %v1461
      %1469 = vmatprep.subr.mxu0 0.0
      %1470 = vmatpush1.xpose.msra.mxu0 %v1463
      %1471 = vmatprep.subr.mxu0 0.0
      %1472 = vmatpush1.xpose.msra.mxu0 0.0
      %1473 = vmatprep.subr.mxu0 0.0
      %1474 = vmatpush1.xpose.msra.mxu0 0.0
      %1475 = vmatprep.subr.mxu0 0.0
      %1476 = vmatpush1.xpose.msra.mxu0 0.0
      %1477 = vmatprep.subr.mxu0 0.0
      %1478 = vmatpush1.xpose.msra.mxu0 0.0
      %1479 = vmatprep.subr.mxu0 0.0
      %1480 = vmatpush1.xpose.msra.mxu0 0.0
      %1481 = vmatprep.subr.mxu0 0.0
      %1482 = vmatpush1.xpose.msra.mxu0 0.0
      %1483 = vmatprep.subr.mxu0 0.0
      %1484 = vmatpush1.xpose.msra.mxu0 0.0
      %1485 = vmatprep.subr.mxu0 0.0
      %1486 = vmatpush1.xpose.msra.mxu0 0.0
      %1487 = vmatprep.subr.mxu0 0.0
      %1488 = vmatpush1.xpose.msra.mxu0 0.0
      %1489 = vmatprep.subr.mxu0 0.0
      %1490 = vmatpush1.xpose.msra.mxu0 0.0
      %1491 = vmatprep.subr.mxu0 0.0
      %1492 = vmatpush1.xpose.msra.mxu0 0.0
      %1493 = vmatprep.subr.mxu0 0.0
      %1494 = vmatpush1.xpose.msra.mxu0 0.0
      %1495 = vmatprep.subr.mxu0 0.0
      %1496 = vmatpush1.xpose.msra.mxu0 0.0
      %1497 = vmatprep.subr.mxu0 0.0
      %1498 = vmatpush1.xpose.msra.mxu0 0.0
      %1499 = vmatprep.subr.mxu0 0.0
      %1500 = vmatpush1.xpose.msra.mxu0 0.0
      %1501 = vmatprep.subr.mxu0 0.0
      %1502 = vmatpush1.xpose.msra.mxu0 0.0
      %1503 = vmatprep.subr.mxu0 0.0
      %1504 = vmatpush1.xpose.msra.mxu0 0.0
      %1505 = vmatprep.subr.mxu0 0.0
      %1506 = vmatpush1.xpose.msra.mxu0 0.0
      %1507 = vmatprep.subr.mxu0 0.0
      %1508 = vmatpush1.xpose.msra.mxu0 0.0
      %1509 = vmatprep.subr.mxu0 0.0
      %1510 = vmatpush1.xpose.msra.mxu0 0.0
      %1511 = vmatprep.subr.mxu0 0.0
      %1512 = vmatpush1.xpose.msra.mxu0 0.0
      %1513 = vmatprep.subr.mxu0 0.0
      %1514 = vmatpush1.xpose.msra.mxu0 0.0
      %1515 = vmatprep.subr.mxu0 0.0
      %1516 = vmatpush1.xpose.msra.mxu0 0.0
      %1517 = vmatprep.subr.mxu0 0.0
      %1518 = vmatpush1.xpose.msra.mxu0 0.0
      %1519 = vmatprep.subr.mxu0 0.0
      %1520 = vmatpush1.xpose.msra.mxu0 0.0
      %1521 = vmatprep.subr.mxu0 0.0
      %1522 = vmatpush1.xpose.msra.mxu0 0.0
      %1523 = vmatprep.subr.mxu0 0.0
      %1524 = vmatpush1.xpose.msra.mxu0 0.0
      %1525 = vmatprep.subr.mxu0 0.0
      %1526 = vmatpush1.xpose.msra.mxu0 0.0
      %1527 = vmatprep.subr.mxu0 0.0
      %1528 = vmatpush1.xpose.msra.mxu0 0.0
      %1529 = vmatprep.mubr.f32.mxu0 0.0
      %1530 = vmatmul.mubr.f32.gmra.mrb[0].mxu0 %v1453
      %v1531 = vpop.f32.mrb[0].mxu0
      %v1532 = vadd.f32 %v805, %v1531
      %v1533 = vpop.f32.mrb[0].mxu0
      %1534 = vmatprep.mubr.f32.mxu0 0.0
      %1535 = vmatmul.mubr.f32.gmra.mrb[0].mxu0 %v1455
      %v1536 = vpop.f32.mrb[0].mxu0
      %v1537 = vadd.f32 %v806, %v1536
      %v1538 = vpop.f32.mrb[0].mxu0
      %1539 = vmatprep.mubr.f32.mxu0 0.0
      %1540 = vmatmul.mubr.f32.gmra.mrb[0].mxu0 %v1457
      %v1541 = vpop.f32.mrb[0].mxu0
      %v1542 = vadd.f32 %v807, %v1541
      %v1543 = vpop.f32.mrb[0].mxu0
      %1544 = vdwg.mxu0
      %v1545 = vsel %vm912, %v1532, -inf
      %1546 = vmax.xlane.f32.xlu0 %v1545
      %v1547 = vpop.xlane.xlu0 %1546
      %v1548 = vsel %vm912, %v1537, -inf
      %1549 = vmax.xlane.f32.xlu0 %v1548
      %v1550 = vpop.xlane.xlu0 %1549
      %v1551 = vsel %vm919, %v1542, -inf
      %1552 = vmax.xlane.f32.xlu0 %v1551
      %v1553 = vpop.xlane.xlu0 %1552
      %v1554 = vsub.f32 %v1532, %v1547
      %v1555 = vsub.f32 %v1537, %v1550
      %v1556 = vsub.f32 %v1542, %v1553
      %v1557 = vmul.f32 %v1554, 1.442695
      %v1558 = vpow.pop %v1557
      %v1559 = vmul.f32 %v1555, 1.442695
      %v1560 = vpow.pop %v1559
      %v1561 = vmul.f32 %v1556, 1.442695
      %v1562 = vpow.pop %v1561
      %v1563 = vsel %vm912, %v1558, 0.0
      %1564 = vadd.xlane.f32.xlu0 %v1563
      %v1565 = vpop.xlane.xlu0 %1564
      %v1566 = vsel %vm912, %v1560, 0.0
      %1567 = vadd.xlane.f32.xlu0 %v1566
      %v1568 = vpop.xlane.xlu0 %1567
      %v1569 = vsel %vm919, %v1562, 0.0
      %1570 = vadd.xlane.f32.xlu0 %v1569
      %v1571 = vpop.xlane.xlu0 %1570
      %v1572 = vrcp.pop %v1565
      %v1573 = vrcp.pop %v1568
      %v1574 = vrcp.pop %v1571
      %v1575 = vmul.f32 %v1558, %v1572
      %v1576 = vmul.f32 %v1560, %v1573
      %v1577 = vmul.f32 %v1562, %v1574
      %vm1578 = vcmp.ge.s32.totalorder %v809, 24
      %vm1579 = vcmp.lt.s32.totalorder %v809, 32
      %vm1580 = vmand %vm1578, %vm1579
      %v1581 = vsel %vm1580, 1, 0
      %vm1582 = vcmp.eq.s32.totalorder %v1581, 1
      %v1583 = vsel %vm1582, %v953, 0.0
      %v1584 = vsel %vm1582, %v955, 0.0
      %v1585 = vsel %vm1582, %v957, 0.0
      %v1586 = vpack.c.bf16 %v1576, %v1575
      %v1587 = vpack.c.bf16 %v1577, %v1577
      %v1588 = vpack.c.bf16 %v1584, %v1583
      %v1589 = vpack.c.bf16 %v1585, %v1585
      %v1591 = vsel %vm912, %v1586, 0
      %v1594 = vsel %vm912, %v1587, 0
      %v1597 = vsel %vm1123, %v1589, 0
      %1599 = vmatprep.subr.bf16.mxu0 0
      %1600 = vmatpush1.bf16.msra.mxu0 %v1588
      %1601 = vmatprep.subr.bf16.mxu0 0
      %1602 = vmatpush1.bf16.msra.mxu0 %v1597
      %1603 = vmatprep.subr.bf16.mxu0 0
      %1604 = vmatpush1.bf16.msra.mxu0 0
      %1605 = vmatprep.subr.bf16.mxu0 0
      %1606 = vmatpush1.bf16.msra.mxu0 0
      %1607 = vmatprep.subr.bf16.mxu0 0
      %1608 = vmatpush1.bf16.msra.mxu0 0
      %1609 = vmatprep.subr.bf16.mxu0 0
      %1610 = vmatpush1.bf16.msra.mxu0 0
      %1611 = vmatprep.subr.bf16.mxu0 0
      %1612 = vmatpush1.bf16.msra.mxu0 0
      %1613 = vmatprep.subr.bf16.mxu0 0
      %1614 = vmatpush1.bf16.msra.mxu0 0
      %1615 = vmatprep.subr.bf16.mxu0 0
      %1616 = vmatpush1.bf16.msra.mxu0 0
      %1617 = vmatprep.subr.bf16.mxu0 0
      %1618 = vmatpush1.bf16.msra.mxu0 0
      %1619 = vmatprep.subr.bf16.mxu0 0
      %1620 = vmatpush1.bf16.msra.mxu0 0
      %1621 = vmatprep.subr.bf16.mxu0 0
      %1622 = vmatpush1.bf16.msra.mxu0 0
      %1623 = vmatprep.subr.bf16.mxu0 0
      %1624 = vmatpush1.bf16.msra.mxu0 0
      %1625 = vmatprep.subr.bf16.mxu0 0
      %1626 = vmatpush1.bf16.msra.mxu0 0
      %1627 = vmatprep.subr.bf16.mxu0 0
      %1628 = vmatpush1.bf16.msra.mxu0 0
      %1629 = vmatprep.subr.bf16.mxu0 0
      %1630 = vmatpush1.bf16.msra.mxu0 0
      %1631 = vmatprep.mubr.bf16.mxu0 0
      %1632 = vmatmul.mubr.bf16.gmra.mrb[0].mxu0 %v1591
      %v1633 = vpop.f32.mrb[0].mxu0
      %v1634 = vadd.f32 0.0, %v1633
      %v1635 = vpop.f32.mrb[0].mxu0
      %v1636 = vpop.f32.mrb[0].mxu0
      %v1637 = vadd.f32 0.0, %v1636
      %v1638 = vpop.f32.mrb[0].mxu0
      %1639 = vmatprep.mubr.bf16.mxu0 0
      %1640 = vmatmul.mubr.bf16.gmra.mrb[0].mxu0 %v1594
      %v1641 = vpop.f32.mrb[0].mxu0
      %v1642 = vadd.f32 0.0, %v1641
      %v1643 = vpop.f32.mrb[0].mxu0
      %v1644 = vpop.f32.mrb[0].mxu0
      %v1645 = vpop.f32.mrb[0].mxu0
      %1646 = vdwg.mxu0
      %v1647 = vadd.f32 %v1438, %v1634
      %v1648 = vadd.f32 %v1439, %v1637
      %v1649 = vadd.f32 %v1440, %v1642
      %v1650 = vpack.c.bf16 %v1648, %v1647
      %v1651 = vpack.c.bf16 %v1649, %v1649
      %v1652 = vpack.c.bf16 %v802, %v801
      %v1653 = vpack.c.bf16 %v804, %v803
      %v1654 = vld [vmem:[%s677] sm:$0x1]
      %v1656 = vlaneseq
      %v1657 = vshrl.u32 %v1656, 7
      %v1658 = vsub.s32 0, %v1657
      %v1659 = vrot.slane %v1654, %v1658
      %v1662 = vsel %vm746, %v1650, 0
      %v1665 = vsel %vm746, %v1651, 0
      %1667 = vmatprep.subr.bf16.mxu0 0
      %1668 = vmatpush1.bf16.msra.mxu0 %v1652
      %1669 = vmatprep.subr.bf16.mxu0 0
      %1670 = vmatpush1.bf16.msra.mxu0 %v1653
      %1671 = vmatprep.subr.bf16.mxu0 0
      %1672 = vmatpush1.bf16.msra.mxu0 0
      %1673 = vmatprep.subr.bf16.mxu0 0
      %1674 = vmatpush1.bf16.msra.mxu0 0
      %1675 = vmatprep.subr.bf16.mxu0 0
      %1676 = vmatpush1.bf16.msra.mxu0 0
      %1677 = vmatprep.subr.bf16.mxu0 0
      %1678 = vmatpush1.bf16.msra.mxu0 0
      %1679 = vmatprep.subr.bf16.mxu0 0
      %1680 = vmatpush1.bf16.msra.mxu0 0
      %1681 = vmatprep.subr.bf16.mxu0 0
      %1682 = vmatpush1.bf16.msra.mxu0 0
      %1683 = vmatprep.subr.bf16.mxu0 0
      %1684 = vmatpush1.bf16.msra.mxu0 0
      %1685 = vmatprep.subr.bf16.mxu0 0
      %1686 = vmatpush1.bf16.msra.mxu0 0
      %1687 = vmatprep.subr.bf16.mxu0 0
      %1688 = vmatpush1.bf16.msra.mxu0 0
      %1689 = vmatprep.subr.bf16.mxu0 0
      %1690 = vmatpush1.bf16.msra.mxu0 0
      %1691 = vmatprep.subr.bf16.mxu0 0
      %1692 = vmatpush1.bf16.msra.mxu0 0
      %1693 = vmatprep.subr.bf16.mxu0 0
      %1694 = vmatpush1.bf16.msra.mxu0 0
      %1695 = vmatprep.subr.bf16.mxu0 0
      %1696 = vmatpush1.bf16.msra.mxu0 0
      %1697 = vmatprep.subr.bf16.mxu0 0
      %1698 = vmatpush1.bf16.msra.mxu0 0
      %1699 = vmatprep.mubr.bf16.mxu0 0
      %1700 = vmatmul.mubr.bf16.gmra.mrb[0].mxu0 %v1662
      %v1701 = vpop.f32.mrb[0].mxu0
      %v1702 = vadd.f32 %v1659, %v1701
      %v1703 = vpop.f32.mrb[0].mxu0
      %v1704 = vpop.f32.mrb[0].mxu0
      %v1705 = vadd.f32 %v1659, %v1704
      %v1706 = vpop.f32.mrb[0].mxu0
      %1707 = vmatprep.mubr.bf16.mxu0 0
      %1708 = vmatmul.mubr.bf16.gmra.mrb[0].mxu0 %v1665
      %v1709 = vpop.f32.mrb[0].mxu0
      %v1710 = vadd.f32 %v1659, %v1709
      %v1711 = vpop.f32.mrb[0].mxu0
      %v1712 = vpop.f32.mrb[0].mxu0
      %v1713 = vpop.f32.mrb[0].mxu0
      %1714 = vdwg.mxu0
      %v1715 = vadd.f32 %v1702, %v728
      %v1716 = vadd.f32 %v1705, %v729
      %v1717 = vadd.f32 %v1710, %v730
      %v1718 = vld [vmem:[%s680] sm:$0x1]
      %v1719 = vld [vmem:[%s683] sm:$0x1]
      %v1720 = vsel %vm746, %v1715, 0.0
      %1721 = vadd.xlane.f32.xlu0 %v1720
      %v1722 = vpop.xlane.xlu0 %1721
      %v1723 = vsel %vm746, %v1716, 0.0
      %1724 = vadd.xlane.f32.xlu0 %v1723
      %v1725 = vpop.xlane.xlu0 %1724
      %vm1726 = vcmask 257024
      %v1727 = vsel %vm1726, %v1717, 0.0
      %1728 = vadd.xlane.f32.xlu0 %v1727
      %v1729 = vpop.xlane.xlu0 %1728
      %v1730 = vrcp.pop 32.0
      %v1731 = vmul.f32 %v1722, %v1730
      %v1732 = vmul.f32 %v1725, %v1730
      %v1733 = vmul.f32 %v1729, %v1730
      %v1734 = vsub.f32 %v1715, %v1731
      %v1735 = vsub.f32 %v1716, %v1732
      %v1736 = vsub.f32 %v1717, %v1733
      %v1737 = vmul.f32 %v1734, %v1734
      %v1738 = vmul.f32 %v1735, %v1735
      %v1739 = vmul.f32 %v1736, %v1736
      %v1740 = vsel %vm746, %v1737, 0.0
      %1741 = vadd.xlane.f32.xlu0 %v1740
      %v1742 = vpop.xlane.xlu0 %1741
      %v1743 = vsel %vm746, %v1738, 0.0
      %1744 = vadd.xlane.f32.xlu0 %v1743
      %v1745 = vpop.xlane.xlu0 %1744
      %v1746 = vsel %vm1726, %v1739, 0.0
      %1747 = vadd.xlane.f32.xlu0 %v1746
      %v1748 = vpop.xlane.xlu0 %1747
      %v1749 = vmul.f32 %v1742, %v1730
      %v1750 = vmul.f32 %v1745, %v1730
      %v1751 = vmul.f32 %v1748, %v1730
      %v1752 = vadd.f32 %v1749, 1e-05
      %v1753 = vadd.f32 %v1750, 1e-05
      %v1754 = vadd.f32 %v1751, 1e-05
      %v1755 = vrsqrt.pop %v1752
      %v1756 = vrsqrt.pop %v1753
      %v1757 = vrsqrt.pop %v1754
      %v1758 = vmul.f32 %v1734, %v1755
      %v1759 = vmul.f32 %v1735, %v1756
      %v1760 = vmul.f32 %v1736, %v1757
      %v1762 = vlaneseq
      %v1763 = vshrl.u32 %v1762, 7
      %v1764 = vsub.s32 0, %v1763
      %v1765 = vrot.slane %v1718, %v1764
      %v1767 = vmul.f32 %v1758, %v1765
      %v1768 = vmul.f32 %v1759, %v1765
      %v1769 = vmul.f32 %v1760, %v1765
      %v1771 = vlaneseq
      %v1772 = vshrl.u32 %v1771, 7
      %v1773 = vsub.s32 0, %v1772
      %v1774 = vrot.slane %v1719, %v1773
      %v1776 = vadd.f32 %v1767, %v1774
      %v1777 = vadd.f32 %v1768, %v1774
      %v1778 = vadd.f32 %v1769, %v1774
      %v1779 = vpack.c.bf16 %v1777, %v1776
      %v1780 = vpack.c.bf16 %v1778, %v1778
      %v1781 = vld [vmem:[%s688] sm:$0xff]
      %v1782 = vld [vmem:[%s688 + $0x8] sm:$0xff]
      %v1783 = vld [vmem:[%s688 + $0x10] sm:$0xff]
      %v1784 = vld [vmem:[%s688 + $0x18] sm:$0xff]
      %v1785 = vpack.c.bf16 %v1782, %v1781
      %v1786 = vpack.c.bf16 %v1784, %v1783
      %v1787 = vld [vmem:[%s691] sm:$0x1]
      %v1789 = vlaneseq
      %v1790 = vshrl.u32 %v1789, 7
      %v1791 = vsub.s32 0, %v1790
      %v1792 = vrot.slane %v1787, %v1791
      %v1795 = vsel %vm746, %v1779, 0
      %v1798 = vsel %vm746, %v1780, 0
      %1800 = vmatprep.subr.bf16.mxu0 0
      %1801 = vmatpush1.bf16.msra.mxu0 %v1785
      %1802 = vmatprep.subr.bf16.mxu0 0
      %1803 = vmatpush1.bf16.msra.mxu0 %v1786
      %1804 = vmatprep.subr.bf16.mxu0 0
      %1805 = vmatpush1.bf16.msra.mxu0 0
      %1806 = vmatprep.subr.bf16.mxu0 0
      %1807 = vmatpush1.bf16.msra.mxu0 0
      %1808 = vmatprep.subr.bf16.mxu0 0
      %1809 = vmatpush1.bf16.msra.mxu0 0
      %1810 = vmatprep.subr.bf16.mxu0 0
      %1811 = vmatpush1.bf16.msra.mxu0 0
      %1812 = vmatprep.subr.bf16.mxu0 0
      %1813 = vmatpush1.bf16.msra.mxu0 0
      %1814 = vmatprep.subr.bf16.mxu0 0
      %1815 = vmatpush1.bf16.msra.mxu0 0
      %1816 = vmatprep.subr.bf16.mxu0 0
      %1817 = vmatpush1.bf16.msra.mxu0 0
      %1818 = vmatprep.subr.bf16.mxu0 0
      %1819 = vmatpush1.bf16.msra.mxu0 0
      %1820 = vmatprep.subr.bf16.mxu0 0
      %1821 = vmatpush1.bf16.msra.mxu0 0
      %1822 = vmatprep.subr.bf16.mxu0 0
      %1823 = vmatpush1.bf16.msra.mxu0 0
      %1824 = vmatprep.subr.bf16.mxu0 0
      %1825 = vmatpush1.bf16.msra.mxu0 0
      %1826 = vmatprep.subr.bf16.mxu0 0
      %1827 = vmatpush1.bf16.msra.mxu0 0
      %1828 = vmatprep.subr.bf16.mxu0 0
      %1829 = vmatpush1.bf16.msra.mxu0 0
      %1830 = vmatprep.subr.bf16.mxu0 0
      %1831 = vmatpush1.bf16.msra.mxu0 0
      %1832 = vmatprep.mubr.bf16.mxu0 0
      %1833 = vmatmul.mubr.bf16.gmra.mrb[0].mxu0 %v1795
      %v1834 = vpop.f32.mrb[0].mxu0
      %v1835 = vadd.f32 %v1792, %v1834
      %v1836 = vpop.f32.mrb[0].mxu0
      %v1837 = vpop.f32.mrb[0].mxu0
      %v1838 = vadd.f32 %v1792, %v1837
      %v1839 = vpop.f32.mrb[0].mxu0
      %1840 = vmatprep.mubr.bf16.mxu0 0
      %1841 = vmatmul.mubr.bf16.gmra.mrb[0].mxu0 %v1798
      %v1842 = vpop.f32.mrb[0].mxu0
      %v1843 = vadd.f32 %v1792, %v1842
      %v1844 = vpop.f32.mrb[0].mxu0
      %v1845 = vpop.f32.mrb[0].mxu0
      %v1846 = vpop.f32.mrb[0].mxu0
      %1847 = vdwg.mxu0
      %v1848 = vmax.f32 %v1835, 0.0
      %v1849 = vmax.f32 %v1838, 0.0
      %v1850 = vmax.f32 %v1843, 0.0
      %v1851 = vpack.c.bf16 %v1849, %v1848
      %v1852 = vpack.c.bf16 %v1850, %v1850
      %v1853 = vld [vmem:[%s696] sm:$0xff]
      %v1854 = vld [vmem:[%s696 + $0x8] sm:$0xff]
      %v1855 = vld [vmem:[%s696 + $0x10] sm:$0xff]
      %v1856 = vld [vmem:[%s696 + $0x18] sm:$0xff]
      %v1857 = vld [vmem:[%s696 + $0x20] sm:$0xff]
      %v1858 = vld [vmem:[%s696 + $0x28] sm:$0xff]
      %v1859 = vld [vmem:[%s696 + $0x30] sm:$0xff]
      %v1860 = vld [vmem:[%s696 + $0x38] sm:$0xff]
      %v1861 = vpack.c.bf16 %v1854, %v1853
      %v1862 = vpack.c.bf16 %v1856, %v1855
      %v1863 = vpack.c.bf16 %v1858, %v1857
      %v1864 = vpack.c.bf16 %v1860, %v1859
      %v1865 = vld [vmem:[%s699] sm:$0x1]
      %v1867 = vlaneseq
      %v1868 = vshrl.u32 %v1867, 7
      %v1869 = vsub.s32 0, %v1868
      %v1870 = vrot.slane %v1865, %v1869
      %vm1872 = vcmask 523264
      %v1874 = vsel %vm1872, %v1851, 0
      %v1877 = vsel %vm1872, %v1852, 0
      %1879 = vmatprep.subr.bf16.mxu0 0
      %1880 = vmatpush1.bf16.msra.mxu0 %v1861
      %1881 = vmatprep.subr.bf16.mxu0 0
      %1882 = vmatpush1.bf16.msra.mxu0 %v1862
      %1883 = vmatprep.subr.bf16.mxu0 0
      %1884 = vmatpush1.bf16.msra.mxu0 %v1863
      %1885 = vmatprep.subr.bf16.mxu0 0
      %1886 = vmatpush1.bf16.msra.mxu0 %v1864
      %1887 = vmatprep.subr.bf16.mxu0 0
      %1888 = vmatpush1.bf16.msra.mxu0 0
      %1889 = vmatprep.subr.bf16.mxu0 0
      %1890 = vmatpush1.bf16.msra.mxu0 0
      %1891 = vmatprep.subr.bf16.mxu0 0
      %1892 = vmatpush1.bf16.msra.mxu0 0
      %1893 = vmatprep.subr.bf16.mxu0 0
      %1894 = vmatpush1.bf16.msra.mxu0 0
      %1895 = vmatprep.subr.bf16.mxu0 0
      %1896 = vmatpush1.bf16.msra.mxu0 0
      %1897 = vmatprep.subr.bf16.mxu0 0
      %1898 = vmatpush1.bf16.msra.mxu0 0
      %1899 = vmatprep.subr.bf16.mxu0 0
      %1900 = vmatpush1.bf16.msra.mxu0 0
      %1901 = vmatprep.subr.bf16.mxu0 0
      %1902 = vmatpush1.bf16.msra.mxu0 0
      %1903 = vmatprep.subr.bf16.mxu0 0
      %1904 = vmatpush1.bf16.msra.mxu0 0
      %1905 = vmatprep.subr.bf16.mxu0 0
      %1906 = vmatpush1.bf16.msra.mxu0 0
      %1907 = vmatprep.subr.bf16.mxu0 0
      %1908 = vmatpush1.bf16.msra.mxu0 0
      %1909 = vmatprep.subr.bf16.mxu0 0
      %1910 = vmatpush1.bf16.msra.mxu0 0
      %1911 = vmatprep.mubr.bf16.mxu0 0
      %1912 = vmatmul.mubr.bf16.gmra.mrb[0].mxu0 %v1874
      %v1913 = vpop.f32.mrb[0].mxu0
      %v1914 = vadd.f32 %v1870, %v1913
      %v1915 = vpop.f32.mrb[0].mxu0
      %v1916 = vpop.f32.mrb[0].mxu0
      %v1917 = vadd.f32 %v1870, %v1916
      %v1918 = vpop.f32.mrb[0].mxu0
      %1919 = vmatprep.mubr.bf16.mxu0 0
      %1920 = vmatmul.mubr.bf16.gmra.mrb[0].mxu0 %v1877
      %v1921 = vpop.f32.mrb[0].mxu0
      %v1922 = vadd.f32 %v1870, %v1921
      %v1923 = vpop.f32.mrb[0].mxu0
      %v1924 = vpop.f32.mrb[0].mxu0
      %v1925 = vpop.f32.mrb[0].mxu0
      %1926 = vdwg.mxu0
      %v1927 = vadd.f32 %v1914, %v1776
      %v1928 = vadd.f32 %v1917, %v1777
      %v1929 = vadd.f32 %v1922, %v1778
      %v1930 = vld [vmem:[%s702] sm:$0x1]
      %v1931 = vld [vmem:[%s705] sm:$0x1]
      %v1932 = vsel %vm746, %v1927, 0.0
      %1933 = vadd.xlane.f32.xlu0 %v1932
      %v1934 = vpop.xlane.xlu0 %1933
      %v1935 = vsel %vm746, %v1928, 0.0
      %1936 = vadd.xlane.f32.xlu0 %v1935
      %v1937 = vpop.xlane.xlu0 %1936
      %v1938 = vsel %vm1726, %v1929, 0.0
      %1939 = vadd.xlane.f32.xlu0 %v1938
      %v1940 = vpop.xlane.xlu0 %1939
      %v1941 = vmul.f32 %v1934, %v1730
      %v1942 = vmul.f32 %v1937, %v1730
      %v1943 = vmul.f32 %v1940, %v1730
      %v1944 = vsub.f32 %v1927, %v1941
      %v1945 = vsub.f32 %v1928, %v1942
      %v1946 = vsub.f32 %v1929, %v1943
      %v1947 = vmul.f32 %v1944, %v1944
      %v1948 = vmul.f32 %v1945, %v1945
      %v1949 = vmul.f32 %v1946, %v1946
      %v1950 = vsel %vm746, %v1947, 0.0
      %1951 = vadd.xlane.f32.xlu0 %v1950
      %v1952 = vpop.xlane.xlu0 %1951
      %v1953 = vsel %vm746, %v1948, 0.0
      %1954 = vadd.xlane.f32.xlu0 %v1953
      %v1955 = vpop.xlane.xlu0 %1954
      %v1956 = vsel %vm1726, %v1949, 0.0
      %1957 = vadd.xlane.f32.xlu0 %v1956
      %v1958 = vpop.xlane.xlu0 %1957
      %v1959 = vmul.f32 %v1952, %v1730
      %v1960 = vmul.f32 %v1955, %v1730
      %v1961 = vmul.f32 %v1958, %v1730
      %v1962 = vadd.f32 %v1959, 1e-05
      %v1963 = vadd.f32 %v1960, 1e-05
      %v1964 = vadd.f32 %v1961, 1e-05
      %v1965 = vrsqrt.pop %v1962
      %v1966 = vrsqrt.pop %v1963
      %v1967 = vrsqrt.pop %v1964
      %v1968 = vmul.f32 %v1944, %v1965
      %v1969 = vmul.f32 %v1945, %v1966
      %v1970 = vmul.f32 %v1946, %v1967
      %v1972 = vlaneseq
      %v1973 = vshrl.u32 %v1972, 7
      %v1974 = vsub.s32 0, %v1973
      %v1975 = vrot.slane %v1930, %v1974
      %v1977 = vmul.f32 %v1968, %v1975
      %v1978 = vmul.f32 %v1969, %v1975
      %v1979 = vmul.f32 %v1970, %v1975
      %v1981 = vlaneseq
      %v1982 = vshrl.u32 %v1981, 7
      %v1983 = vsub.s32 0, %v1982
      %v1984 = vrot.slane %v1931, %v1983
      %v1986 = vadd.f32 %v1977, %v1984
      %v1987 = vadd.f32 %v1978, %v1984
      %v1988 = vadd.f32 %v1979, %v1984
      %1989 = vst.msk [vmem:[#allocation2] sm:$0xff] %vm746, %v1986
      %1990 = vst.msk [vmem:[#allocation2 + $0x8] sm:$0xff] %vm746, %v1987
      %1991 = vst.msk [vmem:[#allocation2 + $0x10] sm:$0xf] %vm1726, %v1988
      %p1992 = scmp.eq.s32.totalorder %s28, 1
      // Predicated region
      $region93: #{language_transformer_forward.2} parent=87 // pred_check
        %p1993 = pneg %p1992
      $region94: #{language_transformer_forward.2} parent=87 // pred_check_branch
        %1995 = sbr.rel (%p1993) target = $region96
      $region95: #{language_transformer_forward.2} parent=87 // pred_region
        %v1996 = vld [vmem:[%s15] sm:$0x1]
        %v1997 = vld [vmem:[%s16] sm:$0x1]
        %v1998 = vsel %vm746, %v1986, 0.0
        %1999 = vadd.xlane.f32.xlu0 %v1998
        %v2000 = vpop.xlane.xlu0 %1999
        %v2001 = vsel %vm746, %v1987, 0.0
        %2002 = vadd.xlane.f32.xlu0 %v2001
        %v2003 = vpop.xlane.xlu0 %2002
        %v2004 = vsel %vm1726, %v1988, 0.0
        %2005 = vadd.xlane.f32.xlu0 %v2004
        %v2006 = vpop.xlane.xlu0 %2005
        %v2007 = vmul.f32 %v2000, %v1730
        %v2008 = vmul.f32 %v2003, %v1730
        %v2009 = vmul.f32 %v2006, %v1730
        %v2010 = vsub.f32 %v1986, %v2007
        %v2011 = vsub.f32 %v1987, %v2008
        %v2012 = vsub.f32 %v1988, %v2009
        %v2013 = vmul.f32 %v2010, %v2010
        %v2014 = vmul.f32 %v2011, %v2011
        %v2015 = vmul.f32 %v2012, %v2012
        %v2016 = vsel %vm746, %v2013, 0.0
        %2017 = vadd.xlane.f32.xlu0 %v2016
        %v2018 = vpop.xlane.xlu0 %2017
        %v2019 = vsel %vm746, %v2014, 0.0
        %2020 = vadd.xlane.f32.xlu0 %v2019
        %v2021 = vpop.xlane.xlu0 %2020
        %v2022 = vsel %vm1726, %v2015, 0.0
        %2023 = vadd.xlane.f32.xlu0 %v2022
        %v2024 = vpop.xlane.xlu0 %2023
        %v2025 = vmul.f32 %v2018, %v1730
        %v2026 = vmul.f32 %v2021, %v1730
        %v2027 = vmul.f32 %v2024, %v1730
        %v2028 = vadd.f32 %v2025, 1e-05
        %v2029 = vadd.f32 %v2026, 1e-05
        %v2030 = vadd.f32 %v2027, 1e-05
        %v2031 = vrsqrt.pop %v2028
        %v2032 = vrsqrt.pop %v2029
        %v2033 = vrsqrt.pop %v2030
        %v2034 = vmul.f32 %v2010, %v2031
        %v2035 = vmul.f32 %v2011, %v2032
        %v2036 = vmul.f32 %v2012, %v2033
        %v2038 = vlaneseq
        %v2039 = vshrl.u32 %v2038, 7
        %v2040 = vsub.s32 0, %v2039
        %v2041 = vrot.slane %v1996, %v2040
        %v2043 = vmul.f32 %v2034, %v2041
        %v2044 = vmul.f32 %v2035, %v2041
        %v2045 = vmul.f32 %v2036, %v2041
        %v2047 = vlaneseq
        %v2048 = vshrl.u32 %v2047, 7
        %v2049 = vsub.s32 0, %v2048
        %v2050 = vrot.slane %v1997, %v2049
        %v2052 = vadd.f32 %v2043, %v2050
        %v2053 = vadd.f32 %v2044, %v2050
        %v2054 = vadd.f32 %v2045, %v2050
        %2055 = vst.msk [vmem:[%s17] sm:$0xff] %vm746, %v2052
        %2056 = vst.msk [vmem:[%s17 + $0x8] sm:$0xff] %vm746, %v2053
        %2057 = vst.msk [vmem:[%s17 + $0x10] sm:$0xf] %vm1726, %v2054
      $region96: #{language_transformer_forward.2} parent=87 // pred_fallthru
        _
      // Predicated region
      $region97: #{language_transformer_forward.2} parent=87 // pred_check
        %p2058 = pneg %p458
      $region98: #{language_transformer_forward.2} parent=87 // pred_check_branch
        %2060 = sbr.rel (%p2058) target = $region100
      $region99: #{language_transformer_forward.2} parent=87 // pred_region
        _
      $region100: #{language_transformer_forward.2} parent=87 // pred_fallthru
        _
      // Predicated region
      $region101: #{language_transformer_forward.2} parent=87 // pred_check
        %p2061 = pneg %p458
      $region102: #{language_transformer_forward.2} parent=87 // pred_check_branch
        %2063 = sbr.rel (%p2061) target = $region104
      $region103: #{language_transformer_forward.2} parent=87 // pred_region
        _
      $region104: #{language_transformer_forward.2} parent=87 // pred_fallthru
        _
    $region88: #{language_transformer_forward.2} parent=5 // pred_fallthru
      _
    %p2064 = scmp.le.s32.totalorder 2, %s23
    // Predicated region
    $region105: #{language_transformer_forward.2} parent=5 // pred_check
      %p2065 = pneg %p2064
    $region106: #{language_transformer_forward.2} parent=5 // pred_check_branch
      %2067 = sbr.rel (%p2065) target = $region108
    $region107: #{language_transformer_forward.2} parent=5 // pred_region
      %s2068 = ssub.s32 %s23, 2
    $region108: #{language_transformer_forward.2} parent=5 // pred_fallthru
      _
  $region6: #{language_transformer_forward.2} parent=0 // loop_footer
    %s27 = sadd.s32 1, %s23
  $region7: #{language_transformer_forward.2} parent=0 // loop_footer_branch
    %22 = sbr.rel target = $region3
  $region8: #{language_transformer_forward.2} parent=0 // loop_exit
    _

// kernel: language_transformer_forward.3
$region0: #{language_transformer_forward.3}
  #allocation0 [shape = 'u32[]', space=smem, size = 0x4, offset = 0x4, fixed_abs, tag = 'smem constant byte address 0x4 - core index']
  #allocation1 [shape = 'u32[144,128]{1,0:T(1,128)}', space=vmem, size = 0x12000, scoped, tag = 'internal scratch']
  #allocation2 [shape = 'f32[16,32]{1,0:T(8,128)}', space=vmem, size = 0x2000, scoped, tag = 'scratch operand']
  %s0 = inlined_call_operand.smem [shape: u32[30], index: -1, kind: input, shape index: {}]
  %s1 = sld [smem:[%s0]]
  %s2 = scalar_lea.smem %s0, 1
  %s3 = sld [smem:[%s2]]
  %s4 = scalar_lea.smem %s0, 2
  %s5 = sld [smem:[%s4]]
  %s6 = scalar_lea.smem %s0, 3
  %s7 = sld [smem:[%s6]]
  %s8 = scalar_lea.smem %s0, 4
  %s9 = sld [smem:[%s8]]
  %s10 = scalar_lea.smem %s0, 5
  %s11 = sld [smem:[%s10]]
  %s12 = scalar_lea.smem %s0, 6
  %s13 = sld [smem:[%s12]]
  %s14 = scalar_lea.smem %s0, 7
  %s15 = sld [smem:[%s14]]
  %s16 = scalar_lea.smem %s0, 8
  %s17 = sld [smem:[%s16]]
  %s18 = scalar_lea.smem %s0, 9
  %s19 = sld [smem:[%s18]]
  %s20 = scalar_lea.smem %s0, 10
  %s21 = sld [smem:[%s20]]
  %s22 = scalar_lea.smem %s0, 11
  %s23 = sld [smem:[%s22]]
  %s24 = scalar_lea.smem %s0, 12
  %s25 = sld [smem:[%s24]]
  %s26 = scalar_lea.smem %s0, 13
  %s27 = sld [smem:[%s26]]
  %s28 = scalar_lea.smem %s0, 14
  %s29 = sld [smem:[%s28]]
  %s30 = scalar_lea.smem %s0, 15
  %s31 = sld [smem:[%s30]]
  %s32 = scalar_lea.smem %s0, 16
  %s33 = sld [smem:[%s32]]
  %s34 = scalar_lea.smem %s0, 17
  %s35 = sld [smem:[%s34]]
  %s36 = scalar_lea.smem %s0, 18
  %s37 = sld [smem:[%s36]]
  %s38 = scalar_lea.smem %s0, 19
  %s39 = sld [smem:[%s38]]
  %s40 = scalar_lea.smem %s0, 20
  %s41 = sld [smem:[%s40]]
  %s42 = scalar_lea.smem %s0, 21
  %s43 = sld [smem:[%s42]]
  %s44 = scalar_lea.smem %s0, 22
  %s45 = sld [smem:[%s44]]
  %s46 = scalar_lea.smem %s0, 23
  %s47 = sld [smem:[%s46]]
  %s48 = scalar_lea.smem %s0, 24
  %s49 = sld [smem:[%s48]]
  %s50 = scalar_lea.smem %s0, 25
  %s51 = sld [smem:[%s50]]
  %s52 = scalar_lea.smem %s0, 26
  %s53 = sld [smem:[%s52]]
  %s54 = scalar_lea.smem %s0, 27
  %s55 = sld [smem:[%s54]]
  %s56 = scalar_lea.smem %s0, 28
  %s57 = sld [smem:[%s56]]
  %s58 = scalar_lea.smem %s0, 29
  %s59 = sld [smem:[%s58]]
  %s60 = sld [smem:[#allocation0]]
  $region157: #{language_transformer_forward.3} parent=0
    _
  %s62 = ssub.s32 1, %s60
  %s63 = scalar_select 0, %s62, %s60
  $region1: #{language_transformer_forward.3} parent=0
    #allocation3 [shape = 'u8[8192]{0}', space=vmem, size = 0x2000, scoped, tag = 'output window, operand 0, single buffered']
    #allocation4 [shape = 's32[2]{0}', space=sflag, size = 0x8, scoped, tag = 'scoped memory for language_transformer_forward.3']
    %64 = vsyncpa [#allocation4], 0
    loop: start=0, step=1, limit=4
    $region2: #{language_transformer_forward.3} parent=1 // loop_pre_header
      _
    $region3: #{language_transformer_forward.3} parent=1 // loop_header
      %s66 = sphi 0, %s70
      %p67 = scmp.ge.s32.totalorder %s66, 4
      %s74 = sphi 0, %s74
      %s76 = sphi 0, %s74
      %s77 = sphi 0, %s76
      %s91 = sphi 0, %s77
      %s95 = sphi 0, %s95
      %s97 = sphi 0, %s95
      %s98 = sphi 0, %s97
      %s112 = sphi 0, %s98
      %s116 = sphi 0, %s116
      %s118 = sphi 0, %s116
      %s119 = sphi 0, %s118
      %s133 = sphi 0, %s119
      %s137 = sphi 0, %s137
      %s139 = sphi 0, %s137
      %s140 = sphi 0, %s139
      %s154 = sphi 0, %s140
      %s158 = sphi 0, %s158
      %s160 = sphi 0, %s158
      %s161 = sphi 0, %s160
      %s175 = sphi 0, %s161
      %s181 = sphi 0, %s183
      %s184 = sphi 0, %s181
      %s185 = sphi 0, %s184
      %s201 = sphi 0, %s185
      %s207 = sphi 0, %s209
      %s210 = sphi 0, %s207
      %s211 = sphi 0, %s210
      %s227 = sphi 0, %s211
      %s233 = sphi 0, %s235
      %s236 = sphi 0, %s233
      %s237 = sphi 0, %s236
      %s253 = sphi 0, %s237
      %s259 = sphi 0, %s261
      %s262 = sphi 0, %s259
      %s263 = sphi 0, %s262
      %s279 = sphi 0, %s263
      %s285 = sphi 0, %s287
      %s288 = sphi 0, %s285
      %s289 = sphi 0, %s288
      %s305 = sphi 0, %s289
      %s311 = sphi 0, %s313
      %s314 = sphi 0, %s311
      %s315 = sphi 0, %s314
      %s331 = sphi 0, %s315
      %s337 = sphi 0, %s339
      %s340 = sphi 0, %s337
      %s341 = sphi 0, %s340
      %s357 = sphi 0, %s341
      %s363 = sphi 0, %s365
      %s366 = sphi 0, %s363
      %s367 = sphi 0, %s366
      %s383 = sphi 0, %s367
      %s389 = sphi 0, %s391
      %s392 = sphi 0, %s389
      %s393 = sphi 0, %s392
      %s409 = sphi 0, %s393
      %s415 = sphi 0, %s417
      %s418 = sphi 0, %s415
      %s419 = sphi 0, %s418
      %s435 = sphi 0, %s419
      %s441 = sphi 0, %s443
      %s444 = sphi 0, %s441
      %s445 = sphi 0, %s444
      %s461 = sphi 0, %s445
      %s467 = sphi 0, %s469
      %s470 = sphi 0, %s467
      %s471 = sphi 0, %s470
      %s487 = sphi 0, %s471
      %s493 = sphi 0, %s495
      %s496 = sphi 0, %s493
      %s497 = sphi 0, %s496
      %s513 = sphi 0, %s497
      %s519 = sphi 0, %s521
      %s522 = sphi 0, %s519
      %s523 = sphi 0, %s522
      %s539 = sphi 0, %s523
      %s545 = sphi 0, %s547
      %s548 = sphi 0, %s545
      %s549 = sphi 0, %s548
      %s565 = sphi 0, %s549
      %s571 = sphi 0, %s573
      %s574 = sphi 0, %s571
      %s575 = sphi 0, %s574
      %s591 = sphi 0, %s575
      %s597 = sphi 0, %s599
      %s600 = sphi 0, %s597
      %s601 = sphi 0, %s600
      %s617 = sphi 0, %s601
      %s623 = sphi 0, %s625
      %s626 = sphi 0, %s623
      %s627 = sphi 0, %s626
      %s643 = sphi 0, %s627
      %s649 = sphi 0, %s651
      %s652 = sphi 0, %s649
      %s653 = sphi 0, %s652
      %s669 = sphi 0, %s653
      %s675 = sphi 0, %s677
      %s678 = sphi 0, %s675
      %s679 = sphi 0, %s678
      %s695 = sphi 0, %s679
      %s699 = sphi 0, %s699
      %s701 = sphi 0, %s699
      %s702 = sphi 0, %s701
      %s716 = sphi 0, %s702
      %s720 = sphi 0, %s720
      %s722 = sphi 0, %s720
      %s723 = sphi 0, %s722
      %s737 = sphi 0, %s723
      %s741 = sphi 0, %s741
      %s743 = sphi 0, %s741
      %s744 = sphi 0, %s743
      %s758 = sphi 0, %s744
      %s762 = sphi 0, %s762
      %s764 = sphi 0, %s762
      %s765 = sphi 0, %s764
      %s779 = sphi 0, %s765
      %s783 = sphi 0, %s783
      %s785 = sphi 0, %s783
      %s786 = sphi 0, %s785
      %s800 = sphi 0, %s786
    $region4: #{language_transformer_forward.3} parent=1 // loop_header_branch
      %69 = sbr.rel (%p67) target = $region8
    $region5: #{language_transformer_forward.3} parent=1 // loop_body
      %s71 = ssub.s32 %s66, 1
      %s72 = ssub.s32 %s66, 2
      %s73 = sadd.s32 %s66, 1
      %s75 = sadd.s32 %s74, 1
      %p78 = scmp.eq.s32.totalorder %s66, 1
      %p79 = scmp.ne.s32.totalorder %s74, %s76
      %p80 = scmp.eq.s32.totalorder %s66, 0
      %p81 = por %p79, %p80
      %p82 = scmp.ne.s32.totalorder %s74, %s76
      %p83 = scmp.eq.s32.totalorder %s71, 1
      %p84 = por %p82, %p83
      %p85 = scmp.ne.s32.totalorder %s76, %s77
      %p86 = scmp.eq.s32.totalorder %s71, 0
      %p87 = por %p85, %p86
      %p88 = scmp.ne.s32.totalorder %s76, %s77
      %p89 = scmp.eq.s32.totalorder %s72, 1
      %p90 = por %p88, %p89
      %p92 = scmp.ne.s32.totalorder %s77, %s91
      %p93 = scmp.eq.s32.totalorder %s72, 0
      %p94 = por %p92, %p93
      %s96 = sadd.s32 %s95, 1
      %p99 = scmp.eq.s32.totalorder %s66, 1
      %p100 = scmp.ne.s32.totalorder %s95, %s97
      %p101 = scmp.eq.s32.totalorder %s66, 0
      %p102 = por %p100, %p101
      %p103 = scmp.ne.s32.totalorder %s95, %s97
      %p104 = scmp.eq.s32.totalorder %s71, 1
      %p105 = por %p103, %p104
      %p106 = scmp.ne.s32.totalorder %s97, %s98
      %p107 = scmp.eq.s32.totalorder %s71, 0
      %p108 = por %p106, %p107
      %p109 = scmp.ne.s32.totalorder %s97, %s98
      %p110 = scmp.eq.s32.totalorder %s72, 1
      %p111 = por %p109, %p110
      %p113 = scmp.ne.s32.totalorder %s98, %s112
      %p114 = scmp.eq.s32.totalorder %s72, 0
      %p115 = por %p113, %p114
      %s117 = sadd.s32 %s116, 1
      %p120 = scmp.eq.s32.totalorder %s66, 1
      %p121 = scmp.ne.s32.totalorder %s116, %s118
      %p122 = scmp.eq.s32.totalorder %s66, 0
      %p123 = por %p121, %p122
      %p124 = scmp.ne.s32.totalorder %s116, %s118
      %p125 = scmp.eq.s32.totalorder %s71, 1
      %p126 = por %p124, %p125
      %p127 = scmp.ne.s32.totalorder %s118, %s119
      %p128 = scmp.eq.s32.totalorder %s71, 0
      %p129 = por %p127, %p128
      %p130 = scmp.ne.s32.totalorder %s118, %s119
      %p131 = scmp.eq.s32.totalorder %s72, 1
      %p132 = por %p130, %p131
      %p134 = scmp.ne.s32.totalorder %s119, %s133
      %p135 = scmp.eq.s32.totalorder %s72, 0
      %p136 = por %p134, %p135
      %s138 = sadd.s32 %s137, 1
      %p141 = scmp.eq.s32.totalorder %s66, 1
      %p142 = scmp.ne.s32.totalorder %s137, %s139
      %p143 = scmp.eq.s32.totalorder %s66, 0
      %p144 = por %p142, %p143
      %p145 = scmp.ne.s32.totalorder %s137, %s139
      %p146 = scmp.eq.s32.totalorder %s71, 1
      %p147 = por %p145, %p146
      %p148 = scmp.ne.s32.totalorder %s139, %s140
      %p149 = scmp.eq.s32.totalorder %s71, 0
      %p150 = por %p148, %p149
      %p151 = scmp.ne.s32.totalorder %s139, %s140
      %p152 = scmp.eq.s32.totalorder %s72, 1
      %p153 = por %p151, %p152
      %p155 = scmp.ne.s32.totalorder %s140, %s154
      %p156 = scmp.eq.s32.totalorder %s72, 0
      %p157 = por %p155, %p156
      %s159 = sadd.s32 %s158, 1
      %p162 = scmp.eq.s32.totalorder %s66, 1
      %p163 = scmp.ne.s32.totalorder %s158, %s160
      %p164 = scmp.eq.s32.totalorder %s66, 0
      %p165 = por %p163, %p164
      %p166 = scmp.ne.s32.totalorder %s158, %s160
      %p167 = scmp.eq.s32.totalorder %s71, 1
      %p168 = por %p166, %p167
      %p169 = scmp.ne.s32.totalorder %s160, %s161
      %p170 = scmp.eq.s32.totalorder %s71, 0
      %p171 = por %p169, %p170
      %p172 = scmp.ne.s32.totalorder %s160, %s161
      %p173 = scmp.eq.s32.totalorder %s72, 1
      %p174 = por %p172, %p173
      %p176 = scmp.ne.s32.totalorder %s161, %s175
      %p177 = scmp.eq.s32.totalorder %s72, 0
      %p178 = por %p176, %p177
      %s179 = ssub.s32 %s66, %s73
      %p180 = scmp.eq.s32.totalorder %s179, 0
      %s182 = sadd.s32 %s181, 1
      %s183 = scalar_select %p180, %s181, %s182
      %p186 = pneg %p180
      %p187 = scmp.eq.s32.totalorder %s66, 1
      %p188 = por %p186, %p187
      %p189 = scmp.ne.s32.totalorder %s181, %s184
      %p190 = scmp.eq.s32.totalorder %s66, 0
      %p191 = por %p189, %p190
      %p192 = scmp.ne.s32.totalorder %s181, %s184
      %p193 = scmp.eq.s32.totalorder %s71, 1
      %p194 = por %p192, %p193
      %p195 = scmp.ne.s32.totalorder %s184, %s185
      %p196 = scmp.eq.s32.totalorder %s71, 0
      %p197 = por %p195, %p196
      %p198 = scmp.ne.s32.totalorder %s184, %s185
      %p199 = scmp.eq.s32.totalorder %s72, 1
      %p200 = por %p198, %p199
      %p202 = scmp.ne.s32.totalorder %s185, %s201
      %p203 = scmp.eq.s32.totalorder %s72, 0
      %p204 = por %p202, %p203
      %s205 = ssub.s32 %s66, %s73
      %p206 = scmp.eq.s32.totalorder %s205, 0
      %s208 = sadd.s32 %s207, 1
      %s209 = scalar_select %p206, %s207, %s208
      %p212 = pneg %p206
      %p213 = scmp.eq.s32.totalorder %s66, 1
      %p214 = por %p212, %p213
      %p215 = scmp.ne.s32.totalorder %s207, %s210
      %p216 = scmp.eq.s32.totalorder %s66, 0
      %p217 = por %p215, %p216
      %p218 = scmp.ne.s32.totalorder %s207, %s210
      %p219 = scmp.eq.s32.totalorder %s71, 1
      %p220 = por %p218, %p219
      %p221 = scmp.ne.s32.totalorder %s210, %s211
      %p222 = scmp.eq.s32.totalorder %s71, 0
      %p223 = por %p221, %p222
      %p224 = scmp.ne.s32.totalorder %s210, %s211
      %p225 = scmp.eq.s32.totalorder %s72, 1
      %p226 = por %p224, %p225
      %p228 = scmp.ne.s32.totalorder %s211, %s227
      %p229 = scmp.eq.s32.totalorder %s72, 0
      %p230 = por %p228, %p229
      %s231 = ssub.s32 %s66, %s73
      %p232 = scmp.eq.s32.totalorder %s231, 0
      %s234 = sadd.s32 %s233, 1
      %s235 = scalar_select %p232, %s233, %s234
      %p238 = pneg %p232
      %p239 = scmp.eq.s32.totalorder %s66, 1
      %p240 = por %p238, %p239
      %p241 = scmp.ne.s32.totalorder %s233, %s236
      %p242 = scmp.eq.s32.totalorder %s66, 0
      %p243 = por %p241, %p242
      %p244 = scmp.ne.s32.totalorder %s233, %s236
      %p245 = scmp.eq.s32.totalorder %s71, 1
      %p246 = por %p244, %p245
      %p247 = scmp.ne.s32.totalorder %s236, %s237
      %p248 = scmp.eq.s32.totalorder %s71, 0
      %p249 = por %p247, %p248
      %p250 = scmp.ne.s32.totalorder %s236, %s237
      %p251 = scmp.eq.s32.totalorder %s72, 1
      %p252 = por %p250, %p251
      %p254 = scmp.ne.s32.totalorder %s237, %s253
      %p255 = scmp.eq.s32.totalorder %s72, 0
      %p256 = por %p254, %p255
      %s257 = ssub.s32 %s66, %s73
      %p258 = scmp.eq.s32.totalorder %s257, 0
      %s260 = sadd.s32 %s259, 1
      %s261 = scalar_select %p258, %s259, %s260
      %p264 = pneg %p258
      %p265 = scmp.eq.s32.totalorder %s66, 1
      %p266 = por %p264, %p265
      %p267 = scmp.ne.s32.totalorder %s259, %s262
      %p268 = scmp.eq.s32.totalorder %s66, 0
      %p269 = por %p267, %p268
      %p270 = scmp.ne.s32.totalorder %s259, %s262
      %p271 = scmp.eq.s32.totalorder %s71, 1
      %p272 = por %p270, %p271
      %p273 = scmp.ne.s32.totalorder %s262, %s263
      %p274 = scmp.eq.s32.totalorder %s71, 0
      %p275 = por %p273, %p274
      %p276 = scmp.ne.s32.totalorder %s262, %s263
      %p277 = scmp.eq.s32.totalorder %s72, 1
      %p278 = por %p276, %p277
      %p280 = scmp.ne.s32.totalorder %s263, %s279
      %p281 = scmp.eq.s32.totalorder %s72, 0
      %p282 = por %p280, %p281
      %s283 = ssub.s32 %s66, %s73
      %p284 = scmp.eq.s32.totalorder %s283, 0
      %s286 = sadd.s32 %s285, 1
      %s287 = scalar_select %p284, %s285, %s286
      %p290 = pneg %p284
      %p291 = scmp.eq.s32.totalorder %s66, 1
      %p292 = por %p290, %p291
      %p293 = scmp.ne.s32.totalorder %s285, %s288
      %p294 = scmp.eq.s32.totalorder %s66, 0
      %p295 = por %p293, %p294
      %p296 = scmp.ne.s32.totalorder %s285, %s288
      %p297 = scmp.eq.s32.totalorder %s71, 1
      %p298 = por %p296, %p297
      %p299 = scmp.ne.s32.totalorder %s288, %s289
      %p300 = scmp.eq.s32.totalorder %s71, 0
      %p301 = por %p299, %p300
      %p302 = scmp.ne.s32.totalorder %s288, %s289
      %p303 = scmp.eq.s32.totalorder %s72, 1
      %p304 = por %p302, %p303
      %p306 = scmp.ne.s32.totalorder %s289, %s305
      %p307 = scmp.eq.s32.totalorder %s72, 0
      %p308 = por %p306, %p307
      %s309 = ssub.s32 %s66, %s73
      %p310 = scmp.eq.s32.totalorder %s309, 0
      %s312 = sadd.s32 %s311, 1
      %s313 = scalar_select %p310, %s311, %s312
      %p316 = pneg %p310
      %p317 = scmp.eq.s32.totalorder %s66, 1
      %p318 = por %p316, %p317
      %p319 = scmp.ne.s32.totalorder %s311, %s314
      %p320 = scmp.eq.s32.totalorder %s66, 0
      %p321 = por %p319, %p320
      %p322 = scmp.ne.s32.totalorder %s311, %s314
      %p323 = scmp.eq.s32.totalorder %s71, 1
      %p324 = por %p322, %p323
      %p325 = scmp.ne.s32.totalorder %s314, %s315
      %p326 = scmp.eq.s32.totalorder %s71, 0
      %p327 = por %p325, %p326
      %p328 = scmp.ne.s32.totalorder %s314, %s315
      %p329 = scmp.eq.s32.totalorder %s72, 1
      %p330 = por %p328, %p329
      %p332 = scmp.ne.s32.totalorder %s315, %s331
      %p333 = scmp.eq.s32.totalorder %s72, 0
      %p334 = por %p332, %p333
      %s335 = ssub.s32 %s66, %s73
      %p336 = scmp.eq.s32.totalorder %s335, 0
      %s338 = sadd.s32 %s337, 1
      %s339 = scalar_select %p336, %s337, %s338
      %p342 = pneg %p336
      %p343 = scmp.eq.s32.totalorder %s66, 1
      %p344 = por %p342, %p343
      %p345 = scmp.ne.s32.totalorder %s337, %s340
      %p346 = scmp.eq.s32.totalorder %s66, 0
      %p347 = por %p345, %p346
      %p348 = scmp.ne.s32.totalorder %s337, %s340
      %p349 = scmp.eq.s32.totalorder %s71, 1
      %p350 = por %p348, %p349
      %p351 = scmp.ne.s32.totalorder %s340, %s341
      %p352 = scmp.eq.s32.totalorder %s71, 0
      %p353 = por %p351, %p352
      %p354 = scmp.ne.s32.totalorder %s340, %s341
      %p355 = scmp.eq.s32.totalorder %s72, 1
      %p356 = por %p354, %p355
      %p358 = scmp.ne.s32.totalorder %s341, %s357
      %p359 = scmp.eq.s32.totalorder %s72, 0
      %p360 = por %p358, %p359
      %s361 = ssub.s32 %s66, %s73
      %p362 = scmp.eq.s32.totalorder %s361, 0
      %s364 = sadd.s32 %s363, 1
      %s365 = scalar_select %p362, %s363, %s364
      %p368 = pneg %p362
      %p369 = scmp.eq.s32.totalorder %s66, 1
      %p370 = por %p368, %p369
      %p371 = scmp.ne.s32.totalorder %s363, %s366
      %p372 = scmp.eq.s32.totalorder %s66, 0
      %p373 = por %p371, %p372
      %p374 = scmp.ne.s32.totalorder %s363, %s366
      %p375 = scmp.eq.s32.totalorder %s71, 1
      %p376 = por %p374, %p375
      %p377 = scmp.ne.s32.totalorder %s366, %s367
      %p378 = scmp.eq.s32.totalorder %s71, 0
      %p379 = por %p377, %p378
      %p380 = scmp.ne.s32.totalorder %s366, %s367
      %p381 = scmp.eq.s32.totalorder %s72, 1
      %p382 = por %p380, %p381
      %p384 = scmp.ne.s32.totalorder %s367, %s383
      %p385 = scmp.eq.s32.totalorder %s72, 0
      %p386 = por %p384, %p385
      %s387 = ssub.s32 %s66, %s73
      %p388 = scmp.eq.s32.totalorder %s387, 0
      %s390 = sadd.s32 %s389, 1
      %s391 = scalar_select %p388, %s389, %s390
      %p394 = pneg %p388
      %p395 = scmp.eq.s32.totalorder %s66, 1
      %p396 = por %p394, %p395
      %p397 = scmp.ne.s32.totalorder %s389, %s392
      %p398 = scmp.eq.s32.totalorder %s66, 0
      %p399 = por %p397, %p398
      %p400 = scmp.ne.s32.totalorder %s389, %s392
      %p401 = scmp.eq.s32.totalorder %s71, 1
      %p402 = por %p400, %p401
      %p403 = scmp.ne.s32.totalorder %s392, %s393
      %p404 = scmp.eq.s32.totalorder %s71, 0
      %p405 = por %p403, %p404
      %p406 = scmp.ne.s32.totalorder %s392, %s393
      %p407 = scmp.eq.s32.totalorder %s72, 1
      %p408 = por %p406, %p407
      %p410 = scmp.ne.s32.totalorder %s393, %s409
      %p411 = scmp.eq.s32.totalorder %s72, 0
      %p412 = por %p410, %p411
      %s413 = ssub.s32 %s66, %s73
      %p414 = scmp.eq.s32.totalorder %s413, 0
      %s416 = sadd.s32 %s415, 1
      %s417 = scalar_select %p414, %s415, %s416
      %p420 = pneg %p414
      %p421 = scmp.eq.s32.totalorder %s66, 1
      %p422 = por %p420, %p421
      %p423 = scmp.ne.s32.totalorder %s415, %s418
      %p424 = scmp.eq.s32.totalorder %s66, 0
      %p425 = por %p423, %p424
      %p426 = scmp.ne.s32.totalorder %s415, %s418
      %p427 = scmp.eq.s32.totalorder %s71, 1
      %p428 = por %p426, %p427
      %p429 = scmp.ne.s32.totalorder %s418, %s419
      %p430 = scmp.eq.s32.totalorder %s71, 0
      %p431 = por %p429, %p430
      %p432 = scmp.ne.s32.totalorder %s418, %s419
      %p433 = scmp.eq.s32.totalorder %s72, 1
      %p434 = por %p432, %p433
      %p436 = scmp.ne.s32.totalorder %s419, %s435
      %p437 = scmp.eq.s32.totalorder %s72, 0
      %p438 = por %p436, %p437
      %s439 = ssub.s32 %s66, %s73
      %p440 = scmp.eq.s32.totalorder %s439, 0
      %s442 = sadd.s32 %s441, 1
      %s443 = scalar_select %p440, %s441, %s442
      %p446 = pneg %p440
      %p447 = scmp.eq.s32.totalorder %s66, 1
      %p448 = por %p446, %p447
      %p449 = scmp.ne.s32.totalorder %s441, %s444
      %p450 = scmp.eq.s32.totalorder %s66, 0
      %p451 = por %p449, %p450
      %p452 = scmp.ne.s32.totalorder %s441, %s444
      %p453 = scmp.eq.s32.totalorder %s71, 1
      %p454 = por %p452, %p453
      %p455 = scmp.ne.s32.totalorder %s444, %s445
      %p456 = scmp.eq.s32.totalorder %s71, 0
      %p457 = por %p455, %p456
      %p458 = scmp.ne.s32.totalorder %s444, %s445
      %p459 = scmp.eq.s32.totalorder %s72, 1
      %p460 = por %p458, %p459
      %p462 = scmp.ne.s32.totalorder %s445, %s461
      %p463 = scmp.eq.s32.totalorder %s72, 0
      %p464 = por %p462, %p463
      %s465 = ssub.s32 %s66, %s73
      %p466 = scmp.eq.s32.totalorder %s465, 0
      %s468 = sadd.s32 %s467, 1
      %s469 = scalar_select %p466, %s467, %s468
      %p472 = pneg %p466
      %p473 = scmp.eq.s32.totalorder %s66, 1
      %p474 = por %p472, %p473
      %p475 = scmp.ne.s32.totalorder %s467, %s470
      %p476 = scmp.eq.s32.totalorder %s66, 0
      %p477 = por %p475, %p476
      %p478 = scmp.ne.s32.totalorder %s467, %s470
      %p479 = scmp.eq.s32.totalorder %s71, 1
      %p480 = por %p478, %p479
      %p481 = scmp.ne.s32.totalorder %s470, %s471
      %p482 = scmp.eq.s32.totalorder %s71, 0
      %p483 = por %p481, %p482
      %p484 = scmp.ne.s32.totalorder %s470, %s471
      %p485 = scmp.eq.s32.totalorder %s72, 1
      %p486 = por %p484, %p485
      %p488 = scmp.ne.s32.totalorder %s471, %s487
      %p489 = scmp.eq.s32.totalorder %s72, 0
      %p490 = por %p488, %p489
      %s491 = ssub.s32 %s66, %s73
      %p492 = scmp.eq.s32.totalorder %s491, 0
      %s494 = sadd.s32 %s493, 1
      %s495 = scalar_select %p492, %s493, %s494
      %p498 = pneg %p492
      %p499 = scmp.eq.s32.totalorder %s66, 1
      %p500 = por %p498, %p499
      %p501 = scmp.ne.s32.totalorder %s493, %s496
      %p502 = scmp.eq.s32.totalorder %s66, 0
      %p503 = por %p501, %p502
      %p504 = scmp.ne.s32.totalorder %s493, %s496
      %p505 = scmp.eq.s32.totalorder %s71, 1
      %p506 = por %p504, %p505
      %p507 = scmp.ne.s32.totalorder %s496, %s497
      %p508 = scmp.eq.s32.totalorder %s71, 0
      %p509 = por %p507, %p508
      %p510 = scmp.ne.s32.totalorder %s496, %s497
      %p511 = scmp.eq.s32.totalorder %s72, 1
      %p512 = por %p510, %p511
      %p514 = scmp.ne.s32.totalorder %s497, %s513
      %p515 = scmp.eq.s32.totalorder %s72, 0
      %p516 = por %p514, %p515
      %s517 = ssub.s32 %s66, %s73
      %p518 = scmp.eq.s32.totalorder %s517, 0
      %s520 = sadd.s32 %s519, 1
      %s521 = scalar_select %p518, %s519, %s520
      %p524 = pneg %p518
      %p525 = scmp.eq.s32.totalorder %s66, 1
      %p526 = por %p524, %p525
      %p527 = scmp.ne.s32.totalorder %s519, %s522
      %p528 = scmp.eq.s32.totalorder %s66, 0
      %p529 = por %p527, %p528
      %p530 = scmp.ne.s32.totalorder %s519, %s522
      %p531 = scmp.eq.s32.totalorder %s71, 1
      %p532 = por %p530, %p531
      %p533 = scmp.ne.s32.totalorder %s522, %s523
      %p534 = scmp.eq.s32.totalorder %s71, 0
      %p535 = por %p533, %p534
      %p536 = scmp.ne.s32.totalorder %s522, %s523
      %p537 = scmp.eq.s32.totalorder %s72, 1
      %p538 = por %p536, %p537
      %p540 = scmp.ne.s32.totalorder %s523, %s539
      %p541 = scmp.eq.s32.totalorder %s72, 0
      %p542 = por %p540, %p541
      %s543 = ssub.s32 %s66, %s73
      %p544 = scmp.eq.s32.totalorder %s543, 0
      %s546 = sadd.s32 %s545, 1
      %s547 = scalar_select %p544, %s545, %s546
      %p550 = pneg %p544
      %p551 = scmp.eq.s32.totalorder %s66, 1
      %p552 = por %p550, %p551
      %p553 = scmp.ne.s32.totalorder %s545, %s548
      %p554 = scmp.eq.s32.totalorder %s66, 0
      %p555 = por %p553, %p554
      %p556 = scmp.ne.s32.totalorder %s545, %s548
      %p557 = scmp.eq.s32.totalorder %s71, 1
      %p558 = por %p556, %p557
      %p559 = scmp.ne.s32.totalorder %s548, %s549
      %p560 = scmp.eq.s32.totalorder %s71, 0
      %p561 = por %p559, %p560
      %p562 = scmp.ne.s32.totalorder %s548, %s549
      %p563 = scmp.eq.s32.totalorder %s72, 1
      %p564 = por %p562, %p563
      %p566 = scmp.ne.s32.totalorder %s549, %s565
      %p567 = scmp.eq.s32.totalorder %s72, 0
      %p568 = por %p566, %p567
      %s569 = ssub.s32 %s66, %s73
      %p570 = scmp.eq.s32.totalorder %s569, 0
      %s572 = sadd.s32 %s571, 1
      %s573 = scalar_select %p570, %s571, %s572
      %p576 = pneg %p570
      %p577 = scmp.eq.s32.totalorder %s66, 1
      %p578 = por %p576, %p577
      %p579 = scmp.ne.s32.totalorder %s571, %s574
      %p580 = scmp.eq.s32.totalorder %s66, 0
      %p581 = por %p579, %p580
      %p582 = scmp.ne.s32.totalorder %s571, %s574
      %p583 = scmp.eq.s32.totalorder %s71, 1
      %p584 = por %p582, %p583
      %p585 = scmp.ne.s32.totalorder %s574, %s575
      %p586 = scmp.eq.s32.totalorder %s71, 0
      %p587 = por %p585, %p586
      %p588 = scmp.ne.s32.totalorder %s574, %s575
      %p589 = scmp.eq.s32.totalorder %s72, 1
      %p590 = por %p588, %p589
      %p592 = scmp.ne.s32.totalorder %s575, %s591
      %p593 = scmp.eq.s32.totalorder %s72, 0
      %p594 = por %p592, %p593
      %s595 = ssub.s32 %s66, %s73
      %p596 = scmp.eq.s32.totalorder %s595, 0
      %s598 = sadd.s32 %s597, 1
      %s599 = scalar_select %p596, %s597, %s598
      %p602 = pneg %p596
      %p603 = scmp.eq.s32.totalorder %s66, 1
      %p604 = por %p602, %p603
      %p605 = scmp.ne.s32.totalorder %s597, %s600
      %p606 = scmp.eq.s32.totalorder %s66, 0
      %p607 = por %p605, %p606
      %p608 = scmp.ne.s32.totalorder %s597, %s600
      %p609 = scmp.eq.s32.totalorder %s71, 1
      %p610 = por %p608, %p609
      %p611 = scmp.ne.s32.totalorder %s600, %s601
      %p612 = scmp.eq.s32.totalorder %s71, 0
      %p613 = por %p611, %p612
      %p614 = scmp.ne.s32.totalorder %s600, %s601
      %p615 = scmp.eq.s32.totalorder %s72, 1
      %p616 = por %p614, %p615
      %p618 = scmp.ne.s32.totalorder %s601, %s617
      %p619 = scmp.eq.s32.totalorder %s72, 0
      %p620 = por %p618, %p619
      %s621 = ssub.s32 %s66, %s73
      %p622 = scmp.eq.s32.totalorder %s621, 0
      %s624 = sadd.s32 %s623, 1
      %s625 = scalar_select %p622, %s623, %s624
      %p628 = pneg %p622
      %p629 = scmp.eq.s32.totalorder %s66, 1
      %p630 = por %p628, %p629
      %p631 = scmp.ne.s32.totalorder %s623, %s626
      %p632 = scmp.eq.s32.totalorder %s66, 0
      %p633 = por %p631, %p632
      %p634 = scmp.ne.s32.totalorder %s623, %s626
      %p635 = scmp.eq.s32.totalorder %s71, 1
      %p636 = por %p634, %p635
      %p637 = scmp.ne.s32.totalorder %s626, %s627
      %p638 = scmp.eq.s32.totalorder %s71, 0
      %p639 = por %p637, %p638
      %p640 = scmp.ne.s32.totalorder %s626, %s627
      %p641 = scmp.eq.s32.totalorder %s72, 1
      %p642 = por %p640, %p641
      %p644 = scmp.ne.s32.totalorder %s627, %s643
      %p645 = scmp.eq.s32.totalorder %s72, 0
      %p646 = por %p644, %p645
      %s647 = ssub.s32 %s66, %s73
      %p648 = scmp.eq.s32.totalorder %s647, 0
      %s650 = sadd.s32 %s649, 1
      %s651 = scalar_select %p648, %s649, %s650
      %p654 = pneg %p648
      %p655 = scmp.eq.s32.totalorder %s66, 1
      %p656 = por %p654, %p655
      %p657 = scmp.ne.s32.totalorder %s649, %s652
      %p658 = scmp.eq.s32.totalorder %s66, 0
      %p659 = por %p657, %p658
      %p660 = scmp.ne.s32.totalorder %s649, %s652
      %p661 = scmp.eq.s32.totalorder %s71, 1
      %p662 = por %p660, %p661
      %p663 = scmp.ne.s32.totalorder %s652, %s653
      %p664 = scmp.eq.s32.totalorder %s71, 0
      %p665 = por %p663, %p664
      %p666 = scmp.ne.s32.totalorder %s652, %s653
      %p667 = scmp.eq.s32.totalorder %s72, 1
      %p668 = por %p666, %p667
      %p670 = scmp.ne.s32.totalorder %s653, %s669
      %p671 = scmp.eq.s32.totalorder %s72, 0
      %p672 = por %p670, %p671
      %s673 = ssub.s32 %s66, %s73
      %p674 = scmp.eq.s32.totalorder %s673, 0
      %s676 = sadd.s32 %s675, 1
      %s677 = scalar_select %p674, %s675, %s676
      %p680 = pneg %p674
      %p681 = scmp.eq.s32.totalorder %s66, 1
      %p682 = por %p680, %p681
      %p683 = scmp.ne.s32.totalorder %s675, %s678
      %p684 = scmp.eq.s32.totalorder %s66, 0
      %p685 = por %p683, %p684
      %p686 = scmp.ne.s32.totalorder %s675, %s678
      %p687 = scmp.eq.s32.totalorder %s71, 1
      %p688 = por %p686, %p687
      %p689 = scmp.ne.s32.totalorder %s678, %s679
      %p690 = scmp.eq.s32.totalorder %s71, 0
      %p691 = por %p689, %p690
      %p692 = scmp.ne.s32.totalorder %s678, %s679
      %p693 = scmp.eq.s32.totalorder %s72, 1
      %p694 = por %p692, %p693
      %p696 = scmp.ne.s32.totalorder %s679, %s695
      %p697 = scmp.eq.s32.totalorder %s72, 0
      %p698 = por %p696, %p697
      %s700 = sadd.s32 %s699, 1
      %p703 = scmp.eq.s32.totalorder %s66, 1
      %p704 = scmp.ne.s32.totalorder %s699, %s701
      %p705 = scmp.eq.s32.totalorder %s66, 0
      %p706 = por %p704, %p705
      %p707 = scmp.ne.s32.totalorder %s699, %s701
      %p708 = scmp.eq.s32.totalorder %s71, 1
      %p709 = por %p707, %p708
      %p710 = scmp.ne.s32.totalorder %s701, %s702
      %p711 = scmp.eq.s32.totalorder %s71, 0
      %p712 = por %p710, %p711
      %p713 = scmp.ne.s32.totalorder %s701, %s702
      %p714 = scmp.eq.s32.totalorder %s72, 1
      %p715 = por %p713, %p714
      %p717 = scmp.ne.s32.totalorder %s702, %s716
      %p718 = scmp.eq.s32.totalorder %s72, 0
      %p719 = por %p717, %p718
      %s721 = sadd.s32 %s720, 1
      %p724 = scmp.eq.s32.totalorder %s66, 1
      %p725 = scmp.ne.s32.totalorder %s720, %s722
      %p726 = scmp.eq.s32.totalorder %s66, 0
      %p727 = por %p725, %p726
      %p728 = scmp.ne.s32.totalorder %s720, %s722
      %p729 = scmp.eq.s32.totalorder %s71, 1
      %p730 = por %p728, %p729
      %p731 = scmp.ne.s32.totalorder %s722, %s723
      %p732 = scmp.eq.s32.totalorder %s71, 0
      %p733 = por %p731, %p732
      %p734 = scmp.ne.s32.totalorder %s722, %s723
      %p735 = scmp.eq.s32.totalorder %s72, 1
      %p736 = por %p734, %p735
      %p738 = scmp.ne.s32.totalorder %s723, %s737
      %p739 = scmp.eq.s32.totalorder %s72, 0
      %p740 = por %p738, %p739
      %s742 = sadd.s32 %s741, 1
      %p745 = scmp.eq.s32.totalorder %s66, 1
      %p746 = scmp.ne.s32.totalorder %s741, %s743
      %p747 = scmp.eq.s32.totalorder %s66, 0
      %p748 = por %p746, %p747
      %p749 = scmp.ne.s32.totalorder %s741, %s743
      %p750 = scmp.eq.s32.totalorder %s71, 1
      %p751 = por %p749, %p750
      %p752 = scmp.ne.s32.totalorder %s743, %s744
      %p753 = scmp.eq.s32.totalorder %s71, 0
      %p754 = por %p752, %p753
      %p755 = scmp.ne.s32.totalorder %s743, %s744
      %p756 = scmp.eq.s32.totalorder %s72, 1
      %p757 = por %p755, %p756
      %p759 = scmp.ne.s32.totalorder %s744, %s758
      %p760 = scmp.eq.s32.totalorder %s72, 0
      %p761 = por %p759, %p760
      %s763 = sadd.s32 %s762, 1
      %p766 = scmp.eq.s32.totalorder %s66, 1
      %p767 = scmp.ne.s32.totalorder %s762, %s764
      %p768 = scmp.eq.s32.totalorder %s66, 0
      %p769 = por %p767, %p768
      %p770 = scmp.ne.s32.totalorder %s762, %s764
      %p771 = scmp.eq.s32.totalorder %s71, 1
      %p772 = por %p770, %p771
      %p773 = scmp.ne.s32.totalorder %s764, %s765
      %p774 = scmp.eq.s32.totalorder %s71, 0
      %p775 = por %p773, %p774
      %p776 = scmp.ne.s32.totalorder %s764, %s765
      %p777 = scmp.eq.s32.totalorder %s72, 1
      %p778 = por %p776, %p777
      %p780 = scmp.ne.s32.totalorder %s765, %s779
      %p781 = scmp.eq.s32.totalorder %s72, 0
      %p782 = por %p780, %p781
      %s784 = sadd.s32 %s783, 1
      %p787 = scmp.eq.s32.totalorder %s66, 1
      %p788 = scmp.ne.s32.totalorder %s783, %s785
      %p789 = scmp.eq.s32.totalorder %s66, 0
      %p790 = por %p788, %p789
      %p791 = scmp.ne.s32.totalorder %s783, %s785
      %p792 = scmp.eq.s32.totalorder %s71, 1
      %p793 = por %p791, %p792
      %p794 = scmp.ne.s32.totalorder %s785, %s786
      %p795 = scmp.eq.s32.totalorder %s71, 0
      %p796 = por %p794, %p795
      %p797 = scmp.ne.s32.totalorder %s785, %s786
      %p798 = scmp.eq.s32.totalorder %s72, 1
      %p799 = por %p797, %p798
      %p801 = scmp.ne.s32.totalorder %s786, %s800
      %p802 = scmp.eq.s32.totalorder %s72, 0
      %p803 = por %p801, %p802
      %p804 = scmp.le.s32.totalorder 1, %s66
      %p805 = scmp.lt.s32.totalorder %s66, 3
      %p806 = pnand %p804, %p805
      %p807 = pneg %p806
      // Predicated region
      $region9: #{language_transformer_forward.3} parent=5 // pred_check
        _
      $region10: #{language_transformer_forward.3} parent=5 // pred_check_branch
        %809 = sbr.rel (%p806) target = $region12
      $region11: #{language_transformer_forward.3} parent=5 // pred_region
        %s810 = ssub.s32 %s66, 1
        // Predicated region
        $region13: #{language_transformer_forward.3} parent=11 // pred_check
          %p811 = pneg %p87
        $region14: #{language_transformer_forward.3} parent=11 // pred_check_branch
          %813 = sbr.rel (%p811) target = $region16
        $region15: #{language_transformer_forward.3} parent=11 // pred_region
          _
        $region16: #{language_transformer_forward.3} parent=11 // pred_fallthru
          _
        // Predicated region
        $region17: #{language_transformer_forward.3} parent=11 // pred_check
          %p814 = pneg %p108
        $region18: #{language_transformer_forward.3} parent=11 // pred_check_branch
          %816 = sbr.rel (%p814) target = $region20
        $region19: #{language_transformer_forward.3} parent=11 // pred_region
          _
        $region20: #{language_transformer_forward.3} parent=11 // pred_fallthru
          _
        // Predicated region
        $region21: #{language_transformer_forward.3} parent=11 // pred_check
          %p817 = pneg %p129
        $region22: #{language_transformer_forward.3} parent=11 // pred_check_branch
          %819 = sbr.rel (%p817) target = $region24
        $region23: #{language_transformer_forward.3} parent=11 // pred_region
          _
        $region24: #{language_transformer_forward.3} parent=11 // pred_fallthru
          _
        // Predicated region
        $region25: #{language_transformer_forward.3} parent=11 // pred_check
          %p820 = pneg %p150
        $region26: #{language_transformer_forward.3} parent=11 // pred_check_branch
          %822 = sbr.rel (%p820) target = $region28
        $region27: #{language_transformer_forward.3} parent=11 // pred_region
          _
        $region28: #{language_transformer_forward.3} parent=11 // pred_fallthru
          _
        // Predicated region
        $region29: #{language_transformer_forward.3} parent=11 // pred_check
          %p823 = pneg %p171
        $region30: #{language_transformer_forward.3} parent=11 // pred_check_branch
          %825 = sbr.rel (%p823) target = $region32
        $region31: #{language_transformer_forward.3} parent=11 // pred_region
          _
        $region32: #{language_transformer_forward.3} parent=11 // pred_fallthru
          _
        // Predicated region
        $region33: #{language_transformer_forward.3} parent=11 // pred_check
          %p826 = pneg %p712
        $region34: #{language_transformer_forward.3} parent=11 // pred_check_branch
          %828 = sbr.rel (%p826) target = $region36
        $region35: #{language_transformer_forward.3} parent=11 // pred_region
          _
        $region36: #{language_transformer_forward.3} parent=11 // pred_fallthru
          _
        // Predicated region
        $region37: #{language_transformer_forward.3} parent=11 // pred_check
          %p829 = pneg %p733
        $region38: #{language_transformer_forward.3} parent=11 // pred_check_branch
          %831 = sbr.rel (%p829) target = $region40
        $region39: #{language_transformer_forward.3} parent=11 // pred_region
          _
        $region40: #{language_transformer_forward.3} parent=11 // pred_fallthru
          _
        // Predicated region
        $region41: #{language_transformer_forward.3} parent=11 // pred_check
          %p832 = pneg %p754
        $region42: #{language_transformer_forward.3} parent=11 // pred_check_branch
          %834 = sbr.rel (%p832) target = $region44
        $region43: #{language_transformer_forward.3} parent=11 // pred_region
          _
        $region44: #{language_transformer_forward.3} parent=11 // pred_fallthru
          _
        // Predicated region
        $region45: #{language_transformer_forward.3} parent=11 // pred_check
          %p835 = pneg %p775
        $region46: #{language_transformer_forward.3} parent=11 // pred_check_branch
          %837 = sbr.rel (%p835) target = $region48
        $region47: #{language_transformer_forward.3} parent=11 // pred_region
          _
        $region48: #{language_transformer_forward.3} parent=11 // pred_fallthru
          _
      $region12: #{language_transformer_forward.3} parent=5 // pred_fallthru
        _
      %p838 = scmp.lt.s32.totalorder %s66, 2
      // Predicated region
      $region49: #{language_transformer_forward.3} parent=5 // pred_check
        %p839 = pneg %p838
      $region50: #{language_transformer_forward.3} parent=5 // pred_check_branch
        %841 = sbr.rel (%p839) target = $region52
      $region51: #{language_transformer_forward.3} parent=5 // pred_region
        // Predicated region
        $region53: #{language_transformer_forward.3} parent=51 // pred_check
          %p842 = pneg %p191
        $region54: #{language_transformer_forward.3} parent=51 // pred_check_branch
          %844 = sbr.rel (%p842) target = $region56
        $region55: #{language_transformer_forward.3} parent=51 // pred_region
          %p845 = scmp.lt.s32.totalorder %s66, 1
          %s846 = scalar_select %p845, %s66, 1
          %s847 = smul.addr %s846, 4
          %s848 = smul.addr %s847, 8
          %s849 = scalar_lea.vmem %s11, %s848
        $region56: #{language_transformer_forward.3} parent=51 // pred_fallthru
          _
        // Predicated region
        $region57: #{language_transformer_forward.3} parent=51 // pred_check
          %p850 = pneg %p217
        $region58: #{language_transformer_forward.3} parent=51 // pred_check_branch
          %852 = sbr.rel (%p850) target = $region60
        $region59: #{language_transformer_forward.3} parent=51 // pred_region
          %p853 = scmp.lt.s32.totalorder %s66, 1
          %s854 = scalar_select %p853, %s66, 1
          %s855 = scalar_lea.vmem %s13, %s854
        $region60: #{language_transformer_forward.3} parent=51 // pred_fallthru
          _
        // Predicated region
        $region61: #{language_transformer_forward.3} parent=51 // pred_check
          %p856 = pneg %p243
        $region62: #{language_transformer_forward.3} parent=51 // pred_check_branch
          %858 = sbr.rel (%p856) target = $region64
        $region63: #{language_transformer_forward.3} parent=51 // pred_region
          %p859 = scmp.lt.s32.totalorder %s66, 1
          %s860 = scalar_select %p859, %s66, 1
          %s861 = smul.addr %s860, 4
          %s862 = smul.addr %s861, 8
          %s863 = scalar_lea.vmem %s15, %s862
        $region64: #{language_transformer_forward.3} parent=51 // pred_fallthru
          _
        // Predicated region
        $region65: #{language_transformer_forward.3} parent=51 // pred_check
          %p864 = pneg %p269
        $region66: #{language_transformer_forward.3} parent=51 // pred_check_branch
          %866 = sbr.rel (%p864) target = $region68
        $region67: #{language_transformer_forward.3} parent=51 // pred_region
          %p867 = scmp.lt.s32.totalorder %s66, 1
          %s868 = scalar_select %p867, %s66, 1
          %s869 = scalar_lea.vmem %s17, %s868
        $region68: #{language_transformer_forward.3} parent=51 // pred_fallthru
          _
        // Predicated region
        $region69: #{language_transformer_forward.3} parent=51 // pred_check
          %p870 = pneg %p295
        $region70: #{language_transformer_forward.3} parent=51 // pred_check_branch
          %872 = sbr.rel (%p870) target = $region72
        $region71: #{language_transformer_forward.3} parent=51 // pred_region
          %p873 = scmp.lt.s32.totalorder %s66, 1
          %s874 = scalar_select %p873, %s66, 1
          %s875 = scalar_lea.vmem %s19, %s874
        $region72: #{language_transformer_forward.3} parent=51 // pred_fallthru
          _
        // Predicated region
        $region73: #{language_transformer_forward.3} parent=51 // pred_check
          %p876 = pneg %p321
        $region74: #{language_transformer_forward.3} parent=51 // pred_check_branch
          %878 = sbr.rel (%p876) target = $region76
        $region75: #{language_transformer_forward.3} parent=51 // pred_region
          %p879 = scmp.lt.s32.totalorder %s66, 1
          %s880 = scalar_select %p879, %s66, 1
          %s881 = scalar_lea.vmem %s21, %s880
        $region76: #{language_transformer_forward.3} parent=51 // pred_fallthru
          _
        // Predicated region
        $region77: #{language_transformer_forward.3} parent=51 // pred_check
          %p882 = pneg %p347
        $region78: #{language_transformer_forward.3} parent=51 // pred_check_branch
          %884 = sbr.rel (%p882) target = $region80
        $region79: #{language_transformer_forward.3} parent=51 // pred_region
          %p885 = scmp.lt.s32.totalorder %s66, 1
          %s886 = scalar_select %p885, %s66, 1
          %s887 = smul.addr %s886, 4
          %s888 = smul.addr %s887, 8
          %s889 = scalar_lea.vmem %s23, %s888
        $region80: #{language_transformer_forward.3} parent=51 // pred_fallthru
          _
        // Predicated region
        $region81: #{language_transformer_forward.3} parent=51 // pred_check
          %p890 = pneg %p373
        $region82: #{language_transformer_forward.3} parent=51 // pred_check_branch
          %892 = sbr.rel (%p890) target = $region84
        $region83: #{language_transformer_forward.3} parent=51 // pred_region
          %p893 = scmp.lt.s32.totalorder %s66, 1
          %s894 = scalar_select %p893, %s66, 1
          %s895 = scalar_lea.vmem %s25, %s894
        $region84: #{language_transformer_forward.3} parent=51 // pred_fallthru
          _
        // Predicated region
        $region85: #{language_transformer_forward.3} parent=51 // pred_check
          %p896 = pneg %p399
        $region86: #{language_transformer_forward.3} parent=51 // pred_check_branch
          %898 = sbr.rel (%p896) target = $region88
        $region87: #{language_transformer_forward.3} parent=51 // pred_region
          %p899 = scmp.lt.s32.totalorder %s66, 1
          %s900 = scalar_select %p899, %s66, 1
          %s901 = smul.addr %s900, 4
          %s902 = smul.addr %s901, 8
          %s903 = scalar_lea.vmem %s27, %s902
        $region88: #{language_transformer_forward.3} parent=51 // pred_fallthru
          _
        // Predicated region
        $region89: #{language_transformer_forward.3} parent=51 // pred_check
          %p904 = pneg %p425
        $region90: #{language_transformer_forward.3} parent=51 // pred_check_branch
          %906 = sbr.rel (%p904) target = $region92
        $region91: #{language_transformer_forward.3} parent=51 // pred_region
          %p907 = scmp.lt.s32.totalorder %s66, 1
          %s908 = scalar_select %p907, %s66, 1
          %s909 = scalar_lea.vmem %s29, %s908
        $region92: #{language_transformer_forward.3} parent=51 // pred_fallthru
          _
        // Predicated region
        $region93: #{language_transformer_forward.3} parent=51 // pred_check
          %p910 = pneg %p451
        $region94: #{language_transformer_forward.3} parent=51 // pred_check_branch
          %912 = sbr.rel (%p910) target = $region96
        $region95: #{language_transformer_forward.3} parent=51 // pred_region
          %p913 = scmp.lt.s32.totalorder %s66, 1
          %s914 = scalar_select %p913, %s66, 1
          %s915 = smul.addr %s914, 4
          %s916 = smul.addr %s915, 8
          %s917 = scalar_lea.vmem %s31, %s916
        $region96: #{language_transformer_forward.3} parent=51 // pred_fallthru
          _
        // Predicated region
        $region97: #{language_transformer_forward.3} parent=51 // pred_check
          %p918 = pneg %p477
        $region98: #{language_transformer_forward.3} parent=51 // pred_check_branch
          %920 = sbr.rel (%p918) target = $region100
        $region99: #{language_transformer_forward.3} parent=51 // pred_region
          %p921 = scmp.lt.s32.totalorder %s66, 1
          %s922 = scalar_select %p921, %s66, 1
          %s923 = scalar_lea.vmem %s33, %s922
        $region100: #{language_transformer_forward.3} parent=51 // pred_fallthru
          _
        // Predicated region
        $region101: #{language_transformer_forward.3} parent=51 // pred_check
          %p924 = pneg %p503
        $region102: #{language_transformer_forward.3} parent=51 // pred_check_branch
          %926 = sbr.rel (%p924) target = $region104
        $region103: #{language_transformer_forward.3} parent=51 // pred_region
          %p927 = scmp.lt.s32.totalorder %s66, 1
          %s928 = scalar_select %p927, %s66, 1
          %s929 = scalar_lea.vmem %s35, %s928
        $region104: #{language_transformer_forward.3} parent=51 // pred_fallthru
          _
        // Predicated region
        $region105: #{language_transformer_forward.3} parent=51 // pred_check
          %p930 = pneg %p529
        $region106: #{language_transformer_forward.3} parent=51 // pred_check_branch
          %932 = sbr.rel (%p930) target = $region108
        $region107: #{language_transformer_forward.3} parent=51 // pred_region
          %p933 = scmp.lt.s32.totalorder %s66, 1
          %s934 = scalar_select %p933, %s66, 1
          %s935 = scalar_lea.vmem %s37, %s934
        $region108: #{language_transformer_forward.3} parent=51 // pred_fallthru
          _
        // Predicated region
        $region109: #{language_transformer_forward.3} parent=51 // pred_check
          %p936 = pneg %p555
        $region110: #{language_transformer_forward.3} parent=51 // pred_check_branch
          %938 = sbr.rel (%p936) target = $region112
        $region111: #{language_transformer_forward.3} parent=51 // pred_region
          %p939 = scmp.lt.s32.totalorder %s66, 1
          %s940 = scalar_select %p939, %s66, 1
          %s941 = smul.addr %s940, 4
          %s942 = smul.addr %s941, 8
          %s943 = scalar_lea.vmem %s39, %s942
        $region112: #{language_transformer_forward.3} parent=51 // pred_fallthru
          _
        // Predicated region
        $region113: #{language_transformer_forward.3} parent=51 // pred_check
          %p944 = pneg %p581
        $region114: #{language_transformer_forward.3} parent=51 // pred_check_branch
          %946 = sbr.rel (%p944) target = $region116
        $region115: #{language_transformer_forward.3} parent=51 // pred_region
          %p947 = scmp.lt.s32.totalorder %s66, 1
          %s948 = scalar_select %p947, %s66, 1
          %s949 = scalar_lea.vmem %s41, %s948
        $region116: #{language_transformer_forward.3} parent=51 // pred_fallthru
          _
        // Predicated region
        $region117: #{language_transformer_forward.3} parent=51 // pred_check
          %p950 = pneg %p607
        $region118: #{language_transformer_forward.3} parent=51 // pred_check_branch
          %952 = sbr.rel (%p950) target = $region120
        $region119: #{language_transformer_forward.3} parent=51 // pred_region
          %p953 = scmp.lt.s32.totalorder %s66, 1
          %s954 = scalar_select %p953, %s66, 1
          %s955 = smul.addr %s954, 8
          %s956 = smul.addr %s955, 8
          %s957 = scalar_lea.vmem %s43, %s956
        $region120: #{language_transformer_forward.3} parent=51 // pred_fallthru
          _
        // Predicated region
        $region121: #{language_transformer_forward.3} parent=51 // pred_check
          %p958 = pneg %p633
        $region122: #{language_transformer_forward.3} parent=51 // pred_check_branch
          %960 = sbr.rel (%p958) target = $region124
        $region123: #{language_transformer_forward.3} parent=51 // pred_region
          %p961 = scmp.lt.s32.totalorder %s66, 1
          %s962 = scalar_select %p961, %s66, 1
          %s963 = scalar_lea.vmem %s45, %s962
        $region124: #{language_transformer_forward.3} parent=51 // pred_fallthru
          _
        // Predicated region
        $region125: #{language_transformer_forward.3} parent=51 // pred_check
          %p964 = pneg %p659
        $region126: #{language_transformer_forward.3} parent=51 // pred_check_branch
          %966 = sbr.rel (%p964) target = $region128
        $region127: #{language_transformer_forward.3} parent=51 // pred_region
          %p967 = scmp.lt.s32.totalorder %s66, 1
          %s968 = scalar_select %p967, %s66, 1
          %s969 = scalar_lea.vmem %s47, %s968
        $region128: #{language_transformer_forward.3} parent=51 // pred_fallthru
          _
        // Predicated region
        $region129: #{language_transformer_forward.3} parent=51 // pred_check
          %p970 = pneg %p685
        $region130: #{language_transformer_forward.3} parent=51 // pred_check_branch
          %972 = sbr.rel (%p970) target = $region132
        $region131: #{language_transformer_forward.3} parent=51 // pred_region
          %p973 = scmp.lt.s32.totalorder %s66, 1
          %s974 = scalar_select %p973, %s66, 1
          %s975 = scalar_lea.vmem %s49, %s974
        $region132: #{language_transformer_forward.3} parent=51 // pred_fallthru
          _
      $region52: #{language_transformer_forward.3} parent=5 // pred_fallthru
        _
      %p976 = scmp.le.s32.totalorder 1, %s66
      %p977 = scmp.lt.s32.totalorder %s66, 3
      %p978 = pnand %p976, %p977
      %p979 = pneg %p978
      // Predicated region
      $region133: #{language_transformer_forward.3} parent=5 // pred_check
        _
      $region134: #{language_transformer_forward.3} parent=5 // pred_check_branch
        %981 = sbr.rel (%p978) target = $region136
      $region135: #{language_transformer_forward.3} parent=5 // pred_region
        %s982 = ssub.s32 %s66, 1
        %p983 = pneg %p87
        %p984 = pneg %p84
        %p985 = pneg %p108
        %p986 = pneg %p105
        %p987 = pneg %p129
        %p988 = pneg %p126
        %p989 = pneg %p150
        %p990 = pneg %p147
        %p991 = pneg %p171
        %p992 = pneg %p168
        %p993 = scmp.lt.s32.totalorder %s71, 1
        %s994 = scalar_select %p993, %s71, 1
        %s995 = smul.addr %s994, 4
        %s996 = smul.addr %s995, 8
        %s997 = scalar_lea.vmem %s11, %s996
        %p998 = pneg %p197
        %p999 = pneg %p194
        %p1000 = scmp.lt.s32.totalorder %s71, 1
        %s1001 = scalar_select %p1000, %s71, 1
        %s1002 = scalar_lea.vmem %s13, %s1001
        %p1003 = pneg %p223
        %p1004 = pneg %p220
        %p1005 = scmp.lt.s32.totalorder %s71, 1
        %s1006 = scalar_select %p1005, %s71, 1
        %s1007 = smul.addr %s1006, 4
        %s1008 = smul.addr %s1007, 8
        %s1009 = scalar_lea.vmem %s15, %s1008
        %p1010 = pneg %p249
        %p1011 = pneg %p246
        %p1012 = scmp.lt.s32.totalorder %s71, 1
        %s1013 = scalar_select %p1012, %s71, 1
        %s1014 = scalar_lea.vmem %s17, %s1013
        %p1015 = pneg %p275
        %p1016 = pneg %p272
        %p1017 = scmp.lt.s32.totalorder %s71, 1
        %s1018 = scalar_select %p1017, %s71, 1
        %s1019 = scalar_lea.vmem %s19, %s1018
        %p1020 = pneg %p301
        %p1021 = pneg %p298
        %p1022 = scmp.lt.s32.totalorder %s71, 1
        %s1023 = scalar_select %p1022, %s71, 1
        %s1024 = scalar_lea.vmem %s21, %s1023
        %p1025 = pneg %p327
        %p1026 = pneg %p324
        %p1027 = scmp.lt.s32.totalorder %s71, 1
        %s1028 = scalar_select %p1027, %s71, 1
        %s1029 = smul.addr %s1028, 4
        %s1030 = smul.addr %s1029, 8
        %s1031 = scalar_lea.vmem %s23, %s1030
        %p1032 = pneg %p353
        %p1033 = pneg %p350
        %p1034 = scmp.lt.s32.totalorder %s71, 1
        %s1035 = scalar_select %p1034, %s71, 1
        %s1036 = scalar_lea.vmem %s25, %s1035
        %p1037 = pneg %p379
        %p1038 = pneg %p376
        %p1039 = scmp.lt.s32.totalorder %s71, 1
        %s1040 = scalar_select %p1039, %s71, 1
        %s1041 = smul.addr %s1040, 4
        %s1042 = smul.addr %s1041, 8
        %s1043 = scalar_lea.vmem %s27, %s1042
        %p1044 = pneg %p405
        %p1045 = pneg %p402
        %p1046 = scmp.lt.s32.totalorder %s71, 1
        %s1047 = scalar_select %p1046, %s71, 1
        %s1048 = scalar_lea.vmem %s29, %s1047
        %p1049 = pneg %p431
        %p1050 = pneg %p428
        %p1051 = scmp.lt.s32.totalorder %s71, 1
        %s1052 = scalar_select %p1051, %s71, 1
        %s1053 = smul.addr %s1052, 4
        %s1054 = smul.addr %s1053, 8
        %s1055 = scalar_lea.vmem %s31, %s1054
        %p1056 = pneg %p457
        %p1057 = pneg %p454
        %p1058 = scmp.lt.s32.totalorder %s71, 1
        %s1059 = scalar_select %p1058, %s71, 1
        %s1060 = scalar_lea.vmem %s33, %s1059
        %p1061 = pneg %p483
        %p1062 = pneg %p480
        %p1063 = scmp.lt.s32.totalorder %s71, 1
        %s1064 = scalar_select %p1063, %s71, 1
        %s1065 = scalar_lea.vmem %s35, %s1064
        %p1066 = pneg %p509
        %p1067 = pneg %p506
        %p1068 = scmp.lt.s32.totalorder %s71, 1
        %s1069 = scalar_select %p1068, %s71, 1
        %s1070 = scalar_lea.vmem %s37, %s1069
        %p1071 = pneg %p535
        %p1072 = pneg %p532
        %p1073 = scmp.lt.s32.totalorder %s71, 1
        %s1074 = scalar_select %p1073, %s71, 1
        %s1075 = smul.addr %s1074, 4
        %s1076 = smul.addr %s1075, 8
        %s1077 = scalar_lea.vmem %s39, %s1076
        %p1078 = pneg %p561
        %p1079 = pneg %p558
        %p1080 = scmp.lt.s32.totalorder %s71, 1
        %s1081 = scalar_select %p1080, %s71, 1
        %s1082 = scalar_lea.vmem %s41, %s1081
        %p1083 = pneg %p587
        %p1084 = pneg %p584
        %p1085 = scmp.lt.s32.totalorder %s71, 1
        %s1086 = scalar_select %p1085, %s71, 1
        %s1087 = smul.addr %s1086, 8
        %s1088 = smul.addr %s1087, 8
        %s1089 = scalar_lea.vmem %s43, %s1088
        %p1090 = pneg %p613
        %p1091 = pneg %p610
        %p1092 = scmp.lt.s32.totalorder %s71, 1
        %s1093 = scalar_select %p1092, %s71, 1
        %s1094 = scalar_lea.vmem %s45, %s1093
        %p1095 = pneg %p639
        %p1096 = pneg %p636
        %p1097 = scmp.lt.s32.totalorder %s71, 1
        %s1098 = scalar_select %p1097, %s71, 1
        %s1099 = scalar_lea.vmem %s47, %s1098
        %p1100 = pneg %p665
        %p1101 = pneg %p662
        %p1102 = scmp.lt.s32.totalorder %s71, 1
        %s1103 = scalar_select %p1102, %s71, 1
        %s1104 = scalar_lea.vmem %s49, %s1103
        %p1105 = pneg %p691
        %p1106 = pneg %p688
        %p1107 = pneg %p712
        %p1108 = pneg %p709
        %p1109 = pneg %p733
        %p1110 = pneg %p730
        %p1111 = pneg %p754
        %p1112 = pneg %p751
        %p1113 = pneg %p775
        %p1114 = pneg %p772
        %p1115 = pneg %p796
        %p1116 = pneg %p793
        %p1117 = scmp.lt.s32.totalorder %s71, 1
        %s1118 = scalar_select %p1117, %s71, 1
        %s1119 = smul.addr %s1118, 4
        %s1120 = smul.addr %s1119, 8
        %s1121 = scalar_lea.vmem %s11, %s1120
        %p1122 = scmp.lt.s32.totalorder %s71, 1
        %s1123 = scalar_select %p1122, %s71, 1
        %s1124 = scalar_lea.vmem %s13, %s1123
        %p1125 = scmp.lt.s32.totalorder %s71, 1
        %s1126 = scalar_select %p1125, %s71, 1
        %s1127 = smul.addr %s1126, 4
        %s1128 = smul.addr %s1127, 8
        %s1129 = scalar_lea.vmem %s15, %s1128
        %p1130 = scmp.lt.s32.totalorder %s71, 1
        %s1131 = scalar_select %p1130, %s71, 1
        %s1132 = scalar_lea.vmem %s17, %s1131
        %p1133 = scmp.lt.s32.totalorder %s71, 1
        %s1134 = scalar_select %p1133, %s71, 1
        %s1135 = scalar_lea.vmem %s19, %s1134
        %p1136 = scmp.lt.s32.totalorder %s71, 1
        %s1137 = scalar_select %p1136, %s71, 1
        %s1138 = scalar_lea.vmem %s21, %s1137
        %p1139 = scmp.lt.s32.totalorder %s71, 1
        %s1140 = scalar_select %p1139, %s71, 1
        %s1141 = smul.addr %s1140, 4
        %s1142 = smul.addr %s1141, 8
        %s1143 = scalar_lea.vmem %s23, %s1142
        %p1144 = scmp.lt.s32.totalorder %s71, 1
        %s1145 = scalar_select %p1144, %s71, 1
        %s1146 = scalar_lea.vmem %s25, %s1145
        %p1147 = scmp.lt.s32.totalorder %s71, 1
        %s1148 = scalar_select %p1147, %s71, 1
        %s1149 = smul.addr %s1148, 4
        %s1150 = smul.addr %s1149, 8
        %s1151 = scalar_lea.vmem %s27, %s1150
        %p1152 = scmp.lt.s32.totalorder %s71, 1
        %s1153 = scalar_select %p1152, %s71, 1
        %s1154 = scalar_lea.vmem %s29, %s1153
        %p1155 = scmp.lt.s32.totalorder %s71, 1
        %s1156 = scalar_select %p1155, %s71, 1
        %s1157 = smul.addr %s1156, 4
        %s1158 = smul.addr %s1157, 8
        %s1159 = scalar_lea.vmem %s31, %s1158
        %p1160 = scmp.lt.s32.totalorder %s71, 1
        %s1161 = scalar_select %p1160, %s71, 1
        %s1162 = scalar_lea.vmem %s33, %s1161
        %p1163 = scmp.lt.s32.totalorder %s71, 1
        %s1164 = scalar_select %p1163, %s71, 1
        %s1165 = scalar_lea.vmem %s35, %s1164
        %p1166 = scmp.lt.s32.totalorder %s71, 1
        %s1167 = scalar_select %p1166, %s71, 1
        %s1168 = scalar_lea.vmem %s37, %s1167
        %p1169 = scmp.lt.s32.totalorder %s71, 1
        %s1170 = scalar_select %p1169, %s71, 1
        %s1171 = smul.addr %s1170, 4
        %s1172 = smul.addr %s1171, 8
        %s1173 = scalar_lea.vmem %s39, %s1172
        %p1174 = scmp.lt.s32.totalorder %s71, 1
        %s1175 = scalar_select %p1174, %s71, 1
        %s1176 = scalar_lea.vmem %s41, %s1175
        %p1177 = scmp.lt.s32.totalorder %s71, 1
        %s1178 = scalar_select %p1177, %s71, 1
        %s1179 = smul.addr %s1178, 8
        %s1180 = smul.addr %s1179, 8
        %s1181 = scalar_lea.vmem %s43, %s1180
        %p1182 = scmp.lt.s32.totalorder %s71, 1
        %s1183 = scalar_select %p1182, %s71, 1
        %s1184 = scalar_lea.vmem %s45, %s1183
        %p1185 = scmp.lt.s32.totalorder %s71, 1
        %s1186 = scalar_select %p1185, %s71, 1
        %s1187 = scalar_lea.vmem %s47, %s1186
        %p1188 = scmp.lt.s32.totalorder %s71, 1
        %s1189 = scalar_select %p1188, %s71, 1
        %s1190 = scalar_lea.vmem %s49, %s1189
        %p1192 = scmp.eq.s32.totalorder %s71, 0
        // Predicated region
        $region137: #{language_transformer_forward.3} parent=135 // pred_check
          %p1193 = pneg %p1192
        $region138: #{language_transformer_forward.3} parent=135 // pred_check_branch
          %1195 = sbr.rel (%p1193) target = $region140
        $region139: #{language_transformer_forward.3} parent=135 // pred_region
          %v1196 = vld [vmem:[%s1] sm:$0xff]
          %v1197 = vld [vmem:[%s1 + $0x8] sm:$0xff]
          %v1198 = vmul.f32 %v1196, 5.656854
          %v1199 = vmul.f32 %v1197, 5.656854
          %v1200 = vld [vmem:[%s3] sm:$0xff]
          %v1201 = vld [vmem:[%s3 + $0x8] sm:$0xff]
          %v1202 = vadd.f32 %v1198, %v1200
          %v1203 = vadd.f32 %v1199, %v1201
          %vm1204 = vcmask 261120
          %1205 = vst.msk [vmem:[#allocation2] sm:$0xff] %vm1204, %v1202
          %1206 = vst.msk [vmem:[#allocation2 + $0x8] sm:$0xff] %vm1204, %v1203
        $region140: #{language_transformer_forward.3} parent=135 // pred_fallthru
          _
        %v1207 = vld [vmem:[#allocation2] sm:$0xff]
        %v1208 = vld [vmem:[#allocation2 + $0x8] sm:$0xff]
        %v1209 = vpack.c.bf16 %v1208, %v1207
        %v1210 = vld [vmem:[%s1121] sm:$0xff]
        %v1211 = vld [vmem:[%s1121 + $0x8] sm:$0xff]
        %v1212 = vld [vmem:[%s1121 + $0x10] sm:$0xff]
        %v1213 = vld [vmem:[%s1121 + $0x18] sm:$0xff]
        %v1214 = vpack.c.bf16 %v1211, %v1210
        %v1215 = vpack.c.bf16 %v1213, %v1212
        %v1216 = vld [vmem:[%s1124] sm:$0x1]
        %v1218 = vlaneseq
        %v1219 = vshrl.u32 %v1218, 7
        %v1220 = vsub.s32 0, %v1219
        %v1221 = vrot.slane %v1216, %v1220
        %vm1223 = vcmask 261120
        %v1225 = vsel %vm1223, %v1209, 0
        %1227 = vmatprep.subr.bf16.mxu0 0
        %1228 = vmatpush1.bf16.msra.mxu0 %v1214
        %1229 = vmatprep.subr.bf16.mxu0 0
        %1230 = vmatpush1.bf16.msra.mxu0 %v1215
        %1231 = vmatprep.subr.bf16.mxu0 0
        %1232 = vmatpush1.bf16.msra.mxu0 0
        %1233 = vmatprep.subr.bf16.mxu0 0
        %1234 = vmatpush1.bf16.msra.mxu0 0
        %1235 = vmatprep.subr.bf16.mxu0 0
        %1236 = vmatpush1.bf16.msra.mxu0 0
        %1237 = vmatprep.subr.bf16.mxu0 0
        %1238 = vmatpush1.bf16.msra.mxu0 0
        %1239 = vmatprep.subr.bf16.mxu0 0
        %1240 = vmatpush1.bf16.msra.mxu0 0
        %1241 = vmatprep.subr.bf16.mxu0 0
        %1242 = vmatpush1.bf16.msra.mxu0 0
        %1243 = vmatprep.subr.bf16.mxu0 0
        %1244 = vmatpush1.bf16.msra.mxu0 0
        %1245 = vmatprep.subr.bf16.mxu0 0
        %1246 = vmatpush1.bf16.msra.mxu0 0
        %1247 = vmatprep.subr.bf16.mxu0 0
        %1248 = vmatpush1.bf16.msra.mxu0 0
        %1249 = vmatprep.subr.bf16.mxu0 0
        %1250 = vmatpush1.bf16.msra.mxu0 0
        %1251 = vmatprep.subr.bf16.mxu0 0
        %1252 = vmatpush1.bf16.msra.mxu0 0
        %1253 = vmatprep.subr.bf16.mxu0 0
        %1254 = vmatpush1.bf16.msra.mxu0 0
        %1255 = vmatprep.subr.bf16.mxu0 0
        %1256 = vmatpush1.bf16.msra.mxu0 0
        %1257 = vmatprep.subr.bf16.mxu0 0
        %1258 = vmatpush1.bf16.msra.mxu0 0
        %1259 = vmatprep.mubr.bf16.mxu0 0
        %1260 = vmatmul.mubr.bf16.gmra.mrb[0].mxu0 %v1225
        %v1261 = vpop.f32.mrb[0].mxu0
        %v1262 = vadd.f32 %v1221, %v1261
        %v1263 = vpop.f32.mrb[0].mxu0
        %v1264 = vpop.f32.mrb[0].mxu0
        %v1265 = vadd.f32 %v1221, %v1264
        %v1266 = vpop.f32.mrb[0].mxu0
        %1267 = vdwg.mxu0
        %v1268 = vld [vmem:[%s1129] sm:$0xff]
        %v1269 = vld [vmem:[%s1129 + $0x8] sm:$0xff]
        %v1270 = vld [vmem:[%s1129 + $0x10] sm:$0xff]
        %v1271 = vld [vmem:[%s1129 + $0x18] sm:$0xff]
        %v1272 = vld [vmem:[%s7] sm:$0xff]
        %v1273 = vld [vmem:[%s7 + $0x8] sm:$0xff]
        %v1274 = vlaneseq
        %v1275 = vand.u32 %v1274, 127
        %1278 = vrot.lane.b32.xlu0 %v1262, 96
        %v1279 = vpop.permute.xlu0 %1278
        %1280 = vrot.lane.b32.xlu0 %v1265, 96
        %v1281 = vpop.permute.xlu0 %1280
        %vm1282 = vcmask 64512
        %v1283 = vsel %vm1282, %v1262, 0
        %v1285 = vsel %vm1282, %v1265, 0
        %v1287 = vsel %vm1282, %v1279, 0
        %v1289 = vsel %vm1282, %v1281, 0
        %1291 = vmatprep.subr.mxu0 0.0
        %1292 = vmatpush1.xpose.msra.mxu0 %v1287
        %1293 = vmatprep.subr.mxu0 0.0
        %1294 = vmatpush1.xpose.msra.mxu0 %v1289
        %1295 = vmatprep.subr.mxu0 0.0
        %1296 = vmatpush1.xpose.msra.mxu0 0.0
        %1297 = vmatprep.subr.mxu0 0.0
        %1298 = vmatpush1.xpose.msra.mxu0 0.0
        %1299 = vmatprep.subr.mxu0 0.0
        %1300 = vmatpush1.xpose.msra.mxu0 0.0
        %1301 = vmatprep.subr.mxu0 0.0
        %1302 = vmatpush1.xpose.msra.mxu0 0.0
        %1303 = vmatprep.subr.mxu0 0.0
        %1304 = vmatpush1.xpose.msra.mxu0 0.0
        %1305 = vmatprep.subr.mxu0 0.0
        %1306 = vmatpush1.xpose.msra.mxu0 0.0
        %1307 = vmatprep.subr.mxu0 0.0
        %1308 = vmatpush1.xpose.msra.mxu0 0.0
        %1309 = vmatprep.subr.mxu0 0.0
        %1310 = vmatpush1.xpose.msra.mxu0 0.0
        %1311 = vmatprep.subr.mxu0 0.0
        %1312 = vmatpush1.xpose.msra.mxu0 0.0
        %1313 = vmatprep.subr.mxu0 0.0
        %1314 = vmatpush1.xpose.msra.mxu0 0.0
        %1315 = vmatprep.subr.mxu0 0.0
        %1316 = vmatpush1.xpose.msra.mxu0 0.0
        %1317 = vmatprep.subr.mxu0 0.0
        %1318 = vmatpush1.xpose.msra.mxu0 0.0
        %1319 = vmatprep.subr.mxu0 0.0
        %1320 = vmatpush1.xpose.msra.mxu0 0.0
        %1321 = vmatprep.subr.mxu0 0.0
        %1322 = vmatpush1.xpose.msra.mxu0 0.0
        %1323 = vmatprep.subr.mxu0 0.0
        %1324 = vmatpush1.xpose.msra.mxu0 0.0
        %1325 = vmatprep.subr.mxu0 0.0
        %1326 = vmatpush1.xpose.msra.mxu0 0.0
        %1327 = vmatprep.subr.mxu0 0.0
        %1328 = vmatpush1.xpose.msra.mxu0 0.0
        %1329 = vmatprep.subr.mxu0 0.0
        %1330 = vmatpush1.xpose.msra.mxu0 0.0
        %1331 = vmatprep.subr.mxu0 0.0
        %1332 = vmatpush1.xpose.msra.mxu0 0.0
        %1333 = vmatprep.subr.mxu0 0.0
        %1334 = vmatpush1.xpose.msra.mxu0 0.0
        %1335 = vmatprep.subr.mxu0 0.0
        %1336 = vmatpush1.xpose.msra.mxu0 0.0
        %1337 = vmatprep.subr.mxu0 0.0
        %1338 = vmatpush1.xpose.msra.mxu0 0.0
        %1339 = vmatprep.subr.mxu0 0.0
        %1340 = vmatpush1.xpose.msra.mxu0 0.0
        %1341 = vmatprep.subr.mxu0 0.0
        %1342 = vmatpush1.xpose.msra.mxu0 0.0
        %1343 = vmatprep.subr.mxu0 0.0
        %1344 = vmatpush1.xpose.msra.mxu0 0.0
        %1345 = vmatprep.subr.mxu0 0.0
        %1346 = vmatpush1.xpose.msra.mxu0 0.0
        %1347 = vmatprep.subr.mxu0 0.0
        %1348 = vmatpush1.xpose.msra.mxu0 0.0
        %1349 = vmatprep.subr.mxu0 0.0
        %1350 = vmatpush1.xpose.msra.mxu0 0.0
        %1351 = vmatprep.subr.mxu0 0.0
        %1352 = vmatpush1.xpose.msra.mxu0 0.0
        %1353 = vmatprep.subr.mxu0 0.0
        %1354 = vmatpush1.xpose.msra.mxu0 0.0
        %1355 = vmatprep.mubr.f32.mxu0 0.0
        %1356 = vmatmul.mubr.f32.gmra.mrb[0].mxu0 %v1283
        %v1357 = vpop.f32.mrb[0].mxu0
        %v1358 = vadd.f32 %v1272, %v1357
        %v1359 = vpop.f32.mrb[0].mxu0
        %1360 = vmatprep.mubr.f32.mxu0 0.0
        %1361 = vmatmul.mubr.f32.gmra.mrb[0].mxu0 %v1285
        %v1362 = vpop.f32.mrb[0].mxu0
        %v1363 = vadd.f32 %v1273, %v1362
        %v1364 = vpop.f32.mrb[0].mxu0
        %1365 = vdwg.mxu0
        %vm1366 = vcmask 130048
        %v1367 = vsel %vm1366, %v1358, -inf
        %1368 = vmax.xlane.f32.xlu0 %v1367
        %v1369 = vpop.xlane.xlu0 %1368
        %v1370 = vsel %vm1366, %v1363, -inf
        %1371 = vmax.xlane.f32.xlu0 %v1370
        %v1372 = vpop.xlane.xlu0 %1371
        %v1373 = vsub.f32 %v1358, %v1369
        %v1374 = vsub.f32 %v1363, %v1372
        %v1375 = vmul.f32 %v1373, 1.442695
        %v1376 = vpow.pop %v1375
        %v1377 = vmul.f32 %v1374, 1.442695
        %v1378 = vpow.pop %v1377
        %v1379 = vsel %vm1366, %v1376, 0.0
        %1380 = vadd.xlane.f32.xlu0 %v1379
        %v1381 = vpop.xlane.xlu0 %1380
        %v1382 = vsel %vm1366, %v1378, 0.0
        %1383 = vadd.xlane.f32.xlu0 %v1382
        %v1384 = vpop.xlane.xlu0 %1383
        %v1385 = vrcp.pop %v1381
        %v1386 = vrcp.pop %v1384
        %v1387 = vmul.f32 %v1376, %v1385
        %v1388 = vmul.f32 %v1378, %v1386
        %vm1389 = vcmp.ge.s32.totalorder %v1275, 0
        %vm1390 = vcmp.lt.s32.totalorder %v1275, 8
        %vm1391 = vmand %vm1389, %vm1390
        %v1392 = vsel %vm1391, 1, 0
        %vm1393 = vcmp.eq.s32.totalorder %v1392, 1
        %1394 = vrot.lane.b32.xlu0 %v1262, 64
        %v1395 = vpop.permute.xlu0 %1394
        %1396 = vrot.lane.b32.xlu0 %v1265, 64
        %v1397 = vpop.permute.xlu0 %1396
        %v1400 = vsel %vm1393, %v1395, 0.0
        %v1401 = vsel %vm1393, %v1397, 0.0
        %v1402 = vpack.c.bf16 %v1388, %v1387
        %v1403 = vpack.c.bf16 %v1401, %v1400
        %1404 = vrot.lane.b32.xlu0 %v1262, 120
        %v1405 = vpop.permute.xlu0 %1404
        %1406 = vrot.lane.b32.xlu0 %v1265, 120
        %v1407 = vpop.permute.xlu0 %1406
        %1408 = vrot.lane.b32.xlu0 %v1262, 88
        %v1409 = vpop.permute.xlu0 %1408
        %1410 = vrot.lane.b32.xlu0 %v1265, 88
        %v1411 = vpop.permute.xlu0 %1410
        %v1412 = vsel %vm1282, %v1405, 0
        %v1414 = vsel %vm1282, %v1407, 0
        %v1416 = vsel %vm1282, %v1409, 0
        %v1418 = vsel %vm1282, %v1411, 0
        %1420 = vmatprep.subr.mxu0 0.0
        %1421 = vmatpush1.xpose.msra.mxu0 %v1416
        %1422 = vmatprep.subr.mxu0 0.0
        %1423 = vmatpush1.xpose.msra.mxu0 %v1418
        %1424 = vmatprep.subr.mxu0 0.0
        %1425 = vmatpush1.xpose.msra.mxu0 0.0
        %1426 = vmatprep.subr.mxu0 0.0
        %1427 = vmatpush1.xpose.msra.mxu0 0.0
        %1428 = vmatprep.subr.mxu0 0.0
        %1429 = vmatpush1.xpose.msra.mxu0 0.0
        %1430 = vmatprep.subr.mxu0 0.0
        %1431 = vmatpush1.xpose.msra.mxu0 0.0
        %1432 = vmatprep.subr.mxu0 0.0
        %1433 = vmatpush1.xpose.msra.mxu0 0.0
        %1434 = vmatprep.subr.mxu0 0.0
        %1435 = vmatpush1.xpose.msra.mxu0 0.0
        %1436 = vmatprep.subr.mxu0 0.0
        %1437 = vmatpush1.xpose.msra.mxu0 0.0
        %1438 = vmatprep.subr.mxu0 0.0
        %1439 = vmatpush1.xpose.msra.mxu0 0.0
        %1440 = vmatprep.subr.mxu0 0.0
        %1441 = vmatpush1.xpose.msra.mxu0 0.0
        %1442 = vmatprep.subr.mxu0 0.0
        %1443 = vmatpush1.xpose.msra.mxu0 0.0
        %1444 = vmatprep.subr.mxu0 0.0
        %1445 = vmatpush1.xpose.msra.mxu0 0.0
        %1446 = vmatprep.subr.mxu0 0.0
        %1447 = vmatpush1.xpose.msra.mxu0 0.0
        %1448 = vmatprep.subr.mxu0 0.0
        %1449 = vmatpush1.xpose.msra.mxu0 0.0
        %1450 = vmatprep.subr.mxu0 0.0
        %1451 = vmatpush1.xpose.msra.mxu0 0.0
        %1452 = vmatprep.subr.mxu0 0.0
        %1453 = vmatpush1.xpose.msra.mxu0 0.0
        %1454 = vmatprep.subr.mxu0 0.0
        %1455 = vmatpush1.xpose.msra.mxu0 0.0
        %1456 = vmatprep.subr.mxu0 0.0
        %1457 = vmatpush1.xpose.msra.mxu0 0.0
        %1458 = vmatprep.subr.mxu0 0.0
        %1459 = vmatpush1.xpose.msra.mxu0 0.0
        %1460 = vmatprep.subr.mxu0 0.0
        %1461 = vmatpush1.xpose.msra.mxu0 0.0
        %1462 = vmatprep.subr.mxu0 0.0
        %1463 = vmatpush1.xpose.msra.mxu0 0.0
        %1464 = vmatprep.subr.mxu0 0.0
        %1465 = vmatpush1.xpose.msra.mxu0 0.0
        %1466 = vmatprep.subr.mxu0 0.0
        %1467 = vmatpush1.xpose.msra.mxu0 0.0
        %1468 = vmatprep.subr.mxu0 0.0
        %1469 = vmatpush1.xpose.msra.mxu0 0.0
        %1470 = vmatprep.subr.mxu0 0.0
        %1471 = vmatpush1.xpose.msra.mxu0 0.0
        %1472 = vmatprep.subr.mxu0 0.0
        %1473 = vmatpush1.xpose.msra.mxu0 0.0
        %1474 = vmatprep.subr.mxu0 0.0
        %1475 = vmatpush1.xpose.msra.mxu0 0.0
        %1476 = vmatprep.subr.mxu0 0.0
        %1477 = vmatpush1.xpose.msra.mxu0 0.0
        %1478 = vmatprep.subr.mxu0 0.0
        %1479 = vmatpush1.xpose.msra.mxu0 0.0
        %1480 = vmatprep.subr.mxu0 0.0
        %1481 = vmatpush1.xpose.msra.mxu0 0.0
        %1482 = vmatprep.subr.mxu0 0.0
        %1483 = vmatpush1.xpose.msra.mxu0 0.0
        %1484 = vmatprep.mubr.f32.mxu0 0.0
        %1485 = vmatmul.mubr.f32.gmra.mrb[0].mxu0 %v1412
        %v1486 = vpop.f32.mrb[0].mxu0
        %v1487 = vadd.f32 %v1272, %v1486
        %v1488 = vpop.f32.mrb[0].mxu0
        %1489 = vmatprep.mubr.f32.mxu0 0.0
        %1490 = vmatmul.mubr.f32.gmra.mrb[0].mxu0 %v1414
        %v1491 = vpop.f32.mrb[0].mxu0
        %v1492 = vadd.f32 %v1273, %v1491
        %v1493 = vpop.f32.mrb[0].mxu0
        %1494 = vdwg.mxu0
        %v1495 = vsel %vm1366, %v1487, -inf
        %1496 = vmax.xlane.f32.xlu0 %v1495
        %v1497 = vpop.xlane.xlu0 %1496
        %v1498 = vsel %vm1366, %v1492, -inf
        %1499 = vmax.xlane.f32.xlu0 %v1498
        %v1500 = vpop.xlane.xlu0 %1499
        %v1501 = vsub.f32 %v1487, %v1497
        %v1502 = vsub.f32 %v1492, %v1500
        %v1503 = vmul.f32 %v1501, 1.442695
        %v1504 = vpow.pop %v1503
        %v1505 = vmul.f32 %v1502, 1.442695
        %v1506 = vpow.pop %v1505
        %v1507 = vsel %vm1366, %v1504, 0.0
        %1508 = vadd.xlane.f32.xlu0 %v1507
        %v1509 = vpop.xlane.xlu0 %1508
        %v1510 = vsel %vm1366, %v1506, 0.0
        %1511 = vadd.xlane.f32.xlu0 %v1510
        %v1512 = vpop.xlane.xlu0 %1511
        %v1513 = vrcp.pop %v1509
        %v1514 = vrcp.pop %v1512
        %v1515 = vmul.f32 %v1504, %v1513
        %v1516 = vmul.f32 %v1506, %v1514
        %vm1517 = vcmp.ge.s32.totalorder %v1275, 8
        %vm1518 = vcmp.lt.s32.totalorder %v1275, 16
        %vm1519 = vmand %vm1517, %vm1518
        %v1520 = vsel %vm1519, 1, 0
        %vm1521 = vcmp.eq.s32.totalorder %v1520, 1
        %v1522 = vsel %vm1521, %v1395, 0.0
        %v1523 = vsel %vm1521, %v1397, 0.0
        %v1524 = vpack.c.bf16 %v1516, %v1515
        %v1525 = vpack.c.bf16 %v1523, %v1522
        %v1527 = vsel %vm1366, %v1524, 0
        %1529 = vmatprep.subr.bf16.mxu0 0
        %1530 = vmatpush1.bf16.msra.mxu0 %v1525
        %1531 = vmatprep.subr.bf16.mxu0 0
        %1532 = vmatpush1.bf16.msra.mxu0 0
        %1533 = vmatprep.subr.bf16.mxu0 0
        %1534 = vmatpush1.bf16.msra.mxu0 0
        %1535 = vmatprep.subr.bf16.mxu0 0
        %1536 = vmatpush1.bf16.msra.mxu0 0
        %1537 = vmatprep.subr.bf16.mxu0 0
        %1538 = vmatpush1.bf16.msra.mxu0 0
        %1539 = vmatprep.subr.bf16.mxu0 0
        %1540 = vmatpush1.bf16.msra.mxu0 0
        %1541 = vmatprep.subr.bf16.mxu0 0
        %1542 = vmatpush1.bf16.msra.mxu0 0
        %1543 = vmatprep.subr.bf16.mxu0 0
        %1544 = vmatpush1.bf16.msra.mxu0 0
        %1545 = vmatprep.subr.bf16.mxu0 0
        %1546 = vmatpush1.bf16.msra.mxu0 0
        %1547 = vmatprep.subr.bf16.mxu0 0
        %1548 = vmatpush1.bf16.msra.mxu0 0
        %1549 = vmatprep.subr.bf16.mxu0 0
        %1550 = vmatpush1.bf16.msra.mxu0 0
        %1551 = vmatprep.subr.bf16.mxu0 0
        %1552 = vmatpush1.bf16.msra.mxu0 0
        %1553 = vmatprep.subr.bf16.mxu0 0
        %1554 = vmatpush1.bf16.msra.mxu0 0
        %1555 = vmatprep.subr.bf16.mxu0 0
        %1556 = vmatpush1.bf16.msra.mxu0 0
        %1557 = vmatprep.subr.bf16.mxu0 0
        %1558 = vmatpush1.bf16.msra.mxu0 0
        %1559 = vmatprep.subr.bf16.mxu0 0
        %1560 = vmatpush1.bf16.msra.mxu0 0
        %1561 = vmatprep.mubr.bf16.mxu0 0
        %1562 = vmatmul.mubr.bf16.gmra.mrb[0].mxu0 %v1527
        %v1563 = vpop.f32.mrb[0].mxu0
        %v1564 = vadd.f32 0.0, %v1563
        %v1565 = vpop.f32.mrb[0].mxu0
        %v1566 = vpop.f32.mrb[0].mxu0
        %v1567 = vadd.f32 0.0, %v1566
        %v1568 = vpop.f32.mrb[0].mxu0
        %1569 = vdwg.mxu0
        %v1571 = vsel %vm1366, %v1402, 0
        %1573 = vmatprep.subr.bf16.mxu0 0
        %1574 = vmatpush1.bf16.msra.mxu0 %v1403
        %1575 = vmatprep.subr.bf16.mxu0 0
        %1576 = vmatpush1.bf16.msra.mxu0 0
        %1577 = vmatprep.subr.bf16.mxu0 0
        %1578 = vmatpush1.bf16.msra.mxu0 0
        %1579 = vmatprep.subr.bf16.mxu0 0
        %1580 = vmatpush1.bf16.msra.mxu0 0
        %1581 = vmatprep.subr.bf16.mxu0 0
        %1582 = vmatpush1.bf16.msra.mxu0 0
        %1583 = vmatprep.subr.bf16.mxu0 0
        %1584 = vmatpush1.bf16.msra.mxu0 0
        %1585 = vmatprep.subr.bf16.mxu0 0
        %1586 = vmatpush1.bf16.msra.mxu0 0
        %1587 = vmatprep.subr.bf16.mxu0 0
        %1588 = vmatpush1.bf16.msra.mxu0 0
        %1589 = vmatprep.subr.bf16.mxu0 0
        %1590 = vmatpush1.bf16.msra.mxu0 0
        %1591 = vmatprep.subr.bf16.mxu0 0
        %1592 = vmatpush1.bf16.msra.mxu0 0
        %1593 = vmatprep.subr.bf16.mxu0 0
        %1594 = vmatpush1.bf16.msra.mxu0 0
        %1595 = vmatprep.subr.bf16.mxu0 0
        %1596 = vmatpush1.bf16.msra.mxu0 0
        %1597 = vmatprep.subr.bf16.mxu0 0
        %1598 = vmatpush1.bf16.msra.mxu0 0
        %1599 = vmatprep.subr.bf16.mxu0 0
        %1600 = vmatpush1.bf16.msra.mxu0 0
        %1601 = vmatprep.subr.bf16.mxu0 0
        %1602 = vmatpush1.bf16.msra.mxu0 0
        %1603 = vmatprep.subr.bf16.mxu0 0
        %1604 = vmatpush1.bf16.msra.mxu0 0
        %1605 = vmatprep.mubr.bf16.mxu0 0
        %1606 = vmatmul.mubr.bf16.gmra.mrb[0].mxu0 %v1571
        %v1607 = vpop.f32.mrb[0].mxu0
        %v1608 = vadd.f32 %v1564, %v1607
        %v1609 = vpop.f32.mrb[0].mxu0
        %v1610 = vpop.f32.mrb[0].mxu0
        %v1611 = vadd.f32 %v1567, %v1610
        %v1612 = vpop.f32.mrb[0].mxu0
        %1613 = vdwg.mxu0
        %1614 = vrot.lane.b32.xlu0 %v1262, 112
        %v1615 = vpop.permute.xlu0 %1614
        %1616 = vrot.lane.b32.xlu0 %v1265, 112
        %v1617 = vpop.permute.xlu0 %1616
        %1618 = vrot.lane.b32.xlu0 %v1262, 80
        %v1619 = vpop.permute.xlu0 %1618
        %1620 = vrot.lane.b32.xlu0 %v1265, 80
        %v1621 = vpop.permute.xlu0 %1620
        %v1622 = vsel %vm1282, %v1615, 0
        %v1624 = vsel %vm1282, %v1617, 0
        %v1626 = vsel %vm1282, %v1619, 0
        %v1628 = vsel %vm1282, %v1621, 0
        %1630 = vmatprep.subr.mxu0 0.0
        %1631 = vmatpush1.xpose.msra.mxu0 %v1626
        %1632 = vmatprep.subr.mxu0 0.0
        %1633 = vmatpush1.xpose.msra.mxu0 %v1628
        %1634 = vmatprep.subr.mxu0 0.0
        %1635 = vmatpush1.xpose.msra.mxu0 0.0
        %1636 = vmatprep.subr.mxu0 0.0
        %1637 = vmatpush1.xpose.msra.mxu0 0.0
        %1638 = vmatprep.subr.mxu0 0.0
        %1639 = vmatpush1.xpose.msra.mxu0 0.0
        %1640 = vmatprep.subr.mxu0 0.0
        %1641 = vmatpush1.xpose.msra.mxu0 0.0
        %1642 = vmatprep.subr.mxu0 0.0
        %1643 = vmatpush1.xpose.msra.mxu0 0.0
        %1644 = vmatprep.subr.mxu0 0.0
        %1645 = vmatpush1.xpose.msra.mxu0 0.0
        %1646 = vmatprep.subr.mxu0 0.0
        %1647 = vmatpush1.xpose.msra.mxu0 0.0
        %1648 = vmatprep.subr.mxu0 0.0
        %1649 = vmatpush1.xpose.msra.mxu0 0.0
        %1650 = vmatprep.subr.mxu0 0.0
        %1651 = vmatpush1.xpose.msra.mxu0 0.0
        %1652 = vmatprep.subr.mxu0 0.0
        %1653 = vmatpush1.xpose.msra.mxu0 0.0
        %1654 = vmatprep.subr.mxu0 0.0
        %1655 = vmatpush1.xpose.msra.mxu0 0.0
        %1656 = vmatprep.subr.mxu0 0.0
        %1657 = vmatpush1.xpose.msra.mxu0 0.0
        %1658 = vmatprep.subr.mxu0 0.0
        %1659 = vmatpush1.xpose.msra.mxu0 0.0
        %1660 = vmatprep.subr.mxu0 0.0
        %1661 = vmatpush1.xpose.msra.mxu0 0.0
        %1662 = vmatprep.subr.mxu0 0.0
        %1663 = vmatpush1.xpose.msra.mxu0 0.0
        %1664 = vmatprep.subr.mxu0 0.0
        %1665 = vmatpush1.xpose.msra.mxu0 0.0
        %1666 = vmatprep.subr.mxu0 0.0
        %1667 = vmatpush1.xpose.msra.mxu0 0.0
        %1668 = vmatprep.subr.mxu0 0.0
        %1669 = vmatpush1.xpose.msra.mxu0 0.0
        %1670 = vmatprep.subr.mxu0 0.0
        %1671 = vmatpush1.xpose.msra.mxu0 0.0
        %1672 = vmatprep.subr.mxu0 0.0
        %1673 = vmatpush1.xpose.msra.mxu0 0.0
        %1674 = vmatprep.subr.mxu0 0.0
        %1675 = vmatpush1.xpose.msra.mxu0 0.0
        %1676 = vmatprep.subr.mxu0 0.0
        %1677 = vmatpush1.xpose.msra.mxu0 0.0
        %1678 = vmatprep.subr.mxu0 0.0
        %1679 = vmatpush1.xpose.msra.mxu0 0.0
        %1680 = vmatprep.subr.mxu0 0.0
        %1681 = vmatpush1.xpose.msra.mxu0 0.0
        %1682 = vmatprep.subr.mxu0 0.0
        %1683 = vmatpush1.xpose.msra.mxu0 0.0
        %1684 = vmatprep.subr.mxu0 0.0
        %1685 = vmatpush1.xpose.msra.mxu0 0.0
        %1686 = vmatprep.subr.mxu0 0.0
        %1687 = vmatpush1.xpose.msra.mxu0 0.0
        %1688 = vmatprep.subr.mxu0 0.0
        %1689 = vmatpush1.xpose.msra.mxu0 0.0
        %1690 = vmatprep.subr.mxu0 0.0
        %1691 = vmatpush1.xpose.msra.mxu0 0.0
        %1692 = vmatprep.subr.mxu0 0.0
        %1693 = vmatpush1.xpose.msra.mxu0 0.0
        %1694 = vmatprep.mubr.f32.mxu0 0.0
        %1695 = vmatmul.mubr.f32.gmra.mrb[0].mxu0 %v1622
        %v1696 = vpop.f32.mrb[0].mxu0
        %v1697 = vadd.f32 %v1272, %v1696
        %v1698 = vpop.f32.mrb[0].mxu0
        %1699 = vmatprep.mubr.f32.mxu0 0.0
        %1700 = vmatmul.mubr.f32.gmra.mrb[0].mxu0 %v1624
        %v1701 = vpop.f32.mrb[0].mxu0
        %v1702 = vadd.f32 %v1273, %v1701
        %v1703 = vpop.f32.mrb[0].mxu0
        %1704 = vdwg.mxu0
        %v1705 = vsel %vm1366, %v1697, -inf
        %1706 = vmax.xlane.f32.xlu0 %v1705
        %v1707 = vpop.xlane.xlu0 %1706
        %v1708 = vsel %vm1366, %v1702, -inf
        %1709 = vmax.xlane.f32.xlu0 %v1708
        %v1710 = vpop.xlane.xlu0 %1709
        %v1711 = vsub.f32 %v1697, %v1707
        %v1712 = vsub.f32 %v1702, %v1710
        %v1713 = vmul.f32 %v1711, 1.442695
        %v1714 = vpow.pop %v1713
        %v1715 = vmul.f32 %v1712, 1.442695
        %v1716 = vpow.pop %v1715
        %v1717 = vsel %vm1366, %v1714, 0.0
        %1718 = vadd.xlane.f32.xlu0 %v1717
        %v1719 = vpop.xlane.xlu0 %1718
        %v1720 = vsel %vm1366, %v1716, 0.0
        %1721 = vadd.xlane.f32.xlu0 %v1720
        %v1722 = vpop.xlane.xlu0 %1721
        %v1723 = vrcp.pop %v1719
        %v1724 = vrcp.pop %v1722
        %v1725 = vmul.f32 %v1714, %v1723
        %v1726 = vmul.f32 %v1716, %v1724
        %vm1727 = vcmp.ge.s32.totalorder %v1275, 16
        %vm1728 = vcmp.lt.s32.totalorder %v1275, 24
        %vm1729 = vmand %vm1727, %vm1728
        %v1730 = vsel %vm1729, 1, 0
        %vm1731 = vcmp.eq.s32.totalorder %v1730, 1
        %v1732 = vsel %vm1731, %v1395, 0.0
        %v1733 = vsel %vm1731, %v1397, 0.0
        %v1734 = vpack.c.bf16 %v1726, %v1725
        %v1735 = vpack.c.bf16 %v1733, %v1732
        %v1737 = vsel %vm1366, %v1734, 0
        %1739 = vmatprep.subr.bf16.mxu0 0
        %1740 = vmatpush1.bf16.msra.mxu0 %v1735
        %1741 = vmatprep.subr.bf16.mxu0 0
        %1742 = vmatpush1.bf16.msra.mxu0 0
        %1743 = vmatprep.subr.bf16.mxu0 0
        %1744 = vmatpush1.bf16.msra.mxu0 0
        %1745 = vmatprep.subr.bf16.mxu0 0
        %1746 = vmatpush1.bf16.msra.mxu0 0
        %1747 = vmatprep.subr.bf16.mxu0 0
        %1748 = vmatpush1.bf16.msra.mxu0 0
        %1749 = vmatprep.subr.bf16.mxu0 0
        %1750 = vmatpush1.bf16.msra.mxu0 0
        %1751 = vmatprep.subr.bf16.mxu0 0
        %1752 = vmatpush1.bf16.msra.mxu0 0
        %1753 = vmatprep.subr.bf16.mxu0 0
        %1754 = vmatpush1.bf16.msra.mxu0 0
        %1755 = vmatprep.subr.bf16.mxu0 0
        %1756 = vmatpush1.bf16.msra.mxu0 0
        %1757 = vmatprep.subr.bf16.mxu0 0
        %1758 = vmatpush1.bf16.msra.mxu0 0
        %1759 = vmatprep.subr.bf16.mxu0 0
        %1760 = vmatpush1.bf16.msra.mxu0 0
        %1761 = vmatprep.subr.bf16.mxu0 0
        %1762 = vmatpush1.bf16.msra.mxu0 0
        %1763 = vmatprep.subr.bf16.mxu0 0
        %1764 = vmatpush1.bf16.msra.mxu0 0
        %1765 = vmatprep.subr.bf16.mxu0 0
        %1766 = vmatpush1.bf16.msra.mxu0 0
        %1767 = vmatprep.subr.bf16.mxu0 0
        %1768 = vmatpush1.bf16.msra.mxu0 0
        %1769 = vmatprep.subr.bf16.mxu0 0
        %1770 = vmatpush1.bf16.msra.mxu0 0
        %1771 = vmatprep.mubr.bf16.mxu0 0
        %1772 = vmatmul.mubr.bf16.gmra.mrb[0].mxu0 %v1737
        %v1773 = vpop.f32.mrb[0].mxu0
        %v1774 = vadd.f32 0.0, %v1773
        %v1775 = vpop.f32.mrb[0].mxu0
        %v1776 = vpop.f32.mrb[0].mxu0
        %v1777 = vadd.f32 0.0, %v1776
        %v1778 = vpop.f32.mrb[0].mxu0
        %1779 = vdwg.mxu0
        %v1780 = vadd.f32 %v1608, %v1774
        %v1781 = vadd.f32 %v1611, %v1777
        %1782 = vrot.lane.b32.xlu0 %v1262, 104
        %v1783 = vpop.permute.xlu0 %1782
        %1784 = vrot.lane.b32.xlu0 %v1265, 104
        %v1785 = vpop.permute.xlu0 %1784
        %1786 = vrot.lane.b32.xlu0 %v1262, 72
        %v1787 = vpop.permute.xlu0 %1786
        %1788 = vrot.lane.b32.xlu0 %v1265, 72
        %v1789 = vpop.permute.xlu0 %1788
        %v1790 = vsel %vm1282, %v1783, 0
        %v1792 = vsel %vm1282, %v1785, 0
        %v1794 = vsel %vm1282, %v1787, 0
        %v1796 = vsel %vm1282, %v1789, 0
        %1798 = vmatprep.subr.mxu0 0.0
        %1799 = vmatpush1.xpose.msra.mxu0 %v1794
        %1800 = vmatprep.subr.mxu0 0.0
        %1801 = vmatpush1.xpose.msra.mxu0 %v1796
        %1802 = vmatprep.subr.mxu0 0.0
        %1803 = vmatpush1.xpose.msra.mxu0 0.0
        %1804 = vmatprep.subr.mxu0 0.0
        %1805 = vmatpush1.xpose.msra.mxu0 0.0
        %1806 = vmatprep.subr.mxu0 0.0
        %1807 = vmatpush1.xpose.msra.mxu0 0.0
        %1808 = vmatprep.subr.mxu0 0.0
        %1809 = vmatpush1.xpose.msra.mxu0 0.0
        %1810 = vmatprep.subr.mxu0 0.0
        %1811 = vmatpush1.xpose.msra.mxu0 0.0
        %1812 = vmatprep.subr.mxu0 0.0
        %1813 = vmatpush1.xpose.msra.mxu0 0.0
        %1814 = vmatprep.subr.mxu0 0.0
        %1815 = vmatpush1.xpose.msra.mxu0 0.0
        %1816 = vmatprep.subr.mxu0 0.0
        %1817 = vmatpush1.xpose.msra.mxu0 0.0
        %1818 = vmatprep.subr.mxu0 0.0
        %1819 = vmatpush1.xpose.msra.mxu0 0.0
        %1820 = vmatprep.subr.mxu0 0.0
        %1821 = vmatpush1.xpose.msra.mxu0 0.0
        %1822 = vmatprep.subr.mxu0 0.0
        %1823 = vmatpush1.xpose.msra.mxu0 0.0
        %1824 = vmatprep.subr.mxu0 0.0
        %1825 = vmatpush1.xpose.msra.mxu0 0.0
        %1826 = vmatprep.subr.mxu0 0.0
        %1827 = vmatpush1.xpose.msra.mxu0 0.0
        %1828 = vmatprep.subr.mxu0 0.0
        %1829 = vmatpush1.xpose.msra.mxu0 0.0
        %1830 = vmatprep.subr.mxu0 0.0
        %1831 = vmatpush1.xpose.msra.mxu0 0.0
        %1832 = vmatprep.subr.mxu0 0.0
        %1833 = vmatpush1.xpose.msra.mxu0 0.0
        %1834 = vmatprep.subr.mxu0 0.0
        %1835 = vmatpush1.xpose.msra.mxu0 0.0
        %1836 = vmatprep.subr.mxu0 0.0
        %1837 = vmatpush1.xpose.msra.mxu0 0.0
        %1838 = vmatprep.subr.mxu0 0.0
        %1839 = vmatpush1.xpose.msra.mxu0 0.0
        %1840 = vmatprep.subr.mxu0 0.0
        %1841 = vmatpush1.xpose.msra.mxu0 0.0
        %1842 = vmatprep.subr.mxu0 0.0
        %1843 = vmatpush1.xpose.msra.mxu0 0.0
        %1844 = vmatprep.subr.mxu0 0.0
        %1845 = vmatpush1.xpose.msra.mxu0 0.0
        %1846 = vmatprep.subr.mxu0 0.0
        %1847 = vmatpush1.xpose.msra.mxu0 0.0
        %1848 = vmatprep.subr.mxu0 0.0
        %1849 = vmatpush1.xpose.msra.mxu0 0.0
        %1850 = vmatprep.subr.mxu0 0.0
        %1851 = vmatpush1.xpose.msra.mxu0 0.0
        %1852 = vmatprep.subr.mxu0 0.0
        %1853 = vmatpush1.xpose.msra.mxu0 0.0
        %1854 = vmatprep.subr.mxu0 0.0
        %1855 = vmatpush1.xpose.msra.mxu0 0.0
        %1856 = vmatprep.subr.mxu0 0.0
        %1857 = vmatpush1.xpose.msra.mxu0 0.0
        %1858 = vmatprep.subr.mxu0 0.0
        %1859 = vmatpush1.xpose.msra.mxu0 0.0
        %1860 = vmatprep.subr.mxu0 0.0
        %1861 = vmatpush1.xpose.msra.mxu0 0.0
        %1862 = vmatprep.mubr.f32.mxu0 0.0
        %1863 = vmatmul.mubr.f32.gmra.mrb[0].mxu0 %v1790
        %v1864 = vpop.f32.mrb[0].mxu0
        %v1865 = vadd.f32 %v1272, %v1864
        %v1866 = vpop.f32.mrb[0].mxu0
        %1867 = vmatprep.mubr.f32.mxu0 0.0
        %1868 = vmatmul.mubr.f32.gmra.mrb[0].mxu0 %v1792
        %v1869 = vpop.f32.mrb[0].mxu0
        %v1870 = vadd.f32 %v1273, %v1869
        %v1871 = vpop.f32.mrb[0].mxu0
        %1872 = vdwg.mxu0
        %v1873 = vsel %vm1366, %v1865, -inf
        %1874 = vmax.xlane.f32.xlu0 %v1873
        %v1875 = vpop.xlane.xlu0 %1874
        %v1876 = vsel %vm1366, %v1870, -inf
        %1877 = vmax.xlane.f32.xlu0 %v1876
        %v1878 = vpop.xlane.xlu0 %1877
        %v1879 = vsub.f32 %v1865, %v1875
        %v1880 = vsub.f32 %v1870, %v1878
        %v1881 = vmul.f32 %v1879, 1.442695
        %v1882 = vpow.pop %v1881
        %v1883 = vmul.f32 %v1880, 1.442695
        %v1884 = vpow.pop %v1883
        %v1885 = vsel %vm1366, %v1882, 0.0
        %1886 = vadd.xlane.f32.xlu0 %v1885
        %v1887 = vpop.xlane.xlu0 %1886
        %v1888 = vsel %vm1366, %v1884, 0.0
        %1889 = vadd.xlane.f32.xlu0 %v1888
        %v1890 = vpop.xlane.xlu0 %1889
        %v1891 = vrcp.pop %v1887
        %v1892 = vrcp.pop %v1890
        %v1893 = vmul.f32 %v1882, %v1891
        %v1894 = vmul.f32 %v1884, %v1892
        %vm1895 = vcmp.ge.s32.totalorder %v1275, 24
        %vm1896 = vcmp.lt.s32.totalorder %v1275, 32
        %vm1897 = vmand %vm1895, %vm1896
        %v1898 = vsel %vm1897, 1, 0
        %vm1899 = vcmp.eq.s32.totalorder %v1898, 1
        %v1900 = vsel %vm1899, %v1395, 0.0
        %v1901 = vsel %vm1899, %v1397, 0.0
        %v1902 = vpack.c.bf16 %v1894, %v1893
        %v1903 = vpack.c.bf16 %v1901, %v1900
        %v1905 = vsel %vm1366, %v1902, 0
        %1907 = vmatprep.subr.bf16.mxu0 0
        %1908 = vmatpush1.bf16.msra.mxu0 %v1903
        %1909 = vmatprep.subr.bf16.mxu0 0
        %1910 = vmatpush1.bf16.msra.mxu0 0
        %1911 = vmatprep.subr.bf16.mxu0 0
        %1912 = vmatpush1.bf16.msra.mxu0 0
        %1913 = vmatprep.subr.bf16.mxu0 0
        %1914 = vmatpush1.bf16.msra.mxu0 0
        %1915 = vmatprep.subr.bf16.mxu0 0
        %1916 = vmatpush1.bf16.msra.mxu0 0
        %1917 = vmatprep.subr.bf16.mxu0 0
        %1918 = vmatpush1.bf16.msra.mxu0 0
        %1919 = vmatprep.subr.bf16.mxu0 0
        %1920 = vmatpush1.bf16.msra.mxu0 0
        %1921 = vmatprep.subr.bf16.mxu0 0
        %1922 = vmatpush1.bf16.msra.mxu0 0
        %1923 = vmatprep.subr.bf16.mxu0 0
        %1924 = vmatpush1.bf16.msra.mxu0 0
        %1925 = vmatprep.subr.bf16.mxu0 0
        %1926 = vmatpush1.bf16.msra.mxu0 0
        %1927 = vmatprep.subr.bf16.mxu0 0
        %1928 = vmatpush1.bf16.msra.mxu0 0
        %1929 = vmatprep.subr.bf16.mxu0 0
        %1930 = vmatpush1.bf16.msra.mxu0 0
        %1931 = vmatprep.subr.bf16.mxu0 0
        %1932 = vmatpush1.bf16.msra.mxu0 0
        %1933 = vmatprep.subr.bf16.mxu0 0
        %1934 = vmatpush1.bf16.msra.mxu0 0
        %1935 = vmatprep.subr.bf16.mxu0 0
        %1936 = vmatpush1.bf16.msra.mxu0 0
        %1937 = vmatprep.subr.bf16.mxu0 0
        %1938 = vmatpush1.bf16.msra.mxu0 0
        %1939 = vmatprep.mubr.bf16.mxu0 0
        %1940 = vmatmul.mubr.bf16.gmra.mrb[0].mxu0 %v1905
        %v1941 = vpop.f32.mrb[0].mxu0
        %v1942 = vadd.f32 0.0, %v1941
        %v1943 = vpop.f32.mrb[0].mxu0
        %v1944 = vpop.f32.mrb[0].mxu0
        %v1945 = vadd.f32 0.0, %v1944
        %v1946 = vpop.f32.mrb[0].mxu0
        %1947 = vdwg.mxu0
        %v1948 = vadd.f32 %v1780, %v1942
        %v1949 = vadd.f32 %v1781, %v1945
        %v1950 = vpack.c.bf16 %v1949, %v1948
        %v1951 = vpack.c.bf16 %v1269, %v1268
        %v1952 = vpack.c.bf16 %v1271, %v1270
        %v1953 = vld [vmem:[%s1132] sm:$0x1]
        %v1955 = vlaneseq
        %v1956 = vshrl.u32 %v1955, 7
        %v1957 = vsub.s32 0, %v1956
        %v1958 = vrot.slane %v1953, %v1957
        %v1961 = vsel %vm1223, %v1950, 0
        %1963 = vmatprep.subr.bf16.mxu0 0
        %1964 = vmatpush1.bf16.msra.mxu0 %v1951
        %1965 = vmatprep.subr.bf16.mxu0 0
        %1966 = vmatpush1.bf16.msra.mxu0 %v1952
        %1967 = vmatprep.subr.bf16.mxu0 0
        %1968 = vmatpush1.bf16.msra.mxu0 0
        %1969 = vmatprep.subr.bf16.mxu0 0
        %1970 = vmatpush1.bf16.msra.mxu0 0
        %1971 = vmatprep.subr.bf16.mxu0 0
        %1972 = vmatpush1.bf16.msra.mxu0 0
        %1973 = vmatprep.subr.bf16.mxu0 0
        %1974 = vmatpush1.bf16.msra.mxu0 0
        %1975 = vmatprep.subr.bf16.mxu0 0
        %1976 = vmatpush1.bf16.msra.mxu0 0
        %1977 = vmatprep.subr.bf16.mxu0 0
        %1978 = vmatpush1.bf16.msra.mxu0 0
        %1979 = vmatprep.subr.bf16.mxu0 0
        %1980 = vmatpush1.bf16.msra.mxu0 0
        %1981 = vmatprep.subr.bf16.mxu0 0
        %1982 = vmatpush1.bf16.msra.mxu0 0
        %1983 = vmatprep.subr.bf16.mxu0 0
        %1984 = vmatpush1.bf16.msra.mxu0 0
        %1985 = vmatprep.subr.bf16.mxu0 0
        %1986 = vmatpush1.bf16.msra.mxu0 0
        %1987 = vmatprep.subr.bf16.mxu0 0
        %1988 = vmatpush1.bf16.msra.mxu0 0
        %1989 = vmatprep.subr.bf16.mxu0 0
        %1990 = vmatpush1.bf16.msra.mxu0 0
        %1991 = vmatprep.subr.bf16.mxu0 0
        %1992 = vmatpush1.bf16.msra.mxu0 0
        %1993 = vmatprep.subr.bf16.mxu0 0
        %1994 = vmatpush1.bf16.msra.mxu0 0
        %1995 = vmatprep.mubr.bf16.mxu0 0
        %1996 = vmatmul.mubr.bf16.gmra.mrb[0].mxu0 %v1961
        %v1997 = vpop.f32.mrb[0].mxu0
        %v1998 = vadd.f32 %v1958, %v1997
        %v1999 = vpop.f32.mrb[0].mxu0
        %v2000 = vpop.f32.mrb[0].mxu0
        %v2001 = vadd.f32 %v1958, %v2000
        %v2002 = vpop.f32.mrb[0].mxu0
        %2003 = vdwg.mxu0
        %v2004 = vadd.f32 %v1998, %v1207
        %v2005 = vadd.f32 %v2001, %v1208
        %v2006 = vld [vmem:[%s1135] sm:$0x1]
        %v2007 = vld [vmem:[%s1138] sm:$0x1]
        %v2008 = vsel %vm1223, %v2004, 0.0
        %2009 = vadd.xlane.f32.xlu0 %v2008
        %v2010 = vpop.xlane.xlu0 %2009
        %v2011 = vsel %vm1223, %v2005, 0.0
        %2012 = vadd.xlane.f32.xlu0 %v2011
        %v2013 = vpop.xlane.xlu0 %2012
        %v2014 = vrcp.pop 32.0
        %v2015 = vmul.f32 %v2010, %v2014
        %v2016 = vmul.f32 %v2013, %v2014
        %v2017 = vsub.f32 %v2004, %v2015
        %v2018 = vsub.f32 %v2005, %v2016
        %v2019 = vmul.f32 %v2017, %v2017
        %v2020 = vmul.f32 %v2018, %v2018
        %v2021 = vsel %vm1223, %v2019, 0.0
        %2022 = vadd.xlane.f32.xlu0 %v2021
        %v2023 = vpop.xlane.xlu0 %2022
        %v2024 = vsel %vm1223, %v2020, 0.0
        %2025 = vadd.xlane.f32.xlu0 %v2024
        %v2026 = vpop.xlane.xlu0 %2025
        %v2027 = vmul.f32 %v2023, %v2014
        %v2028 = vmul.f32 %v2026, %v2014
        %v2029 = vadd.f32 %v2027, 1e-05
        %v2030 = vadd.f32 %v2028, 1e-05
        %v2031 = vrsqrt.pop %v2029
        %v2032 = vrsqrt.pop %v2030
        %v2033 = vmul.f32 %v2017, %v2031
        %v2034 = vmul.f32 %v2018, %v2032
        %v2036 = vlaneseq
        %v2037 = vshrl.u32 %v2036, 7
        %v2038 = vsub.s32 0, %v2037
        %v2039 = vrot.slane %v2006, %v2038
        %v2041 = vmul.f32 %v2033, %v2039
        %v2042 = vmul.f32 %v2034, %v2039
        %v2044 = vlaneseq
        %v2045 = vshrl.u32 %v2044, 7
        %v2046 = vsub.s32 0, %v2045
        %v2047 = vrot.slane %v2007, %v2046
        %v2049 = vadd.f32 %v2041, %v2047
        %v2050 = vadd.f32 %v2042, %v2047
        %v2051 = vpack.c.bf16 %v2050, %v2049
        %v2052 = vld [vmem:[%s1143] sm:$0xff]
        %v2053 = vld [vmem:[%s1143 + $0x8] sm:$0xff]
        %v2054 = vld [vmem:[%s1143 + $0x10] sm:$0xff]
        %v2055 = vld [vmem:[%s1143 + $0x18] sm:$0xff]
        %v2056 = vpack.c.bf16 %v2053, %v2052
        %v2057 = vpack.c.bf16 %v2055, %v2054
        %v2058 = vld [vmem:[%s1146] sm:$0x1]
        %v2060 = vlaneseq
        %v2061 = vshrl.u32 %v2060, 7
        %v2062 = vsub.s32 0, %v2061
        %v2063 = vrot.slane %v2058, %v2062
        %v2066 = vsel %vm1223, %v2051, 0
        %2068 = vmatprep.subr.bf16.mxu0 0
        %2069 = vmatpush1.bf16.msra.mxu0 %v2056
        %2070 = vmatprep.subr.bf16.mxu0 0
        %2071 = vmatpush1.bf16.msra.mxu0 %v2057
        %2072 = vmatprep.subr.bf16.mxu0 0
        %2073 = vmatpush1.bf16.msra.mxu0 0
        %2074 = vmatprep.subr.bf16.mxu0 0
        %2075 = vmatpush1.bf16.msra.mxu0 0
        %2076 = vmatprep.subr.bf16.mxu0 0
        %2077 = vmatpush1.bf16.msra.mxu0 0
        %2078 = vmatprep.subr.bf16.mxu0 0
        %2079 = vmatpush1.bf16.msra.mxu0 0
        %2080 = vmatprep.subr.bf16.mxu0 0
        %2081 = vmatpush1.bf16.msra.mxu0 0
        %2082 = vmatprep.subr.bf16.mxu0 0
        %2083 = vmatpush1.bf16.msra.mxu0 0
        %2084 = vmatprep.subr.bf16.mxu0 0
        %2085 = vmatpush1.bf16.msra.mxu0 0
        %2086 = vmatprep.subr.bf16.mxu0 0
        %2087 = vmatpush1.bf16.msra.mxu0 0
        %2088 = vmatprep.subr.bf16.mxu0 0
        %2089 = vmatpush1.bf16.msra.mxu0 0
        %2090 = vmatprep.subr.bf16.mxu0 0
        %2091 = vmatpush1.bf16.msra.mxu0 0
        %2092 = vmatprep.subr.bf16.mxu0 0
        %2093 = vmatpush1.bf16.msra.mxu0 0
        %2094 = vmatprep.subr.bf16.mxu0 0
        %2095 = vmatpush1.bf16.msra.mxu0 0
        %2096 = vmatprep.subr.bf16.mxu0 0
        %2097 = vmatpush1.bf16.msra.mxu0 0
        %2098 = vmatprep.subr.bf16.mxu0 0
        %2099 = vmatpush1.bf16.msra.mxu0 0
        %2100 = vmatprep.mubr.bf16.mxu0 0
        %2101 = vmatmul.mubr.bf16.gmra.mrb[0].mxu0 %v2066
        %v2102 = vpop.f32.mrb[0].mxu0
        %v2103 = vadd.f32 %v2063, %v2102
        %v2104 = vpop.f32.mrb[0].mxu0
        %v2105 = vpop.f32.mrb[0].mxu0
        %v2106 = vadd.f32 %v2063, %v2105
        %v2107 = vpop.f32.mrb[0].mxu0
        %2108 = vdwg.mxu0
        %v2109 = vld [vmem:[%s5] sm:$0xff]
        %v2110 = vld [vmem:[%s5 + $0x8] sm:$0xff]
        %v2111 = vld [vmem:[%s5 + $0x10] sm:$0xf]
        %v2112 = vpack.c.bf16 %v2110, %v2109
        %v2113 = vpack.c.bf16 %v2111, %v2111
        %v2114 = vld [vmem:[%s1151] sm:$0xff]
        %v2115 = vld [vmem:[%s1151 + $0x8] sm:$0xff]
        %v2116 = vld [vmem:[%s1151 + $0x10] sm:$0xff]
        %v2117 = vld [vmem:[%s1151 + $0x18] sm:$0xff]
        %v2118 = vpack.c.bf16 %v2115, %v2114
        %v2119 = vpack.c.bf16 %v2117, %v2116
        %v2120 = vld [vmem:[%s1154] sm:$0x1]
        %v2122 = vlaneseq
        %v2123 = vshrl.u32 %v2122, 7
        %v2124 = vsub.s32 0, %v2123
        %v2125 = vrot.slane %v2120, %v2124
        %v2128 = vsel %vm1223, %v2112, 0
        %v2131 = vsel %vm1223, %v2113, 0
        %2133 = vmatprep.subr.bf16.mxu0 0
        %2134 = vmatpush1.bf16.msra.mxu0 %v2118
        %2135 = vmatprep.subr.bf16.mxu0 0
        %2136 = vmatpush1.bf16.msra.mxu0 %v2119
        %2137 = vmatprep.subr.bf16.mxu0 0
        %2138 = vmatpush1.bf16.msra.mxu0 0
        %2139 = vmatprep.subr.bf16.mxu0 0
        %2140 = vmatpush1.bf16.msra.mxu0 0
        %2141 = vmatprep.subr.bf16.mxu0 0
        %2142 = vmatpush1.bf16.msra.mxu0 0
        %2143 = vmatprep.subr.bf16.mxu0 0
        %2144 = vmatpush1.bf16.msra.mxu0 0
        %2145 = vmatprep.subr.bf16.mxu0 0
        %2146 = vmatpush1.bf16.msra.mxu0 0
        %2147 = vmatprep.subr.bf16.mxu0 0
        %2148 = vmatpush1.bf16.msra.mxu0 0
        %2149 = vmatprep.subr.bf16.mxu0 0
        %2150 = vmatpush1.bf16.msra.mxu0 0
        %2151 = vmatprep.subr.bf16.mxu0 0
        %2152 = vmatpush1.bf16.msra.mxu0 0
        %2153 = vmatprep.subr.bf16.mxu0 0
        %2154 = vmatpush1.bf16.msra.mxu0 0
        %2155 = vmatprep.subr.bf16.mxu0 0
        %2156 = vmatpush1.bf16.msra.mxu0 0
        %2157 = vmatprep.subr.bf16.mxu0 0
        %2158 = vmatpush1.bf16.msra.mxu0 0
        %2159 = vmatprep.subr.bf16.mxu0 0
        %2160 = vmatpush1.bf16.msra.mxu0 0
        %2161 = vmatprep.subr.bf16.mxu0 0
        %2162 = vmatpush1.bf16.msra.mxu0 0
        %2163 = vmatprep.subr.bf16.mxu0 0
        %2164 = vmatpush1.bf16.msra.mxu0 0
        %2165 = vmatprep.mubr.bf16.mxu0 0
        %2166 = vmatmul.mubr.bf16.gmra.mrb[0].mxu0 %v2128
        %v2167 = vpop.f32.mrb[0].mxu0
        %v2168 = vadd.f32 %v2125, %v2167
        %v2169 = vpop.f32.mrb[0].mxu0
        %v2170 = vpop.f32.mrb[0].mxu0
        %v2171 = vadd.f32 %v2125, %v2170
        %v2172 = vpop.f32.mrb[0].mxu0
        %2173 = vmatprep.mubr.bf16.mxu0 0
        %2174 = vmatmul.mubr.bf16.gmra.mrb[0].mxu0 %v2131
        %v2175 = vpop.f32.mrb[0].mxu0
        %v2176 = vadd.f32 %v2125, %v2175
        %v2177 = vpop.f32.mrb[0].mxu0
        %v2178 = vpop.f32.mrb[0].mxu0
        %v2179 = vpop.f32.mrb[0].mxu0
        %2180 = vdwg.mxu0
        %v2181 = vld [vmem:[%s1159] sm:$0xff]
        %v2182 = vld [vmem:[%s1159 + $0x8] sm:$0xff]
        %v2183 = vld [vmem:[%s1159 + $0x10] sm:$0xff]
        %v2184 = vld [vmem:[%s1159 + $0x18] sm:$0xff]
        %v2185 = vld [vmem:[%s9] sm:$0xff]
        %v2186 = vld [vmem:[%s9 + $0x8] sm:$0xff]
        %v2188 = vsel %vm1282, %v2103, 0
        %v2191 = vsel %vm1282, %v2106, 0
        %v2194 = vsel %vm1282, %v2168, 0
        %v2197 = vsel %vm1282, %v2171, 0
        %v2200 = vsel %vm1282, %v2176, 0
        %2202 = vmatprep.subr.mxu0 0.0
        %2203 = vmatpush1.xpose.msra.mxu0 %v2194
        %2204 = vmatprep.subr.mxu0 0.0
        %2205 = vmatpush1.xpose.msra.mxu0 %v2197
        %2206 = vmatprep.subr.mxu0 0.0
        %2207 = vmatpush1.xpose.msra.mxu0 %v2200
        %2208 = vmatprep.subr.mxu0 0.0
        %2209 = vmatpush1.xpose.msra.mxu0 0.0
        %2210 = vmatprep.subr.mxu0 0.0
        %2211 = vmatpush1.xpose.msra.mxu0 0.0
        %2212 = vmatprep.subr.mxu0 0.0
        %2213 = vmatpush1.xpose.msra.mxu0 0.0
        %2214 = vmatprep.subr.mxu0 0.0
        %2215 = vmatpush1.xpose.msra.mxu0 0.0
        %2216 = vmatprep.subr.mxu0 0.0
        %2217 = vmatpush1.xpose.msra.mxu0 0.0
        %2218 = vmatprep.subr.mxu0 0.0
        %2219 = vmatpush1.xpose.msra.mxu0 0.0
        %2220 = vmatprep.subr.mxu0 0.0
        %2221 = vmatpush1.xpose.msra.mxu0 0.0
        %2222 = vmatprep.subr.mxu0 0.0
        %2223 = vmatpush1.xpose.msra.mxu0 0.0
        %2224 = vmatprep.subr.mxu0 0.0
        %2225 = vmatpush1.xpose.msra.mxu0 0.0
        %2226 = vmatprep.subr.mxu0 0.0
        %2227 = vmatpush1.xpose.msra.mxu0 0.0
        %2228 = vmatprep.subr.mxu0 0.0
        %2229 = vmatpush1.xpose.msra.mxu0 0.0
        %2230 = vmatprep.subr.mxu0 0.0
        %2231 = vmatpush1.xpose.msra.mxu0 0.0
        %2232 = vmatprep.subr.mxu0 0.0
        %2233 = vmatpush1.xpose.msra.mxu0 0.0
        %2234 = vmatprep.subr.mxu0 0.0
        %2235 = vmatpush1.xpose.msra.mxu0 0.0
        %2236 = vmatprep.subr.mxu0 0.0
        %2237 = vmatpush1.xpose.msra.mxu0 0.0
        %2238 = vmatprep.subr.mxu0 0.0
        %2239 = vmatpush1.xpose.msra.mxu0 0.0
        %2240 = vmatprep.subr.mxu0 0.0
        %2241 = vmatpush1.xpose.msra.mxu0 0.0
        %2242 = vmatprep.subr.mxu0 0.0
        %2243 = vmatpush1.xpose.msra.mxu0 0.0
        %2244 = vmatprep.subr.mxu0 0.0
        %2245 = vmatpush1.xpose.msra.mxu0 0.0
        %2246 = vmatprep.subr.mxu0 0.0
        %2247 = vmatpush1.xpose.msra.mxu0 0.0
        %2248 = vmatprep.subr.mxu0 0.0
        %2249 = vmatpush1.xpose.msra.mxu0 0.0
        %2250 = vmatprep.subr.mxu0 0.0
        %2251 = vmatpush1.xpose.msra.mxu0 0.0
        %2252 = vmatprep.subr.mxu0 0.0
        %2253 = vmatpush1.xpose.msra.mxu0 0.0
        %2254 = vmatprep.subr.mxu0 0.0
        %2255 = vmatpush1.xpose.msra.mxu0 0.0
        %2256 = vmatprep.subr.mxu0 0.0
        %2257 = vmatpush1.xpose.msra.mxu0 0.0
        %2258 = vmatprep.subr.mxu0 0.0
        %2259 = vmatpush1.xpose.msra.mxu0 0.0
        %2260 = vmatprep.subr.mxu0 0.0
        %2261 = vmatpush1.xpose.msra.mxu0 0.0
        %2262 = vmatprep.subr.mxu0 0.0
        %2263 = vmatpush1.xpose.msra.mxu0 0.0
        %2264 = vmatprep.subr.mxu0 0.0
        %2265 = vmatpush1.xpose.msra.mxu0 0.0
        %2266 = vmatprep.mubr.f32.mxu0 0.0
        %2267 = vmatmul.mubr.f32.gmra.mrb[0].mxu0 %v2188
        %v2268 = vpop.f32.mrb[0].mxu0
        %v2269 = vadd.f32 %v2185, %v2268
        %v2270 = vpop.f32.mrb[0].mxu0
        %2271 = vmatprep.mubr.f32.mxu0 0.0
        %2272 = vmatmul.mubr.f32.gmra.mrb[0].mxu0 %v2191
        %v2273 = vpop.f32.mrb[0].mxu0
        %v2274 = vadd.f32 %v2186, %v2273
        %v2275 = vpop.f32.mrb[0].mxu0
        %2276 = vdwg.mxu0
        %vm2277 = vcmask 162816
        %v2278 = vsel %vm2277, %v2269, -inf
        %2279 = vmax.xlane.f32.xlu0 %v2278
        %v2280 = vpop.xlane.xlu0 %2279
        %v2281 = vsel %vm2277, %v2274, -inf
        %2282 = vmax.xlane.f32.xlu0 %v2281
        %v2283 = vpop.xlane.xlu0 %2282
        %v2284 = vsub.f32 %v2269, %v2280
        %v2285 = vsub.f32 %v2274, %v2283
        %v2286 = vmul.f32 %v2284, 1.442695
        %v2287 = vpow.pop %v2286
        %v2288 = vmul.f32 %v2285, 1.442695
        %v2289 = vpow.pop %v2288
        %v2290 = vsel %vm2277, %v2287, 0.0
        %2291 = vadd.xlane.f32.xlu0 %v2290
        %v2292 = vpop.xlane.xlu0 %2291
        %v2293 = vsel %vm2277, %v2289, 0.0
        %2294 = vadd.xlane.f32.xlu0 %v2293
        %v2295 = vpop.xlane.xlu0 %2294
        %v2296 = vrcp.pop %v2292
        %v2297 = vrcp.pop %v2295
        %v2298 = vmul.f32 %v2287, %v2296
        %v2299 = vmul.f32 %v2289, %v2297
        %2300 = vrot.lane.b32.xlu0 %v2168, 96
        %v2301 = vpop.permute.xlu0 %2300
        %2302 = vrot.lane.b32.xlu0 %v2171, 96
        %v2303 = vpop.permute.xlu0 %2302
        %2304 = vrot.lane.b32.xlu0 %v2176, 96
        %v2305 = vpop.permute.xlu0 %2304
        %v2309 = vsel %vm1393, %v2301, 0.0
        %v2310 = vsel %vm1393, %v2303, 0.0
        %v2311 = vsel %vm1393, %v2305, 0.0
        %v2312 = vpack.c.bf16 %v2299, %v2298
        %v2313 = vpack.c.bf16 %v2310, %v2309
        %v2314 = vpack.c.bf16 %v2311, %v2311
        %2315 = vrot.lane.b32.xlu0 %v2103, 120
        %v2316 = vpop.permute.xlu0 %2315
        %2317 = vrot.lane.b32.xlu0 %v2106, 120
        %v2318 = vpop.permute.xlu0 %2317
        %2319 = vrot.lane.b32.xlu0 %v2168, 120
        %v2320 = vpop.permute.xlu0 %2319
        %2321 = vrot.lane.b32.xlu0 %v2171, 120
        %v2322 = vpop.permute.xlu0 %2321
        %2323 = vrot.lane.b32.xlu0 %v2176, 120
        %v2324 = vpop.permute.xlu0 %2323
        %v2325 = vsel %vm1282, %v2316, 0
        %v2327 = vsel %vm1282, %v2318, 0
        %v2329 = vsel %vm1282, %v2320, 0
        %v2331 = vsel %vm1282, %v2322, 0
        %v2333 = vsel %vm1282, %v2324, 0
        %2335 = vmatprep.subr.mxu0 0.0
        %2336 = vmatpush1.xpose.msra.mxu0 %v2329
        %2337 = vmatprep.subr.mxu0 0.0
        %2338 = vmatpush1.xpose.msra.mxu0 %v2331
        %2339 = vmatprep.subr.mxu0 0.0
        %2340 = vmatpush1.xpose.msra.mxu0 %v2333
        %2341 = vmatprep.subr.mxu0 0.0
        %2342 = vmatpush1.xpose.msra.mxu0 0.0
        %2343 = vmatprep.subr.mxu0 0.0
        %2344 = vmatpush1.xpose.msra.mxu0 0.0
        %2345 = vmatprep.subr.mxu0 0.0
        %2346 = vmatpush1.xpose.msra.mxu0 0.0
        %2347 = vmatprep.subr.mxu0 0.0
        %2348 = vmatpush1.xpose.msra.mxu0 0.0
        %2349 = vmatprep.subr.mxu0 0.0
        %2350 = vmatpush1.xpose.msra.mxu0 0.0
        %2351 = vmatprep.subr.mxu0 0.0
        %2352 = vmatpush1.xpose.msra.mxu0 0.0
        %2353 = vmatprep.subr.mxu0 0.0
        %2354 = vmatpush1.xpose.msra.mxu0 0.0
        %2355 = vmatprep.subr.mxu0 0.0
        %2356 = vmatpush1.xpose.msra.mxu0 0.0
        %2357 = vmatprep.subr.mxu0 0.0
        %2358 = vmatpush1.xpose.msra.mxu0 0.0
        %2359 = vmatprep.subr.mxu0 0.0
        %2360 = vmatpush1.xpose.msra.mxu0 0.0
        %2361 = vmatprep.subr.mxu0 0.0
        %2362 = vmatpush1.xpose.msra.mxu0 0.0
        %2363 = vmatprep.subr.mxu0 0.0
        %2364 = vmatpush1.xpose.msra.mxu0 0.0
        %2365 = vmatprep.subr.mxu0 0.0
        %2366 = vmatpush1.xpose.msra.mxu0 0.0
        %2367 = vmatprep.subr.mxu0 0.0
        %2368 = vmatpush1.xpose.msra.mxu0 0.0
        %2369 = vmatprep.subr.mxu0 0.0
        %2370 = vmatpush1.xpose.msra.mxu0 0.0
        %2371 = vmatprep.subr.mxu0 0.0
        %2372 = vmatpush1.xpose.msra.mxu0 0.0
        %2373 = vmatprep.subr.mxu0 0.0
        %2374 = vmatpush1.xpose.msra.mxu0 0.0
        %2375 = vmatprep.subr.mxu0 0.0
        %2376 = vmatpush1.xpose.msra.mxu0 0.0
        %2377 = vmatprep.subr.mxu0 0.0
        %2378 = vmatpush1.xpose.msra.mxu0 0.0
        %2379 = vmatprep.subr.mxu0 0.0
        %2380 = vmatpush1.xpose.msra.mxu0 0.0
        %2381 = vmatprep.subr.mxu0 0.0
        %2382 = vmatpush1.xpose.msra.mxu0 0.0
        %2383 = vmatprep.subr.mxu0 0.0
        %2384 = vmatpush1.xpose.msra.mxu0 0.0
        %2385 = vmatprep.subr.mxu0 0.0
        %2386 = vmatpush1.xpose.msra.mxu0 0.0
        %2387 = vmatprep.subr.mxu0 0.0
        %2388 = vmatpush1.xpose.msra.mxu0 0.0
        %2389 = vmatprep.subr.mxu0 0.0
        %2390 = vmatpush1.xpose.msra.mxu0 0.0
        %2391 = vmatprep.subr.mxu0 0.0
        %2392 = vmatpush1.xpose.msra.mxu0 0.0
        %2393 = vmatprep.subr.mxu0 0.0
        %2394 = vmatpush1.xpose.msra.mxu0 0.0
        %2395 = vmatprep.subr.mxu0 0.0
        %2396 = vmatpush1.xpose.msra.mxu0 0.0
        %2397 = vmatprep.subr.mxu0 0.0
        %2398 = vmatpush1.xpose.msra.mxu0 0.0
        %2399 = vmatprep.mubr.f32.mxu0 0.0
        %2400 = vmatmul.mubr.f32.gmra.mrb[0].mxu0 %v2325
        %v2401 = vpop.f32.mrb[0].mxu0
        %v2402 = vadd.f32 %v2185, %v2401
        %v2403 = vpop.f32.mrb[0].mxu0
        %2404 = vmatprep.mubr.f32.mxu0 0.0
        %2405 = vmatmul.mubr.f32.gmra.mrb[0].mxu0 %v2327
        %v2406 = vpop.f32.mrb[0].mxu0
        %v2407 = vadd.f32 %v2186, %v2406
        %v2408 = vpop.f32.mrb[0].mxu0
        %2409 = vdwg.mxu0
        %v2410 = vsel %vm2277, %v2402, -inf
        %2411 = vmax.xlane.f32.xlu0 %v2410
        %v2412 = vpop.xlane.xlu0 %2411
        %v2413 = vsel %vm2277, %v2407, -inf
        %2414 = vmax.xlane.f32.xlu0 %v2413
        %v2415 = vpop.xlane.xlu0 %2414
        %v2416 = vsub.f32 %v2402, %v2412
        %v2417 = vsub.f32 %v2407, %v2415
        %v2418 = vmul.f32 %v2416, 1.442695
        %v2419 = vpow.pop %v2418
        %v2420 = vmul.f32 %v2417, 1.442695
        %v2421 = vpow.pop %v2420
        %v2422 = vsel %vm2277, %v2419, 0.0
        %2423 = vadd.xlane.f32.xlu0 %v2422
        %v2424 = vpop.xlane.xlu0 %2423
        %v2425 = vsel %vm2277, %v2421, 0.0
        %2426 = vadd.xlane.f32.xlu0 %v2425
        %v2427 = vpop.xlane.xlu0 %2426
        %v2428 = vrcp.pop %v2424
        %v2429 = vrcp.pop %v2427
        %v2430 = vmul.f32 %v2419, %v2428
        %v2431 = vmul.f32 %v2421, %v2429
        %v2432 = vsel %vm1521, %v2301, 0.0
        %v2433 = vsel %vm1521, %v2303, 0.0
        %v2434 = vsel %vm1521, %v2305, 0.0
        %v2435 = vpack.c.bf16 %v2431, %v2430
        %v2436 = vpack.c.bf16 %v2433, %v2432
        %v2437 = vpack.c.bf16 %v2434, %v2434
        %v2439 = vsel %vm2277, %v2435, 0
        %vm2441 = vcmask 1041408
        %v2443 = vsel %vm2441, %v2437, 0
        %2445 = vmatprep.subr.bf16.mxu0 0
        %2446 = vmatpush1.bf16.msra.mxu0 %v2436
        %2447 = vmatprep.subr.bf16.mxu0 0
        %2448 = vmatpush1.bf16.msra.mxu0 %v2443
        %2449 = vmatprep.subr.bf16.mxu0 0
        %2450 = vmatpush1.bf16.msra.mxu0 0
        %2451 = vmatprep.subr.bf16.mxu0 0
        %2452 = vmatpush1.bf16.msra.mxu0 0
        %2453 = vmatprep.subr.bf16.mxu0 0
        %2454 = vmatpush1.bf16.msra.mxu0 0
        %2455 = vmatprep.subr.bf16.mxu0 0
        %2456 = vmatpush1.bf16.msra.mxu0 0
        %2457 = vmatprep.subr.bf16.mxu0 0
        %2458 = vmatpush1.bf16.msra.mxu0 0
        %2459 = vmatprep.subr.bf16.mxu0 0
        %2460 = vmatpush1.bf16.msra.mxu0 0
        %2461 = vmatprep.subr.bf16.mxu0 0
        %2462 = vmatpush1.bf16.msra.mxu0 0
        %2463 = vmatprep.subr.bf16.mxu0 0
        %2464 = vmatpush1.bf16.msra.mxu0 0
        %2465 = vmatprep.subr.bf16.mxu0 0
        %2466 = vmatpush1.bf16.msra.mxu0 0
        %2467 = vmatprep.subr.bf16.mxu0 0
        %2468 = vmatpush1.bf16.msra.mxu0 0
        %2469 = vmatprep.subr.bf16.mxu0 0
        %2470 = vmatpush1.bf16.msra.mxu0 0
        %2471 = vmatprep.subr.bf16.mxu0 0
        %2472 = vmatpush1.bf16.msra.mxu0 0
        %2473 = vmatprep.subr.bf16.mxu0 0
        %2474 = vmatpush1.bf16.msra.mxu0 0
        %2475 = vmatprep.subr.bf16.mxu0 0
        %2476 = vmatpush1.bf16.msra.mxu0 0
        %2477 = vmatprep.mubr.bf16.mxu0 0
        %2478 = vmatmul.mubr.bf16.gmra.mrb[0].mxu0 %v2439
        %v2479 = vpop.f32.mrb[0].mxu0
        %v2480 = vadd.f32 0.0, %v2479
        %v2481 = vpop.f32.mrb[0].mxu0
        %v2482 = vpop.f32.mrb[0].mxu0
        %v2483 = vadd.f32 0.0, %v2482
        %v2484 = vpop.f32.mrb[0].mxu0
        %2485 = vdwg.mxu0
        %v2487 = vsel %vm2277, %v2312, 0
        %v2490 = vsel %vm2441, %v2314, 0
        %2492 = vmatprep.subr.bf16.mxu0 0
        %2493 = vmatpush1.bf16.msra.mxu0 %v2313
        %2494 = vmatprep.subr.bf16.mxu0 0
        %2495 = vmatpush1.bf16.msra.mxu0 %v2490
        %2496 = vmatprep.subr.bf16.mxu0 0
        %2497 = vmatpush1.bf16.msra.mxu0 0
        %2498 = vmatprep.subr.bf16.mxu0 0
        %2499 = vmatpush1.bf16.msra.mxu0 0
        %2500 = vmatprep.subr.bf16.mxu0 0
        %2501 = vmatpush1.bf16.msra.mxu0 0
        %2502 = vmatprep.subr.bf16.mxu0 0
        %2503 = vmatpush1.bf16.msra.mxu0 0
        %2504 = vmatprep.subr.bf16.mxu0 0
        %2505 = vmatpush1.bf16.msra.mxu0 0
        %2506 = vmatprep.subr.bf16.mxu0 0
        %2507 = vmatpush1.bf16.msra.mxu0 0
        %2508 = vmatprep.subr.bf16.mxu0 0
        %2509 = vmatpush1.bf16.msra.mxu0 0
        %2510 = vmatprep.subr.bf16.mxu0 0
        %2511 = vmatpush1.bf16.msra.mxu0 0
        %2512 = vmatprep.subr.bf16.mxu0 0
        %2513 = vmatpush1.bf16.msra.mxu0 0
        %2514 = vmatprep.subr.bf16.mxu0 0
        %2515 = vmatpush1.bf16.msra.mxu0 0
        %2516 = vmatprep.subr.bf16.mxu0 0
        %2517 = vmatpush1.bf16.msra.mxu0 0
        %2518 = vmatprep.subr.bf16.mxu0 0
        %2519 = vmatpush1.bf16.msra.mxu0 0
        %2520 = vmatprep.subr.bf16.mxu0 0
        %2521 = vmatpush1.bf16.msra.mxu0 0
        %2522 = vmatprep.subr.bf16.mxu0 0
        %2523 = vmatpush1.bf16.msra.mxu0 0
        %2524 = vmatprep.mubr.bf16.mxu0 0
        %2525 = vmatmul.mubr.bf16.gmra.mrb[0].mxu0 %v2487
        %v2526 = vpop.f32.mrb[0].mxu0
        %v2527 = vadd.f32 %v2480, %v2526
        %v2528 = vpop.f32.mrb[0].mxu0
        %v2529 = vpop.f32.mrb[0].mxu0
        %v2530 = vadd.f32 %v2483, %v2529
        %v2531 = vpop.f32.mrb[0].mxu0
        %2532 = vdwg.mxu0
        %2533 = vrot.lane.b32.xlu0 %v2103, 112
        %v2534 = vpop.permute.xlu0 %2533
        %2535 = vrot.lane.b32.xlu0 %v2106, 112
        %v2536 = vpop.permute.xlu0 %2535
        %2537 = vrot.lane.b32.xlu0 %v2168, 112
        %v2538 = vpop.permute.xlu0 %2537
        %2539 = vrot.lane.b32.xlu0 %v2171, 112
        %v2540 = vpop.permute.xlu0 %2539
        %2541 = vrot.lane.b32.xlu0 %v2176, 112
        %v2542 = vpop.permute.xlu0 %2541
        %v2543 = vsel %vm1282, %v2534, 0
        %v2545 = vsel %vm1282, %v2536, 0
        %v2547 = vsel %vm1282, %v2538, 0
        %v2549 = vsel %vm1282, %v2540, 0
        %v2551 = vsel %vm1282, %v2542, 0
        %2553 = vmatprep.subr.mxu0 0.0
        %2554 = vmatpush1.xpose.msra.mxu0 %v2547
        %2555 = vmatprep.subr.mxu0 0.0
        %2556 = vmatpush1.xpose.msra.mxu0 %v2549
        %2557 = vmatprep.subr.mxu0 0.0
        %2558 = vmatpush1.xpose.msra.mxu0 %v2551
        %2559 = vmatprep.subr.mxu0 0.0
        %2560 = vmatpush1.xpose.msra.mxu0 0.0
        %2561 = vmatprep.subr.mxu0 0.0
        %2562 = vmatpush1.xpose.msra.mxu0 0.0
        %2563 = vmatprep.subr.mxu0 0.0
        %2564 = vmatpush1.xpose.msra.mxu0 0.0
        %2565 = vmatprep.subr.mxu0 0.0
        %2566 = vmatpush1.xpose.msra.mxu0 0.0
        %2567 = vmatprep.subr.mxu0 0.0
        %2568 = vmatpush1.xpose.msra.mxu0 0.0
        %2569 = vmatprep.subr.mxu0 0.0
        %2570 = vmatpush1.xpose.msra.mxu0 0.0
        %2571 = vmatprep.subr.mxu0 0.0
        %2572 = vmatpush1.xpose.msra.mxu0 0.0
        %2573 = vmatprep.subr.mxu0 0.0
        %2574 = vmatpush1.xpose.msra.mxu0 0.0
        %2575 = vmatprep.subr.mxu0 0.0
        %2576 = vmatpush1.xpose.msra.mxu0 0.0
        %2577 = vmatprep.subr.mxu0 0.0
        %2578 = vmatpush1.xpose.msra.mxu0 0.0
        %2579 = vmatprep.subr.mxu0 0.0
        %2580 = vmatpush1.xpose.msra.mxu0 0.0
        %2581 = vmatprep.subr.mxu0 0.0
        %2582 = vmatpush1.xpose.msra.mxu0 0.0
        %2583 = vmatprep.subr.mxu0 0.0
        %2584 = vmatpush1.xpose.msra.mxu0 0.0
        %2585 = vmatprep.subr.mxu0 0.0
        %2586 = vmatpush1.xpose.msra.mxu0 0.0
        %2587 = vmatprep.subr.mxu0 0.0
        %2588 = vmatpush1.xpose.msra.mxu0 0.0
        %2589 = vmatprep.subr.mxu0 0.0
        %2590 = vmatpush1.xpose.msra.mxu0 0.0
        %2591 = vmatprep.subr.mxu0 0.0
        %2592 = vmatpush1.xpose.msra.mxu0 0.0
        %2593 = vmatprep.subr.mxu0 0.0
        %2594 = vmatpush1.xpose.msra.mxu0 0.0
        %2595 = vmatprep.subr.mxu0 0.0
        %2596 = vmatpush1.xpose.msra.mxu0 0.0
        %2597 = vmatprep.subr.mxu0 0.0
        %2598 = vmatpush1.xpose.msra.mxu0 0.0
        %2599 = vmatprep.subr.mxu0 0.0
        %2600 = vmatpush1.xpose.msra.mxu0 0.0
        %2601 = vmatprep.subr.mxu0 0.0
        %2602 = vmatpush1.xpose.msra.mxu0 0.0
        %2603 = vmatprep.subr.mxu0 0.0
        %2604 = vmatpush1.xpose.msra.mxu0 0.0
        %2605 = vmatprep.subr.mxu0 0.0
        %2606 = vmatpush1.xpose.msra.mxu0 0.0
        %2607 = vmatprep.subr.mxu0 0.0
        %2608 = vmatpush1.xpose.msra.mxu0 0.0
        %2609 = vmatprep.subr.mxu0 0.0
        %2610 = vmatpush1.xpose.msra.mxu0 0.0
        %2611 = vmatprep.subr.mxu0 0.0
        %2612 = vmatpush1.xpose.msra.mxu0 0.0
        %2613 = vmatprep.subr.mxu0 0.0
        %2614 = vmatpush1.xpose.msra.mxu0 0.0
        %2615 = vmatprep.subr.mxu0 0.0
        %2616 = vmatpush1.xpose.msra.mxu0 0.0
        %2617 = vmatprep.mubr.f32.mxu0 0.0
        %2618 = vmatmul.mubr.f32.gmra.mrb[0].mxu0 %v2543
        %v2619 = vpop.f32.mrb[0].mxu0
        %v2620 = vadd.f32 %v2185, %v2619
        %v2621 = vpop.f32.mrb[0].mxu0
        %2622 = vmatprep.mubr.f32.mxu0 0.0
        %2623 = vmatmul.mubr.f32.gmra.mrb[0].mxu0 %v2545
        %v2624 = vpop.f32.mrb[0].mxu0
        %v2625 = vadd.f32 %v2186, %v2624
        %v2626 = vpop.f32.mrb[0].mxu0
        %2627 = vdwg.mxu0
        %v2628 = vsel %vm2277, %v2620, -inf
        %2629 = vmax.xlane.f32.xlu0 %v2628
        %v2630 = vpop.xlane.xlu0 %2629
        %v2631 = vsel %vm2277, %v2625, -inf
        %2632 = vmax.xlane.f32.xlu0 %v2631
        %v2633 = vpop.xlane.xlu0 %2632
        %v2634 = vsub.f32 %v2620, %v2630
        %v2635 = vsub.f32 %v2625, %v2633
        %v2636 = vmul.f32 %v2634, 1.442695
        %v2637 = vpow.pop %v2636
        %v2638 = vmul.f32 %v2635, 1.442695
        %v2639 = vpow.pop %v2638
        %v2640 = vsel %vm2277, %v2637, 0.0
        %2641 = vadd.xlane.f32.xlu0 %v2640
        %v2642 = vpop.xlane.xlu0 %2641
        %v2643 = vsel %vm2277, %v2639, 0.0
        %2644 = vadd.xlane.f32.xlu0 %v2643
        %v2645 = vpop.xlane.xlu0 %2644
        %v2646 = vrcp.pop %v2642
        %v2647 = vrcp.pop %v2645
        %v2648 = vmul.f32 %v2637, %v2646
        %v2649 = vmul.f32 %v2639, %v2647
        %v2650 = vsel %vm1731, %v2301, 0.0
        %v2651 = vsel %vm1731, %v2303, 0.0
        %v2652 = vsel %vm1731, %v2305, 0.0
        %v2653 = vpack.c.bf16 %v2649, %v2648
        %v2654 = vpack.c.bf16 %v2651, %v2650
        %v2655 = vpack.c.bf16 %v2652, %v2652
        %v2657 = vsel %vm2277, %v2653, 0
        %v2660 = vsel %vm2441, %v2655, 0
        %2662 = vmatprep.subr.bf16.mxu0 0
        %2663 = vmatpush1.bf16.msra.mxu0 %v2654
        %2664 = vmatprep.subr.bf16.mxu0 0
        %2665 = vmatpush1.bf16.msra.mxu0 %v2660
        %2666 = vmatprep.subr.bf16.mxu0 0
        %2667 = vmatpush1.bf16.msra.mxu0 0
        %2668 = vmatprep.subr.bf16.mxu0 0
        %2669 = vmatpush1.bf16.msra.mxu0 0
        %2670 = vmatprep.subr.bf16.mxu0 0
        %2671 = vmatpush1.bf16.msra.mxu0 0
        %2672 = vmatprep.subr.bf16.mxu0 0
        %2673 = vmatpush1.bf16.msra.mxu0 0
        %2674 = vmatprep.subr.bf16.mxu0 0
        %2675 = vmatpush1.bf16.msra.mxu0 0
        %2676 = vmatprep.subr.bf16.mxu0 0
        %2677 = vmatpush1.bf16.msra.mxu0 0
        %2678 = vmatprep.subr.bf16.mxu0 0
        %2679 = vmatpush1.bf16.msra.mxu0 0
        %2680 = vmatprep.subr.bf16.mxu0 0
        %2681 = vmatpush1.bf16.msra.mxu0 0
        %2682 = vmatprep.subr.bf16.mxu0 0
        %2683 = vmatpush1.bf16.msra.mxu0 0
        %2684 = vmatprep.subr.bf16.mxu0 0
        %2685 = vmatpush1.bf16.msra.mxu0 0
        %2686 = vmatprep.subr.bf16.mxu0 0
        %2687 = vmatpush1.bf16.msra.mxu0 0
        %2688 = vmatprep.subr.bf16.mxu0 0
        %2689 = vmatpush1.bf16.msra.mxu0 0
        %2690 = vmatprep.subr.bf16.mxu0 0
        %2691 = vmatpush1.bf16.msra.mxu0 0
        %2692 = vmatprep.subr.bf16.mxu0 0
        %2693 = vmatpush1.bf16.msra.mxu0 0
        %2694 = vmatprep.mubr.bf16.mxu0 0
        %2695 = vmatmul.mubr.bf16.gmra.mrb[0].mxu0 %v2657
        %v2696 = vpop.f32.mrb[0].mxu0
        %v2697 = vadd.f32 0.0, %v2696
        %v2698 = vpop.f32.mrb[0].mxu0
        %v2699 = vpop.f32.mrb[0].mxu0
        %v2700 = vadd.f32 0.0, %v2699
        %v2701 = vpop.f32.mrb[0].mxu0
        %2702 = vdwg.mxu0
        %v2703 = vadd.f32 %v2527, %v2697
        %v2704 = vadd.f32 %v2530, %v2700
        %2705 = vrot.lane.b32.xlu0 %v2103, 104
        %v2706 = vpop.permute.xlu0 %2705
        %2707 = vrot.lane.b32.xlu0 %v2106, 104
        %v2708 = vpop.permute.xlu0 %2707
        %2709 = vrot.lane.b32.xlu0 %v2168, 104
        %v2710 = vpop.permute.xlu0 %2709
        %2711 = vrot.lane.b32.xlu0 %v2171, 104
        %v2712 = vpop.permute.xlu0 %2711
        %2713 = vrot.lane.b32.xlu0 %v2176, 104
        %v2714 = vpop.permute.xlu0 %2713
        %v2715 = vsel %vm1282, %v2706, 0
        %v2717 = vsel %vm1282, %v2708, 0
        %v2719 = vsel %vm1282, %v2710, 0
        %v2721 = vsel %vm1282, %v2712, 0
        %v2723 = vsel %vm1282, %v2714, 0
        %2725 = vmatprep.subr.mxu0 0.0
        %2726 = vmatpush1.xpose.msra.mxu0 %v2719
        %2727 = vmatprep.subr.mxu0 0.0
        %2728 = vmatpush1.xpose.msra.mxu0 %v2721
        %2729 = vmatprep.subr.mxu0 0.0
        %2730 = vmatpush1.xpose.msra.mxu0 %v2723
        %2731 = vmatprep.subr.mxu0 0.0
        %2732 = vmatpush1.xpose.msra.mxu0 0.0
        %2733 = vmatprep.subr.mxu0 0.0
        %2734 = vmatpush1.xpose.msra.mxu0 0.0
        %2735 = vmatprep.subr.mxu0 0.0
        %2736 = vmatpush1.xpose.msra.mxu0 0.0
        %2737 = vmatprep.subr.mxu0 0.0
        %2738 = vmatpush1.xpose.msra.mxu0 0.0
        %2739 = vmatprep.subr.mxu0 0.0
        %2740 = vmatpush1.xpose.msra.mxu0 0.0
        %2741 = vmatprep.subr.mxu0 0.0
        %2742 = vmatpush1.xpose.msra.mxu0 0.0
        %2743 = vmatprep.subr.mxu0 0.0
        %2744 = vmatpush1.xpose.msra.mxu0 0.0
        %2745 = vmatprep.subr.mxu0 0.0
        %2746 = vmatpush1.xpose.msra.mxu0 0.0
        %2747 = vmatprep.subr.mxu0 0.0
        %2748 = vmatpush1.xpose.msra.mxu0 0.0
        %2749 = vmatprep.subr.mxu0 0.0
        %2750 = vmatpush1.xpose.msra.mxu0 0.0
        %2751 = vmatprep.subr.mxu0 0.0
        %2752 = vmatpush1.xpose.msra.mxu0 0.0
        %2753 = vmatprep.subr.mxu0 0.0
        %2754 = vmatpush1.xpose.msra.mxu0 0.0
        %2755 = vmatprep.subr.mxu0 0.0
        %2756 = vmatpush1.xpose.msra.mxu0 0.0
        %2757 = vmatprep.subr.mxu0 0.0
        %2758 = vmatpush1.xpose.msra.mxu0 0.0
        %2759 = vmatprep.subr.mxu0 0.0
        %2760 = vmatpush1.xpose.msra.mxu0 0.0
        %2761 = vmatprep.subr.mxu0 0.0
        %2762 = vmatpush1.xpose.msra.mxu0 0.0
        %2763 = vmatprep.subr.mxu0 0.0
        %2764 = vmatpush1.xpose.msra.mxu0 0.0
        %2765 = vmatprep.subr.mxu0 0.0
        %2766 = vmatpush1.xpose.msra.mxu0 0.0
        %2767 = vmatprep.subr.mxu0 0.0
        %2768 = vmatpush1.xpose.msra.mxu0 0.0
        %2769 = vmatprep.subr.mxu0 0.0
        %2770 = vmatpush1.xpose.msra.mxu0 0.0
        %2771 = vmatprep.subr.mxu0 0.0
        %2772 = vmatpush1.xpose.msra.mxu0 0.0
        %2773 = vmatprep.subr.mxu0 0.0
        %2774 = vmatpush1.xpose.msra.mxu0 0.0
        %2775 = vmatprep.subr.mxu0 0.0
        %2776 = vmatpush1.xpose.msra.mxu0 0.0
        %2777 = vmatprep.subr.mxu0 0.0
        %2778 = vmatpush1.xpose.msra.mxu0 0.0
        %2779 = vmatprep.subr.mxu0 0.0
        %2780 = vmatpush1.xpose.msra.mxu0 0.0
        %2781 = vmatprep.subr.mxu0 0.0
        %2782 = vmatpush1.xpose.msra.mxu0 0.0
        %2783 = vmatprep.subr.mxu0 0.0
        %2784 = vmatpush1.xpose.msra.mxu0 0.0
        %2785 = vmatprep.subr.mxu0 0.0
        %2786 = vmatpush1.xpose.msra.mxu0 0.0
        %2787 = vmatprep.subr.mxu0 0.0
        %2788 = vmatpush1.xpose.msra.mxu0 0.0
        %2789 = vmatprep.mubr.f32.mxu0 0.0
        %2790 = vmatmul.mubr.f32.gmra.mrb[0].mxu0 %v2715
        %v2791 = vpop.f32.mrb[0].mxu0
        %v2792 = vadd.f32 %v2185, %v2791
        %v2793 = vpop.f32.mrb[0].mxu0
        %2794 = vmatprep.mubr.f32.mxu0 0.0
        %2795 = vmatmul.mubr.f32.gmra.mrb[0].mxu0 %v2717
        %v2796 = vpop.f32.mrb[0].mxu0
        %v2797 = vadd.f32 %v2186, %v2796
        %v2798 = vpop.f32.mrb[0].mxu0
        %2799 = vdwg.mxu0
        %v2800 = vsel %vm2277, %v2792, -inf
        %2801 = vmax.xlane.f32.xlu0 %v2800
        %v2802 = vpop.xlane.xlu0 %2801
        %v2803 = vsel %vm2277, %v2797, -inf
        %2804 = vmax.xlane.f32.xlu0 %v2803
        %v2805 = vpop.xlane.xlu0 %2804
        %v2806 = vsub.f32 %v2792, %v2802
        %v2807 = vsub.f32 %v2797, %v2805
        %v2808 = vmul.f32 %v2806, 1.442695
        %v2809 = vpow.pop %v2808
        %v2810 = vmul.f32 %v2807, 1.442695
        %v2811 = vpow.pop %v2810
        %v2812 = vsel %vm2277, %v2809, 0.0
        %2813 = vadd.xlane.f32.xlu0 %v2812
        %v2814 = vpop.xlane.xlu0 %2813
        %v2815 = vsel %vm2277, %v2811, 0.0
        %2816 = vadd.xlane.f32.xlu0 %v2815
        %v2817 = vpop.xlane.xlu0 %2816
        %v2818 = vrcp.pop %v2814
        %v2819 = vrcp.pop %v2817
        %v2820 = vmul.f32 %v2809, %v2818
        %v2821 = vmul.f32 %v2811, %v2819
        %v2822 = vsel %vm1899, %v2301, 0.0
        %v2823 = vsel %vm1899, %v2303, 0.0
        %v2824 = vsel %vm1899, %v2305, 0.0
        %v2825 = vpack.c.bf16 %v2821, %v2820
        %v2826 = vpack.c.bf16 %v2823, %v2822
        %v2827 = vpack.c.bf16 %v2824, %v2824
        %v2829 = vsel %vm2277, %v2825, 0
        %v2832 = vsel %vm2441, %v2827, 0
        %2834 = vmatprep.subr.bf16.mxu0 0
        %2835 = vmatpush1.bf16.msra.mxu0 %v2826
        %2836 = vmatprep.subr.bf16.mxu0 0
        %2837 = vmatpush1.bf16.msra.mxu0 %v2832
        %2838 = vmatprep.subr.bf16.mxu0 0
        %2839 = vmatpush1.bf16.msra.mxu0 0
        %2840 = vmatprep.subr.bf16.mxu0 0
        %2841 = vmatpush1.bf16.msra.mxu0 0
        %2842 = vmatprep.subr.bf16.mxu0 0
        %2843 = vmatpush1.bf16.msra.mxu0 0
        %2844 = vmatprep.subr.bf16.mxu0 0
        %2845 = vmatpush1.bf16.msra.mxu0 0
        %2846 = vmatprep.subr.bf16.mxu0 0
        %2847 = vmatpush1.bf16.msra.mxu0 0
        %2848 = vmatprep.subr.bf16.mxu0 0
        %2849 = vmatpush1.bf16.msra.mxu0 0
        %2850 = vmatprep.subr.bf16.mxu0 0
        %2851 = vmatpush1.bf16.msra.mxu0 0
        %2852 = vmatprep.subr.bf16.mxu0 0
        %2853 = vmatpush1.bf16.msra.mxu0 0
        %2854 = vmatprep.subr.bf16.mxu0 0
        %2855 = vmatpush1.bf16.msra.mxu0 0
        %2856 = vmatprep.subr.bf16.mxu0 0
        %2857 = vmatpush1.bf16.msra.mxu0 0
        %2858 = vmatprep.subr.bf16.mxu0 0
        %2859 = vmatpush1.bf16.msra.mxu0 0
        %2860 = vmatprep.subr.bf16.mxu0 0
        %2861 = vmatpush1.bf16.msra.mxu0 0
        %2862 = vmatprep.subr.bf16.mxu0 0
        %2863 = vmatpush1.bf16.msra.mxu0 0
        %2864 = vmatprep.subr.bf16.mxu0 0
        %2865 = vmatpush1.bf16.msra.mxu0 0
        %2866 = vmatprep.mubr.bf16.mxu0 0
        %2867 = vmatmul.mubr.bf16.gmra.mrb[0].mxu0 %v2829
        %v2868 = vpop.f32.mrb[0].mxu0
        %v2869 = vadd.f32 0.0, %v2868
        %v2870 = vpop.f32.mrb[0].mxu0
        %v2871 = vpop.f32.mrb[0].mxu0
        %v2872 = vadd.f32 0.0, %v2871
        %v2873 = vpop.f32.mrb[0].mxu0
        %2874 = vdwg.mxu0
        %v2875 = vadd.f32 %v2703, %v2869
        %v2876 = vadd.f32 %v2704, %v2872
        %v2877 = vpack.c.bf16 %v2876, %v2875
        %v2878 = vpack.c.bf16 %v2182, %v2181
        %v2879 = vpack.c.bf16 %v2184, %v2183
        %v2880 = vld [vmem:[%s1162] sm:$0x1]
        %v2882 = vlaneseq
        %v2883 = vshrl.u32 %v2882, 7
        %v2884 = vsub.s32 0, %v2883
        %v2885 = vrot.slane %v2880, %v2884
        %v2888 = vsel %vm1223, %v2877, 0
        %2890 = vmatprep.subr.bf16.mxu0 0
        %2891 = vmatpush1.bf16.msra.mxu0 %v2878
        %2892 = vmatprep.subr.bf16.mxu0 0
        %2893 = vmatpush1.bf16.msra.mxu0 %v2879
        %2894 = vmatprep.subr.bf16.mxu0 0
        %2895 = vmatpush1.bf16.msra.mxu0 0
        %2896 = vmatprep.subr.bf16.mxu0 0
        %2897 = vmatpush1.bf16.msra.mxu0 0
        %2898 = vmatprep.subr.bf16.mxu0 0
        %2899 = vmatpush1.bf16.msra.mxu0 0
        %2900 = vmatprep.subr.bf16.mxu0 0
        %2901 = vmatpush1.bf16.msra.mxu0 0
        %2902 = vmatprep.subr.bf16.mxu0 0
        %2903 = vmatpush1.bf16.msra.mxu0 0
        %2904 = vmatprep.subr.bf16.mxu0 0
        %2905 = vmatpush1.bf16.msra.mxu0 0
        %2906 = vmatprep.subr.bf16.mxu0 0
        %2907 = vmatpush1.bf16.msra.mxu0 0
        %2908 = vmatprep.subr.bf16.mxu0 0
        %2909 = vmatpush1.bf16.msra.mxu0 0
        %2910 = vmatprep.subr.bf16.mxu0 0
        %2911 = vmatpush1.bf16.msra.mxu0 0
        %2912 = vmatprep.subr.bf16.mxu0 0
        %2913 = vmatpush1.bf16.msra.mxu0 0
        %2914 = vmatprep.subr.bf16.mxu0 0
        %2915 = vmatpush1.bf16.msra.mxu0 0
        %2916 = vmatprep.subr.bf16.mxu0 0
        %2917 = vmatpush1.bf16.msra.mxu0 0
        %2918 = vmatprep.subr.bf16.mxu0 0
        %2919 = vmatpush1.bf16.msra.mxu0 0
        %2920 = vmatprep.subr.bf16.mxu0 0
        %2921 = vmatpush1.bf16.msra.mxu0 0
        %2922 = vmatprep.mubr.bf16.mxu0 0
        %2923 = vmatmul.mubr.bf16.gmra.mrb[0].mxu0 %v2888
        %v2924 = vpop.f32.mrb[0].mxu0
        %v2925 = vadd.f32 %v2885, %v2924
        %v2926 = vpop.f32.mrb[0].mxu0
        %v2927 = vpop.f32.mrb[0].mxu0
        %v2928 = vadd.f32 %v2885, %v2927
        %v2929 = vpop.f32.mrb[0].mxu0
        %2930 = vdwg.mxu0
        %v2931 = vadd.f32 %v2925, %v2049
        %v2932 = vadd.f32 %v2928, %v2050
        %v2933 = vld [vmem:[%s1165] sm:$0x1]
        %v2934 = vld [vmem:[%s1168] sm:$0x1]
        %v2935 = vsel %vm1223, %v2931, 0.0
        %2936 = vadd.xlane.f32.xlu0 %v2935
        %v2937 = vpop.xlane.xlu0 %2936
        %v2938 = vsel %vm1223, %v2932, 0.0
        %2939 = vadd.xlane.f32.xlu0 %v2938
        %v2940 = vpop.xlane.xlu0 %2939
        %v2941 = vmul.f32 %v2937, %v2014
        %v2942 = vmul.f32 %v2940, %v2014
        %v2943 = vsub.f32 %v2931, %v2941
        %v2944 = vsub.f32 %v2932, %v2942
        %v2945 = vmul.f32 %v2943, %v2943
        %v2946 = vmul.f32 %v2944, %v2944
        %v2947 = vsel %vm1223, %v2945, 0.0
        %2948 = vadd.xlane.f32.xlu0 %v2947
        %v2949 = vpop.xlane.xlu0 %2948
        %v2950 = vsel %vm1223, %v2946, 0.0
        %2951 = vadd.xlane.f32.xlu0 %v2950
        %v2952 = vpop.xlane.xlu0 %2951
        %v2953 = vmul.f32 %v2949, %v2014
        %v2954 = vmul.f32 %v2952, %v2014
        %v2955 = vadd.f32 %v2953, 1e-05
        %v2956 = vadd.f32 %v2954, 1e-05
        %v2957 = vrsqrt.pop %v2955
        %v2958 = vrsqrt.pop %v2956
        %v2959 = vmul.f32 %v2943, %v2957
        %v2960 = vmul.f32 %v2944, %v2958
        %v2962 = vlaneseq
        %v2963 = vshrl.u32 %v2962, 7
        %v2964 = vsub.s32 0, %v2963
        %v2965 = vrot.slane %v2933, %v2964
        %v2967 = vmul.f32 %v2959, %v2965
        %v2968 = vmul.f32 %v2960, %v2965
        %v2970 = vlaneseq
        %v2971 = vshrl.u32 %v2970, 7
        %v2972 = vsub.s32 0, %v2971
        %v2973 = vrot.slane %v2934, %v2972
        %v2975 = vadd.f32 %v2967, %v2973
        %v2976 = vadd.f32 %v2968, %v2973
        %v2977 = vpack.c.bf16 %v2976, %v2975
        %v2978 = vld [vmem:[%s1173] sm:$0xff]
        %v2979 = vld [vmem:[%s1173 + $0x8] sm:$0xff]
        %v2980 = vld [vmem:[%s1173 + $0x10] sm:$0xff]
        %v2981 = vld [vmem:[%s1173 + $0x18] sm:$0xff]
        %v2982 = vpack.c.bf16 %v2979, %v2978
        %v2983 = vpack.c.bf16 %v2981, %v2980
        %v2984 = vld [vmem:[%s1176] sm:$0x1]
        %v2986 = vlaneseq
        %v2987 = vshrl.u32 %v2986, 7
        %v2988 = vsub.s32 0, %v2987
        %v2989 = vrot.slane %v2984, %v2988
        %v2992 = vsel %vm1223, %v2977, 0
        %2994 = vmatprep.subr.bf16.mxu0 0
        %2995 = vmatpush1.bf16.msra.mxu0 %v2982
        %2996 = vmatprep.subr.bf16.mxu0 0
        %2997 = vmatpush1.bf16.msra.mxu0 %v2983
        %2998 = vmatprep.subr.bf16.mxu0 0
        %2999 = vmatpush1.bf16.msra.mxu0 0
        %3000 = vmatprep.subr.bf16.mxu0 0
        %3001 = vmatpush1.bf16.msra.mxu0 0
        %3002 = vmatprep.subr.bf16.mxu0 0
        %3003 = vmatpush1.bf16.msra.mxu0 0
        %3004 = vmatprep.subr.bf16.mxu0 0
        %3005 = vmatpush1.bf16.msra.mxu0 0
        %3006 = vmatprep.subr.bf16.mxu0 0
        %3007 = vmatpush1.bf16.msra.mxu0 0
        %3008 = vmatprep.subr.bf16.mxu0 0
        %3009 = vmatpush1.bf16.msra.mxu0 0
        %3010 = vmatprep.subr.bf16.mxu0 0
        %3011 = vmatpush1.bf16.msra.mxu0 0
        %3012 = vmatprep.subr.bf16.mxu0 0
        %3013 = vmatpush1.bf16.msra.mxu0 0
        %3014 = vmatprep.subr.bf16.mxu0 0
        %3015 = vmatpush1.bf16.msra.mxu0 0
        %3016 = vmatprep.subr.bf16.mxu0 0
        %3017 = vmatpush1.bf16.msra.mxu0 0
        %3018 = vmatprep.subr.bf16.mxu0 0
        %3019 = vmatpush1.bf16.msra.mxu0 0
        %3020 = vmatprep.subr.bf16.mxu0 0
        %3021 = vmatpush1.bf16.msra.mxu0 0
        %3022 = vmatprep.subr.bf16.mxu0 0
        %3023 = vmatpush1.bf16.msra.mxu0 0
        %3024 = vmatprep.subr.bf16.mxu0 0
        %3025 = vmatpush1.bf16.msra.mxu0 0
        %3026 = vmatprep.mubr.bf16.mxu0 0
        %3027 = vmatmul.mubr.bf16.gmra.mrb[0].mxu0 %v2992
        %v3028 = vpop.f32.mrb[0].mxu0
        %v3029 = vadd.f32 %v2989, %v3028
        %v3030 = vpop.f32.mrb[0].mxu0
        %v3031 = vpop.f32.mrb[0].mxu0
        %v3032 = vadd.f32 %v2989, %v3031
        %v3033 = vpop.f32.mrb[0].mxu0
        %3034 = vdwg.mxu0
        %v3035 = vmax.f32 %v3029, 0.0
        %v3036 = vmax.f32 %v3032, 0.0
        %v3037 = vpack.c.bf16 %v3036, %v3035
        %v3038 = vld [vmem:[%s1181] sm:$0xff]
        %v3039 = vld [vmem:[%s1181 + $0x8] sm:$0xff]
        %v3040 = vld [vmem:[%s1181 + $0x10] sm:$0xff]
        %v3041 = vld [vmem:[%s1181 + $0x18] sm:$0xff]
        %v3042 = vld [vmem:[%s1181 + $0x20] sm:$0xff]
        %v3043 = vld [vmem:[%s1181 + $0x28] sm:$0xff]
        %v3044 = vld [vmem:[%s1181 + $0x30] sm:$0xff]
        %v3045 = vld [vmem:[%s1181 + $0x38] sm:$0xff]
        %v3046 = vpack.c.bf16 %v3039, %v3038
        %v3047 = vpack.c.bf16 %v3041, %v3040
        %v3048 = vpack.c.bf16 %v3043, %v3042
        %v3049 = vpack.c.bf16 %v3045, %v3044
        %v3050 = vld [vmem:[%s1184] sm:$0x1]
        %v3052 = vlaneseq
        %v3053 = vshrl.u32 %v3052, 7
        %v3054 = vsub.s32 0, %v3053
        %v3055 = vrot.slane %v3050, %v3054
        %vm3057 = vcmask 523264
        %v3059 = vsel %vm3057, %v3037, 0
        %3061 = vmatprep.subr.bf16.mxu0 0
        %3062 = vmatpush1.bf16.msra.mxu0 %v3046
        %3063 = vmatprep.subr.bf16.mxu0 0
        %3064 = vmatpush1.bf16.msra.mxu0 %v3047
        %3065 = vmatprep.subr.bf16.mxu0 0
        %3066 = vmatpush1.bf16.msra.mxu0 %v3048
        %3067 = vmatprep.subr.bf16.mxu0 0
        %3068 = vmatpush1.bf16.msra.mxu0 %v3049
        %3069 = vmatprep.subr.bf16.mxu0 0
        %3070 = vmatpush1.bf16.msra.mxu0 0
        %3071 = vmatprep.subr.bf16.mxu0 0
        %3072 = vmatpush1.bf16.msra.mxu0 0
        %3073 = vmatprep.subr.bf16.mxu0 0
        %3074 = vmatpush1.bf16.msra.mxu0 0
        %3075 = vmatprep.subr.bf16.mxu0 0
        %3076 = vmatpush1.bf16.msra.mxu0 0
        %3077 = vmatprep.subr.bf16.mxu0 0
        %3078 = vmatpush1.bf16.msra.mxu0 0
        %3079 = vmatprep.subr.bf16.mxu0 0
        %3080 = vmatpush1.bf16.msra.mxu0 0
        %3081 = vmatprep.subr.bf16.mxu0 0
        %3082 = vmatpush1.bf16.msra.mxu0 0
        %3083 = vmatprep.subr.bf16.mxu0 0
        %3084 = vmatpush1.bf16.msra.mxu0 0
        %3085 = vmatprep.subr.bf16.mxu0 0
        %3086 = vmatpush1.bf16.msra.mxu0 0
        %3087 = vmatprep.subr.bf16.mxu0 0
        %3088 = vmatpush1.bf16.msra.mxu0 0
        %3089 = vmatprep.subr.bf16.mxu0 0
        %3090 = vmatpush1.bf16.msra.mxu0 0
        %3091 = vmatprep.subr.bf16.mxu0 0
        %3092 = vmatpush1.bf16.msra.mxu0 0
        %3093 = vmatprep.mubr.bf16.mxu0 0
        %3094 = vmatmul.mubr.bf16.gmra.mrb[0].mxu0 %v3059
        %v3095 = vpop.f32.mrb[0].mxu0
        %v3096 = vadd.f32 %v3055, %v3095
        %v3097 = vpop.f32.mrb[0].mxu0
        %v3098 = vpop.f32.mrb[0].mxu0
        %v3099 = vadd.f32 %v3055, %v3098
        %v3100 = vpop.f32.mrb[0].mxu0
        %3101 = vdwg.mxu0
        %v3102 = vadd.f32 %v3096, %v2975
        %v3103 = vadd.f32 %v3099, %v2976
        %v3104 = vld [vmem:[%s1187] sm:$0x1]
        %v3105 = vld [vmem:[%s1190] sm:$0x1]
        %v3106 = vsel %vm1223, %v3102, 0.0
        %3107 = vadd.xlane.f32.xlu0 %v3106
        %v3108 = vpop.xlane.xlu0 %3107
        %v3109 = vsel %vm1223, %v3103, 0.0
        %3110 = vadd.xlane.f32.xlu0 %v3109
        %v3111 = vpop.xlane.xlu0 %3110
        %v3112 = vmul.f32 %v3108, %v2014
        %v3113 = vmul.f32 %v3111, %v2014
        %v3114 = vsub.f32 %v3102, %v3112
        %v3115 = vsub.f32 %v3103, %v3113
        %v3116 = vmul.f32 %v3114, %v3114
        %v3117 = vmul.f32 %v3115, %v3115
        %v3118 = vsel %vm1223, %v3116, 0.0
        %3119 = vadd.xlane.f32.xlu0 %v3118
        %v3120 = vpop.xlane.xlu0 %3119
        %v3121 = vsel %vm1223, %v3117, 0.0
        %3122 = vadd.xlane.f32.xlu0 %v3121
        %v3123 = vpop.xlane.xlu0 %3122
        %v3124 = vmul.f32 %v3120, %v2014
        %v3125 = vmul.f32 %v3123, %v2014
        %v3126 = vadd.f32 %v3124, 1e-05
        %v3127 = vadd.f32 %v3125, 1e-05
        %v3128 = vrsqrt.pop %v3126
        %v3129 = vrsqrt.pop %v3127
        %v3130 = vmul.f32 %v3114, %v3128
        %v3131 = vmul.f32 %v3115, %v3129
        %v3133 = vlaneseq
        %v3134 = vshrl.u32 %v3133, 7
        %v3135 = vsub.s32 0, %v3134
        %v3136 = vrot.slane %v3104, %v3135
        %v3138 = vmul.f32 %v3130, %v3136
        %v3139 = vmul.f32 %v3131, %v3136
        %v3141 = vlaneseq
        %v3142 = vshrl.u32 %v3141, 7
        %v3143 = vsub.s32 0, %v3142
        %v3144 = vrot.slane %v3105, %v3143
        %v3146 = vadd.f32 %v3138, %v3144
        %v3147 = vadd.f32 %v3139, %v3144
        %3148 = vst.msk [vmem:[#allocation2] sm:$0xff] %vm1223, %v3146
        %3149 = vst.msk [vmem:[#allocation2 + $0x8] sm:$0xff] %vm1223, %v3147
        %p3150 = scmp.eq.s32.totalorder %s71, 1
        // Predicated region
        $region141: #{language_transformer_forward.3} parent=135 // pred_check
          %p3151 = pneg %p3150
        $region142: #{language_transformer_forward.3} parent=135 // pred_check_branch
          %3153 = sbr.rel (%p3151) target = $region144
        $region143: #{language_transformer_forward.3} parent=135 // pred_region
          %v3154 = vld [vmem:[%s51] sm:$0x1]
          %v3155 = vld [vmem:[%s53] sm:$0x1]
          %v3156 = vsel %vm1223, %v3146, 0.0
          %3157 = vadd.xlane.f32.xlu0 %v3156
          %v3158 = vpop.xlane.xlu0 %3157
          %v3159 = vsel %vm1223, %v3147, 0.0
          %3160 = vadd.xlane.f32.xlu0 %v3159
          %v3161 = vpop.xlane.xlu0 %3160
          %v3162 = vmul.f32 %v3158, %v2014
          %v3163 = vmul.f32 %v3161, %v2014
          %v3164 = vsub.f32 %v3146, %v3162
          %v3165 = vsub.f32 %v3147, %v3163
          %v3166 = vmul.f32 %v3164, %v3164
          %v3167 = vmul.f32 %v3165, %v3165
          %v3168 = vsel %vm1223, %v3166, 0.0
          %3169 = vadd.xlane.f32.xlu0 %v3168
          %v3170 = vpop.xlane.xlu0 %3169
          %v3171 = vsel %vm1223, %v3167, 0.0
          %3172 = vadd.xlane.f32.xlu0 %v3171
          %v3173 = vpop.xlane.xlu0 %3172
          %v3174 = vmul.f32 %v3170, %v2014
          %v3175 = vmul.f32 %v3173, %v2014
          %v3176 = vadd.f32 %v3174, 1e-05
          %v3177 = vadd.f32 %v3175, 1e-05
          %v3178 = vrsqrt.pop %v3176
          %v3179 = vrsqrt.pop %v3177
          %v3180 = vmul.f32 %v3164, %v3178
          %v3181 = vmul.f32 %v3165, %v3179
          %v3183 = vlaneseq
          %v3184 = vshrl.u32 %v3183, 7
          %v3185 = vsub.s32 0, %v3184
          %v3186 = vrot.slane %v3154, %v3185
          %v3188 = vmul.f32 %v3180, %v3186
          %v3189 = vmul.f32 %v3181, %v3186
          %v3191 = vlaneseq
          %v3192 = vshrl.u32 %v3191, 7
          %v3193 = vsub.s32 0, %v3192
          %v3194 = vrot.slane %v3155, %v3193
          %v3196 = vadd.f32 %v3188, %v3194
          %v3197 = vadd.f32 %v3189, %v3194
          %v3198 = vpack.c.bf16 %v3197, %v3196
          %v3199 = vld [vmem:[%s55] sm:$0xff]
          %v3200 = vld [vmem:[%s55 + $0x8] sm:$0xff]
          %v3201 = vld [vmem:[%s55 + $0x10] sm:$0xff]
          %v3202 = vld [vmem:[%s55 + $0x18] sm:$0xff]
          %v3203 = vpack.c.bf16 %v3200, %v3199
          %v3204 = vpack.c.bf16 %v3202, %v3201
          %v3205 = vld [vmem:[%s57] sm:$0x1]
          %v3207 = vlaneseq
          %v3208 = vshrl.u32 %v3207, 7
          %v3209 = vsub.s32 0, %v3208
          %v3210 = vrot.slane %v3205, %v3209
          %v3213 = vsel %vm1223, %v3198, 0
          %3215 = vmatprep.subr.bf16.mxu0 0
          %3216 = vmatpush1.bf16.msra.mxu0 %v3203
          %3217 = vmatprep.subr.bf16.mxu0 0
          %3218 = vmatpush1.bf16.msra.mxu0 %v3204
          %3219 = vmatprep.subr.bf16.mxu0 0
          %3220 = vmatpush1.bf16.msra.mxu0 0
          %3221 = vmatprep.subr.bf16.mxu0 0
          %3222 = vmatpush1.bf16.msra.mxu0 0
          %3223 = vmatprep.subr.bf16.mxu0 0
          %3224 = vmatpush1.bf16.msra.mxu0 0
          %3225 = vmatprep.subr.bf16.mxu0 0
          %3226 = vmatpush1.bf16.msra.mxu0 0
          %3227 = vmatprep.subr.bf16.mxu0 0
          %3228 = vmatpush1.bf16.msra.mxu0 0
          %3229 = vmatprep.subr.bf16.mxu0 0
          %3230 = vmatpush1.bf16.msra.mxu0 0
          %3231 = vmatprep.subr.bf16.mxu0 0
          %3232 = vmatpush1.bf16.msra.mxu0 0
          %3233 = vmatprep.subr.bf16.mxu0 0
          %3234 = vmatpush1.bf16.msra.mxu0 0
          %3235 = vmatprep.subr.bf16.mxu0 0
          %3236 = vmatpush1.bf16.msra.mxu0 0
          %3237 = vmatprep.subr.bf16.mxu0 0
          %3238 = vmatpush1.bf16.msra.mxu0 0
          %3239 = vmatprep.subr.bf16.mxu0 0
          %3240 = vmatpush1.bf16.msra.mxu0 0
          %3241 = vmatprep.subr.bf16.mxu0 0
          %3242 = vmatpush1.bf16.msra.mxu0 0
          %3243 = vmatprep.subr.bf16.mxu0 0
          %3244 = vmatpush1.bf16.msra.mxu0 0
          %3245 = vmatprep.subr.bf16.mxu0 0
          %3246 = vmatpush1.bf16.msra.mxu0 0
          %3247 = vmatprep.mubr.bf16.mxu0 0
          %3248 = vmatmul.mubr.bf16.gmra.mrb[0].mxu0 %v3213
          %v3249 = vpop.f32.mrb[0].mxu0
          %v3250 = vadd.f32 %v3210, %v3249
          %v3251 = vpop.f32.mrb[0].mxu0
          %v3252 = vpop.f32.mrb[0].mxu0
          %v3253 = vadd.f32 %v3210, %v3252
          %v3254 = vpop.f32.mrb[0].mxu0
          %3255 = vdwg.mxu0
          %3256 = vst.msk [vmem:[#allocation3] sm:$0xff] %vm3057, %v3250
          %3257 = vst.msk [vmem:[#allocation3 + $0x8] sm:$0xff] %vm3057, %v3253
        $region144: #{language_transformer_forward.3} parent=135 // pred_fallthru
          _
        // Predicated region
        $region145: #{language_transformer_forward.3} parent=135 // pred_check
          %p3258 = pneg %p793
        $region146: #{language_transformer_forward.3} parent=135 // pred_check_branch
          %3260 = sbr.rel (%p3258) target = $region148
        $region147: #{language_transformer_forward.3} parent=135 // pred_region
          %s3262 = ssub.s32 256, 256
          %3263 = vsyncadd [#allocation4], %s3262
          %s3264 = sshll.u32 [#allocation3], 4
          %s3265 = int_to_ptr.vmem [resolvable:$true] %s3264
          %3270 = dma.vmem_to_hbm [thread:$0]  %s3265, 256, %s59, [#allocation4], 128, 128, 8
        $region148: #{language_transformer_forward.3} parent=135 // pred_fallthru
          _
        // Predicated region
        $region149: #{language_transformer_forward.3} parent=135 // pred_check
          %p3271 = pneg %p793
        $region150: #{language_transformer_forward.3} parent=135 // pred_check_branch
          %3273 = sbr.rel (%p3271) target = $region152
        $region151: #{language_transformer_forward.3} parent=135 // pred_region
          %3274 = dma.done [#allocation4], 256
        $region152: #{language_transformer_forward.3} parent=135 // pred_fallthru
          _
      $region136: #{language_transformer_forward.3} parent=5 // pred_fallthru
        _
      %p3275 = scmp.le.s32.totalorder 2, %s66
      // Predicated region
      $region153: #{language_transformer_forward.3} parent=5 // pred_check
        %p3276 = pneg %p3275
      $region154: #{language_transformer_forward.3} parent=5 // pred_check_branch
        %3278 = sbr.rel (%p3276) target = $region156
      $region155: #{language_transformer_forward.3} parent=5 // pred_region
        %s3279 = ssub.s32 %s66, 2
      $region156: #{language_transformer_forward.3} parent=5 // pred_fallthru
        _
    $region6: #{language_transformer_forward.3} parent=1 // loop_footer
      %s70 = sadd.s32 1, %s66
    $region7: #{language_transformer_forward.3} parent=1 // loop_footer_branch
      %65 = sbr.rel target = $region3
    $region8: #{language_transformer_forward.3} parent=1 // loop_exit
      _
    %3280 = vsyncpa [#allocation4], 1
    %s3281 = scalar_lea.sflag [#allocation4], 1
    %3282 = vsyncpa %s3281, 1

</llo_original>
